<compile_context>
chip_gen: v7x
topology: tpu7x:2x2x1
jax: 0.10.0
libtpu: 0.0.40
codegen_flags: <defaults>
</compile_context>

<pallas_src>
import math
import jax
import jax.numpy as jnp
from jax import lax
from jax.experimental import pallas as pl
from jax.experimental.pallas import tpu as pltpu

LAYERS = [2, 40, 40, 40, 1]
_CHUNK = 512                               # in-kernel lane sub-chunk
_MATMUL_PREC = jax.lax.Precision.HIGHEST   # pin f32 MXU precision


def _round_up(x, m):
    return ((x + m - 1) // m) * m


def _tensorcore_count():
    """Best-effort per-chip TensorCore count (2 on v7x, 1 on v5e/v6e)."""
    try:
        info = pltpu.get_tpu_info()
        for name in ("num_cores", "core_count", "tensorcore_count", "num_tensorcores"):
            v = getattr(info, name, None)
            if isinstance(v, int) and v > 0:
                return v
    except Exception:
        pass
    return 1


def _make_mlp_kernel(chunk, n_chunks):
    """Feature-major MLP kernel: x_ref (2, TM), weights (out, in), biases (out, 1)."""

    def kernel(x_ref,
               w0_ref, b0_ref, w1_ref, b1_ref, w2_ref, b2_ref, w3_ref, b3_ref,
               o_ref):
        # Tiny constant weights (~13 KB): load once per grid step, reuse per chunk.
        w0, b0 = w0_ref[...], b0_ref[...]
        w1, b1 = w1_ref[...], b1_ref[...]
        w2, b2 = w2_ref[...], b2_ref[...]
        w3, b3 = w3_ref[...], b3_ref[...]

        def body(c, carry):
            off = pl.multiple_of(c * chunk, chunk)
            xs = x_ref[:, pl.ds(off, chunk)]                            # (2, chunk)
            h = jnp.tanh(
                jnp.dot(w0, xs, preferred_element_type=jnp.float32,
                        precision=_MATMUL_PREC) + b0)                   # (40, chunk)
            h = jnp.tanh(
                jnp.dot(w1, h, preferred_element_type=jnp.float32,
                        precision=_MATMUL_PREC) + b1)                   # (40, chunk)
            h = jnp.tanh(
                jnp.dot(w2, h, preferred_element_type=jnp.float32,
                        precision=_MATMUL_PREC) + b2)                   # (40, chunk)
            out = (jnp.dot(w3, h, preferred_element_type=jnp.float32,
                           precision=_MATMUL_PREC) + b3)                # (1, chunk)
            o_ref[:, pl.ds(off, chunk)] = out.astype(o_ref.dtype)
            return carry

        if n_chunks == 1:
            body(0, 0)
        else:
            lax.fori_loop(0, n_chunks, body, 0, unroll=(n_chunks <= 4))

    return kernel


def _choose_tile(n, tile_m, n_cores):
    """Batch-tile size (multiple of 128; multiple of _CHUNK above _CHUNK)."""
    if n <= _CHUNK:
        return _round_up(n, 128)              # single grid step, single chunk
    tile_m = _round_up(tile_m, _CHUNK)
    if n_cores > 1:
        # v7x megacore: aim for >= 2 evenly-sized tiles so both TCs stay busy.
        per_core = _round_up(pl.cdiv(n, n_cores), _CHUNK)
        return min(tile_m, per_core)
    # Single-TC chips (v5e/v6e): one big tile when the batch fits — the grid is
    # a serial loop there, so splitting only doubles per-step overhead.
    return min(tile_m, _round_up(n, _CHUNK))


def dnn_forward(x, params, *, tile_m=8192, feature_major=False):
    """Forward pass of the [2, 40, 40, 40, 1] tanh MLP.

    x: (N, 2) float32, or (2, N) if feature_major=True (preferred for PINN
       callers that reuse the same collocation points — skips a transpose pass).
    params: list of (W_(out,in), b_(out,1)) in PyTorch nn.Linear layout.
    Returns (N, 1).
    """
    if feature_major:
        d_in, n = x.shape
    else:
        n, d_in = x.shape
    assert d_in == LAYERS[0]

    n_cores = _tensorcore_count()
    tm = _choose_tile(n, tile_m, n_cores)
    n_pad = _round_up(n, tm)
    chunk = min(_CHUNK, tm)
    n_chunks = tm // chunk

    # One layout pass so the batch rides the 128-wide lane axis (lane-dense
    # loads, unmasked stores).  Callers holding points feature-major skip it.
    if feature_major:
        x_t = x if n_pad == n else jnp.pad(x, ((0, 0), (0, n_pad - n)))
    else:
        x_t = jnp.zeros((d_in, n_pad), x.dtype).at[:, :n].set(x.T)

    flat_params = []
    weight_specs = []
    for w, b in params:
        flat_params += [w, b]
        # Whole-array constant blocks: DMA'd once, constant block index.
        weight_specs.append(pl.BlockSpec(w.shape, lambda i: (0, 0)))
        weight_specs.append(pl.BlockSpec(b.shape, lambda i: (0, 0)))

    n_param_bytes = sum(int(p.size) * p.dtype.itemsize for p in flat_params)
    cost = pl.CostEstimate(
        flops=2 * n_pad * sum(LAYERS[i] * LAYERS[i + 1]
                              for i in range(len(LAYERS) - 1)),
        transcendentals=n_pad * sum(LAYERS[1:-1]),
        bytes_accessed=4 * n_pad * (LAYERS[0] + LAYERS[-1]) + n_param_bytes,
    )

    out_t = pl.pallas_call(
        _make_mlp_kernel(chunk, n_chunks),
        out_shape=jax.ShapeDtypeStruct((LAYERS[-1], n_pad), x.dtype),
        grid_spec=pl.GridSpec(
            grid=(n_pad // tm,),
            in_specs=[pl.BlockSpec((d_in, tm), lambda i: (0, i))] + weight_specs,
            out_specs=pl.BlockSpec((LAYERS[-1], tm), lambda i: (0, i)),
        ),
        compiler_params=pltpu.CompilerParams(
            dimension_semantics=("parallel",)),
        cost_estimate=cost,
    )(x_t, *flat_params)

    # (1, n_pad) -> (N, 1): size-1 transpose is a pure reshape (no data moved).
    return out_t.reshape(n_pad, 1)[:n]


def init_params(key, layers=LAYERS):
    """PyTorch-Linear-style init: U(-1/sqrt(fan_in), +1/sqrt(fan_in)).
    Weights stored as (out, in) (PyTorch layout), biases as (out, 1)."""
    params = []
    for i in range(len(layers) - 1):
        fan_in, fan_out = layers[i], layers[i + 1]
        key, kw, kb = jax.random.split(key, 3)
        bound = 1.0 / math.sqrt(fan_in)
        w = jax.random.uniform(kw, (fan_out, fan_in), jnp.float32, -bound, bound)
        b = jax.random.uniform(kb, (fan_out, 1), jnp.float32, -bound, bound)
        params.append((w, b))
    return params


def reference_forward(x, params):
    h = x
    for i, (w, b) in enumerate(params):
        h = h @ w.T + b.T
        if i < len(params) - 1:
            h = jnp.tanh(h)
    return h


if __name__ == "__main__":
    key = jax.random.PRNGKey(0)
    key, kx = jax.random.split(key)

    # Small batch of (x, t) collocation points, like the Burgers PINN input.
    # Deliberately not a multiple of 128/512 to exercise padding + the
    # in-kernel sub-chunk loop.
    N = 1000
    x = jax.random.uniform(kx, (N, 2), jnp.float32, -1.0, 1.0)

    params = init_params(jax.random.PRNGKey(0))

    out = dnn_forward(x, params)
    out = jax.block_until_ready(out)

    ref = reference_forward(x, params)
    assert out.shape == (N, 1), out.shape
    assert jnp.allclose(out, ref, atol=1e-5, rtol=1e-5), "mismatch vs reference"

    print("KERNEL_OK")
</pallas_src>

<mosaic_0001>
module attributes {stable_mosaic.version = 11 : i64} {
  func.func @kernel(%arg0: i32, %arg1: memref<2x1024xf32, #tpu.memory_space<vmem>>, %arg2: memref<40x2xf32, #tpu.memory_space<vmem>>, %arg3: memref<40x1xf32, #tpu.memory_space<vmem>>, %arg4: memref<40x40xf32, #tpu.memory_space<vmem>>, %arg5: memref<40x1xf32, #tpu.memory_space<vmem>>, %arg6: memref<40x40xf32, #tpu.memory_space<vmem>>, %arg7: memref<40x1xf32, #tpu.memory_space<vmem>>, %arg8: memref<1x40xf32, #tpu.memory_space<vmem>>, %arg9: memref<1x1xf32, #tpu.memory_space<vmem>>, %arg10: memref<1x1024xf32, #tpu.memory_space<vmem>>) attributes {dimension_semantics = [#tpu.dimension_semantics<parallel>], iteration_bounds = array<i64: 1>, scalar_prefetch = 0 : i64, scratch_operands = 0 : i64, tpu.core_type = #tpu.core_type<tc>, window_params = [{transform_indices = @transform_0, window_bounds = array<i64: 2, 1024>}, {pipeline_mode = #tpu.pipeline_mode<synchronous>, transform_indices = @transform_1, window_bounds = array<i64: 40, 2>}, {pipeline_mode = #tpu.pipeline_mode<synchronous>, transform_indices = @transform_2, window_bounds = array<i64: 40, 1>}, {pipeline_mode = #tpu.pipeline_mode<synchronous>, transform_indices = @transform_3, window_bounds = array<i64: 40, 40>}, {pipeline_mode = #tpu.pipeline_mode<synchronous>, transform_indices = @transform_4, window_bounds = array<i64: 40, 1>}, {pipeline_mode = #tpu.pipeline_mode<synchronous>, transform_indices = @transform_5, window_bounds = array<i64: 40, 40>}, {pipeline_mode = #tpu.pipeline_mode<synchronous>, transform_indices = @transform_6, window_bounds = array<i64: 40, 1>}, {pipeline_mode = #tpu.pipeline_mode<synchronous>, transform_indices = @transform_7, window_bounds = array<i64: 1, 40>}, {pipeline_mode = #tpu.pipeline_mode<synchronous>, transform_indices = @transform_8, window_bounds = array<i64: 1, 1>}, {transform_indices = @transform_9, window_bounds = array<i64: 1, 1024>}]} {
    %c0 = arith.constant 0 : index
    %c0_0 = arith.constant 0 : index
    %0 = vector.load %arg2[%c0, %c0_0] : memref<40x2xf32, #tpu.memory_space<vmem>>, vector<40x2xf32>
    %c0_1 = arith.constant 0 : index
    %c0_2 = arith.constant 0 : index
    %1 = vector.load %arg3[%c0_1, %c0_2] : memref<40x1xf32, #tpu.memory_space<vmem>>, vector<40x1xf32>
    %c0_3 = arith.constant 0 : index
    %c0_4 = arith.constant 0 : index
    %2 = vector.load %arg4[%c0_3, %c0_4] : memref<40x40xf32, #tpu.memory_space<vmem>>, vector<40x40xf32>
    %c0_5 = arith.constant 0 : index
    %c0_6 = arith.constant 0 : index
    %3 = vector.load %arg5[%c0_5, %c0_6] : memref<40x1xf32, #tpu.memory_space<vmem>>, vector<40x1xf32>
    %c0_7 = arith.constant 0 : index
    %c0_8 = arith.constant 0 : index
    %4 = vector.load %arg6[%c0_7, %c0_8] : memref<40x40xf32, #tpu.memory_space<vmem>>, vector<40x40xf32>
    %c0_9 = arith.constant 0 : index
    %c0_10 = arith.constant 0 : index
    %5 = vector.load %arg7[%c0_9, %c0_10] : memref<40x1xf32, #tpu.memory_space<vmem>>, vector<40x1xf32>
    %c0_11 = arith.constant 0 : index
    %c0_12 = arith.constant 0 : index
    %6 = vector.load %arg8[%c0_11, %c0_12] : memref<1x40xf32, #tpu.memory_space<vmem>>, vector<1x40xf32>
    %c0_13 = arith.constant 0 : index
    %c0_14 = arith.constant 0 : index
    %7 = vector.load %arg9[%c0_13, %c0_14] : memref<1x1xf32, #tpu.memory_space<vmem>>, vector<1x1xf32>
    %c0_i32 = arith.constant 0 : i32
    %c512_i32 = arith.constant 512 : i32
    %8 = arith.muli %c0_i32, %c512_i32 : i32
    %9 = tpu.assume_multiple %8, 512 : i32
    %c0_15 = arith.constant 0 : index
    %10 = arith.index_cast %9 : i32 to index
    %11 = vector.load %arg1[%c0_15, %10] : memref<2x1024xf32, #tpu.memory_space<vmem>>, vector<2x512xf32>
    %cst = arith.constant dense<0.000000e+00> : vector<40x512xf32>
    %12 = tpu.matmul %0, %11, %cst {dimension_numbers = #tpu.dot_dimension_numbers<[1], [0], [0], [1], [0, 0, 1, 1], [], []>, precision = #tpu.contract_precision<fp32>} : vector<40x2xf32>, vector<2x512xf32>, vector<40x512xf32> -> vector<40x512xf32>
    %13 = vector.broadcast %1 : vector<40x1xf32> to vector<40x512xf32>
    %14 = arith.addf %12, %13 : vector<40x512xf32>
    %15 = math.tanh %14 : vector<40x512xf32>
    %cst_16 = arith.constant dense<0.000000e+00> : vector<40x512xf32>
    %16 = tpu.matmul %2, %15, %cst_16 {dimension_numbers = #tpu.dot_dimension_numbers<[1], [0], [0], [1], [0, 0, 1, 1], [], []>, precision = #tpu.contract_precision<fp32>} : vector<40x40xf32>, vector<40x512xf32>, vector<40x512xf32> -> vector<40x512xf32>
    %17 = vector.broadcast %3 : vector<40x1xf32> to vector<40x512xf32>
    %18 = arith.addf %16, %17 : vector<40x512xf32>
    %19 = math.tanh %18 : vector<40x512xf32>
    %cst_17 = arith.constant dense<0.000000e+00> : vector<40x512xf32>
    %20 = tpu.matmul %4, %19, %cst_17 {dimension_numbers = #tpu.dot_dimension_numbers<[1], [0], [0], [1], [0, 0, 1, 1], [], []>, precision = #tpu.contract_precision<fp32>} : vector<40x40xf32>, vector<40x512xf32>, vector<40x512xf32> -> vector<40x512xf32>
    %21 = vector.broadcast %5 : vector<40x1xf32> to vector<40x512xf32>
    %22 = arith.addf %20, %21 : vector<40x512xf32>
    %23 = math.tanh %22 : vector<40x512xf32>
    %cst_18 = arith.constant dense<0.000000e+00> : vector<1x512xf32>
    %24 = tpu.matmul %6, %23, %cst_18 {dimension_numbers = #tpu.dot_dimension_numbers<[1], [0], [0], [1], [0, 0, 1, 1], [], []>, precision = #tpu.contract_precision<fp32>} : vector<1x40xf32>, vector<40x512xf32>, vector<1x512xf32> -> vector<1x512xf32>
    %25 = vector.broadcast %7 : vector<1x1xf32> to vector<1x512xf32>
    %26 = arith.addf %24, %25 : vector<1x512xf32>
    %c0_19 = arith.constant 0 : index
    %27 = arith.index_cast %9 : i32 to index
    %28 = vector.load %arg10[%c0_19, %27] : memref<1x1024xf32, #tpu.memory_space<vmem>>, vector<1x512xf32>
    tpu.vector_store %arg10[%c0_19, %27], %26 {strides = array<i32>} : memref<1x1024xf32, #tpu.memory_space<vmem>>, vector<1x512xf32>,
    %c1_i32 = arith.constant 1 : i32
    %c512_i32_20 = arith.constant 512 : i32
    %29 = arith.muli %c1_i32, %c512_i32_20 : i32
    %30 = tpu.assume_multiple %29, 512 : i32
    %c0_21 = arith.constant 0 : index
    %31 = arith.index_cast %30 : i32 to index
    %32 = vector.load %arg1[%c0_21, %31] : memref<2x1024xf32, #tpu.memory_space<vmem>>, vector<2x512xf32>
    %cst_22 = arith.constant dense<0.000000e+00> : vector<40x512xf32>
    %33 = tpu.matmul %0, %32, %cst_22 {dimension_numbers = #tpu.dot_dimension_numbers<[1], [0], [0], [1], [0, 0, 1, 1], [], []>, precision = #tpu.contract_precision<fp32>} : vector<40x2xf32>, vector<2x512xf32>, vector<40x512xf32> -> vector<40x512xf32>
    %34 = vector.broadcast %1 : vector<40x1xf32> to vector<40x512xf32>
    %35 = arith.addf %33, %34 : vector<40x512xf32>
    %36 = math.tanh %35 : vector<40x512xf32>
    %cst_23 = arith.constant dense<0.000000e+00> : vector<40x512xf32>
    %37 = tpu.matmul %2, %36, %cst_23 {dimension_numbers = #tpu.dot_dimension_numbers<[1], [0], [0], [1], [0, 0, 1, 1], [], []>, precision = #tpu.contract_precision<fp32>} : vector<40x40xf32>, vector<40x512xf32>, vector<40x512xf32> -> vector<40x512xf32>
    %38 = vector.broadcast %3 : vector<40x1xf32> to vector<40x512xf32>
    %39 = arith.addf %37, %38 : vector<40x512xf32>
    %40 = math.tanh %39 : vector<40x512xf32>
    %cst_24 = arith.constant dense<0.000000e+00> : vector<40x512xf32>
    %41 = tpu.matmul %4, %40, %cst_24 {dimension_numbers = #tpu.dot_dimension_numbers<[1], [0], [0], [1], [0, 0, 1, 1], [], []>, precision = #tpu.contract_precision<fp32>} : vector<40x40xf32>, vector<40x512xf32>, vector<40x512xf32> -> vector<40x512xf32>
    %42 = vector.broadcast %5 : vector<40x1xf32> to vector<40x512xf32>
    %43 = arith.addf %41, %42 : vector<40x512xf32>
    %44 = math.tanh %43 : vector<40x512xf32>
    %cst_25 = arith.constant dense<0.000000e+00> : vector<1x512xf32>
    %45 = tpu.matmul %6, %44, %cst_25 {dimension_numbers = #tpu.dot_dimension_numbers<[1], [0], [0], [1], [0, 0, 1, 1], [], []>, precision = #tpu.contract_precision<fp32>} : vector<1x40xf32>, vector<40x512xf32>, vector<1x512xf32> -> vector<1x512xf32>
    %46 = vector.broadcast %7 : vector<1x1xf32> to vector<1x512xf32>
    %47 = arith.addf %45, %46 : vector<1x512xf32>
    %c0_26 = arith.constant 0 : index
    %48 = arith.index_cast %30 : i32 to index
    %49 = vector.load %arg10[%c0_26, %48] : memref<1x1024xf32, #tpu.memory_space<vmem>>, vector<1x512xf32>
    tpu.vector_store %arg10[%c0_26, %48], %47 {strides = array<i32>} : memref<1x1024xf32, #tpu.memory_space<vmem>>, vector<1x512xf32>,
    %c2_i32 = arith.constant 2 : i32
    return
  }
  func.func @transform_0(%arg0: i32) -> (i32, i32) {
    %c0_i32 = arith.constant 0 : i32
    %c0_i32_0 = arith.constant 0 : i32
    return %c0_i32, %arg0 : i32, i32
  }
  func.func @transform_1(%arg0: i32) -> (i32, i32) {
    %c0_i32 = arith.constant 0 : i32
    %c0_i32_0 = arith.constant 0 : i32
    %c0_i32_1 = arith.constant 0 : i32
    return %c0_i32, %c0_i32_0 : i32, i32
  }
  func.func @transform_2(%arg0: i32) -> (i32, i32) {
    %c0_i32 = arith.constant 0 : i32
    %c0_i32_0 = arith.constant 0 : i32
    %c0_i32_1 = arith.constant 0 : i32
    return %c0_i32, %c0_i32_0 : i32, i32
  }
  func.func @transform_3(%arg0: i32) -> (i32, i32) {
    %c0_i32 = arith.constant 0 : i32
    %c0_i32_0 = arith.constant 0 : i32
    %c0_i32_1 = arith.constant 0 : i32
    return %c0_i32, %c0_i32_0 : i32, i32
  }
  func.func @transform_4(%arg0: i32) -> (i32, i32) {
    %c0_i32 = arith.constant 0 : i32
    %c0_i32_0 = arith.constant 0 : i32
    %c0_i32_1 = arith.constant 0 : i32
    return %c0_i32, %c0_i32_0 : i32, i32
  }
  func.func @transform_5(%arg0: i32) -> (i32, i32) {
    %c0_i32 = arith.constant 0 : i32
    %c0_i32_0 = arith.constant 0 : i32
    %c0_i32_1 = arith.constant 0 : i32
    return %c0_i32, %c0_i32_0 : i32, i32
  }
  func.func @transform_6(%arg0: i32) -> (i32, i32) {
    %c0_i32 = arith.constant 0 : i32
    %c0_i32_0 = arith.constant 0 : i32
    %c0_i32_1 = arith.constant 0 : i32
    return %c0_i32, %c0_i32_0 : i32, i32
  }
  func.func @transform_7(%arg0: i32) -> (i32, i32) {
    %c0_i32 = arith.constant 0 : i32
    %c0_i32_0 = arith.constant 0 : i32
    %c0_i32_1 = arith.constant 0 : i32
    return %c0_i32, %c0_i32_0 : i32, i32
  }
  func.func @transform_8(%arg0: i32) -> (i32, i32) {
    %c0_i32 = arith.constant 0 : i32
    %c0_i32_0 = arith.constant 0 : i32
    %c0_i32_1 = arith.constant 0 : i32
    return %c0_i32, %c0_i32_0 : i32, i32
  }
  func.func @transform_9(%arg0: i32) -> (i32, i32) {
    %c0_i32 = arith.constant 0 : i32
    %c0_i32_0 = arith.constant 0 : i32
    return %c0_i32, %arg0 : i32, i32
  }
}

</mosaic_0001>

<llo_original>
// kernel: tpu_custom_call.1
$region0: #{tpu_custom_call.1}
  #allocation0 [shape = 'u32[]', space=smem, size = 0x4, offset = 0x4, fixed_abs, tag = 'smem constant byte address 0x4 - core index']
  #allocation1 [shape = 'u32[144,128]{1,0:T(1,128)}', space=vmem, size = 0x12000, scoped, tag = 'internal scratch']
  #allocation2 [shape = 'f32[1,1]{1,0:T(1,128)S(1)}', space=vmem, size = 0x200, scoped, tag = 'scoped memory for tpu_custom_call.1']
  %s0 = inlined_call_operand.vmem [shape: f32[2,1024], index: 0, kind: input, shape index: {}]
  %s1 = inlined_call_operand.vmem [shape: f32[40,2], index: 1, kind: input, shape index: {}]
  %s2 = inlined_call_operand.vmem [shape: f32[40,1], index: 2, kind: input, shape index: {}]
  %s3 = inlined_call_operand.vmem [shape: f32[40,40], index: 3, kind: input, shape index: {}]
  %s4 = inlined_call_operand.vmem [shape: f32[40,1], index: 4, kind: input, shape index: {}]
  %s5 = inlined_call_operand.vmem [shape: f32[40,40], index: 5, kind: input, shape index: {}]
  %s6 = inlined_call_operand.vmem [shape: f32[40,1], index: 6, kind: input, shape index: {}]
  %s7 = inlined_call_operand.vmem [shape: f32[1,40], index: 7, kind: input, shape index: {}]
  %s8 = inlined_call_operand.<no memory space> [shape: f32[1,1], index: 8, kind: input, shape index: {}]
  %s9 = inlined_call_operand.hbm [shape: f32[1,1024], index: 9, kind: output, shape index: {}]
  %s10 = sld [smem:[#allocation0]]
  $region46: #{tpu_custom_call.1} parent=0
    _
  %s12 = ssub.s32 1, %s10
  %s13 = scalar_select 0, %s12, %s10
  %v14 = vstv %s8
  %15 = vst [vmem:[#allocation2] sm:$0x1] %v14
  $region1: #{tpu_custom_call.1} parent=0
    #allocation3 [shape = 'u8[4096]{0}', space=vmem, size = 0x1000, scoped, tag = 'output window, operand 0, single buffered']
    #allocation4 [shape = 's32[1]{0}', space=sflag, size = 0x4, scoped, tag = 'scoped memory for tpu_custom_call.1']
    %16 = vsyncpa [#allocation4], 0
    // Predicated region
    $region2: #{tpu_custom_call.1} parent=1 // pred_check
      _
    $region3: #{tpu_custom_call.1} parent=1 // pred_check_branch
      %18 = sbr.rel (0) target = $region5
    $region4: #{tpu_custom_call.1} parent=1 // pred_region
      _
    $region5: #{tpu_custom_call.1} parent=1 // pred_fallthru
      _
    // Predicated region
    $region6: #{tpu_custom_call.1} parent=1 // pred_check
      _
    $region7: #{tpu_custom_call.1} parent=1 // pred_check_branch
      %20 = sbr.rel (0) target = $region9
    $region8: #{tpu_custom_call.1} parent=1 // pred_region
      _
    $region9: #{tpu_custom_call.1} parent=1 // pred_fallthru
      _
    // Predicated region
    $region10: #{tpu_custom_call.1} parent=1 // pred_check
      _
    $region11: #{tpu_custom_call.1} parent=1 // pred_check_branch
      %22 = sbr.rel (0) target = $region13
    $region12: #{tpu_custom_call.1} parent=1 // pred_region
      _
    $region13: #{tpu_custom_call.1} parent=1 // pred_fallthru
      _
    // Predicated region
    $region14: #{tpu_custom_call.1} parent=1 // pred_check
      _
    $region15: #{tpu_custom_call.1} parent=1 // pred_check_branch
      %24 = sbr.rel (0) target = $region17
    $region16: #{tpu_custom_call.1} parent=1 // pred_region
      _
    $region17: #{tpu_custom_call.1} parent=1 // pred_fallthru
      _
    // Predicated region
    $region18: #{tpu_custom_call.1} parent=1 // pred_check
      _
    $region19: #{tpu_custom_call.1} parent=1 // pred_check_branch
      %26 = sbr.rel (0) target = $region21
    $region20: #{tpu_custom_call.1} parent=1 // pred_region
      _
    $region21: #{tpu_custom_call.1} parent=1 // pred_fallthru
      _
    // Predicated region
    $region22: #{tpu_custom_call.1} parent=1 // pred_check
      _
    $region23: #{tpu_custom_call.1} parent=1 // pred_check_branch
      %28 = sbr.rel (0) target = $region25
    $region24: #{tpu_custom_call.1} parent=1 // pred_region
      _
    $region25: #{tpu_custom_call.1} parent=1 // pred_fallthru
      _
    // Predicated region
    $region26: #{tpu_custom_call.1} parent=1 // pred_check
      _
    $region27: #{tpu_custom_call.1} parent=1 // pred_check_branch
      %30 = sbr.rel (0) target = $region29
    $region28: #{tpu_custom_call.1} parent=1 // pred_region
      _
    $region29: #{tpu_custom_call.1} parent=1 // pred_fallthru
      _
    // Predicated region
    $region30: #{tpu_custom_call.1} parent=1 // pred_check
      _
    $region31: #{tpu_custom_call.1} parent=1 // pred_check_branch
      %32 = sbr.rel (0) target = $region33
    $region32: #{tpu_custom_call.1} parent=1 // pred_region
      _
    $region33: #{tpu_custom_call.1} parent=1 // pred_fallthru
      _
    // Predicated region
    $region34: #{tpu_custom_call.1} parent=1 // pred_check
      _
    $region35: #{tpu_custom_call.1} parent=1 // pred_check_branch
      %34 = sbr.rel (0) target = $region37
    $region36: #{tpu_custom_call.1} parent=1 // pred_region
      _
    $region37: #{tpu_custom_call.1} parent=1 // pred_fallthru
      _
    %v35 = vld [vmem:[%s1] sm:$0xff]
    %v36 = vld [vmem:[%s1 + $0x8] sm:$0xff]
    %v37 = vld [vmem:[%s1 + $0x10] sm:$0xff]
    %v38 = vld [vmem:[%s1 + $0x18] sm:$0xff]
    %v39 = vld [vmem:[%s1 + $0x20] sm:$0xff]
    %v40 = vld [vmem:[%s2] sm:$0xff]
    %v41 = vld [vmem:[%s2 + $0x8] sm:$0xff]
    %v42 = vld [vmem:[%s2 + $0x10] sm:$0xff]
    %v43 = vld [vmem:[%s2 + $0x18] sm:$0xff]
    %v44 = vld [vmem:[%s2 + $0x20] sm:$0xff]
    %v45 = vld [vmem:[%s3] sm:$0xff]
    %v46 = vld [vmem:[%s3 + $0x8] sm:$0xff]
    %v47 = vld [vmem:[%s3 + $0x10] sm:$0xff]
    %v48 = vld [vmem:[%s3 + $0x18] sm:$0xff]
    %v49 = vld [vmem:[%s3 + $0x20] sm:$0xff]
    %v50 = vld [vmem:[%s4] sm:$0xff]
    %v51 = vld [vmem:[%s4 + $0x8] sm:$0xff]
    %v52 = vld [vmem:[%s4 + $0x10] sm:$0xff]
    %v53 = vld [vmem:[%s4 + $0x18] sm:$0xff]
    %v54 = vld [vmem:[%s4 + $0x20] sm:$0xff]
    %v55 = vld [vmem:[%s5] sm:$0xff]
    %v56 = vld [vmem:[%s5 + $0x8] sm:$0xff]
    %v57 = vld [vmem:[%s5 + $0x10] sm:$0xff]
    %v58 = vld [vmem:[%s5 + $0x18] sm:$0xff]
    %v59 = vld [vmem:[%s5 + $0x20] sm:$0xff]
    %v60 = vld [vmem:[%s6] sm:$0xff]
    %v61 = vld [vmem:[%s6 + $0x8] sm:$0xff]
    %v62 = vld [vmem:[%s6 + $0x10] sm:$0xff]
    %v63 = vld [vmem:[%s6 + $0x18] sm:$0xff]
    %v64 = vld [vmem:[%s6 + $0x20] sm:$0xff]
    %v65 = vld [vmem:[%s7] sm:$0x1]
    %v66 = vld [vmem:[#allocation2] sm:$0x1]
    %v67 = vld [vmem:[%s0] sm:$0xff]
    %69 = vset.pattern.permute.xlu0 0
    %70 = vperm.xlu0 %69, %v40
    %v71 = vpop.permute.xlu0 %70
    %74 = vset.pattern.permute.xlu0 0
    %75 = vperm.xlu0 %74, %v41
    %v76 = vpop.permute.xlu0 %75
    %79 = vset.pattern.permute.xlu0 0
    %80 = vperm.xlu0 %79, %v42
    %v81 = vpop.permute.xlu0 %80
    %84 = vset.pattern.permute.xlu0 0
    %85 = vperm.xlu0 %84, %v43
    %v86 = vpop.permute.xlu0 %85
    %89 = vset.pattern.permute.xlu0 0
    %90 = vperm.xlu0 %89, %v44
    %v91 = vpop.permute.xlu0 %90
    %v94 = vcombine.high %v67, %v67
    %v96 = vunpack.c.l.s4 1983009808
    %v97 = vunpack.c.0.s8 %v96
    %v98 = vlaneseq
    %v99 = vshrl.u32 %v98, 7
    %v100 = vsub.s32 %v97, %v99
    %v101 = vrot.slane %v67, %v100
    %v103 = vunpack.c.l.s4 1983009808
    %v104 = vunpack.c.0.s8 %v103
    %v105 = vlaneseq
    %v106 = vshrl.u32 %v105, 7
    %v107 = vsub.s32 %v104, %v106
    %v108 = vrot.slane %v94, %v107
    %v109 = vcombine.high %v101, %v101
    %v110 = vcombine.high %v108, %v108
    %vm111 = vcmask 15360
    %v113 = vsel %vm111, %v35, 0
    %v116 = vsel %vm111, %v36, 0
    %v119 = vsel %vm111, %v37, 0
    %v122 = vsel %vm111, %v38, 0
    %v125 = vsel %vm111, %v39, 0
    %vm127 = vcmask 1041408
    %v128 = vsel %vm127, %v101, 0
    %v130 = vsel %vm127, %v109, 0
    %v132 = vsel %vm127, %v108, 0
    %v134 = vsel %vm127, %v110, 0
    %v136 = vand.u32 %v130, 4294901760
    %137 = vmatprep.subr.mxu0 %v136
    %v138 = vand.u32 %v128, 4294901760
    %139 = vmatpush1.msra.mxu0 %v138
    %140 = vmatprep.subr.mxu0 0.0
    %141 = vmatpush1.msra.mxu0 0.0
    %142 = vmatprep.subr.mxu0 0.0
    %143 = vmatpush1.msra.mxu0 0.0
    %144 = vmatprep.subr.mxu0 0.0
    %145 = vmatpush1.msra.mxu0 0.0
    %146 = vmatprep.subr.mxu0 0.0
    %147 = vmatpush1.msra.mxu0 0.0
    %148 = vmatprep.subr.mxu0 0.0
    %149 = vmatpush1.msra.mxu0 0.0
    %150 = vmatprep.subr.mxu0 0.0
    %151 = vmatpush1.msra.mxu0 0.0
    %152 = vmatprep.subr.mxu0 0.0
    %153 = vmatpush1.msra.mxu0 0.0
    %154 = vmatprep.subr.mxu0 0.0
    %155 = vmatpush1.msra.mxu0 0.0
    %156 = vmatprep.subr.mxu0 0.0
    %157 = vmatpush1.msra.mxu0 0.0
    %158 = vmatprep.subr.mxu0 0.0
    %159 = vmatpush1.msra.mxu0 0.0
    %160 = vmatprep.subr.mxu0 0.0
    %161 = vmatpush1.msra.mxu0 0.0
    %162 = vmatprep.subr.mxu0 0.0
    %163 = vmatpush1.msra.mxu0 0.0
    %164 = vmatprep.subr.mxu0 0.0
    %165 = vmatpush1.msra.mxu0 0.0
    %166 = vmatprep.subr.mxu0 0.0
    %167 = vmatpush1.msra.mxu0 0.0
    %168 = vmatprep.subr.mxu0 0.0
    %169 = vmatpush1.msra.mxu0 0.0
    %170 = vmatprep.subr.mxu0 0.0
    %171 = vmatpush1.msra.mxu0 0.0
    %172 = vmatprep.subr.mxu0 0.0
    %173 = vmatpush1.msra.mxu0 0.0
    %174 = vmatprep.subr.mxu0 0.0
    %175 = vmatpush1.msra.mxu0 0.0
    %176 = vmatprep.subr.mxu0 0.0
    %177 = vmatpush1.msra.mxu0 0.0
    %178 = vmatprep.subr.mxu0 0.0
    %179 = vmatpush1.msra.mxu0 0.0
    %180 = vmatprep.subr.mxu0 0.0
    %181 = vmatpush1.msra.mxu0 0.0
    %182 = vmatprep.subr.mxu0 0.0
    %183 = vmatpush1.msra.mxu0 0.0
    %184 = vmatprep.subr.mxu0 0.0
    %185 = vmatpush1.msra.mxu0 0.0
    %186 = vmatprep.subr.mxu0 0.0
    %187 = vmatpush1.msra.mxu0 0.0
    %188 = vmatprep.subr.mxu0 0.0
    %189 = vmatpush1.msra.mxu0 0.0
    %190 = vmatprep.subr.mxu0 0.0
    %191 = vmatpush1.msra.mxu0 0.0
    %192 = vmatprep.subr.mxu0 0.0
    %193 = vmatpush1.msra.mxu0 0.0
    %194 = vmatprep.subr.mxu0 0.0
    %195 = vmatpush1.msra.mxu0 0.0
    %196 = vmatprep.subr.mxu0 0.0
    %197 = vmatpush1.msra.mxu0 0.0
    %198 = vmatprep.subr.mxu0 0.0
    %199 = vmatpush1.msra.mxu0 0.0
    %200 = vmatprep.subr.mxu0 0.0
    %201 = vmatpush1.msra.mxu0 0.0
    %202 = vmatprep.mubr.f32.mxu0 0.0
    %v203 = vand.u32 %v113, 4294901760
    %v204 = vsub.f32 %v113, %v203
    %v205 = vand.u32 %v204, 4294901760
    %v206 = vsub.f32 %v204, %v205
    %v207 = vand.u32 %v206, 4294901760
    %208 = vmatmul.mubr.f32.gmra.mrb[0].mxu0 %v207
    %v209 = vpop.f32.mrb[0].mxu0
    %v210 = vadd.f32 %v71, %v209
    %v211 = vpop.f32.mrb[0].mxu0
    %v212 = vadd.f32 %v71, %v211
    %213 = vmatprep.mubr.f32.mxu0 0.0
    %v214 = vand.u32 %v116, 4294901760
    %v215 = vsub.f32 %v116, %v214
    %v216 = vand.u32 %v215, 4294901760
    %v217 = vsub.f32 %v215, %v216
    %v218 = vand.u32 %v217, 4294901760
    %219 = vmatmul.mubr.f32.gmra.mrb[0].mxu0 %v218
    %v220 = vpop.f32.mrb[0].mxu0
    %v221 = vadd.f32 %v76, %v220
    %v222 = vpop.f32.mrb[0].mxu0
    %v223 = vadd.f32 %v76, %v222
    %224 = vmatprep.mubr.f32.mxu0 0.0
    %v225 = vand.u32 %v119, 4294901760
    %v226 = vsub.f32 %v119, %v225
    %v227 = vand.u32 %v226, 4294901760
    %v228 = vsub.f32 %v226, %v227
    %v229 = vand.u32 %v228, 4294901760
    %230 = vmatmul.mubr.f32.gmra.mrb[0].mxu0 %v229
    %v231 = vpop.f32.mrb[0].mxu0
    %v232 = vadd.f32 %v81, %v231
    %v233 = vpop.f32.mrb[0].mxu0
    %v234 = vadd.f32 %v81, %v233
    %235 = vmatprep.mubr.f32.mxu0 0.0
    %v236 = vand.u32 %v122, 4294901760
    %v237 = vsub.f32 %v122, %v236
    %v238 = vand.u32 %v237, 4294901760
    %v239 = vsub.f32 %v237, %v238
    %v240 = vand.u32 %v239, 4294901760
    %241 = vmatmul.mubr.f32.gmra.mrb[0].mxu0 %v240
    %v242 = vpop.f32.mrb[0].mxu0
    %v243 = vadd.f32 %v86, %v242
    %v244 = vpop.f32.mrb[0].mxu0
    %v245 = vadd.f32 %v86, %v244
    %246 = vmatprep.mubr.f32.mxu0 0.0
    %v247 = vand.u32 %v125, 4294901760
    %v248 = vsub.f32 %v125, %v247
    %v249 = vand.u32 %v248, 4294901760
    %v250 = vsub.f32 %v248, %v249
    %v251 = vand.u32 %v250, 4294901760
    %252 = vmatmul.mubr.f32.gmra.mrb[0].mxu0 %v251
    %v253 = vpop.f32.mrb[0].mxu0
    %v254 = vadd.f32 %v91, %v253
    %v255 = vpop.f32.mrb[0].mxu0
    %v256 = vadd.f32 %v91, %v255
    %257 = vdwg.mxu0
    %v258 = vand.u32 %v130, 4294901760
    %v259 = vsub.f32 %v130, %v258
    %v260 = vand.u32 %v259, 4294901760
    %v261 = vsub.f32 %v259, %v260
    %v262 = vand.u32 %v261, 4294901760
    %263 = vmatprep.subr.mxu0 %v262
    %v264 = vand.u32 %v128, 4294901760
    %v265 = vsub.f32 %v128, %v264
    %v266 = vand.u32 %v265, 4294901760
    %v267 = vsub.f32 %v265, %v266
    %v268 = vand.u32 %v267, 4294901760
    %269 = vmatpush1.msra.mxu0 %v268
    %270 = vmatprep.subr.mxu0 0.0
    %271 = vmatpush1.msra.mxu0 0.0
    %272 = vmatprep.subr.mxu0 0.0
    %273 = vmatpush1.msra.mxu0 0.0
    %274 = vmatprep.subr.mxu0 0.0
    %275 = vmatpush1.msra.mxu0 0.0
    %276 = vmatprep.subr.mxu0 0.0
    %277 = vmatpush1.msra.mxu0 0.0
    %278 = vmatprep.subr.mxu0 0.0
    %279 = vmatpush1.msra.mxu0 0.0
    %280 = vmatprep.subr.mxu0 0.0
    %281 = vmatpush1.msra.mxu0 0.0
    %282 = vmatprep.subr.mxu0 0.0
    %283 = vmatpush1.msra.mxu0 0.0
    %284 = vmatprep.subr.mxu0 0.0
    %285 = vmatpush1.msra.mxu0 0.0
    %286 = vmatprep.subr.mxu0 0.0
    %287 = vmatpush1.msra.mxu0 0.0
    %288 = vmatprep.subr.mxu0 0.0
    %289 = vmatpush1.msra.mxu0 0.0
    %290 = vmatprep.subr.mxu0 0.0
    %291 = vmatpush1.msra.mxu0 0.0
    %292 = vmatprep.subr.mxu0 0.0
    %293 = vmatpush1.msra.mxu0 0.0
    %294 = vmatprep.subr.mxu0 0.0
    %295 = vmatpush1.msra.mxu0 0.0
    %296 = vmatprep.subr.mxu0 0.0
    %297 = vmatpush1.msra.mxu0 0.0
    %298 = vmatprep.subr.mxu0 0.0
    %299 = vmatpush1.msra.mxu0 0.0
    %300 = vmatprep.subr.mxu0 0.0
    %301 = vmatpush1.msra.mxu0 0.0
    %302 = vmatprep.subr.mxu0 0.0
    %303 = vmatpush1.msra.mxu0 0.0
    %304 = vmatprep.subr.mxu0 0.0
    %305 = vmatpush1.msra.mxu0 0.0
    %306 = vmatprep.subr.mxu0 0.0
    %307 = vmatpush1.msra.mxu0 0.0
    %308 = vmatprep.subr.mxu0 0.0
    %309 = vmatpush1.msra.mxu0 0.0
    %310 = vmatprep.subr.mxu0 0.0
    %311 = vmatpush1.msra.mxu0 0.0
    %312 = vmatprep.subr.mxu0 0.0
    %313 = vmatpush1.msra.mxu0 0.0
    %314 = vmatprep.subr.mxu0 0.0
    %315 = vmatpush1.msra.mxu0 0.0
    %316 = vmatprep.subr.mxu0 0.0
    %317 = vmatpush1.msra.mxu0 0.0
    %318 = vmatprep.subr.mxu0 0.0
    %319 = vmatpush1.msra.mxu0 0.0
    %320 = vmatprep.subr.mxu0 0.0
    %321 = vmatpush1.msra.mxu0 0.0
    %322 = vmatprep.subr.mxu0 0.0
    %323 = vmatpush1.msra.mxu0 0.0
    %324 = vmatprep.subr.mxu0 0.0
    %325 = vmatpush1.msra.mxu0 0.0
    %326 = vmatprep.subr.mxu0 0.0
    %327 = vmatpush1.msra.mxu0 0.0
    %328 = vmatprep.subr.mxu0 0.0
    %329 = vmatpush1.msra.mxu0 0.0
    %330 = vmatprep.subr.mxu0 0.0
    %331 = vmatpush1.msra.mxu0 0.0
    %332 = vmatprep.mubr.f32.mxu0 0.0
    %v333 = vand.u32 %v113, 4294901760
    %334 = vmatmul.mubr.f32.gmra.mrb[0].mxu0 %v333
    %v335 = vpop.f32.mrb[0].mxu0
    %v336 = vadd.f32 %v210, %v335
    %v337 = vpop.f32.mrb[0].mxu0
    %v338 = vadd.f32 %v212, %v337
    %339 = vmatprep.mubr.f32.mxu0 0.0
    %v340 = vand.u32 %v116, 4294901760
    %341 = vmatmul.mubr.f32.gmra.mrb[0].mxu0 %v340
    %v342 = vpop.f32.mrb[0].mxu0
    %v343 = vadd.f32 %v221, %v342
    %v344 = vpop.f32.mrb[0].mxu0
    %v345 = vadd.f32 %v223, %v344
    %346 = vmatprep.mubr.f32.mxu0 0.0
    %v347 = vand.u32 %v119, 4294901760
    %348 = vmatmul.mubr.f32.gmra.mrb[0].mxu0 %v347
    %v349 = vpop.f32.mrb[0].mxu0
    %v350 = vadd.f32 %v232, %v349
    %v351 = vpop.f32.mrb[0].mxu0
    %v352 = vadd.f32 %v234, %v351
    %353 = vmatprep.mubr.f32.mxu0 0.0
    %v354 = vand.u32 %v122, 4294901760
    %355 = vmatmul.mubr.f32.gmra.mrb[0].mxu0 %v354
    %v356 = vpop.f32.mrb[0].mxu0
    %v357 = vadd.f32 %v243, %v356
    %v358 = vpop.f32.mrb[0].mxu0
    %v359 = vadd.f32 %v245, %v358
    %360 = vmatprep.mubr.f32.mxu0 0.0
    %v361 = vand.u32 %v125, 4294901760
    %362 = vmatmul.mubr.f32.gmra.mrb[0].mxu0 %v361
    %v363 = vpop.f32.mrb[0].mxu0
    %v364 = vadd.f32 %v254, %v363
    %v365 = vpop.f32.mrb[0].mxu0
    %v366 = vadd.f32 %v256, %v365
    %367 = vdwg.mxu0
    %v368 = vand.u32 %v130, 4294901760
    %v369 = vsub.f32 %v130, %v368
    %370 = vmatprep.subr.mxu0 %v369
    %v371 = vand.u32 %v128, 4294901760
    %v372 = vsub.f32 %v128, %v371
    %373 = vmatpush1.msra.mxu0 %v372
    %374 = vmatprep.subr.mxu0 0.0
    %375 = vmatpush1.msra.mxu0 0.0
    %376 = vmatprep.subr.mxu0 0.0
    %377 = vmatpush1.msra.mxu0 0.0
    %378 = vmatprep.subr.mxu0 0.0
    %379 = vmatpush1.msra.mxu0 0.0
    %380 = vmatprep.subr.mxu0 0.0
    %381 = vmatpush1.msra.mxu0 0.0
    %382 = vmatprep.subr.mxu0 0.0
    %383 = vmatpush1.msra.mxu0 0.0
    %384 = vmatprep.subr.mxu0 0.0
    %385 = vmatpush1.msra.mxu0 0.0
    %386 = vmatprep.subr.mxu0 0.0
    %387 = vmatpush1.msra.mxu0 0.0
    %388 = vmatprep.subr.mxu0 0.0
    %389 = vmatpush1.msra.mxu0 0.0
    %390 = vmatprep.subr.mxu0 0.0
    %391 = vmatpush1.msra.mxu0 0.0
    %392 = vmatprep.subr.mxu0 0.0
    %393 = vmatpush1.msra.mxu0 0.0
    %394 = vmatprep.subr.mxu0 0.0
    %395 = vmatpush1.msra.mxu0 0.0
    %396 = vmatprep.subr.mxu0 0.0
    %397 = vmatpush1.msra.mxu0 0.0
    %398 = vmatprep.subr.mxu0 0.0
    %399 = vmatpush1.msra.mxu0 0.0
    %400 = vmatprep.subr.mxu0 0.0
    %401 = vmatpush1.msra.mxu0 0.0
    %402 = vmatprep.subr.mxu0 0.0
    %403 = vmatpush1.msra.mxu0 0.0
    %404 = vmatprep.subr.mxu0 0.0
    %405 = vmatpush1.msra.mxu0 0.0
    %406 = vmatprep.subr.mxu0 0.0
    %407 = vmatpush1.msra.mxu0 0.0
    %408 = vmatprep.subr.mxu0 0.0
    %409 = vmatpush1.msra.mxu0 0.0
    %410 = vmatprep.subr.mxu0 0.0
    %411 = vmatpush1.msra.mxu0 0.0
    %412 = vmatprep.subr.mxu0 0.0
    %413 = vmatpush1.msra.mxu0 0.0
    %414 = vmatprep.subr.mxu0 0.0
    %415 = vmatpush1.msra.mxu0 0.0
    %416 = vmatprep.subr.mxu0 0.0
    %417 = vmatpush1.msra.mxu0 0.0
    %418 = vmatprep.subr.mxu0 0.0
    %419 = vmatpush1.msra.mxu0 0.0
    %420 = vmatprep.subr.mxu0 0.0
    %421 = vmatpush1.msra.mxu0 0.0
    %422 = vmatprep.subr.mxu0 0.0
    %423 = vmatpush1.msra.mxu0 0.0
    %424 = vmatprep.subr.mxu0 0.0
    %425 = vmatpush1.msra.mxu0 0.0
    %426 = vmatprep.subr.mxu0 0.0
    %427 = vmatpush1.msra.mxu0 0.0
    %428 = vmatprep.subr.mxu0 0.0
    %429 = vmatpush1.msra.mxu0 0.0
    %430 = vmatprep.subr.mxu0 0.0
    %431 = vmatpush1.msra.mxu0 0.0
    %432 = vmatprep.subr.mxu0 0.0
    %433 = vmatpush1.msra.mxu0 0.0
    %434 = vmatprep.subr.mxu0 0.0
    %435 = vmatpush1.msra.mxu0 0.0
    %436 = vmatprep.mubr.f32.mxu0 0.0
    %v437 = vand.u32 %v113, 4294901760
    %v438 = vsub.f32 %v113, %v437
    %439 = vmatmul.mubr.f32.gmra.mrb[0].mxu0 %v438
    %v440 = vpop.f32.mrb[0].mxu0
    %v441 = vadd.f32 %v336, %v440
    %v442 = vpop.f32.mrb[0].mxu0
    %v443 = vadd.f32 %v338, %v442
    %444 = vmatprep.mubr.f32.mxu0 0.0
    %v445 = vand.u32 %v116, 4294901760
    %v446 = vsub.f32 %v116, %v445
    %447 = vmatmul.mubr.f32.gmra.mrb[0].mxu0 %v446
    %v448 = vpop.f32.mrb[0].mxu0
    %v449 = vadd.f32 %v343, %v448
    %v450 = vpop.f32.mrb[0].mxu0
    %v451 = vadd.f32 %v345, %v450
    %452 = vmatprep.mubr.f32.mxu0 0.0
    %v453 = vand.u32 %v119, 4294901760
    %v454 = vsub.f32 %v119, %v453
    %455 = vmatmul.mubr.f32.gmra.mrb[0].mxu0 %v454
    %v456 = vpop.f32.mrb[0].mxu0
    %v457 = vadd.f32 %v350, %v456
    %v458 = vpop.f32.mrb[0].mxu0
    %v459 = vadd.f32 %v352, %v458
    %460 = vmatprep.mubr.f32.mxu0 0.0
    %v461 = vand.u32 %v122, 4294901760
    %v462 = vsub.f32 %v122, %v461
    %463 = vmatmul.mubr.f32.gmra.mrb[0].mxu0 %v462
    %v464 = vpop.f32.mrb[0].mxu0
    %v465 = vadd.f32 %v357, %v464
    %v466 = vpop.f32.mrb[0].mxu0
    %v467 = vadd.f32 %v359, %v466
    %468 = vmatprep.mubr.f32.mxu0 0.0
    %v469 = vand.u32 %v125, 4294901760
    %v470 = vsub.f32 %v125, %v469
    %471 = vmatmul.mubr.f32.gmra.mrb[0].mxu0 %v470
    %v472 = vpop.f32.mrb[0].mxu0
    %v473 = vadd.f32 %v364, %v472
    %v474 = vpop.f32.mrb[0].mxu0
    %v475 = vadd.f32 %v366, %v474
    %476 = vdwg.mxu0
    %v477 = vand.u32 %v130, 4294901760
    %478 = vmatprep.subr.mxu0 %v477
    %v479 = vand.u32 %v128, 4294901760
    %480 = vmatpush1.msra.mxu0 %v479
    %481 = vmatprep.subr.mxu0 0.0
    %482 = vmatpush1.msra.mxu0 0.0
    %483 = vmatprep.subr.mxu0 0.0
    %484 = vmatpush1.msra.mxu0 0.0
    %485 = vmatprep.subr.mxu0 0.0
    %486 = vmatpush1.msra.mxu0 0.0
    %487 = vmatprep.subr.mxu0 0.0
    %488 = vmatpush1.msra.mxu0 0.0
    %489 = vmatprep.subr.mxu0 0.0
    %490 = vmatpush1.msra.mxu0 0.0
    %491 = vmatprep.subr.mxu0 0.0
    %492 = vmatpush1.msra.mxu0 0.0
    %493 = vmatprep.subr.mxu0 0.0
    %494 = vmatpush1.msra.mxu0 0.0
    %495 = vmatprep.subr.mxu0 0.0
    %496 = vmatpush1.msra.mxu0 0.0
    %497 = vmatprep.subr.mxu0 0.0
    %498 = vmatpush1.msra.mxu0 0.0
    %499 = vmatprep.subr.mxu0 0.0
    %500 = vmatpush1.msra.mxu0 0.0
    %501 = vmatprep.subr.mxu0 0.0
    %502 = vmatpush1.msra.mxu0 0.0
    %503 = vmatprep.subr.mxu0 0.0
    %504 = vmatpush1.msra.mxu0 0.0
    %505 = vmatprep.subr.mxu0 0.0
    %506 = vmatpush1.msra.mxu0 0.0
    %507 = vmatprep.subr.mxu0 0.0
    %508 = vmatpush1.msra.mxu0 0.0
    %509 = vmatprep.subr.mxu0 0.0
    %510 = vmatpush1.msra.mxu0 0.0
    %511 = vmatprep.subr.mxu0 0.0
    %512 = vmatpush1.msra.mxu0 0.0
    %513 = vmatprep.subr.mxu0 0.0
    %514 = vmatpush1.msra.mxu0 0.0
    %515 = vmatprep.subr.mxu0 0.0
    %516 = vmatpush1.msra.mxu0 0.0
    %517 = vmatprep.subr.mxu0 0.0
    %518 = vmatpush1.msra.mxu0 0.0
    %519 = vmatprep.subr.mxu0 0.0
    %520 = vmatpush1.msra.mxu0 0.0
    %521 = vmatprep.subr.mxu0 0.0
    %522 = vmatpush1.msra.mxu0 0.0
    %523 = vmatprep.subr.mxu0 0.0
    %524 = vmatpush1.msra.mxu0 0.0
    %525 = vmatprep.subr.mxu0 0.0
    %526 = vmatpush1.msra.mxu0 0.0
    %527 = vmatprep.subr.mxu0 0.0
    %528 = vmatpush1.msra.mxu0 0.0
    %529 = vmatprep.subr.mxu0 0.0
    %530 = vmatpush1.msra.mxu0 0.0
    %531 = vmatprep.subr.mxu0 0.0
    %532 = vmatpush1.msra.mxu0 0.0
    %533 = vmatprep.subr.mxu0 0.0
    %534 = vmatpush1.msra.mxu0 0.0
    %535 = vmatprep.subr.mxu0 0.0
    %536 = vmatpush1.msra.mxu0 0.0
    %537 = vmatprep.subr.mxu0 0.0
    %538 = vmatpush1.msra.mxu0 0.0
    %539 = vmatprep.subr.mxu0 0.0
    %540 = vmatpush1.msra.mxu0 0.0
    %541 = vmatprep.subr.mxu0 0.0
    %542 = vmatpush1.msra.mxu0 0.0
    %543 = vmatprep.mubr.f32.mxu0 0.0
    %v544 = vand.u32 %v113, 4294901760
    %v545 = vsub.f32 %v113, %v544
    %v546 = vand.u32 %v545, 4294901760
    %547 = vmatmul.mubr.f32.gmra.mrb[0].mxu0 %v546
    %v548 = vpop.f32.mrb[0].mxu0
    %v549 = vadd.f32 %v441, %v548
    %v550 = vpop.f32.mrb[0].mxu0
    %v551 = vadd.f32 %v443, %v550
    %552 = vmatprep.mubr.f32.mxu0 0.0
    %v553 = vand.u32 %v116, 4294901760
    %v554 = vsub.f32 %v116, %v553
    %v555 = vand.u32 %v554, 4294901760
    %556 = vmatmul.mubr.f32.gmra.mrb[0].mxu0 %v555
    %v557 = vpop.f32.mrb[0].mxu0
    %v558 = vadd.f32 %v449, %v557
    %v559 = vpop.f32.mrb[0].mxu0
    %v560 = vadd.f32 %v451, %v559
    %561 = vmatprep.mubr.f32.mxu0 0.0
    %v562 = vand.u32 %v119, 4294901760
    %v563 = vsub.f32 %v119, %v562
    %v564 = vand.u32 %v563, 4294901760
    %565 = vmatmul.mubr.f32.gmra.mrb[0].mxu0 %v564
    %v566 = vpop.f32.mrb[0].mxu0
    %v567 = vadd.f32 %v457, %v566
    %v568 = vpop.f32.mrb[0].mxu0
    %v569 = vadd.f32 %v459, %v568
    %570 = vmatprep.mubr.f32.mxu0 0.0
    %v571 = vand.u32 %v122, 4294901760
    %v572 = vsub.f32 %v122, %v571
    %v573 = vand.u32 %v572, 4294901760
    %574 = vmatmul.mubr.f32.gmra.mrb[0].mxu0 %v573
    %v575 = vpop.f32.mrb[0].mxu0
    %v576 = vadd.f32 %v465, %v575
    %v577 = vpop.f32.mrb[0].mxu0
    %v578 = vadd.f32 %v467, %v577
    %579 = vmatprep.mubr.f32.mxu0 0.0
    %v580 = vand.u32 %v125, 4294901760
    %v581 = vsub.f32 %v125, %v580
    %v582 = vand.u32 %v581, 4294901760
    %583 = vmatmul.mubr.f32.gmra.mrb[0].mxu0 %v582
    %v584 = vpop.f32.mrb[0].mxu0
    %v585 = vadd.f32 %v473, %v584
    %v586 = vpop.f32.mrb[0].mxu0
    %v587 = vadd.f32 %v475, %v586
    %588 = vdwg.mxu0
    %v589 = vand.u32 %v130, 4294901760
    %v590 = vsub.f32 %v130, %v589
    %v591 = vand.u32 %v590, 4294901760
    %592 = vmatprep.subr.mxu0 %v591
    %v593 = vand.u32 %v128, 4294901760
    %v594 = vsub.f32 %v128, %v593
    %v595 = vand.u32 %v594, 4294901760
    %596 = vmatpush1.msra.mxu0 %v595
    %597 = vmatprep.subr.mxu0 0.0
    %598 = vmatpush1.msra.mxu0 0.0
    %599 = vmatprep.subr.mxu0 0.0
    %600 = vmatpush1.msra.mxu0 0.0
    %601 = vmatprep.subr.mxu0 0.0
    %602 = vmatpush1.msra.mxu0 0.0
    %603 = vmatprep.subr.mxu0 0.0
    %604 = vmatpush1.msra.mxu0 0.0
    %605 = vmatprep.subr.mxu0 0.0
    %606 = vmatpush1.msra.mxu0 0.0
    %607 = vmatprep.subr.mxu0 0.0
    %608 = vmatpush1.msra.mxu0 0.0
    %609 = vmatprep.subr.mxu0 0.0
    %610 = vmatpush1.msra.mxu0 0.0
    %611 = vmatprep.subr.mxu0 0.0
    %612 = vmatpush1.msra.mxu0 0.0
    %613 = vmatprep.subr.mxu0 0.0
    %614 = vmatpush1.msra.mxu0 0.0
    %615 = vmatprep.subr.mxu0 0.0
    %616 = vmatpush1.msra.mxu0 0.0
    %617 = vmatprep.subr.mxu0 0.0
    %618 = vmatpush1.msra.mxu0 0.0
    %619 = vmatprep.subr.mxu0 0.0
    %620 = vmatpush1.msra.mxu0 0.0
    %621 = vmatprep.subr.mxu0 0.0
    %622 = vmatpush1.msra.mxu0 0.0
    %623 = vmatprep.subr.mxu0 0.0
    %624 = vmatpush1.msra.mxu0 0.0
    %625 = vmatprep.subr.mxu0 0.0
    %626 = vmatpush1.msra.mxu0 0.0
    %627 = vmatprep.subr.mxu0 0.0
    %628 = vmatpush1.msra.mxu0 0.0
    %629 = vmatprep.subr.mxu0 0.0
    %630 = vmatpush1.msra.mxu0 0.0
    %631 = vmatprep.subr.mxu0 0.0
    %632 = vmatpush1.msra.mxu0 0.0
    %633 = vmatprep.subr.mxu0 0.0
    %634 = vmatpush1.msra.mxu0 0.0
    %635 = vmatprep.subr.mxu0 0.0
    %636 = vmatpush1.msra.mxu0 0.0
    %637 = vmatprep.subr.mxu0 0.0
    %638 = vmatpush1.msra.mxu0 0.0
    %639 = vmatprep.subr.mxu0 0.0
    %640 = vmatpush1.msra.mxu0 0.0
    %641 = vmatprep.subr.mxu0 0.0
    %642 = vmatpush1.msra.mxu0 0.0
    %643 = vmatprep.subr.mxu0 0.0
    %644 = vmatpush1.msra.mxu0 0.0
    %645 = vmatprep.subr.mxu0 0.0
    %646 = vmatpush1.msra.mxu0 0.0
    %647 = vmatprep.subr.mxu0 0.0
    %648 = vmatpush1.msra.mxu0 0.0
    %649 = vmatprep.subr.mxu0 0.0
    %650 = vmatpush1.msra.mxu0 0.0
    %651 = vmatprep.subr.mxu0 0.0
    %652 = vmatpush1.msra.mxu0 0.0
    %653 = vmatprep.subr.mxu0 0.0
    %654 = vmatpush1.msra.mxu0 0.0
    %655 = vmatprep.subr.mxu0 0.0
    %656 = vmatpush1.msra.mxu0 0.0
    %657 = vmatprep.subr.mxu0 0.0
    %658 = vmatpush1.msra.mxu0 0.0
    %659 = vmatprep.mubr.f32.mxu0 0.0
    %v660 = vand.u32 %v113, 4294901760
    %661 = vmatmul.mubr.f32.gmra.mrb[0].mxu0 %v660
    %v662 = vpop.f32.mrb[0].mxu0
    %v663 = vadd.f32 %v549, %v662
    %v664 = vpop.f32.mrb[0].mxu0
    %v665 = vadd.f32 %v551, %v664
    %666 = vmatprep.mubr.f32.mxu0 0.0
    %v667 = vand.u32 %v116, 4294901760
    %668 = vmatmul.mubr.f32.gmra.mrb[0].mxu0 %v667
    %v669 = vpop.f32.mrb[0].mxu0
    %v670 = vadd.f32 %v558, %v669
    %v671 = vpop.f32.mrb[0].mxu0
    %v672 = vadd.f32 %v560, %v671
    %673 = vmatprep.mubr.f32.mxu0 0.0
    %v674 = vand.u32 %v119, 4294901760
    %675 = vmatmul.mubr.f32.gmra.mrb[0].mxu0 %v674
    %v676 = vpop.f32.mrb[0].mxu0
    %v677 = vadd.f32 %v567, %v676
    %v678 = vpop.f32.mrb[0].mxu0
    %v679 = vadd.f32 %v569, %v678
    %680 = vmatprep.mubr.f32.mxu0 0.0
    %v681 = vand.u32 %v122, 4294901760
    %682 = vmatmul.mubr.f32.gmra.mrb[0].mxu0 %v681
    %v683 = vpop.f32.mrb[0].mxu0
    %v684 = vadd.f32 %v576, %v683
    %v685 = vpop.f32.mrb[0].mxu0
    %v686 = vadd.f32 %v578, %v685
    %687 = vmatprep.mubr.f32.mxu0 0.0
    %v688 = vand.u32 %v125, 4294901760
    %689 = vmatmul.mubr.f32.gmra.mrb[0].mxu0 %v688
    %v690 = vpop.f32.mrb[0].mxu0
    %v691 = vadd.f32 %v585, %v690
    %v692 = vpop.f32.mrb[0].mxu0
    %v693 = vadd.f32 %v587, %v692
    %694 = vdwg.mxu0
    %v695 = vand.u32 %v130, 4294901760
    %696 = vmatprep.subr.mxu0 %v695
    %v697 = vand.u32 %v128, 4294901760
    %698 = vmatpush1.msra.mxu0 %v697
    %699 = vmatprep.subr.mxu0 0.0
    %700 = vmatpush1.msra.mxu0 0.0
    %701 = vmatprep.subr.mxu0 0.0
    %702 = vmatpush1.msra.mxu0 0.0
    %703 = vmatprep.subr.mxu0 0.0
    %704 = vmatpush1.msra.mxu0 0.0
    %705 = vmatprep.subr.mxu0 0.0
    %706 = vmatpush1.msra.mxu0 0.0
    %707 = vmatprep.subr.mxu0 0.0
    %708 = vmatpush1.msra.mxu0 0.0
    %709 = vmatprep.subr.mxu0 0.0
    %710 = vmatpush1.msra.mxu0 0.0
    %711 = vmatprep.subr.mxu0 0.0
    %712 = vmatpush1.msra.mxu0 0.0
    %713 = vmatprep.subr.mxu0 0.0
    %714 = vmatpush1.msra.mxu0 0.0
    %715 = vmatprep.subr.mxu0 0.0
    %716 = vmatpush1.msra.mxu0 0.0
    %717 = vmatprep.subr.mxu0 0.0
    %718 = vmatpush1.msra.mxu0 0.0
    %719 = vmatprep.subr.mxu0 0.0
    %720 = vmatpush1.msra.mxu0 0.0
    %721 = vmatprep.subr.mxu0 0.0
    %722 = vmatpush1.msra.mxu0 0.0
    %723 = vmatprep.subr.mxu0 0.0
    %724 = vmatpush1.msra.mxu0 0.0
    %725 = vmatprep.subr.mxu0 0.0
    %726 = vmatpush1.msra.mxu0 0.0
    %727 = vmatprep.subr.mxu0 0.0
    %728 = vmatpush1.msra.mxu0 0.0
    %729 = vmatprep.subr.mxu0 0.0
    %730 = vmatpush1.msra.mxu0 0.0
    %731 = vmatprep.subr.mxu0 0.0
    %732 = vmatpush1.msra.mxu0 0.0
    %733 = vmatprep.subr.mxu0 0.0
    %734 = vmatpush1.msra.mxu0 0.0
    %735 = vmatprep.subr.mxu0 0.0
    %736 = vmatpush1.msra.mxu0 0.0
    %737 = vmatprep.subr.mxu0 0.0
    %738 = vmatpush1.msra.mxu0 0.0
    %739 = vmatprep.subr.mxu0 0.0
    %740 = vmatpush1.msra.mxu0 0.0
    %741 = vmatprep.subr.mxu0 0.0
    %742 = vmatpush1.msra.mxu0 0.0
    %743 = vmatprep.subr.mxu0 0.0
    %744 = vmatpush1.msra.mxu0 0.0
    %745 = vmatprep.subr.mxu0 0.0
    %746 = vmatpush1.msra.mxu0 0.0
    %747 = vmatprep.subr.mxu0 0.0
    %748 = vmatpush1.msra.mxu0 0.0
    %749 = vmatprep.subr.mxu0 0.0
    %750 = vmatpush1.msra.mxu0 0.0
    %751 = vmatprep.subr.mxu0 0.0
    %752 = vmatpush1.msra.mxu0 0.0
    %753 = vmatprep.subr.mxu0 0.0
    %754 = vmatpush1.msra.mxu0 0.0
    %755 = vmatprep.subr.mxu0 0.0
    %756 = vmatpush1.msra.mxu0 0.0
    %757 = vmatprep.subr.mxu0 0.0
    %758 = vmatpush1.msra.mxu0 0.0
    %759 = vmatprep.subr.mxu0 0.0
    %760 = vmatpush1.msra.mxu0 0.0
    %761 = vmatprep.mubr.f32.mxu0 0.0
    %v762 = vand.u32 %v113, 4294901760
    %763 = vmatmul.mubr.f32.gmra.mrb[0].mxu0 %v762
    %v764 = vpop.f32.mrb[0].mxu0
    %v765 = vadd.f32 %v663, %v764
    %v766 = vpop.f32.mrb[0].mxu0
    %v767 = vadd.f32 %v665, %v766
    %768 = vmatprep.mubr.f32.mxu0 0.0
    %v769 = vand.u32 %v116, 4294901760
    %770 = vmatmul.mubr.f32.gmra.mrb[0].mxu0 %v769
    %v771 = vpop.f32.mrb[0].mxu0
    %v772 = vadd.f32 %v670, %v771
    %v773 = vpop.f32.mrb[0].mxu0
    %v774 = vadd.f32 %v672, %v773
    %775 = vmatprep.mubr.f32.mxu0 0.0
    %v776 = vand.u32 %v119, 4294901760
    %777 = vmatmul.mubr.f32.gmra.mrb[0].mxu0 %v776
    %v778 = vpop.f32.mrb[0].mxu0
    %v779 = vadd.f32 %v677, %v778
    %v780 = vpop.f32.mrb[0].mxu0
    %v781 = vadd.f32 %v679, %v780
    %782 = vmatprep.mubr.f32.mxu0 0.0
    %v783 = vand.u32 %v122, 4294901760
    %784 = vmatmul.mubr.f32.gmra.mrb[0].mxu0 %v783
    %v785 = vpop.f32.mrb[0].mxu0
    %v786 = vadd.f32 %v684, %v785
    %v787 = vpop.f32.mrb[0].mxu0
    %v788 = vadd.f32 %v686, %v787
    %789 = vmatprep.mubr.f32.mxu0 0.0
    %v790 = vand.u32 %v125, 4294901760
    %791 = vmatmul.mubr.f32.gmra.mrb[0].mxu0 %v790
    %v792 = vpop.f32.mrb[0].mxu0
    %v793 = vadd.f32 %v691, %v792
    %v794 = vpop.f32.mrb[0].mxu0
    %v795 = vadd.f32 %v693, %v794
    %796 = vdwg.mxu0
    %v797 = vand.u32 %v134, 4294901760
    %798 = vmatprep.subr.mxu0 %v797
    %v799 = vand.u32 %v132, 4294901760
    %800 = vmatpush1.msra.mxu0 %v799
    %801 = vmatprep.subr.mxu0 0.0
    %802 = vmatpush1.msra.mxu0 0.0
    %803 = vmatprep.subr.mxu0 0.0
    %804 = vmatpush1.msra.mxu0 0.0
    %805 = vmatprep.subr.mxu0 0.0
    %806 = vmatpush1.msra.mxu0 0.0
    %807 = vmatprep.subr.mxu0 0.0
    %808 = vmatpush1.msra.mxu0 0.0
    %809 = vmatprep.subr.mxu0 0.0
    %810 = vmatpush1.msra.mxu0 0.0
    %811 = vmatprep.subr.mxu0 0.0
    %812 = vmatpush1.msra.mxu0 0.0
    %813 = vmatprep.subr.mxu0 0.0
    %814 = vmatpush1.msra.mxu0 0.0
    %815 = vmatprep.subr.mxu0 0.0
    %816 = vmatpush1.msra.mxu0 0.0
    %817 = vmatprep.subr.mxu0 0.0
    %818 = vmatpush1.msra.mxu0 0.0
    %819 = vmatprep.subr.mxu0 0.0
    %820 = vmatpush1.msra.mxu0 0.0
    %821 = vmatprep.subr.mxu0 0.0
    %822 = vmatpush1.msra.mxu0 0.0
    %823 = vmatprep.subr.mxu0 0.0
    %824 = vmatpush1.msra.mxu0 0.0
    %825 = vmatprep.subr.mxu0 0.0
    %826 = vmatpush1.msra.mxu0 0.0
    %827 = vmatprep.subr.mxu0 0.0
    %828 = vmatpush1.msra.mxu0 0.0
    %829 = vmatprep.subr.mxu0 0.0
    %830 = vmatpush1.msra.mxu0 0.0
    %831 = vmatprep.subr.mxu0 0.0
    %832 = vmatpush1.msra.mxu0 0.0
    %833 = vmatprep.subr.mxu0 0.0
    %834 = vmatpush1.msra.mxu0 0.0
    %835 = vmatprep.subr.mxu0 0.0
    %836 = vmatpush1.msra.mxu0 0.0
    %837 = vmatprep.subr.mxu0 0.0
    %838 = vmatpush1.msra.mxu0 0.0
    %839 = vmatprep.subr.mxu0 0.0
    %840 = vmatpush1.msra.mxu0 0.0
    %841 = vmatprep.subr.mxu0 0.0
    %842 = vmatpush1.msra.mxu0 0.0
    %843 = vmatprep.subr.mxu0 0.0
    %844 = vmatpush1.msra.mxu0 0.0
    %845 = vmatprep.subr.mxu0 0.0
    %846 = vmatpush1.msra.mxu0 0.0
    %847 = vmatprep.subr.mxu0 0.0
    %848 = vmatpush1.msra.mxu0 0.0
    %849 = vmatprep.subr.mxu0 0.0
    %850 = vmatpush1.msra.mxu0 0.0
    %851 = vmatprep.subr.mxu0 0.0
    %852 = vmatpush1.msra.mxu0 0.0
    %853 = vmatprep.subr.mxu0 0.0
    %854 = vmatpush1.msra.mxu0 0.0
    %855 = vmatprep.subr.mxu0 0.0
    %856 = vmatpush1.msra.mxu0 0.0
    %857 = vmatprep.subr.mxu0 0.0
    %858 = vmatpush1.msra.mxu0 0.0
    %859 = vmatprep.subr.mxu0 0.0
    %860 = vmatpush1.msra.mxu0 0.0
    %861 = vmatprep.subr.mxu0 0.0
    %862 = vmatpush1.msra.mxu0 0.0
    %863 = vmatprep.mubr.f32.mxu0 0.0
    %v864 = vand.u32 %v113, 4294901760
    %v865 = vsub.f32 %v113, %v864
    %v866 = vand.u32 %v865, 4294901760
    %v867 = vsub.f32 %v865, %v866
    %v868 = vand.u32 %v867, 4294901760
    %869 = vmatmul.mubr.f32.gmra.mrb[0].mxu0 %v868
    %v870 = vpop.f32.mrb[0].mxu0
    %v871 = vadd.f32 %v71, %v870
    %v872 = vpop.f32.mrb[0].mxu0
    %v873 = vadd.f32 %v71, %v872
    %874 = vmatprep.mubr.f32.mxu0 0.0
    %v875 = vand.u32 %v116, 4294901760
    %v876 = vsub.f32 %v116, %v875
    %v877 = vand.u32 %v876, 4294901760
    %v878 = vsub.f32 %v876, %v877
    %v879 = vand.u32 %v878, 4294901760
    %880 = vmatmul.mubr.f32.gmra.mrb[0].mxu0 %v879
    %v881 = vpop.f32.mrb[0].mxu0
    %v882 = vadd.f32 %v76, %v881
    %v883 = vpop.f32.mrb[0].mxu0
    %v884 = vadd.f32 %v76, %v883
    %885 = vmatprep.mubr.f32.mxu0 0.0
    %v886 = vand.u32 %v119, 4294901760
    %v887 = vsub.f32 %v119, %v886
    %v888 = vand.u32 %v887, 4294901760
    %v889 = vsub.f32 %v887, %v888
    %v890 = vand.u32 %v889, 4294901760
    %891 = vmatmul.mubr.f32.gmra.mrb[0].mxu0 %v890
    %v892 = vpop.f32.mrb[0].mxu0
    %v893 = vadd.f32 %v81, %v892
    %v894 = vpop.f32.mrb[0].mxu0
    %v895 = vadd.f32 %v81, %v894
    %896 = vmatprep.mubr.f32.mxu0 0.0
    %v897 = vand.u32 %v122, 4294901760
    %v898 = vsub.f32 %v122, %v897
    %v899 = vand.u32 %v898, 4294901760
    %v900 = vsub.f32 %v898, %v899
    %v901 = vand.u32 %v900, 4294901760
    %902 = vmatmul.mubr.f32.gmra.mrb[0].mxu0 %v901
    %v903 = vpop.f32.mrb[0].mxu0
    %v904 = vadd.f32 %v86, %v903
    %v905 = vpop.f32.mrb[0].mxu0
    %v906 = vadd.f32 %v86, %v905
    %907 = vmatprep.mubr.f32.mxu0 0.0
    %v908 = vand.u32 %v125, 4294901760
    %v909 = vsub.f32 %v125, %v908
    %v910 = vand.u32 %v909, 4294901760
    %v911 = vsub.f32 %v909, %v910
    %v912 = vand.u32 %v911, 4294901760
    %913 = vmatmul.mubr.f32.gmra.mrb[0].mxu0 %v912
    %v914 = vpop.f32.mrb[0].mxu0
    %v915 = vadd.f32 %v91, %v914
    %v916 = vpop.f32.mrb[0].mxu0
    %v917 = vadd.f32 %v91, %v916
    %918 = vdwg.mxu0
    %v919 = vand.u32 %v134, 4294901760
    %v920 = vsub.f32 %v134, %v919
    %v921 = vand.u32 %v920, 4294901760
    %v922 = vsub.f32 %v920, %v921
    %v923 = vand.u32 %v922, 4294901760
    %924 = vmatprep.subr.mxu0 %v923
    %v925 = vand.u32 %v132, 4294901760
    %v926 = vsub.f32 %v132, %v925
    %v927 = vand.u32 %v926, 4294901760
    %v928 = vsub.f32 %v926, %v927
    %v929 = vand.u32 %v928, 4294901760
    %930 = vmatpush1.msra.mxu0 %v929
    %931 = vmatprep.subr.mxu0 0.0
    %932 = vmatpush1.msra.mxu0 0.0
    %933 = vmatprep.subr.mxu0 0.0
    %934 = vmatpush1.msra.mxu0 0.0
    %935 = vmatprep.subr.mxu0 0.0
    %936 = vmatpush1.msra.mxu0 0.0
    %937 = vmatprep.subr.mxu0 0.0
    %938 = vmatpush1.msra.mxu0 0.0
    %939 = vmatprep.subr.mxu0 0.0
    %940 = vmatpush1.msra.mxu0 0.0
    %941 = vmatprep.subr.mxu0 0.0
    %942 = vmatpush1.msra.mxu0 0.0
    %943 = vmatprep.subr.mxu0 0.0
    %944 = vmatpush1.msra.mxu0 0.0
    %945 = vmatprep.subr.mxu0 0.0
    %946 = vmatpush1.msra.mxu0 0.0
    %947 = vmatprep.subr.mxu0 0.0
    %948 = vmatpush1.msra.mxu0 0.0
    %949 = vmatprep.subr.mxu0 0.0
    %950 = vmatpush1.msra.mxu0 0.0
    %951 = vmatprep.subr.mxu0 0.0
    %952 = vmatpush1.msra.mxu0 0.0
    %953 = vmatprep.subr.mxu0 0.0
    %954 = vmatpush1.msra.mxu0 0.0
    %955 = vmatprep.subr.mxu0 0.0
    %956 = vmatpush1.msra.mxu0 0.0
    %957 = vmatprep.subr.mxu0 0.0
    %958 = vmatpush1.msra.mxu0 0.0
    %959 = vmatprep.subr.mxu0 0.0
    %960 = vmatpush1.msra.mxu0 0.0
    %961 = vmatprep.subr.mxu0 0.0
    %962 = vmatpush1.msra.mxu0 0.0
    %963 = vmatprep.subr.mxu0 0.0
    %964 = vmatpush1.msra.mxu0 0.0
    %965 = vmatprep.subr.mxu0 0.0
    %966 = vmatpush1.msra.mxu0 0.0
    %967 = vmatprep.subr.mxu0 0.0
    %968 = vmatpush1.msra.mxu0 0.0
    %969 = vmatprep.subr.mxu0 0.0
    %970 = vmatpush1.msra.mxu0 0.0
    %971 = vmatprep.subr.mxu0 0.0
    %972 = vmatpush1.msra.mxu0 0.0
    %973 = vmatprep.subr.mxu0 0.0
    %974 = vmatpush1.msra.mxu0 0.0
    %975 = vmatprep.subr.mxu0 0.0
    %976 = vmatpush1.msra.mxu0 0.0
    %977 = vmatprep.subr.mxu0 0.0
    %978 = vmatpush1.msra.mxu0 0.0
    %979 = vmatprep.subr.mxu0 0.0
    %980 = vmatpush1.msra.mxu0 0.0
    %981 = vmatprep.subr.mxu0 0.0
    %982 = vmatpush1.msra.mxu0 0.0
    %983 = vmatprep.subr.mxu0 0.0
    %984 = vmatpush1.msra.mxu0 0.0
    %985 = vmatprep.subr.mxu0 0.0
    %986 = vmatpush1.msra.mxu0 0.0
    %987 = vmatprep.subr.mxu0 0.0
    %988 = vmatpush1.msra.mxu0 0.0
    %989 = vmatprep.subr.mxu0 0.0
    %990 = vmatpush1.msra.mxu0 0.0
    %991 = vmatprep.subr.mxu0 0.0
    %992 = vmatpush1.msra.mxu0 0.0
    %993 = vmatprep.mubr.f32.mxu0 0.0
    %v994 = vand.u32 %v113, 4294901760
    %995 = vmatmul.mubr.f32.gmra.mrb[0].mxu0 %v994
    %v996 = vpop.f32.mrb[0].mxu0
    %v997 = vadd.f32 %v871, %v996
    %v998 = vpop.f32.mrb[0].mxu0
    %v999 = vadd.f32 %v873, %v998
    %1000 = vmatprep.mubr.f32.mxu0 0.0
    %v1001 = vand.u32 %v116, 4294901760
    %1002 = vmatmul.mubr.f32.gmra.mrb[0].mxu0 %v1001
    %v1003 = vpop.f32.mrb[0].mxu0
    %v1004 = vadd.f32 %v882, %v1003
    %v1005 = vpop.f32.mrb[0].mxu0
    %v1006 = vadd.f32 %v884, %v1005
    %1007 = vmatprep.mubr.f32.mxu0 0.0
    %v1008 = vand.u32 %v119, 4294901760
    %1009 = vmatmul.mubr.f32.gmra.mrb[0].mxu0 %v1008
    %v1010 = vpop.f32.mrb[0].mxu0
    %v1011 = vadd.f32 %v893, %v1010
    %v1012 = vpop.f32.mrb[0].mxu0
    %v1013 = vadd.f32 %v895, %v1012
    %1014 = vmatprep.mubr.f32.mxu0 0.0
    %v1015 = vand.u32 %v122, 4294901760
    %1016 = vmatmul.mubr.f32.gmra.mrb[0].mxu0 %v1015
    %v1017 = vpop.f32.mrb[0].mxu0
    %v1018 = vadd.f32 %v904, %v1017
    %v1019 = vpop.f32.mrb[0].mxu0
    %v1020 = vadd.f32 %v906, %v1019
    %1021 = vmatprep.mubr.f32.mxu0 0.0
    %v1022 = vand.u32 %v125, 4294901760
    %1023 = vmatmul.mubr.f32.gmra.mrb[0].mxu0 %v1022
    %v1024 = vpop.f32.mrb[0].mxu0
    %v1025 = vadd.f32 %v915, %v1024
    %v1026 = vpop.f32.mrb[0].mxu0
    %v1027 = vadd.f32 %v917, %v1026
    %1028 = vdwg.mxu0
    %v1029 = vand.u32 %v134, 4294901760
    %v1030 = vsub.f32 %v134, %v1029
    %1031 = vmatprep.subr.mxu0 %v1030
    %v1032 = vand.u32 %v132, 4294901760
    %v1033 = vsub.f32 %v132, %v1032
    %1034 = vmatpush1.msra.mxu0 %v1033
    %1035 = vmatprep.subr.mxu0 0.0
    %1036 = vmatpush1.msra.mxu0 0.0
    %1037 = vmatprep.subr.mxu0 0.0
    %1038 = vmatpush1.msra.mxu0 0.0
    %1039 = vmatprep.subr.mxu0 0.0
    %1040 = vmatpush1.msra.mxu0 0.0
    %1041 = vmatprep.subr.mxu0 0.0
    %1042 = vmatpush1.msra.mxu0 0.0
    %1043 = vmatprep.subr.mxu0 0.0
    %1044 = vmatpush1.msra.mxu0 0.0
    %1045 = vmatprep.subr.mxu0 0.0
    %1046 = vmatpush1.msra.mxu0 0.0
    %1047 = vmatprep.subr.mxu0 0.0
    %1048 = vmatpush1.msra.mxu0 0.0
    %1049 = vmatprep.subr.mxu0 0.0
    %1050 = vmatpush1.msra.mxu0 0.0
    %1051 = vmatprep.subr.mxu0 0.0
    %1052 = vmatpush1.msra.mxu0 0.0
    %1053 = vmatprep.subr.mxu0 0.0
    %1054 = vmatpush1.msra.mxu0 0.0
    %1055 = vmatprep.subr.mxu0 0.0
    %1056 = vmatpush1.msra.mxu0 0.0
    %1057 = vmatprep.subr.mxu0 0.0
    %1058 = vmatpush1.msra.mxu0 0.0
    %1059 = vmatprep.subr.mxu0 0.0
    %1060 = vmatpush1.msra.mxu0 0.0
    %1061 = vmatprep.subr.mxu0 0.0
    %1062 = vmatpush1.msra.mxu0 0.0
    %1063 = vmatprep.subr.mxu0 0.0
    %1064 = vmatpush1.msra.mxu0 0.0
    %1065 = vmatprep.subr.mxu0 0.0
    %1066 = vmatpush1.msra.mxu0 0.0
    %1067 = vmatprep.subr.mxu0 0.0
    %1068 = vmatpush1.msra.mxu0 0.0
    %1069 = vmatprep.subr.mxu0 0.0
    %1070 = vmatpush1.msra.mxu0 0.0
    %1071 = vmatprep.subr.mxu0 0.0
    %1072 = vmatpush1.msra.mxu0 0.0
    %1073 = vmatprep.subr.mxu0 0.0
    %1074 = vmatpush1.msra.mxu0 0.0
    %1075 = vmatprep.subr.mxu0 0.0
    %1076 = vmatpush1.msra.mxu0 0.0
    %1077 = vmatprep.subr.mxu0 0.0
    %1078 = vmatpush1.msra.mxu0 0.0
    %1079 = vmatprep.subr.mxu0 0.0
    %1080 = vmatpush1.msra.mxu0 0.0
    %1081 = vmatprep.subr.mxu0 0.0
    %1082 = vmatpush1.msra.mxu0 0.0
    %1083 = vmatprep.subr.mxu0 0.0
    %1084 = vmatpush1.msra.mxu0 0.0
    %1085 = vmatprep.subr.mxu0 0.0
    %1086 = vmatpush1.msra.mxu0 0.0
    %1087 = vmatprep.subr.mxu0 0.0
    %1088 = vmatpush1.msra.mxu0 0.0
    %1089 = vmatprep.subr.mxu0 0.0
    %1090 = vmatpush1.msra.mxu0 0.0
    %1091 = vmatprep.subr.mxu0 0.0
    %1092 = vmatpush1.msra.mxu0 0.0
    %1093 = vmatprep.subr.mxu0 0.0
    %1094 = vmatpush1.msra.mxu0 0.0
    %1095 = vmatprep.subr.mxu0 0.0
    %1096 = vmatpush1.msra.mxu0 0.0
    %1097 = vmatprep.mubr.f32.mxu0 0.0
    %v1098 = vand.u32 %v113, 4294901760
    %v1099 = vsub.f32 %v113, %v1098
    %1100 = vmatmul.mubr.f32.gmra.mrb[0].mxu0 %v1099
    %v1101 = vpop.f32.mrb[0].mxu0
    %v1102 = vadd.f32 %v997, %v1101
    %v1103 = vpop.f32.mrb[0].mxu0
    %v1104 = vadd.f32 %v999, %v1103
    %1105 = vmatprep.mubr.f32.mxu0 0.0
    %v1106 = vand.u32 %v116, 4294901760
    %v1107 = vsub.f32 %v116, %v1106
    %1108 = vmatmul.mubr.f32.gmra.mrb[0].mxu0 %v1107
    %v1109 = vpop.f32.mrb[0].mxu0
    %v1110 = vadd.f32 %v1004, %v1109
    %v1111 = vpop.f32.mrb[0].mxu0
    %v1112 = vadd.f32 %v1006, %v1111
    %1113 = vmatprep.mubr.f32.mxu0 0.0
    %v1114 = vand.u32 %v119, 4294901760
    %v1115 = vsub.f32 %v119, %v1114
    %1116 = vmatmul.mubr.f32.gmra.mrb[0].mxu0 %v1115
    %v1117 = vpop.f32.mrb[0].mxu0
    %v1118 = vadd.f32 %v1011, %v1117
    %v1119 = vpop.f32.mrb[0].mxu0
    %v1120 = vadd.f32 %v1013, %v1119
    %1121 = vmatprep.mubr.f32.mxu0 0.0
    %v1122 = vand.u32 %v122, 4294901760
    %v1123 = vsub.f32 %v122, %v1122
    %1124 = vmatmul.mubr.f32.gmra.mrb[0].mxu0 %v1123
    %v1125 = vpop.f32.mrb[0].mxu0
    %v1126 = vadd.f32 %v1018, %v1125
    %v1127 = vpop.f32.mrb[0].mxu0
    %v1128 = vadd.f32 %v1020, %v1127
    %1129 = vmatprep.mubr.f32.mxu0 0.0
    %v1130 = vand.u32 %v125, 4294901760
    %v1131 = vsub.f32 %v125, %v1130
    %1132 = vmatmul.mubr.f32.gmra.mrb[0].mxu0 %v1131
    %v1133 = vpop.f32.mrb[0].mxu0
    %v1134 = vadd.f32 %v1025, %v1133
    %v1135 = vpop.f32.mrb[0].mxu0
    %v1136 = vadd.f32 %v1027, %v1135
    %1137 = vdwg.mxu0
    %v1138 = vand.u32 %v134, 4294901760
    %1139 = vmatprep.subr.mxu0 %v1138
    %v1140 = vand.u32 %v132, 4294901760
    %1141 = vmatpush1.msra.mxu0 %v1140
    %1142 = vmatprep.subr.mxu0 0.0
    %1143 = vmatpush1.msra.mxu0 0.0
    %1144 = vmatprep.subr.mxu0 0.0
    %1145 = vmatpush1.msra.mxu0 0.0
    %1146 = vmatprep.subr.mxu0 0.0
    %1147 = vmatpush1.msra.mxu0 0.0
    %1148 = vmatprep.subr.mxu0 0.0
    %1149 = vmatpush1.msra.mxu0 0.0
    %1150 = vmatprep.subr.mxu0 0.0
    %1151 = vmatpush1.msra.mxu0 0.0
    %1152 = vmatprep.subr.mxu0 0.0
    %1153 = vmatpush1.msra.mxu0 0.0
    %1154 = vmatprep.subr.mxu0 0.0
    %1155 = vmatpush1.msra.mxu0 0.0
    %1156 = vmatprep.subr.mxu0 0.0
    %1157 = vmatpush1.msra.mxu0 0.0
    %1158 = vmatprep.subr.mxu0 0.0
    %1159 = vmatpush1.msra.mxu0 0.0
    %1160 = vmatprep.subr.mxu0 0.0
    %1161 = vmatpush1.msra.mxu0 0.0
    %1162 = vmatprep.subr.mxu0 0.0
    %1163 = vmatpush1.msra.mxu0 0.0
    %1164 = vmatprep.subr.mxu0 0.0
    %1165 = vmatpush1.msra.mxu0 0.0
    %1166 = vmatprep.subr.mxu0 0.0
    %1167 = vmatpush1.msra.mxu0 0.0
    %1168 = vmatprep.subr.mxu0 0.0
    %1169 = vmatpush1.msra.mxu0 0.0
    %1170 = vmatprep.subr.mxu0 0.0
    %1171 = vmatpush1.msra.mxu0 0.0
    %1172 = vmatprep.subr.mxu0 0.0
    %1173 = vmatpush1.msra.mxu0 0.0
    %1174 = vmatprep.subr.mxu0 0.0
    %1175 = vmatpush1.msra.mxu0 0.0
    %1176 = vmatprep.subr.mxu0 0.0
    %1177 = vmatpush1.msra.mxu0 0.0
    %1178 = vmatprep.subr.mxu0 0.0
    %1179 = vmatpush1.msra.mxu0 0.0
    %1180 = vmatprep.subr.mxu0 0.0
    %1181 = vmatpush1.msra.mxu0 0.0
    %1182 = vmatprep.subr.mxu0 0.0
    %1183 = vmatpush1.msra.mxu0 0.0
    %1184 = vmatprep.subr.mxu0 0.0
    %1185 = vmatpush1.msra.mxu0 0.0
    %1186 = vmatprep.subr.mxu0 0.0
    %1187 = vmatpush1.msra.mxu0 0.0
    %1188 = vmatprep.subr.mxu0 0.0
    %1189 = vmatpush1.msra.mxu0 0.0
    %1190 = vmatprep.subr.mxu0 0.0
    %1191 = vmatpush1.msra.mxu0 0.0
    %1192 = vmatprep.subr.mxu0 0.0
    %1193 = vmatpush1.msra.mxu0 0.0
    %1194 = vmatprep.subr.mxu0 0.0
    %1195 = vmatpush1.msra.mxu0 0.0
    %1196 = vmatprep.subr.mxu0 0.0
    %1197 = vmatpush1.msra.mxu0 0.0
    %1198 = vmatprep.subr.mxu0 0.0
    %1199 = vmatpush1.msra.mxu0 0.0
    %1200 = vmatprep.subr.mxu0 0.0
    %1201 = vmatpush1.msra.mxu0 0.0
    %1202 = vmatprep.subr.mxu0 0.0
    %1203 = vmatpush1.msra.mxu0 0.0
    %1204 = vmatprep.mubr.f32.mxu0 0.0
    %v1205 = vand.u32 %v113, 4294901760
    %v1206 = vsub.f32 %v113, %v1205
    %v1207 = vand.u32 %v1206, 4294901760
    %1208 = vmatmul.mubr.f32.gmra.mrb[0].mxu0 %v1207
    %v1209 = vpop.f32.mrb[0].mxu0
    %v1210 = vadd.f32 %v1102, %v1209
    %v1211 = vpop.f32.mrb[0].mxu0
    %v1212 = vadd.f32 %v1104, %v1211
    %1213 = vmatprep.mubr.f32.mxu0 0.0
    %v1214 = vand.u32 %v116, 4294901760
    %v1215 = vsub.f32 %v116, %v1214
    %v1216 = vand.u32 %v1215, 4294901760
    %1217 = vmatmul.mubr.f32.gmra.mrb[0].mxu0 %v1216
    %v1218 = vpop.f32.mrb[0].mxu0
    %v1219 = vadd.f32 %v1110, %v1218
    %v1220 = vpop.f32.mrb[0].mxu0
    %v1221 = vadd.f32 %v1112, %v1220
    %1222 = vmatprep.mubr.f32.mxu0 0.0
    %v1223 = vand.u32 %v119, 4294901760
    %v1224 = vsub.f32 %v119, %v1223
    %v1225 = vand.u32 %v1224, 4294901760
    %1226 = vmatmul.mubr.f32.gmra.mrb[0].mxu0 %v1225
    %v1227 = vpop.f32.mrb[0].mxu0
    %v1228 = vadd.f32 %v1118, %v1227
    %v1229 = vpop.f32.mrb[0].mxu0
    %v1230 = vadd.f32 %v1120, %v1229
    %1231 = vmatprep.mubr.f32.mxu0 0.0
    %v1232 = vand.u32 %v122, 4294901760
    %v1233 = vsub.f32 %v122, %v1232
    %v1234 = vand.u32 %v1233, 4294901760
    %1235 = vmatmul.mubr.f32.gmra.mrb[0].mxu0 %v1234
    %v1236 = vpop.f32.mrb[0].mxu0
    %v1237 = vadd.f32 %v1126, %v1236
    %v1238 = vpop.f32.mrb[0].mxu0
    %v1239 = vadd.f32 %v1128, %v1238
    %1240 = vmatprep.mubr.f32.mxu0 0.0
    %v1241 = vand.u32 %v125, 4294901760
    %v1242 = vsub.f32 %v125, %v1241
    %v1243 = vand.u32 %v1242, 4294901760
    %1244 = vmatmul.mubr.f32.gmra.mrb[0].mxu0 %v1243
    %v1245 = vpop.f32.mrb[0].mxu0
    %v1246 = vadd.f32 %v1134, %v1245
    %v1247 = vpop.f32.mrb[0].mxu0
    %v1248 = vadd.f32 %v1136, %v1247
    %1249 = vdwg.mxu0
    %v1250 = vand.u32 %v134, 4294901760
    %v1251 = vsub.f32 %v134, %v1250
    %v1252 = vand.u32 %v1251, 4294901760
    %1253 = vmatprep.subr.mxu0 %v1252
    %v1254 = vand.u32 %v132, 4294901760
    %v1255 = vsub.f32 %v132, %v1254
    %v1256 = vand.u32 %v1255, 4294901760
    %1257 = vmatpush1.msra.mxu0 %v1256
    %1258 = vmatprep.subr.mxu0 0.0
    %1259 = vmatpush1.msra.mxu0 0.0
    %1260 = vmatprep.subr.mxu0 0.0
    %1261 = vmatpush1.msra.mxu0 0.0
    %1262 = vmatprep.subr.mxu0 0.0
    %1263 = vmatpush1.msra.mxu0 0.0
    %1264 = vmatprep.subr.mxu0 0.0
    %1265 = vmatpush1.msra.mxu0 0.0
    %1266 = vmatprep.subr.mxu0 0.0
    %1267 = vmatpush1.msra.mxu0 0.0
    %1268 = vmatprep.subr.mxu0 0.0
    %1269 = vmatpush1.msra.mxu0 0.0
    %1270 = vmatprep.subr.mxu0 0.0
    %1271 = vmatpush1.msra.mxu0 0.0
    %1272 = vmatprep.subr.mxu0 0.0
    %1273 = vmatpush1.msra.mxu0 0.0
    %1274 = vmatprep.subr.mxu0 0.0
    %1275 = vmatpush1.msra.mxu0 0.0
    %1276 = vmatprep.subr.mxu0 0.0
    %1277 = vmatpush1.msra.mxu0 0.0
    %1278 = vmatprep.subr.mxu0 0.0
    %1279 = vmatpush1.msra.mxu0 0.0
    %1280 = vmatprep.subr.mxu0 0.0
    %1281 = vmatpush1.msra.mxu0 0.0
    %1282 = vmatprep.subr.mxu0 0.0
    %1283 = vmatpush1.msra.mxu0 0.0
    %1284 = vmatprep.subr.mxu0 0.0
    %1285 = vmatpush1.msra.mxu0 0.0
    %1286 = vmatprep.subr.mxu0 0.0
    %1287 = vmatpush1.msra.mxu0 0.0
    %1288 = vmatprep.subr.mxu0 0.0
    %1289 = vmatpush1.msra.mxu0 0.0
    %1290 = vmatprep.subr.mxu0 0.0
    %1291 = vmatpush1.msra.mxu0 0.0
    %1292 = vmatprep.subr.mxu0 0.0
    %1293 = vmatpush1.msra.mxu0 0.0
    %1294 = vmatprep.subr.mxu0 0.0
    %1295 = vmatpush1.msra.mxu0 0.0
    %1296 = vmatprep.subr.mxu0 0.0
    %1297 = vmatpush1.msra.mxu0 0.0
    %1298 = vmatprep.subr.mxu0 0.0
    %1299 = vmatpush1.msra.mxu0 0.0
    %1300 = vmatprep.subr.mxu0 0.0
    %1301 = vmatpush1.msra.mxu0 0.0
    %1302 = vmatprep.subr.mxu0 0.0
    %1303 = vmatpush1.msra.mxu0 0.0
    %1304 = vmatprep.subr.mxu0 0.0
    %1305 = vmatpush1.msra.mxu0 0.0
    %1306 = vmatprep.subr.mxu0 0.0
    %1307 = vmatpush1.msra.mxu0 0.0
    %1308 = vmatprep.subr.mxu0 0.0
    %1309 = vmatpush1.msra.mxu0 0.0
    %1310 = vmatprep.subr.mxu0 0.0
    %1311 = vmatpush1.msra.mxu0 0.0
    %1312 = vmatprep.subr.mxu0 0.0
    %1313 = vmatpush1.msra.mxu0 0.0
    %1314 = vmatprep.subr.mxu0 0.0
    %1315 = vmatpush1.msra.mxu0 0.0
    %1316 = vmatprep.subr.mxu0 0.0
    %1317 = vmatpush1.msra.mxu0 0.0
    %1318 = vmatprep.subr.mxu0 0.0
    %1319 = vmatpush1.msra.mxu0 0.0
    %1320 = vmatprep.mubr.f32.mxu0 0.0
    %v1321 = vand.u32 %v113, 4294901760
    %1322 = vmatmul.mubr.f32.gmra.mrb[0].mxu0 %v1321
    %v1323 = vpop.f32.mrb[0].mxu0
    %v1324 = vadd.f32 %v1210, %v1323
    %v1325 = vpop.f32.mrb[0].mxu0
    %v1326 = vadd.f32 %v1212, %v1325
    %1327 = vmatprep.mubr.f32.mxu0 0.0
    %v1328 = vand.u32 %v116, 4294901760
    %1329 = vmatmul.mubr.f32.gmra.mrb[0].mxu0 %v1328
    %v1330 = vpop.f32.mrb[0].mxu0
    %v1331 = vadd.f32 %v1219, %v1330
    %v1332 = vpop.f32.mrb[0].mxu0
    %v1333 = vadd.f32 %v1221, %v1332
    %1334 = vmatprep.mubr.f32.mxu0 0.0
    %v1335 = vand.u32 %v119, 4294901760
    %1336 = vmatmul.mubr.f32.gmra.mrb[0].mxu0 %v1335
    %v1337 = vpop.f32.mrb[0].mxu0
    %v1338 = vadd.f32 %v1228, %v1337
    %v1339 = vpop.f32.mrb[0].mxu0
    %v1340 = vadd.f32 %v1230, %v1339
    %1341 = vmatprep.mubr.f32.mxu0 0.0
    %v1342 = vand.u32 %v122, 4294901760
    %1343 = vmatmul.mubr.f32.gmra.mrb[0].mxu0 %v1342
    %v1344 = vpop.f32.mrb[0].mxu0
    %v1345 = vadd.f32 %v1237, %v1344
    %v1346 = vpop.f32.mrb[0].mxu0
    %v1347 = vadd.f32 %v1239, %v1346
    %1348 = vmatprep.mubr.f32.mxu0 0.0
    %v1349 = vand.u32 %v125, 4294901760
    %1350 = vmatmul.mubr.f32.gmra.mrb[0].mxu0 %v1349
    %v1351 = vpop.f32.mrb[0].mxu0
    %v1352 = vadd.f32 %v1246, %v1351
    %v1353 = vpop.f32.mrb[0].mxu0
    %v1354 = vadd.f32 %v1248, %v1353
    %1355 = vdwg.mxu0
    %v1356 = vand.u32 %v134, 4294901760
    %1357 = vmatprep.subr.mxu0 %v1356
    %v1358 = vand.u32 %v132, 4294901760
    %1359 = vmatpush1.msra.mxu0 %v1358
    %1360 = vmatprep.subr.mxu0 0.0
    %1361 = vmatpush1.msra.mxu0 0.0
    %1362 = vmatprep.subr.mxu0 0.0
    %1363 = vmatpush1.msra.mxu0 0.0
    %1364 = vmatprep.subr.mxu0 0.0
    %1365 = vmatpush1.msra.mxu0 0.0
    %1366 = vmatprep.subr.mxu0 0.0
    %1367 = vmatpush1.msra.mxu0 0.0
    %1368 = vmatprep.subr.mxu0 0.0
    %1369 = vmatpush1.msra.mxu0 0.0
    %1370 = vmatprep.subr.mxu0 0.0
    %1371 = vmatpush1.msra.mxu0 0.0
    %1372 = vmatprep.subr.mxu0 0.0
    %1373 = vmatpush1.msra.mxu0 0.0
    %1374 = vmatprep.subr.mxu0 0.0
    %1375 = vmatpush1.msra.mxu0 0.0
    %1376 = vmatprep.subr.mxu0 0.0
    %1377 = vmatpush1.msra.mxu0 0.0
    %1378 = vmatprep.subr.mxu0 0.0
    %1379 = vmatpush1.msra.mxu0 0.0
    %1380 = vmatprep.subr.mxu0 0.0
    %1381 = vmatpush1.msra.mxu0 0.0
    %1382 = vmatprep.subr.mxu0 0.0
    %1383 = vmatpush1.msra.mxu0 0.0
    %1384 = vmatprep.subr.mxu0 0.0
    %1385 = vmatpush1.msra.mxu0 0.0
    %1386 = vmatprep.subr.mxu0 0.0
    %1387 = vmatpush1.msra.mxu0 0.0
    %1388 = vmatprep.subr.mxu0 0.0
    %1389 = vmatpush1.msra.mxu0 0.0
    %1390 = vmatprep.subr.mxu0 0.0
    %1391 = vmatpush1.msra.mxu0 0.0
    %1392 = vmatprep.subr.mxu0 0.0
    %1393 = vmatpush1.msra.mxu0 0.0
    %1394 = vmatprep.subr.mxu0 0.0
    %1395 = vmatpush1.msra.mxu0 0.0
    %1396 = vmatprep.subr.mxu0 0.0
    %1397 = vmatpush1.msra.mxu0 0.0
    %1398 = vmatprep.subr.mxu0 0.0
    %1399 = vmatpush1.msra.mxu0 0.0
    %1400 = vmatprep.subr.mxu0 0.0
    %1401 = vmatpush1.msra.mxu0 0.0
    %1402 = vmatprep.subr.mxu0 0.0
    %1403 = vmatpush1.msra.mxu0 0.0
    %1404 = vmatprep.subr.mxu0 0.0
    %1405 = vmatpush1.msra.mxu0 0.0
    %1406 = vmatprep.subr.mxu0 0.0
    %1407 = vmatpush1.msra.mxu0 0.0
    %1408 = vmatprep.subr.mxu0 0.0
    %1409 = vmatpush1.msra.mxu0 0.0
    %1410 = vmatprep.subr.mxu0 0.0
    %1411 = vmatpush1.msra.mxu0 0.0
    %1412 = vmatprep.subr.mxu0 0.0
    %1413 = vmatpush1.msra.mxu0 0.0
    %1414 = vmatprep.subr.mxu0 0.0
    %1415 = vmatpush1.msra.mxu0 0.0
    %1416 = vmatprep.subr.mxu0 0.0
    %1417 = vmatpush1.msra.mxu0 0.0
    %1418 = vmatprep.subr.mxu0 0.0
    %1419 = vmatpush1.msra.mxu0 0.0
    %1420 = vmatprep.subr.mxu0 0.0
    %1421 = vmatpush1.msra.mxu0 0.0
    %1422 = vmatprep.mubr.f32.mxu0 0.0
    %v1423 = vand.u32 %v113, 4294901760
    %1424 = vmatmul.mubr.f32.gmra.mrb[0].mxu0 %v1423
    %v1425 = vpop.f32.mrb[0].mxu0
    %v1426 = vadd.f32 %v1324, %v1425
    %v1427 = vpop.f32.mrb[0].mxu0
    %v1428 = vadd.f32 %v1326, %v1427
    %1429 = vmatprep.mubr.f32.mxu0 0.0
    %v1430 = vand.u32 %v116, 4294901760
    %1431 = vmatmul.mubr.f32.gmra.mrb[0].mxu0 %v1430
    %v1432 = vpop.f32.mrb[0].mxu0
    %v1433 = vadd.f32 %v1331, %v1432
    %v1434 = vpop.f32.mrb[0].mxu0
    %v1435 = vadd.f32 %v1333, %v1434
    %1436 = vmatprep.mubr.f32.mxu0 0.0
    %v1437 = vand.u32 %v119, 4294901760
    %1438 = vmatmul.mubr.f32.gmra.mrb[0].mxu0 %v1437
    %v1439 = vpop.f32.mrb[0].mxu0
    %v1440 = vadd.f32 %v1338, %v1439
    %v1441 = vpop.f32.mrb[0].mxu0
    %v1442 = vadd.f32 %v1340, %v1441
    %1443 = vmatprep.mubr.f32.mxu0 0.0
    %v1444 = vand.u32 %v122, 4294901760
    %1445 = vmatmul.mubr.f32.gmra.mrb[0].mxu0 %v1444
    %v1446 = vpop.f32.mrb[0].mxu0
    %v1447 = vadd.f32 %v1345, %v1446
    %v1448 = vpop.f32.mrb[0].mxu0
    %v1449 = vadd.f32 %v1347, %v1448
    %1450 = vmatprep.mubr.f32.mxu0 0.0
    %v1451 = vand.u32 %v125, 4294901760
    %1452 = vmatmul.mubr.f32.gmra.mrb[0].mxu0 %v1451
    %v1453 = vpop.f32.mrb[0].mxu0
    %v1454 = vadd.f32 %v1352, %v1453
    %v1455 = vpop.f32.mrb[0].mxu0
    %v1456 = vadd.f32 %v1354, %v1455
    %1457 = vdwg.mxu0
    %v1458 = vtanh.pop %v765
    %v1459 = vtanh.pop %v767
    %v1460 = vtanh.pop %v1426
    %v1461 = vtanh.pop %v1428
    %v1462 = vtanh.pop %v772
    %v1463 = vtanh.pop %v774
    %v1464 = vtanh.pop %v1433
    %v1465 = vtanh.pop %v1435
    %v1466 = vtanh.pop %v779
    %v1467 = vtanh.pop %v781
    %v1468 = vtanh.pop %v1440
    %v1469 = vtanh.pop %v1442
    %v1470 = vtanh.pop %v786
    %v1471 = vtanh.pop %v788
    %v1472 = vtanh.pop %v1447
    %v1473 = vtanh.pop %v1449
    %v1474 = vtanh.pop %v793
    %v1475 = vtanh.pop %v795
    %v1476 = vtanh.pop %v1454
    %v1477 = vtanh.pop %v1456
    %1479 = vset.pattern.permute.xlu0 0
    %1480 = vperm.xlu0 %1479, %v50
    %v1481 = vpop.permute.xlu0 %1480
    %1484 = vset.pattern.permute.xlu0 0
    %1485 = vperm.xlu0 %1484, %v51
    %v1486 = vpop.permute.xlu0 %1485
    %1489 = vset.pattern.permute.xlu0 0
    %1490 = vperm.xlu0 %1489, %v52
    %v1491 = vpop.permute.xlu0 %1490
    %1494 = vset.pattern.permute.xlu0 0
    %1495 = vperm.xlu0 %1494, %v53
    %v1496 = vpop.permute.xlu0 %1495
    %1499 = vset.pattern.permute.xlu0 0
    %1500 = vperm.xlu0 %1499, %v54
    %v1501 = vpop.permute.xlu0 %1500
    %vm1503 = vcmask 326656
    %v1505 = vsel %vm1503, %v45, 0
    %v1508 = vsel %vm1503, %v46, 0
    %v1511 = vsel %vm1503, %v47, 0
    %v1514 = vsel %vm1503, %v48, 0
    %v1517 = vsel %vm1503, %v49, 0
    %v1519 = vand.u32 %v1459, 4294901760
    %1520 = vmatprep.subr.mxu0 %v1519
    %v1521 = vand.u32 %v1458, 4294901760
    %1522 = vmatpush1.msra.mxu0 %v1521
    %v1523 = vand.u32 %v1463, 4294901760
    %1524 = vmatprep.subr.mxu0 %v1523
    %v1525 = vand.u32 %v1462, 4294901760
    %1526 = vmatpush1.msra.mxu0 %v1525
    %v1527 = vand.u32 %v1467, 4294901760
    %1528 = vmatprep.subr.mxu0 %v1527
    %v1529 = vand.u32 %v1466, 4294901760
    %1530 = vmatpush1.msra.mxu0 %v1529
    %v1531 = vand.u32 %v1471, 4294901760
    %1532 = vmatprep.subr.mxu0 %v1531
    %v1533 = vand.u32 %v1470, 4294901760
    %1534 = vmatpush1.msra.mxu0 %v1533
    %v1535 = vand.u32 %v1475, 4294901760
    %1536 = vmatprep.subr.mxu0 %v1535
    %v1537 = vand.u32 %v1474, 4294901760
    %1538 = vmatpush1.msra.mxu0 %v1537
    %1539 = vmatprep.subr.mxu0 0.0
    %1540 = vmatpush1.msra.mxu0 0.0
    %1541 = vmatprep.subr.mxu0 0.0
    %1542 = vmatpush1.msra.mxu0 0.0
    %1543 = vmatprep.subr.mxu0 0.0
    %1544 = vmatpush1.msra.mxu0 0.0
    %1545 = vmatprep.subr.mxu0 0.0
    %1546 = vmatpush1.msra.mxu0 0.0
    %1547 = vmatprep.subr.mxu0 0.0
    %1548 = vmatpush1.msra.mxu0 0.0
    %1549 = vmatprep.subr.mxu0 0.0
    %1550 = vmatpush1.msra.mxu0 0.0
    %1551 = vmatprep.subr.mxu0 0.0
    %1552 = vmatpush1.msra.mxu0 0.0
    %1553 = vmatprep.subr.mxu0 0.0
    %1554 = vmatpush1.msra.mxu0 0.0
    %1555 = vmatprep.subr.mxu0 0.0
    %1556 = vmatpush1.msra.mxu0 0.0
    %1557 = vmatprep.subr.mxu0 0.0
    %1558 = vmatpush1.msra.mxu0 0.0
    %1559 = vmatprep.subr.mxu0 0.0
    %1560 = vmatpush1.msra.mxu0 0.0
    %1561 = vmatprep.subr.mxu0 0.0
    %1562 = vmatpush1.msra.mxu0 0.0
    %1563 = vmatprep.subr.mxu0 0.0
    %1564 = vmatpush1.msra.mxu0 0.0
    %1565 = vmatprep.subr.mxu0 0.0
    %1566 = vmatpush1.msra.mxu0 0.0
    %1567 = vmatprep.subr.mxu0 0.0
    %1568 = vmatpush1.msra.mxu0 0.0
    %1569 = vmatprep.subr.mxu0 0.0
    %1570 = vmatpush1.msra.mxu0 0.0
    %1571 = vmatprep.subr.mxu0 0.0
    %1572 = vmatpush1.msra.mxu0 0.0
    %1573 = vmatprep.subr.mxu0 0.0
    %1574 = vmatpush1.msra.mxu0 0.0
    %1575 = vmatprep.subr.mxu0 0.0
    %1576 = vmatpush1.msra.mxu0 0.0
    %1577 = vmatprep.subr.mxu0 0.0
    %1578 = vmatpush1.msra.mxu0 0.0
    %1579 = vmatprep.subr.mxu0 0.0
    %1580 = vmatpush1.msra.mxu0 0.0
    %1581 = vmatprep.subr.mxu0 0.0
    %1582 = vmatpush1.msra.mxu0 0.0
    %1583 = vmatprep.subr.mxu0 0.0
    %1584 = vmatpush1.msra.mxu0 0.0
    %1585 = vmatprep.subr.mxu0 0.0
    %1586 = vmatpush1.msra.mxu0 0.0
    %1587 = vmatprep.subr.mxu0 0.0
    %1588 = vmatpush1.msra.mxu0 0.0
    %1589 = vmatprep.subr.mxu0 0.0
    %1590 = vmatpush1.msra.mxu0 0.0
    %1591 = vmatprep.subr.mxu0 0.0
    %1592 = vmatpush1.msra.mxu0 0.0
    %1593 = vmatprep.mubr.f32.mxu0 0.0
    %v1594 = vand.u32 %v1505, 4294901760
    %v1595 = vsub.f32 %v1505, %v1594
    %v1596 = vand.u32 %v1595, 4294901760
    %v1597 = vsub.f32 %v1595, %v1596
    %v1598 = vand.u32 %v1597, 4294901760
    %1599 = vmatmul.mubr.f32.gmra.mrb[0].mxu0 %v1598
    %v1600 = vpop.f32.mrb[0].mxu0
    %v1601 = vadd.f32 %v1481, %v1600
    %v1602 = vpop.f32.mrb[0].mxu0
    %v1603 = vadd.f32 %v1481, %v1602
    %1604 = vmatprep.mubr.f32.mxu0 0.0
    %v1605 = vand.u32 %v1508, 4294901760
    %v1606 = vsub.f32 %v1508, %v1605
    %v1607 = vand.u32 %v1606, 4294901760
    %v1608 = vsub.f32 %v1606, %v1607
    %v1609 = vand.u32 %v1608, 4294901760
    %1610 = vmatmul.mubr.f32.gmra.mrb[0].mxu0 %v1609
    %v1611 = vpop.f32.mrb[0].mxu0
    %v1612 = vadd.f32 %v1486, %v1611
    %v1613 = vpop.f32.mrb[0].mxu0
    %v1614 = vadd.f32 %v1486, %v1613
    %1615 = vmatprep.mubr.f32.mxu0 0.0
    %v1616 = vand.u32 %v1511, 4294901760
    %v1617 = vsub.f32 %v1511, %v1616
    %v1618 = vand.u32 %v1617, 4294901760
    %v1619 = vsub.f32 %v1617, %v1618
    %v1620 = vand.u32 %v1619, 4294901760
    %1621 = vmatmul.mubr.f32.gmra.mrb[0].mxu0 %v1620
    %v1622 = vpop.f32.mrb[0].mxu0
    %v1623 = vadd.f32 %v1491, %v1622
    %v1624 = vpop.f32.mrb[0].mxu0
    %v1625 = vadd.f32 %v1491, %v1624
    %1626 = vmatprep.mubr.f32.mxu0 0.0
    %v1627 = vand.u32 %v1514, 4294901760
    %v1628 = vsub.f32 %v1514, %v1627
    %v1629 = vand.u32 %v1628, 4294901760
    %v1630 = vsub.f32 %v1628, %v1629
    %v1631 = vand.u32 %v1630, 4294901760
    %1632 = vmatmul.mubr.f32.gmra.mrb[0].mxu0 %v1631
    %v1633 = vpop.f32.mrb[0].mxu0
    %v1634 = vadd.f32 %v1496, %v1633
    %v1635 = vpop.f32.mrb[0].mxu0
    %v1636 = vadd.f32 %v1496, %v1635
    %1637 = vmatprep.mubr.f32.mxu0 0.0
    %v1638 = vand.u32 %v1517, 4294901760
    %v1639 = vsub.f32 %v1517, %v1638
    %v1640 = vand.u32 %v1639, 4294901760
    %v1641 = vsub.f32 %v1639, %v1640
    %v1642 = vand.u32 %v1641, 4294901760
    %1643 = vmatmul.mubr.f32.gmra.mrb[0].mxu0 %v1642
    %v1644 = vpop.f32.mrb[0].mxu0
    %v1645 = vadd.f32 %v1501, %v1644
    %v1646 = vpop.f32.mrb[0].mxu0
    %v1647 = vadd.f32 %v1501, %v1646
    %1648 = vdwg.mxu0
    %v1649 = vand.u32 %v1459, 4294901760
    %v1650 = vsub.f32 %v1459, %v1649
    %v1651 = vand.u32 %v1650, 4294901760
    %v1652 = vsub.f32 %v1650, %v1651
    %v1653 = vand.u32 %v1652, 4294901760
    %1654 = vmatprep.subr.mxu0 %v1653
    %v1655 = vand.u32 %v1458, 4294901760
    %v1656 = vsub.f32 %v1458, %v1655
    %v1657 = vand.u32 %v1656, 4294901760
    %v1658 = vsub.f32 %v1656, %v1657
    %v1659 = vand.u32 %v1658, 4294901760
    %1660 = vmatpush1.msra.mxu0 %v1659
    %v1661 = vand.u32 %v1463, 4294901760
    %v1662 = vsub.f32 %v1463, %v1661
    %v1663 = vand.u32 %v1662, 4294901760
    %v1664 = vsub.f32 %v1662, %v1663
    %v1665 = vand.u32 %v1664, 4294901760
    %1666 = vmatprep.subr.mxu0 %v1665
    %v1667 = vand.u32 %v1462, 4294901760
    %v1668 = vsub.f32 %v1462, %v1667
    %v1669 = vand.u32 %v1668, 4294901760
    %v1670 = vsub.f32 %v1668, %v1669
    %v1671 = vand.u32 %v1670, 4294901760
    %1672 = vmatpush1.msra.mxu0 %v1671
    %v1673 = vand.u32 %v1467, 4294901760
    %v1674 = vsub.f32 %v1467, %v1673
    %v1675 = vand.u32 %v1674, 4294901760
    %v1676 = vsub.f32 %v1674, %v1675
    %v1677 = vand.u32 %v1676, 4294901760
    %1678 = vmatprep.subr.mxu0 %v1677
    %v1679 = vand.u32 %v1466, 4294901760
    %v1680 = vsub.f32 %v1466, %v1679
    %v1681 = vand.u32 %v1680, 4294901760
    %v1682 = vsub.f32 %v1680, %v1681
    %v1683 = vand.u32 %v1682, 4294901760
    %1684 = vmatpush1.msra.mxu0 %v1683
    %v1685 = vand.u32 %v1471, 4294901760
    %v1686 = vsub.f32 %v1471, %v1685
    %v1687 = vand.u32 %v1686, 4294901760
    %v1688 = vsub.f32 %v1686, %v1687
    %v1689 = vand.u32 %v1688, 4294901760
    %1690 = vmatprep.subr.mxu0 %v1689
    %v1691 = vand.u32 %v1470, 4294901760
    %v1692 = vsub.f32 %v1470, %v1691
    %v1693 = vand.u32 %v1692, 4294901760
    %v1694 = vsub.f32 %v1692, %v1693
    %v1695 = vand.u32 %v1694, 4294901760
    %1696 = vmatpush1.msra.mxu0 %v1695
    %v1697 = vand.u32 %v1475, 4294901760
    %v1698 = vsub.f32 %v1475, %v1697
    %v1699 = vand.u32 %v1698, 4294901760
    %v1700 = vsub.f32 %v1698, %v1699
    %v1701 = vand.u32 %v1700, 4294901760
    %1702 = vmatprep.subr.mxu0 %v1701
    %v1703 = vand.u32 %v1474, 4294901760
    %v1704 = vsub.f32 %v1474, %v1703
    %v1705 = vand.u32 %v1704, 4294901760
    %v1706 = vsub.f32 %v1704, %v1705
    %v1707 = vand.u32 %v1706, 4294901760
    %1708 = vmatpush1.msra.mxu0 %v1707
    %1709 = vmatprep.subr.mxu0 0.0
    %1710 = vmatpush1.msra.mxu0 0.0
    %1711 = vmatprep.subr.mxu0 0.0
    %1712 = vmatpush1.msra.mxu0 0.0
    %1713 = vmatprep.subr.mxu0 0.0
    %1714 = vmatpush1.msra.mxu0 0.0
    %1715 = vmatprep.subr.mxu0 0.0
    %1716 = vmatpush1.msra.mxu0 0.0
    %1717 = vmatprep.subr.mxu0 0.0
    %1718 = vmatpush1.msra.mxu0 0.0
    %1719 = vmatprep.subr.mxu0 0.0
    %1720 = vmatpush1.msra.mxu0 0.0
    %1721 = vmatprep.subr.mxu0 0.0
    %1722 = vmatpush1.msra.mxu0 0.0
    %1723 = vmatprep.subr.mxu0 0.0
    %1724 = vmatpush1.msra.mxu0 0.0
    %1725 = vmatprep.subr.mxu0 0.0
    %1726 = vmatpush1.msra.mxu0 0.0
    %1727 = vmatprep.subr.mxu0 0.0
    %1728 = vmatpush1.msra.mxu0 0.0
    %1729 = vmatprep.subr.mxu0 0.0
    %1730 = vmatpush1.msra.mxu0 0.0
    %1731 = vmatprep.subr.mxu0 0.0
    %1732 = vmatpush1.msra.mxu0 0.0
    %1733 = vmatprep.subr.mxu0 0.0
    %1734 = vmatpush1.msra.mxu0 0.0
    %1735 = vmatprep.subr.mxu0 0.0
    %1736 = vmatpush1.msra.mxu0 0.0
    %1737 = vmatprep.subr.mxu0 0.0
    %1738 = vmatpush1.msra.mxu0 0.0
    %1739 = vmatprep.subr.mxu0 0.0
    %1740 = vmatpush1.msra.mxu0 0.0
    %1741 = vmatprep.subr.mxu0 0.0
    %1742 = vmatpush1.msra.mxu0 0.0
    %1743 = vmatprep.subr.mxu0 0.0
    %1744 = vmatpush1.msra.mxu0 0.0
    %1745 = vmatprep.subr.mxu0 0.0
    %1746 = vmatpush1.msra.mxu0 0.0
    %1747 = vmatprep.subr.mxu0 0.0
    %1748 = vmatpush1.msra.mxu0 0.0
    %1749 = vmatprep.subr.mxu0 0.0
    %1750 = vmatpush1.msra.mxu0 0.0
    %1751 = vmatprep.subr.mxu0 0.0
    %1752 = vmatpush1.msra.mxu0 0.0
    %1753 = vmatprep.subr.mxu0 0.0
    %1754 = vmatpush1.msra.mxu0 0.0
    %1755 = vmatprep.subr.mxu0 0.0
    %1756 = vmatpush1.msra.mxu0 0.0
    %1757 = vmatprep.subr.mxu0 0.0
    %1758 = vmatpush1.msra.mxu0 0.0
    %1759 = vmatprep.subr.mxu0 0.0
    %1760 = vmatpush1.msra.mxu0 0.0
    %1761 = vmatprep.subr.mxu0 0.0
    %1762 = vmatpush1.msra.mxu0 0.0
    %1763 = vmatprep.mubr.f32.mxu0 0.0
    %v1764 = vand.u32 %v1505, 4294901760
    %1765 = vmatmul.mubr.f32.gmra.mrb[0].mxu0 %v1764
    %v1766 = vpop.f32.mrb[0].mxu0
    %v1767 = vadd.f32 %v1601, %v1766
    %v1768 = vpop.f32.mrb[0].mxu0
    %v1769 = vadd.f32 %v1603, %v1768
    %1770 = vmatprep.mubr.f32.mxu0 0.0
    %v1771 = vand.u32 %v1508, 4294901760
    %1772 = vmatmul.mubr.f32.gmra.mrb[0].mxu0 %v1771
    %v1773 = vpop.f32.mrb[0].mxu0
    %v1774 = vadd.f32 %v1612, %v1773
    %v1775 = vpop.f32.mrb[0].mxu0
    %v1776 = vadd.f32 %v1614, %v1775
    %1777 = vmatprep.mubr.f32.mxu0 0.0
    %v1778 = vand.u32 %v1511, 4294901760
    %1779 = vmatmul.mubr.f32.gmra.mrb[0].mxu0 %v1778
    %v1780 = vpop.f32.mrb[0].mxu0
    %v1781 = vadd.f32 %v1623, %v1780
    %v1782 = vpop.f32.mrb[0].mxu0
    %v1783 = vadd.f32 %v1625, %v1782
    %1784 = vmatprep.mubr.f32.mxu0 0.0
    %v1785 = vand.u32 %v1514, 4294901760
    %1786 = vmatmul.mubr.f32.gmra.mrb[0].mxu0 %v1785
    %v1787 = vpop.f32.mrb[0].mxu0
    %v1788 = vadd.f32 %v1634, %v1787
    %v1789 = vpop.f32.mrb[0].mxu0
    %v1790 = vadd.f32 %v1636, %v1789
    %1791 = vmatprep.mubr.f32.mxu0 0.0
    %v1792 = vand.u32 %v1517, 4294901760
    %1793 = vmatmul.mubr.f32.gmra.mrb[0].mxu0 %v1792
    %v1794 = vpop.f32.mrb[0].mxu0
    %v1795 = vadd.f32 %v1645, %v1794
    %v1796 = vpop.f32.mrb[0].mxu0
    %v1797 = vadd.f32 %v1647, %v1796
    %1798 = vdwg.mxu0
    %v1799 = vand.u32 %v1459, 4294901760
    %v1800 = vsub.f32 %v1459, %v1799
    %1801 = vmatprep.subr.mxu0 %v1800
    %v1802 = vand.u32 %v1458, 4294901760
    %v1803 = vsub.f32 %v1458, %v1802
    %1804 = vmatpush1.msra.mxu0 %v1803
    %v1805 = vand.u32 %v1463, 4294901760
    %v1806 = vsub.f32 %v1463, %v1805
    %1807 = vmatprep.subr.mxu0 %v1806
    %v1808 = vand.u32 %v1462, 4294901760
    %v1809 = vsub.f32 %v1462, %v1808
    %1810 = vmatpush1.msra.mxu0 %v1809
    %v1811 = vand.u32 %v1467, 4294901760
    %v1812 = vsub.f32 %v1467, %v1811
    %1813 = vmatprep.subr.mxu0 %v1812
    %v1814 = vand.u32 %v1466, 4294901760
    %v1815 = vsub.f32 %v1466, %v1814
    %1816 = vmatpush1.msra.mxu0 %v1815
    %v1817 = vand.u32 %v1471, 4294901760
    %v1818 = vsub.f32 %v1471, %v1817
    %1819 = vmatprep.subr.mxu0 %v1818
    %v1820 = vand.u32 %v1470, 4294901760
    %v1821 = vsub.f32 %v1470, %v1820
    %1822 = vmatpush1.msra.mxu0 %v1821
    %v1823 = vand.u32 %v1475, 4294901760
    %v1824 = vsub.f32 %v1475, %v1823
    %1825 = vmatprep.subr.mxu0 %v1824
    %v1826 = vand.u32 %v1474, 4294901760
    %v1827 = vsub.f32 %v1474, %v1826
    %1828 = vmatpush1.msra.mxu0 %v1827
    %1829 = vmatprep.subr.mxu0 0.0
    %1830 = vmatpush1.msra.mxu0 0.0
    %1831 = vmatprep.subr.mxu0 0.0
    %1832 = vmatpush1.msra.mxu0 0.0
    %1833 = vmatprep.subr.mxu0 0.0
    %1834 = vmatpush1.msra.mxu0 0.0
    %1835 = vmatprep.subr.mxu0 0.0
    %1836 = vmatpush1.msra.mxu0 0.0
    %1837 = vmatprep.subr.mxu0 0.0
    %1838 = vmatpush1.msra.mxu0 0.0
    %1839 = vmatprep.subr.mxu0 0.0
    %1840 = vmatpush1.msra.mxu0 0.0
    %1841 = vmatprep.subr.mxu0 0.0
    %1842 = vmatpush1.msra.mxu0 0.0
    %1843 = vmatprep.subr.mxu0 0.0
    %1844 = vmatpush1.msra.mxu0 0.0
    %1845 = vmatprep.subr.mxu0 0.0
    %1846 = vmatpush1.msra.mxu0 0.0
    %1847 = vmatprep.subr.mxu0 0.0
    %1848 = vmatpush1.msra.mxu0 0.0
    %1849 = vmatprep.subr.mxu0 0.0
    %1850 = vmatpush1.msra.mxu0 0.0
    %1851 = vmatprep.subr.mxu0 0.0
    %1852 = vmatpush1.msra.mxu0 0.0
    %1853 = vmatprep.subr.mxu0 0.0
    %1854 = vmatpush1.msra.mxu0 0.0
    %1855 = vmatprep.subr.mxu0 0.0
    %1856 = vmatpush1.msra.mxu0 0.0
    %1857 = vmatprep.subr.mxu0 0.0
    %1858 = vmatpush1.msra.mxu0 0.0
    %1859 = vmatprep.subr.mxu0 0.0
    %1860 = vmatpush1.msra.mxu0 0.0
    %1861 = vmatprep.subr.mxu0 0.0
    %1862 = vmatpush1.msra.mxu0 0.0
    %1863 = vmatprep.subr.mxu0 0.0
    %1864 = vmatpush1.msra.mxu0 0.0
    %1865 = vmatprep.subr.mxu0 0.0
    %1866 = vmatpush1.msra.mxu0 0.0
    %1867 = vmatprep.subr.mxu0 0.0
    %1868 = vmatpush1.msra.mxu0 0.0
    %1869 = vmatprep.subr.mxu0 0.0
    %1870 = vmatpush1.msra.mxu0 0.0
    %1871 = vmatprep.subr.mxu0 0.0
    %1872 = vmatpush1.msra.mxu0 0.0
    %1873 = vmatprep.subr.mxu0 0.0
    %1874 = vmatpush1.msra.mxu0 0.0
    %1875 = vmatprep.subr.mxu0 0.0
    %1876 = vmatpush1.msra.mxu0 0.0
    %1877 = vmatprep.subr.mxu0 0.0
    %1878 = vmatpush1.msra.mxu0 0.0
    %1879 = vmatprep.subr.mxu0 0.0
    %1880 = vmatpush1.msra.mxu0 0.0
    %1881 = vmatprep.subr.mxu0 0.0
    %1882 = vmatpush1.msra.mxu0 0.0
    %1883 = vmatprep.mubr.f32.mxu0 0.0
    %v1884 = vand.u32 %v1505, 4294901760
    %v1885 = vsub.f32 %v1505, %v1884
    %1886 = vmatmul.mubr.f32.gmra.mrb[0].mxu0 %v1885
    %v1887 = vpop.f32.mrb[0].mxu0
    %v1888 = vadd.f32 %v1767, %v1887
    %v1889 = vpop.f32.mrb[0].mxu0
    %v1890 = vadd.f32 %v1769, %v1889
    %1891 = vmatprep.mubr.f32.mxu0 0.0
    %v1892 = vand.u32 %v1508, 4294901760
    %v1893 = vsub.f32 %v1508, %v1892
    %1894 = vmatmul.mubr.f32.gmra.mrb[0].mxu0 %v1893
    %v1895 = vpop.f32.mrb[0].mxu0
    %v1896 = vadd.f32 %v1774, %v1895
    %v1897 = vpop.f32.mrb[0].mxu0
    %v1898 = vadd.f32 %v1776, %v1897
    %1899 = vmatprep.mubr.f32.mxu0 0.0
    %v1900 = vand.u32 %v1511, 4294901760
    %v1901 = vsub.f32 %v1511, %v1900
    %1902 = vmatmul.mubr.f32.gmra.mrb[0].mxu0 %v1901
    %v1903 = vpop.f32.mrb[0].mxu0
    %v1904 = vadd.f32 %v1781, %v1903
    %v1905 = vpop.f32.mrb[0].mxu0
    %v1906 = vadd.f32 %v1783, %v1905
    %1907 = vmatprep.mubr.f32.mxu0 0.0
    %v1908 = vand.u32 %v1514, 4294901760
    %v1909 = vsub.f32 %v1514, %v1908
    %1910 = vmatmul.mubr.f32.gmra.mrb[0].mxu0 %v1909
    %v1911 = vpop.f32.mrb[0].mxu0
    %v1912 = vadd.f32 %v1788, %v1911
    %v1913 = vpop.f32.mrb[0].mxu0
    %v1914 = vadd.f32 %v1790, %v1913
    %1915 = vmatprep.mubr.f32.mxu0 0.0
    %v1916 = vand.u32 %v1517, 4294901760
    %v1917 = vsub.f32 %v1517, %v1916
    %1918 = vmatmul.mubr.f32.gmra.mrb[0].mxu0 %v1917
    %v1919 = vpop.f32.mrb[0].mxu0
    %v1920 = vadd.f32 %v1795, %v1919
    %v1921 = vpop.f32.mrb[0].mxu0
    %v1922 = vadd.f32 %v1797, %v1921
    %1923 = vdwg.mxu0
    %v1924 = vand.u32 %v1459, 4294901760
    %1925 = vmatprep.subr.mxu0 %v1924
    %v1926 = vand.u32 %v1458, 4294901760
    %1927 = vmatpush1.msra.mxu0 %v1926
    %v1928 = vand.u32 %v1463, 4294901760
    %1929 = vmatprep.subr.mxu0 %v1928
    %v1930 = vand.u32 %v1462, 4294901760
    %1931 = vmatpush1.msra.mxu0 %v1930
    %v1932 = vand.u32 %v1467, 4294901760
    %1933 = vmatprep.subr.mxu0 %v1932
    %v1934 = vand.u32 %v1466, 4294901760
    %1935 = vmatpush1.msra.mxu0 %v1934
    %v1936 = vand.u32 %v1471, 4294901760
    %1937 = vmatprep.subr.mxu0 %v1936
    %v1938 = vand.u32 %v1470, 4294901760
    %1939 = vmatpush1.msra.mxu0 %v1938
    %v1940 = vand.u32 %v1475, 4294901760
    %1941 = vmatprep.subr.mxu0 %v1940
    %v1942 = vand.u32 %v1474, 4294901760
    %1943 = vmatpush1.msra.mxu0 %v1942
    %1944 = vmatprep.subr.mxu0 0.0
    %1945 = vmatpush1.msra.mxu0 0.0
    %1946 = vmatprep.subr.mxu0 0.0
    %1947 = vmatpush1.msra.mxu0 0.0
    %1948 = vmatprep.subr.mxu0 0.0
    %1949 = vmatpush1.msra.mxu0 0.0
    %1950 = vmatprep.subr.mxu0 0.0
    %1951 = vmatpush1.msra.mxu0 0.0
    %1952 = vmatprep.subr.mxu0 0.0
    %1953 = vmatpush1.msra.mxu0 0.0
    %1954 = vmatprep.subr.mxu0 0.0
    %1955 = vmatpush1.msra.mxu0 0.0
    %1956 = vmatprep.subr.mxu0 0.0
    %1957 = vmatpush1.msra.mxu0 0.0
    %1958 = vmatprep.subr.mxu0 0.0
    %1959 = vmatpush1.msra.mxu0 0.0
    %1960 = vmatprep.subr.mxu0 0.0
    %1961 = vmatpush1.msra.mxu0 0.0
    %1962 = vmatprep.subr.mxu0 0.0
    %1963 = vmatpush1.msra.mxu0 0.0
    %1964 = vmatprep.subr.mxu0 0.0
    %1965 = vmatpush1.msra.mxu0 0.0
    %1966 = vmatprep.subr.mxu0 0.0
    %1967 = vmatpush1.msra.mxu0 0.0
    %1968 = vmatprep.subr.mxu0 0.0
    %1969 = vmatpush1.msra.mxu0 0.0
    %1970 = vmatprep.subr.mxu0 0.0
    %1971 = vmatpush1.msra.mxu0 0.0
    %1972 = vmatprep.subr.mxu0 0.0
    %1973 = vmatpush1.msra.mxu0 0.0
    %1974 = vmatprep.subr.mxu0 0.0
    %1975 = vmatpush1.msra.mxu0 0.0
    %1976 = vmatprep.subr.mxu0 0.0
    %1977 = vmatpush1.msra.mxu0 0.0
    %1978 = vmatprep.subr.mxu0 0.0
    %1979 = vmatpush1.msra.mxu0 0.0
    %1980 = vmatprep.subr.mxu0 0.0
    %1981 = vmatpush1.msra.mxu0 0.0
    %1982 = vmatprep.subr.mxu0 0.0
    %1983 = vmatpush1.msra.mxu0 0.0
    %1984 = vmatprep.subr.mxu0 0.0
    %1985 = vmatpush1.msra.mxu0 0.0
    %1986 = vmatprep.subr.mxu0 0.0
    %1987 = vmatpush1.msra.mxu0 0.0
    %1988 = vmatprep.subr.mxu0 0.0
    %1989 = vmatpush1.msra.mxu0 0.0
    %1990 = vmatprep.subr.mxu0 0.0
    %1991 = vmatpush1.msra.mxu0 0.0
    %1992 = vmatprep.subr.mxu0 0.0
    %1993 = vmatpush1.msra.mxu0 0.0
    %1994 = vmatprep.subr.mxu0 0.0
    %1995 = vmatpush1.msra.mxu0 0.0
    %1996 = vmatprep.subr.mxu0 0.0
    %1997 = vmatpush1.msra.mxu0 0.0
    %1998 = vmatprep.mubr.f32.mxu0 0.0
    %v1999 = vand.u32 %v1505, 4294901760
    %v2000 = vsub.f32 %v1505, %v1999
    %v2001 = vand.u32 %v2000, 4294901760
    %2002 = vmatmul.mubr.f32.gmra.mrb[0].mxu0 %v2001
    %v2003 = vpop.f32.mrb[0].mxu0
    %v2004 = vadd.f32 %v1888, %v2003
    %v2005 = vpop.f32.mrb[0].mxu0
    %v2006 = vadd.f32 %v1890, %v2005
    %2007 = vmatprep.mubr.f32.mxu0 0.0
    %v2008 = vand.u32 %v1508, 4294901760
    %v2009 = vsub.f32 %v1508, %v2008
    %v2010 = vand.u32 %v2009, 4294901760
    %2011 = vmatmul.mubr.f32.gmra.mrb[0].mxu0 %v2010
    %v2012 = vpop.f32.mrb[0].mxu0
    %v2013 = vadd.f32 %v1896, %v2012
    %v2014 = vpop.f32.mrb[0].mxu0
    %v2015 = vadd.f32 %v1898, %v2014
    %2016 = vmatprep.mubr.f32.mxu0 0.0
    %v2017 = vand.u32 %v1511, 4294901760
    %v2018 = vsub.f32 %v1511, %v2017
    %v2019 = vand.u32 %v2018, 4294901760
    %2020 = vmatmul.mubr.f32.gmra.mrb[0].mxu0 %v2019
    %v2021 = vpop.f32.mrb[0].mxu0
    %v2022 = vadd.f32 %v1904, %v2021
    %v2023 = vpop.f32.mrb[0].mxu0
    %v2024 = vadd.f32 %v1906, %v2023
    %2025 = vmatprep.mubr.f32.mxu0 0.0
    %v2026 = vand.u32 %v1514, 4294901760
    %v2027 = vsub.f32 %v1514, %v2026
    %v2028 = vand.u32 %v2027, 4294901760
    %2029 = vmatmul.mubr.f32.gmra.mrb[0].mxu0 %v2028
    %v2030 = vpop.f32.mrb[0].mxu0
    %v2031 = vadd.f32 %v1912, %v2030
    %v2032 = vpop.f32.mrb[0].mxu0
    %v2033 = vadd.f32 %v1914, %v2032
    %2034 = vmatprep.mubr.f32.mxu0 0.0
    %v2035 = vand.u32 %v1517, 4294901760
    %v2036 = vsub.f32 %v1517, %v2035
    %v2037 = vand.u32 %v2036, 4294901760
    %2038 = vmatmul.mubr.f32.gmra.mrb[0].mxu0 %v2037
    %v2039 = vpop.f32.mrb[0].mxu0
    %v2040 = vadd.f32 %v1920, %v2039
    %v2041 = vpop.f32.mrb[0].mxu0
    %v2042 = vadd.f32 %v1922, %v2041
    %2043 = vdwg.mxu0
    %v2044 = vand.u32 %v1459, 4294901760
    %v2045 = vsub.f32 %v1459, %v2044
    %v2046 = vand.u32 %v2045, 4294901760
    %2047 = vmatprep.subr.mxu0 %v2046
    %v2048 = vand.u32 %v1458, 4294901760
    %v2049 = vsub.f32 %v1458, %v2048
    %v2050 = vand.u32 %v2049, 4294901760
    %2051 = vmatpush1.msra.mxu0 %v2050
    %v2052 = vand.u32 %v1463, 4294901760
    %v2053 = vsub.f32 %v1463, %v2052
    %v2054 = vand.u32 %v2053, 4294901760
    %2055 = vmatprep.subr.mxu0 %v2054
    %v2056 = vand.u32 %v1462, 4294901760
    %v2057 = vsub.f32 %v1462, %v2056
    %v2058 = vand.u32 %v2057, 4294901760
    %2059 = vmatpush1.msra.mxu0 %v2058
    %v2060 = vand.u32 %v1467, 4294901760
    %v2061 = vsub.f32 %v1467, %v2060
    %v2062 = vand.u32 %v2061, 4294901760
    %2063 = vmatprep.subr.mxu0 %v2062
    %v2064 = vand.u32 %v1466, 4294901760
    %v2065 = vsub.f32 %v1466, %v2064
    %v2066 = vand.u32 %v2065, 4294901760
    %2067 = vmatpush1.msra.mxu0 %v2066
    %v2068 = vand.u32 %v1471, 4294901760
    %v2069 = vsub.f32 %v1471, %v2068
    %v2070 = vand.u32 %v2069, 4294901760
    %2071 = vmatprep.subr.mxu0 %v2070
    %v2072 = vand.u32 %v1470, 4294901760
    %v2073 = vsub.f32 %v1470, %v2072
    %v2074 = vand.u32 %v2073, 4294901760
    %2075 = vmatpush1.msra.mxu0 %v2074
    %v2076 = vand.u32 %v1475, 4294901760
    %v2077 = vsub.f32 %v1475, %v2076
    %v2078 = vand.u32 %v2077, 4294901760
    %2079 = vmatprep.subr.mxu0 %v2078
    %v2080 = vand.u32 %v1474, 4294901760
    %v2081 = vsub.f32 %v1474, %v2080
    %v2082 = vand.u32 %v2081, 4294901760
    %2083 = vmatpush1.msra.mxu0 %v2082
    %2084 = vmatprep.subr.mxu0 0.0
    %2085 = vmatpush1.msra.mxu0 0.0
    %2086 = vmatprep.subr.mxu0 0.0
    %2087 = vmatpush1.msra.mxu0 0.0
    %2088 = vmatprep.subr.mxu0 0.0
    %2089 = vmatpush1.msra.mxu0 0.0
    %2090 = vmatprep.subr.mxu0 0.0
    %2091 = vmatpush1.msra.mxu0 0.0
    %2092 = vmatprep.subr.mxu0 0.0
    %2093 = vmatpush1.msra.mxu0 0.0
    %2094 = vmatprep.subr.mxu0 0.0
    %2095 = vmatpush1.msra.mxu0 0.0
    %2096 = vmatprep.subr.mxu0 0.0
    %2097 = vmatpush1.msra.mxu0 0.0
    %2098 = vmatprep.subr.mxu0 0.0
    %2099 = vmatpush1.msra.mxu0 0.0
    %2100 = vmatprep.subr.mxu0 0.0
    %2101 = vmatpush1.msra.mxu0 0.0
    %2102 = vmatprep.subr.mxu0 0.0
    %2103 = vmatpush1.msra.mxu0 0.0
    %2104 = vmatprep.subr.mxu0 0.0
    %2105 = vmatpush1.msra.mxu0 0.0
    %2106 = vmatprep.subr.mxu0 0.0
    %2107 = vmatpush1.msra.mxu0 0.0
    %2108 = vmatprep.subr.mxu0 0.0
    %2109 = vmatpush1.msra.mxu0 0.0
    %2110 = vmatprep.subr.mxu0 0.0
    %2111 = vmatpush1.msra.mxu0 0.0
    %2112 = vmatprep.subr.mxu0 0.0
    %2113 = vmatpush1.msra.mxu0 0.0
    %2114 = vmatprep.subr.mxu0 0.0
    %2115 = vmatpush1.msra.mxu0 0.0
    %2116 = vmatprep.subr.mxu0 0.0
    %2117 = vmatpush1.msra.mxu0 0.0
    %2118 = vmatprep.subr.mxu0 0.0
    %2119 = vmatpush1.msra.mxu0 0.0
    %2120 = vmatprep.subr.mxu0 0.0
    %2121 = vmatpush1.msra.mxu0 0.0
    %2122 = vmatprep.subr.mxu0 0.0
    %2123 = vmatpush1.msra.mxu0 0.0
    %2124 = vmatprep.subr.mxu0 0.0
    %2125 = vmatpush1.msra.mxu0 0.0
    %2126 = vmatprep.subr.mxu0 0.0
    %2127 = vmatpush1.msra.mxu0 0.0
    %2128 = vmatprep.subr.mxu0 0.0
    %2129 = vmatpush1.msra.mxu0 0.0
    %2130 = vmatprep.subr.mxu0 0.0
    %2131 = vmatpush1.msra.mxu0 0.0
    %2132 = vmatprep.subr.mxu0 0.0
    %2133 = vmatpush1.msra.mxu0 0.0
    %2134 = vmatprep.subr.mxu0 0.0
    %2135 = vmatpush1.msra.mxu0 0.0
    %2136 = vmatprep.subr.mxu0 0.0
    %2137 = vmatpush1.msra.mxu0 0.0
    %2138 = vmatprep.mubr.f32.mxu0 0.0
    %v2139 = vand.u32 %v1505, 4294901760
    %2140 = vmatmul.mubr.f32.gmra.mrb[0].mxu0 %v2139
    %v2141 = vpop.f32.mrb[0].mxu0
    %v2142 = vadd.f32 %v2004, %v2141
    %v2143 = vpop.f32.mrb[0].mxu0
    %v2144 = vadd.f32 %v2006, %v2143
    %2145 = vmatprep.mubr.f32.mxu0 0.0
    %v2146 = vand.u32 %v1508, 4294901760
    %2147 = vmatmul.mubr.f32.gmra.mrb[0].mxu0 %v2146
    %v2148 = vpop.f32.mrb[0].mxu0
    %v2149 = vadd.f32 %v2013, %v2148
    %v2150 = vpop.f32.mrb[0].mxu0
    %v2151 = vadd.f32 %v2015, %v2150
    %2152 = vmatprep.mubr.f32.mxu0 0.0
    %v2153 = vand.u32 %v1511, 4294901760
    %2154 = vmatmul.mubr.f32.gmra.mrb[0].mxu0 %v2153
    %v2155 = vpop.f32.mrb[0].mxu0
    %v2156 = vadd.f32 %v2022, %v2155
    %v2157 = vpop.f32.mrb[0].mxu0
    %v2158 = vadd.f32 %v2024, %v2157
    %2159 = vmatprep.mubr.f32.mxu0 0.0
    %v2160 = vand.u32 %v1514, 4294901760
    %2161 = vmatmul.mubr.f32.gmra.mrb[0].mxu0 %v2160
    %v2162 = vpop.f32.mrb[0].mxu0
    %v2163 = vadd.f32 %v2031, %v2162
    %v2164 = vpop.f32.mrb[0].mxu0
    %v2165 = vadd.f32 %v2033, %v2164
    %2166 = vmatprep.mubr.f32.mxu0 0.0
    %v2167 = vand.u32 %v1517, 4294901760
    %2168 = vmatmul.mubr.f32.gmra.mrb[0].mxu0 %v2167
    %v2169 = vpop.f32.mrb[0].mxu0
    %v2170 = vadd.f32 %v2040, %v2169
    %v2171 = vpop.f32.mrb[0].mxu0
    %v2172 = vadd.f32 %v2042, %v2171
    %2173 = vdwg.mxu0
    %v2174 = vand.u32 %v1459, 4294901760
    %2175 = vmatprep.subr.mxu0 %v2174
    %v2176 = vand.u32 %v1458, 4294901760
    %2177 = vmatpush1.msra.mxu0 %v2176
    %v2178 = vand.u32 %v1463, 4294901760
    %2179 = vmatprep.subr.mxu0 %v2178
    %v2180 = vand.u32 %v1462, 4294901760
    %2181 = vmatpush1.msra.mxu0 %v2180
    %v2182 = vand.u32 %v1467, 4294901760
    %2183 = vmatprep.subr.mxu0 %v2182
    %v2184 = vand.u32 %v1466, 4294901760
    %2185 = vmatpush1.msra.mxu0 %v2184
    %v2186 = vand.u32 %v1471, 4294901760
    %2187 = vmatprep.subr.mxu0 %v2186
    %v2188 = vand.u32 %v1470, 4294901760
    %2189 = vmatpush1.msra.mxu0 %v2188
    %v2190 = vand.u32 %v1475, 4294901760
    %2191 = vmatprep.subr.mxu0 %v2190
    %v2192 = vand.u32 %v1474, 4294901760
    %2193 = vmatpush1.msra.mxu0 %v2192
    %2194 = vmatprep.subr.mxu0 0.0
    %2195 = vmatpush1.msra.mxu0 0.0
    %2196 = vmatprep.subr.mxu0 0.0
    %2197 = vmatpush1.msra.mxu0 0.0
    %2198 = vmatprep.subr.mxu0 0.0
    %2199 = vmatpush1.msra.mxu0 0.0
    %2200 = vmatprep.subr.mxu0 0.0
    %2201 = vmatpush1.msra.mxu0 0.0
    %2202 = vmatprep.subr.mxu0 0.0
    %2203 = vmatpush1.msra.mxu0 0.0
    %2204 = vmatprep.subr.mxu0 0.0
    %2205 = vmatpush1.msra.mxu0 0.0
    %2206 = vmatprep.subr.mxu0 0.0
    %2207 = vmatpush1.msra.mxu0 0.0
    %2208 = vmatprep.subr.mxu0 0.0
    %2209 = vmatpush1.msra.mxu0 0.0
    %2210 = vmatprep.subr.mxu0 0.0
    %2211 = vmatpush1.msra.mxu0 0.0
    %2212 = vmatprep.subr.mxu0 0.0
    %2213 = vmatpush1.msra.mxu0 0.0
    %2214 = vmatprep.subr.mxu0 0.0
    %2215 = vmatpush1.msra.mxu0 0.0
    %2216 = vmatprep.subr.mxu0 0.0
    %2217 = vmatpush1.msra.mxu0 0.0
    %2218 = vmatprep.subr.mxu0 0.0
    %2219 = vmatpush1.msra.mxu0 0.0
    %2220 = vmatprep.subr.mxu0 0.0
    %2221 = vmatpush1.msra.mxu0 0.0
    %2222 = vmatprep.subr.mxu0 0.0
    %2223 = vmatpush1.msra.mxu0 0.0
    %2224 = vmatprep.subr.mxu0 0.0
    %2225 = vmatpush1.msra.mxu0 0.0
    %2226 = vmatprep.subr.mxu0 0.0
    %2227 = vmatpush1.msra.mxu0 0.0
    %2228 = vmatprep.subr.mxu0 0.0
    %2229 = vmatpush1.msra.mxu0 0.0
    %2230 = vmatprep.subr.mxu0 0.0
    %2231 = vmatpush1.msra.mxu0 0.0
    %2232 = vmatprep.subr.mxu0 0.0
    %2233 = vmatpush1.msra.mxu0 0.0
    %2234 = vmatprep.subr.mxu0 0.0
    %2235 = vmatpush1.msra.mxu0 0.0
    %2236 = vmatprep.subr.mxu0 0.0
    %2237 = vmatpush1.msra.mxu0 0.0
    %2238 = vmatprep.subr.mxu0 0.0
    %2239 = vmatpush1.msra.mxu0 0.0
    %2240 = vmatprep.subr.mxu0 0.0
    %2241 = vmatpush1.msra.mxu0 0.0
    %2242 = vmatprep.subr.mxu0 0.0
    %2243 = vmatpush1.msra.mxu0 0.0
    %2244 = vmatprep.subr.mxu0 0.0
    %2245 = vmatpush1.msra.mxu0 0.0
    %2246 = vmatprep.subr.mxu0 0.0
    %2247 = vmatpush1.msra.mxu0 0.0
    %2248 = vmatprep.mubr.f32.mxu0 0.0
    %v2249 = vand.u32 %v1505, 4294901760
    %2250 = vmatmul.mubr.f32.gmra.mrb[0].mxu0 %v2249
    %v2251 = vpop.f32.mrb[0].mxu0
    %v2252 = vadd.f32 %v2142, %v2251
    %v2253 = vpop.f32.mrb[0].mxu0
    %v2254 = vadd.f32 %v2144, %v2253
    %2255 = vmatprep.mubr.f32.mxu0 0.0
    %v2256 = vand.u32 %v1508, 4294901760
    %2257 = vmatmul.mubr.f32.gmra.mrb[0].mxu0 %v2256
    %v2258 = vpop.f32.mrb[0].mxu0
    %v2259 = vadd.f32 %v2149, %v2258
    %v2260 = vpop.f32.mrb[0].mxu0
    %v2261 = vadd.f32 %v2151, %v2260
    %2262 = vmatprep.mubr.f32.mxu0 0.0
    %v2263 = vand.u32 %v1511, 4294901760
    %2264 = vmatmul.mubr.f32.gmra.mrb[0].mxu0 %v2263
    %v2265 = vpop.f32.mrb[0].mxu0
    %v2266 = vadd.f32 %v2156, %v2265
    %v2267 = vpop.f32.mrb[0].mxu0
    %v2268 = vadd.f32 %v2158, %v2267
    %2269 = vmatprep.mubr.f32.mxu0 0.0
    %v2270 = vand.u32 %v1514, 4294901760
    %2271 = vmatmul.mubr.f32.gmra.mrb[0].mxu0 %v2270
    %v2272 = vpop.f32.mrb[0].mxu0
    %v2273 = vadd.f32 %v2163, %v2272
    %v2274 = vpop.f32.mrb[0].mxu0
    %v2275 = vadd.f32 %v2165, %v2274
    %2276 = vmatprep.mubr.f32.mxu0 0.0
    %v2277 = vand.u32 %v1517, 4294901760
    %2278 = vmatmul.mubr.f32.gmra.mrb[0].mxu0 %v2277
    %v2279 = vpop.f32.mrb[0].mxu0
    %v2280 = vadd.f32 %v2170, %v2279
    %v2281 = vpop.f32.mrb[0].mxu0
    %v2282 = vadd.f32 %v2172, %v2281
    %2283 = vdwg.mxu0
    %v2284 = vand.u32 %v1461, 4294901760
    %2285 = vmatprep.subr.mxu0 %v2284
    %v2286 = vand.u32 %v1460, 4294901760
    %2287 = vmatpush1.msra.mxu0 %v2286
    %v2288 = vand.u32 %v1465, 4294901760
    %2289 = vmatprep.subr.mxu0 %v2288
    %v2290 = vand.u32 %v1464, 4294901760
    %2291 = vmatpush1.msra.mxu0 %v2290
    %v2292 = vand.u32 %v1469, 4294901760
    %2293 = vmatprep.subr.mxu0 %v2292
    %v2294 = vand.u32 %v1468, 4294901760
    %2295 = vmatpush1.msra.mxu0 %v2294
    %v2296 = vand.u32 %v1473, 4294901760
    %2297 = vmatprep.subr.mxu0 %v2296
    %v2298 = vand.u32 %v1472, 4294901760
    %2299 = vmatpush1.msra.mxu0 %v2298
    %v2300 = vand.u32 %v1477, 4294901760
    %2301 = vmatprep.subr.mxu0 %v2300
    %v2302 = vand.u32 %v1476, 4294901760
    %2303 = vmatpush1.msra.mxu0 %v2302
    %2304 = vmatprep.subr.mxu0 0.0
    %2305 = vmatpush1.msra.mxu0 0.0
    %2306 = vmatprep.subr.mxu0 0.0
    %2307 = vmatpush1.msra.mxu0 0.0
    %2308 = vmatprep.subr.mxu0 0.0
    %2309 = vmatpush1.msra.mxu0 0.0
    %2310 = vmatprep.subr.mxu0 0.0
    %2311 = vmatpush1.msra.mxu0 0.0
    %2312 = vmatprep.subr.mxu0 0.0
    %2313 = vmatpush1.msra.mxu0 0.0
    %2314 = vmatprep.subr.mxu0 0.0
    %2315 = vmatpush1.msra.mxu0 0.0
    %2316 = vmatprep.subr.mxu0 0.0
    %2317 = vmatpush1.msra.mxu0 0.0
    %2318 = vmatprep.subr.mxu0 0.0
    %2319 = vmatpush1.msra.mxu0 0.0
    %2320 = vmatprep.subr.mxu0 0.0
    %2321 = vmatpush1.msra.mxu0 0.0
    %2322 = vmatprep.subr.mxu0 0.0
    %2323 = vmatpush1.msra.mxu0 0.0
    %2324 = vmatprep.subr.mxu0 0.0
    %2325 = vmatpush1.msra.mxu0 0.0
    %2326 = vmatprep.subr.mxu0 0.0
    %2327 = vmatpush1.msra.mxu0 0.0
    %2328 = vmatprep.subr.mxu0 0.0
    %2329 = vmatpush1.msra.mxu0 0.0
    %2330 = vmatprep.subr.mxu0 0.0
    %2331 = vmatpush1.msra.mxu0 0.0
    %2332 = vmatprep.subr.mxu0 0.0
    %2333 = vmatpush1.msra.mxu0 0.0
    %2334 = vmatprep.subr.mxu0 0.0
    %2335 = vmatpush1.msra.mxu0 0.0
    %2336 = vmatprep.subr.mxu0 0.0
    %2337 = vmatpush1.msra.mxu0 0.0
    %2338 = vmatprep.subr.mxu0 0.0
    %2339 = vmatpush1.msra.mxu0 0.0
    %2340 = vmatprep.subr.mxu0 0.0
    %2341 = vmatpush1.msra.mxu0 0.0
    %2342 = vmatprep.subr.mxu0 0.0
    %2343 = vmatpush1.msra.mxu0 0.0
    %2344 = vmatprep.subr.mxu0 0.0
    %2345 = vmatpush1.msra.mxu0 0.0
    %2346 = vmatprep.subr.mxu0 0.0
    %2347 = vmatpush1.msra.mxu0 0.0
    %2348 = vmatprep.subr.mxu0 0.0
    %2349 = vmatpush1.msra.mxu0 0.0
    %2350 = vmatprep.subr.mxu0 0.0
    %2351 = vmatpush1.msra.mxu0 0.0
    %2352 = vmatprep.subr.mxu0 0.0
    %2353 = vmatpush1.msra.mxu0 0.0
    %2354 = vmatprep.subr.mxu0 0.0
    %2355 = vmatpush1.msra.mxu0 0.0
    %2356 = vmatprep.subr.mxu0 0.0
    %2357 = vmatpush1.msra.mxu0 0.0
    %2358 = vmatprep.mubr.f32.mxu0 0.0
    %v2359 = vand.u32 %v1505, 4294901760
    %v2360 = vsub.f32 %v1505, %v2359
    %v2361 = vand.u32 %v2360, 4294901760
    %v2362 = vsub.f32 %v2360, %v2361
    %v2363 = vand.u32 %v2362, 4294901760
    %2364 = vmatmul.mubr.f32.gmra.mrb[0].mxu0 %v2363
    %v2365 = vpop.f32.mrb[0].mxu0
    %v2366 = vadd.f32 %v1481, %v2365
    %v2367 = vpop.f32.mrb[0].mxu0
    %v2368 = vadd.f32 %v1481, %v2367
    %2369 = vmatprep.mubr.f32.mxu0 0.0
    %v2370 = vand.u32 %v1508, 4294901760
    %v2371 = vsub.f32 %v1508, %v2370
    %v2372 = vand.u32 %v2371, 4294901760
    %v2373 = vsub.f32 %v2371, %v2372
    %v2374 = vand.u32 %v2373, 4294901760
    %2375 = vmatmul.mubr.f32.gmra.mrb[0].mxu0 %v2374
    %v2376 = vpop.f32.mrb[0].mxu0
    %v2377 = vadd.f32 %v1486, %v2376
    %v2378 = vpop.f32.mrb[0].mxu0
    %v2379 = vadd.f32 %v1486, %v2378
    %2380 = vmatprep.mubr.f32.mxu0 0.0
    %v2381 = vand.u32 %v1511, 4294901760
    %v2382 = vsub.f32 %v1511, %v2381
    %v2383 = vand.u32 %v2382, 4294901760
    %v2384 = vsub.f32 %v2382, %v2383
    %v2385 = vand.u32 %v2384, 4294901760
    %2386 = vmatmul.mubr.f32.gmra.mrb[0].mxu0 %v2385
    %v2387 = vpop.f32.mrb[0].mxu0
    %v2388 = vadd.f32 %v1491, %v2387
    %v2389 = vpop.f32.mrb[0].mxu0
    %v2390 = vadd.f32 %v1491, %v2389
    %2391 = vmatprep.mubr.f32.mxu0 0.0
    %v2392 = vand.u32 %v1514, 4294901760
    %v2393 = vsub.f32 %v1514, %v2392
    %v2394 = vand.u32 %v2393, 4294901760
    %v2395 = vsub.f32 %v2393, %v2394
    %v2396 = vand.u32 %v2395, 4294901760
    %2397 = vmatmul.mubr.f32.gmra.mrb[0].mxu0 %v2396
    %v2398 = vpop.f32.mrb[0].mxu0
    %v2399 = vadd.f32 %v1496, %v2398
    %v2400 = vpop.f32.mrb[0].mxu0
    %v2401 = vadd.f32 %v1496, %v2400
    %2402 = vmatprep.mubr.f32.mxu0 0.0
    %v2403 = vand.u32 %v1517, 4294901760
    %v2404 = vsub.f32 %v1517, %v2403
    %v2405 = vand.u32 %v2404, 4294901760
    %v2406 = vsub.f32 %v2404, %v2405
    %v2407 = vand.u32 %v2406, 4294901760
    %2408 = vmatmul.mubr.f32.gmra.mrb[0].mxu0 %v2407
    %v2409 = vpop.f32.mrb[0].mxu0
    %v2410 = vadd.f32 %v1501, %v2409
    %v2411 = vpop.f32.mrb[0].mxu0
    %v2412 = vadd.f32 %v1501, %v2411
    %2413 = vdwg.mxu0
    %v2414 = vand.u32 %v1461, 4294901760
    %v2415 = vsub.f32 %v1461, %v2414
    %v2416 = vand.u32 %v2415, 4294901760
    %v2417 = vsub.f32 %v2415, %v2416
    %v2418 = vand.u32 %v2417, 4294901760
    %2419 = vmatprep.subr.mxu0 %v2418
    %v2420 = vand.u32 %v1460, 4294901760
    %v2421 = vsub.f32 %v1460, %v2420
    %v2422 = vand.u32 %v2421, 4294901760
    %v2423 = vsub.f32 %v2421, %v2422
    %v2424 = vand.u32 %v2423, 4294901760
    %2425 = vmatpush1.msra.mxu0 %v2424
    %v2426 = vand.u32 %v1465, 4294901760
    %v2427 = vsub.f32 %v1465, %v2426
    %v2428 = vand.u32 %v2427, 4294901760
    %v2429 = vsub.f32 %v2427, %v2428
    %v2430 = vand.u32 %v2429, 4294901760
    %2431 = vmatprep.subr.mxu0 %v2430
    %v2432 = vand.u32 %v1464, 4294901760
    %v2433 = vsub.f32 %v1464, %v2432
    %v2434 = vand.u32 %v2433, 4294901760
    %v2435 = vsub.f32 %v2433, %v2434
    %v2436 = vand.u32 %v2435, 4294901760
    %2437 = vmatpush1.msra.mxu0 %v2436
    %v2438 = vand.u32 %v1469, 4294901760
    %v2439 = vsub.f32 %v1469, %v2438
    %v2440 = vand.u32 %v2439, 4294901760
    %v2441 = vsub.f32 %v2439, %v2440
    %v2442 = vand.u32 %v2441, 4294901760
    %2443 = vmatprep.subr.mxu0 %v2442
    %v2444 = vand.u32 %v1468, 4294901760
    %v2445 = vsub.f32 %v1468, %v2444
    %v2446 = vand.u32 %v2445, 4294901760
    %v2447 = vsub.f32 %v2445, %v2446
    %v2448 = vand.u32 %v2447, 4294901760
    %2449 = vmatpush1.msra.mxu0 %v2448
    %v2450 = vand.u32 %v1473, 4294901760
    %v2451 = vsub.f32 %v1473, %v2450
    %v2452 = vand.u32 %v2451, 4294901760
    %v2453 = vsub.f32 %v2451, %v2452
    %v2454 = vand.u32 %v2453, 4294901760
    %2455 = vmatprep.subr.mxu0 %v2454
    %v2456 = vand.u32 %v1472, 4294901760
    %v2457 = vsub.f32 %v1472, %v2456
    %v2458 = vand.u32 %v2457, 4294901760
    %v2459 = vsub.f32 %v2457, %v2458
    %v2460 = vand.u32 %v2459, 4294901760
    %2461 = vmatpush1.msra.mxu0 %v2460
    %v2462 = vand.u32 %v1477, 4294901760
    %v2463 = vsub.f32 %v1477, %v2462
    %v2464 = vand.u32 %v2463, 4294901760
    %v2465 = vsub.f32 %v2463, %v2464
    %v2466 = vand.u32 %v2465, 4294901760
    %2467 = vmatprep.subr.mxu0 %v2466
    %v2468 = vand.u32 %v1476, 4294901760
    %v2469 = vsub.f32 %v1476, %v2468
    %v2470 = vand.u32 %v2469, 4294901760
    %v2471 = vsub.f32 %v2469, %v2470
    %v2472 = vand.u32 %v2471, 4294901760
    %2473 = vmatpush1.msra.mxu0 %v2472
    %2474 = vmatprep.subr.mxu0 0.0
    %2475 = vmatpush1.msra.mxu0 0.0
    %2476 = vmatprep.subr.mxu0 0.0
    %2477 = vmatpush1.msra.mxu0 0.0
    %2478 = vmatprep.subr.mxu0 0.0
    %2479 = vmatpush1.msra.mxu0 0.0
    %2480 = vmatprep.subr.mxu0 0.0
    %2481 = vmatpush1.msra.mxu0 0.0
    %2482 = vmatprep.subr.mxu0 0.0
    %2483 = vmatpush1.msra.mxu0 0.0
    %2484 = vmatprep.subr.mxu0 0.0
    %2485 = vmatpush1.msra.mxu0 0.0
    %2486 = vmatprep.subr.mxu0 0.0
    %2487 = vmatpush1.msra.mxu0 0.0
    %2488 = vmatprep.subr.mxu0 0.0
    %2489 = vmatpush1.msra.mxu0 0.0
    %2490 = vmatprep.subr.mxu0 0.0
    %2491 = vmatpush1.msra.mxu0 0.0
    %2492 = vmatprep.subr.mxu0 0.0
    %2493 = vmatpush1.msra.mxu0 0.0
    %2494 = vmatprep.subr.mxu0 0.0
    %2495 = vmatpush1.msra.mxu0 0.0
    %2496 = vmatprep.subr.mxu0 0.0
    %2497 = vmatpush1.msra.mxu0 0.0
    %2498 = vmatprep.subr.mxu0 0.0
    %2499 = vmatpush1.msra.mxu0 0.0
    %2500 = vmatprep.subr.mxu0 0.0
    %2501 = vmatpush1.msra.mxu0 0.0
    %2502 = vmatprep.subr.mxu0 0.0
    %2503 = vmatpush1.msra.mxu0 0.0
    %2504 = vmatprep.subr.mxu0 0.0
    %2505 = vmatpush1.msra.mxu0 0.0
    %2506 = vmatprep.subr.mxu0 0.0
    %2507 = vmatpush1.msra.mxu0 0.0
    %2508 = vmatprep.subr.mxu0 0.0
    %2509 = vmatpush1.msra.mxu0 0.0
    %2510 = vmatprep.subr.mxu0 0.0
    %2511 = vmatpush1.msra.mxu0 0.0
    %2512 = vmatprep.subr.mxu0 0.0
    %2513 = vmatpush1.msra.mxu0 0.0
    %2514 = vmatprep.subr.mxu0 0.0
    %2515 = vmatpush1.msra.mxu0 0.0
    %2516 = vmatprep.subr.mxu0 0.0
    %2517 = vmatpush1.msra.mxu0 0.0
    %2518 = vmatprep.subr.mxu0 0.0
    %2519 = vmatpush1.msra.mxu0 0.0
    %2520 = vmatprep.subr.mxu0 0.0
    %2521 = vmatpush1.msra.mxu0 0.0
    %2522 = vmatprep.subr.mxu0 0.0
    %2523 = vmatpush1.msra.mxu0 0.0
    %2524 = vmatprep.subr.mxu0 0.0
    %2525 = vmatpush1.msra.mxu0 0.0
    %2526 = vmatprep.subr.mxu0 0.0
    %2527 = vmatpush1.msra.mxu0 0.0
    %2528 = vmatprep.mubr.f32.mxu0 0.0
    %v2529 = vand.u32 %v1505, 4294901760
    %2530 = vmatmul.mubr.f32.gmra.mrb[0].mxu0 %v2529
    %v2531 = vpop.f32.mrb[0].mxu0
    %v2532 = vadd.f32 %v2366, %v2531
    %v2533 = vpop.f32.mrb[0].mxu0
    %v2534 = vadd.f32 %v2368, %v2533
    %2535 = vmatprep.mubr.f32.mxu0 0.0
    %v2536 = vand.u32 %v1508, 4294901760
    %2537 = vmatmul.mubr.f32.gmra.mrb[0].mxu0 %v2536
    %v2538 = vpop.f32.mrb[0].mxu0
    %v2539 = vadd.f32 %v2377, %v2538
    %v2540 = vpop.f32.mrb[0].mxu0
    %v2541 = vadd.f32 %v2379, %v2540
    %2542 = vmatprep.mubr.f32.mxu0 0.0
    %v2543 = vand.u32 %v1511, 4294901760
    %2544 = vmatmul.mubr.f32.gmra.mrb[0].mxu0 %v2543
    %v2545 = vpop.f32.mrb[0].mxu0
    %v2546 = vadd.f32 %v2388, %v2545
    %v2547 = vpop.f32.mrb[0].mxu0
    %v2548 = vadd.f32 %v2390, %v2547
    %2549 = vmatprep.mubr.f32.mxu0 0.0
    %v2550 = vand.u32 %v1514, 4294901760
    %2551 = vmatmul.mubr.f32.gmra.mrb[0].mxu0 %v2550
    %v2552 = vpop.f32.mrb[0].mxu0
    %v2553 = vadd.f32 %v2399, %v2552
    %v2554 = vpop.f32.mrb[0].mxu0
    %v2555 = vadd.f32 %v2401, %v2554
    %2556 = vmatprep.mubr.f32.mxu0 0.0
    %v2557 = vand.u32 %v1517, 4294901760
    %2558 = vmatmul.mubr.f32.gmra.mrb[0].mxu0 %v2557
    %v2559 = vpop.f32.mrb[0].mxu0
    %v2560 = vadd.f32 %v2410, %v2559
    %v2561 = vpop.f32.mrb[0].mxu0
    %v2562 = vadd.f32 %v2412, %v2561
    %2563 = vdwg.mxu0
    %v2564 = vand.u32 %v1461, 4294901760
    %v2565 = vsub.f32 %v1461, %v2564
    %2566 = vmatprep.subr.mxu0 %v2565
    %v2567 = vand.u32 %v1460, 4294901760
    %v2568 = vsub.f32 %v1460, %v2567
    %2569 = vmatpush1.msra.mxu0 %v2568
    %v2570 = vand.u32 %v1465, 4294901760
    %v2571 = vsub.f32 %v1465, %v2570
    %2572 = vmatprep.subr.mxu0 %v2571
    %v2573 = vand.u32 %v1464, 4294901760
    %v2574 = vsub.f32 %v1464, %v2573
    %2575 = vmatpush1.msra.mxu0 %v2574
    %v2576 = vand.u32 %v1469, 4294901760
    %v2577 = vsub.f32 %v1469, %v2576
    %2578 = vmatprep.subr.mxu0 %v2577
    %v2579 = vand.u32 %v1468, 4294901760
    %v2580 = vsub.f32 %v1468, %v2579
    %2581 = vmatpush1.msra.mxu0 %v2580
    %v2582 = vand.u32 %v1473, 4294901760
    %v2583 = vsub.f32 %v1473, %v2582
    %2584 = vmatprep.subr.mxu0 %v2583
    %v2585 = vand.u32 %v1472, 4294901760
    %v2586 = vsub.f32 %v1472, %v2585
    %2587 = vmatpush1.msra.mxu0 %v2586
    %v2588 = vand.u32 %v1477, 4294901760
    %v2589 = vsub.f32 %v1477, %v2588
    %2590 = vmatprep.subr.mxu0 %v2589
    %v2591 = vand.u32 %v1476, 4294901760
    %v2592 = vsub.f32 %v1476, %v2591
    %2593 = vmatpush1.msra.mxu0 %v2592
    %2594 = vmatprep.subr.mxu0 0.0
    %2595 = vmatpush1.msra.mxu0 0.0
    %2596 = vmatprep.subr.mxu0 0.0
    %2597 = vmatpush1.msra.mxu0 0.0
    %2598 = vmatprep.subr.mxu0 0.0
    %2599 = vmatpush1.msra.mxu0 0.0
    %2600 = vmatprep.subr.mxu0 0.0
    %2601 = vmatpush1.msra.mxu0 0.0
    %2602 = vmatprep.subr.mxu0 0.0
    %2603 = vmatpush1.msra.mxu0 0.0
    %2604 = vmatprep.subr.mxu0 0.0
    %2605 = vmatpush1.msra.mxu0 0.0
    %2606 = vmatprep.subr.mxu0 0.0
    %2607 = vmatpush1.msra.mxu0 0.0
    %2608 = vmatprep.subr.mxu0 0.0
    %2609 = vmatpush1.msra.mxu0 0.0
    %2610 = vmatprep.subr.mxu0 0.0
    %2611 = vmatpush1.msra.mxu0 0.0
    %2612 = vmatprep.subr.mxu0 0.0
    %2613 = vmatpush1.msra.mxu0 0.0
    %2614 = vmatprep.subr.mxu0 0.0
    %2615 = vmatpush1.msra.mxu0 0.0
    %2616 = vmatprep.subr.mxu0 0.0
    %2617 = vmatpush1.msra.mxu0 0.0
    %2618 = vmatprep.subr.mxu0 0.0
    %2619 = vmatpush1.msra.mxu0 0.0
    %2620 = vmatprep.subr.mxu0 0.0
    %2621 = vmatpush1.msra.mxu0 0.0
    %2622 = vmatprep.subr.mxu0 0.0
    %2623 = vmatpush1.msra.mxu0 0.0
    %2624 = vmatprep.subr.mxu0 0.0
    %2625 = vmatpush1.msra.mxu0 0.0
    %2626 = vmatprep.subr.mxu0 0.0
    %2627 = vmatpush1.msra.mxu0 0.0
    %2628 = vmatprep.subr.mxu0 0.0
    %2629 = vmatpush1.msra.mxu0 0.0
    %2630 = vmatprep.subr.mxu0 0.0
    %2631 = vmatpush1.msra.mxu0 0.0
    %2632 = vmatprep.subr.mxu0 0.0
    %2633 = vmatpush1.msra.mxu0 0.0
    %2634 = vmatprep.subr.mxu0 0.0
    %2635 = vmatpush1.msra.mxu0 0.0
    %2636 = vmatprep.subr.mxu0 0.0
    %2637 = vmatpush1.msra.mxu0 0.0
    %2638 = vmatprep.subr.mxu0 0.0
    %2639 = vmatpush1.msra.mxu0 0.0
    %2640 = vmatprep.subr.mxu0 0.0
    %2641 = vmatpush1.msra.mxu0 0.0
    %2642 = vmatprep.subr.mxu0 0.0
    %2643 = vmatpush1.msra.mxu0 0.0
    %2644 = vmatprep.subr.mxu0 0.0
    %2645 = vmatpush1.msra.mxu0 0.0
    %2646 = vmatprep.subr.mxu0 0.0
    %2647 = vmatpush1.msra.mxu0 0.0
    %2648 = vmatprep.mubr.f32.mxu0 0.0
    %v2649 = vand.u32 %v1505, 4294901760
    %v2650 = vsub.f32 %v1505, %v2649
    %2651 = vmatmul.mubr.f32.gmra.mrb[0].mxu0 %v2650
    %v2652 = vpop.f32.mrb[0].mxu0
    %v2653 = vadd.f32 %v2532, %v2652
    %v2654 = vpop.f32.mrb[0].mxu0
    %v2655 = vadd.f32 %v2534, %v2654
    %2656 = vmatprep.mubr.f32.mxu0 0.0
    %v2657 = vand.u32 %v1508, 4294901760
    %v2658 = vsub.f32 %v1508, %v2657
    %2659 = vmatmul.mubr.f32.gmra.mrb[0].mxu0 %v2658
    %v2660 = vpop.f32.mrb[0].mxu0
    %v2661 = vadd.f32 %v2539, %v2660
    %v2662 = vpop.f32.mrb[0].mxu0
    %v2663 = vadd.f32 %v2541, %v2662
    %2664 = vmatprep.mubr.f32.mxu0 0.0
    %v2665 = vand.u32 %v1511, 4294901760
    %v2666 = vsub.f32 %v1511, %v2665
    %2667 = vmatmul.mubr.f32.gmra.mrb[0].mxu0 %v2666
    %v2668 = vpop.f32.mrb[0].mxu0
    %v2669 = vadd.f32 %v2546, %v2668
    %v2670 = vpop.f32.mrb[0].mxu0
    %v2671 = vadd.f32 %v2548, %v2670
    %2672 = vmatprep.mubr.f32.mxu0 0.0
    %v2673 = vand.u32 %v1514, 4294901760
    %v2674 = vsub.f32 %v1514, %v2673
    %2675 = vmatmul.mubr.f32.gmra.mrb[0].mxu0 %v2674
    %v2676 = vpop.f32.mrb[0].mxu0
    %v2677 = vadd.f32 %v2553, %v2676
    %v2678 = vpop.f32.mrb[0].mxu0
    %v2679 = vadd.f32 %v2555, %v2678
    %2680 = vmatprep.mubr.f32.mxu0 0.0
    %v2681 = vand.u32 %v1517, 4294901760
    %v2682 = vsub.f32 %v1517, %v2681
    %2683 = vmatmul.mubr.f32.gmra.mrb[0].mxu0 %v2682
    %v2684 = vpop.f32.mrb[0].mxu0
    %v2685 = vadd.f32 %v2560, %v2684
    %v2686 = vpop.f32.mrb[0].mxu0
    %v2687 = vadd.f32 %v2562, %v2686
    %2688 = vdwg.mxu0
    %v2689 = vand.u32 %v1461, 4294901760
    %2690 = vmatprep.subr.mxu0 %v2689
    %v2691 = vand.u32 %v1460, 4294901760
    %2692 = vmatpush1.msra.mxu0 %v2691
    %v2693 = vand.u32 %v1465, 4294901760
    %2694 = vmatprep.subr.mxu0 %v2693
    %v2695 = vand.u32 %v1464, 4294901760
    %2696 = vmatpush1.msra.mxu0 %v2695
    %v2697 = vand.u32 %v1469, 4294901760
    %2698 = vmatprep.subr.mxu0 %v2697
    %v2699 = vand.u32 %v1468, 4294901760
    %2700 = vmatpush1.msra.mxu0 %v2699
    %v2701 = vand.u32 %v1473, 4294901760
    %2702 = vmatprep.subr.mxu0 %v2701
    %v2703 = vand.u32 %v1472, 4294901760
    %2704 = vmatpush1.msra.mxu0 %v2703
    %v2705 = vand.u32 %v1477, 4294901760
    %2706 = vmatprep.subr.mxu0 %v2705
    %v2707 = vand.u32 %v1476, 4294901760
    %2708 = vmatpush1.msra.mxu0 %v2707
    %2709 = vmatprep.subr.mxu0 0.0
    %2710 = vmatpush1.msra.mxu0 0.0
    %2711 = vmatprep.subr.mxu0 0.0
    %2712 = vmatpush1.msra.mxu0 0.0
    %2713 = vmatprep.subr.mxu0 0.0
    %2714 = vmatpush1.msra.mxu0 0.0
    %2715 = vmatprep.subr.mxu0 0.0
    %2716 = vmatpush1.msra.mxu0 0.0
    %2717 = vmatprep.subr.mxu0 0.0
    %2718 = vmatpush1.msra.mxu0 0.0
    %2719 = vmatprep.subr.mxu0 0.0
    %2720 = vmatpush1.msra.mxu0 0.0
    %2721 = vmatprep.subr.mxu0 0.0
    %2722 = vmatpush1.msra.mxu0 0.0
    %2723 = vmatprep.subr.mxu0 0.0
    %2724 = vmatpush1.msra.mxu0 0.0
    %2725 = vmatprep.subr.mxu0 0.0
    %2726 = vmatpush1.msra.mxu0 0.0
    %2727 = vmatprep.subr.mxu0 0.0
    %2728 = vmatpush1.msra.mxu0 0.0
    %2729 = vmatprep.subr.mxu0 0.0
    %2730 = vmatpush1.msra.mxu0 0.0
    %2731 = vmatprep.subr.mxu0 0.0
    %2732 = vmatpush1.msra.mxu0 0.0
    %2733 = vmatprep.subr.mxu0 0.0
    %2734 = vmatpush1.msra.mxu0 0.0
    %2735 = vmatprep.subr.mxu0 0.0
    %2736 = vmatpush1.msra.mxu0 0.0
    %2737 = vmatprep.subr.mxu0 0.0
    %2738 = vmatpush1.msra.mxu0 0.0
    %2739 = vmatprep.subr.mxu0 0.0
    %2740 = vmatpush1.msra.mxu0 0.0
    %2741 = vmatprep.subr.mxu0 0.0
    %2742 = vmatpush1.msra.mxu0 0.0
    %2743 = vmatprep.subr.mxu0 0.0
    %2744 = vmatpush1.msra.mxu0 0.0
    %2745 = vmatprep.subr.mxu0 0.0
    %2746 = vmatpush1.msra.mxu0 0.0
    %2747 = vmatprep.subr.mxu0 0.0
    %2748 = vmatpush1.msra.mxu0 0.0
    %2749 = vmatprep.subr.mxu0 0.0
    %2750 = vmatpush1.msra.mxu0 0.0
    %2751 = vmatprep.subr.mxu0 0.0
    %2752 = vmatpush1.msra.mxu0 0.0
    %2753 = vmatprep.subr.mxu0 0.0
    %2754 = vmatpush1.msra.mxu0 0.0
    %2755 = vmatprep.subr.mxu0 0.0
    %2756 = vmatpush1.msra.mxu0 0.0
    %2757 = vmatprep.subr.mxu0 0.0
    %2758 = vmatpush1.msra.mxu0 0.0
    %2759 = vmatprep.subr.mxu0 0.0
    %2760 = vmatpush1.msra.mxu0 0.0
    %2761 = vmatprep.subr.mxu0 0.0
    %2762 = vmatpush1.msra.mxu0 0.0
    %2763 = vmatprep.mubr.f32.mxu0 0.0
    %v2764 = vand.u32 %v1505, 4294901760
    %v2765 = vsub.f32 %v1505, %v2764
    %v2766 = vand.u32 %v2765, 4294901760
    %2767 = vmatmul.mubr.f32.gmra.mrb[0].mxu0 %v2766
    %v2768 = vpop.f32.mrb[0].mxu0
    %v2769 = vadd.f32 %v2653, %v2768
    %v2770 = vpop.f32.mrb[0].mxu0
    %v2771 = vadd.f32 %v2655, %v2770
    %2772 = vmatprep.mubr.f32.mxu0 0.0
    %v2773 = vand.u32 %v1508, 4294901760
    %v2774 = vsub.f32 %v1508, %v2773
    %v2775 = vand.u32 %v2774, 4294901760
    %2776 = vmatmul.mubr.f32.gmra.mrb[0].mxu0 %v2775
    %v2777 = vpop.f32.mrb[0].mxu0
    %v2778 = vadd.f32 %v2661, %v2777
    %v2779 = vpop.f32.mrb[0].mxu0
    %v2780 = vadd.f32 %v2663, %v2779
    %2781 = vmatprep.mubr.f32.mxu0 0.0
    %v2782 = vand.u32 %v1511, 4294901760
    %v2783 = vsub.f32 %v1511, %v2782
    %v2784 = vand.u32 %v2783, 4294901760
    %2785 = vmatmul.mubr.f32.gmra.mrb[0].mxu0 %v2784
    %v2786 = vpop.f32.mrb[0].mxu0
    %v2787 = vadd.f32 %v2669, %v2786
    %v2788 = vpop.f32.mrb[0].mxu0
    %v2789 = vadd.f32 %v2671, %v2788
    %2790 = vmatprep.mubr.f32.mxu0 0.0
    %v2791 = vand.u32 %v1514, 4294901760
    %v2792 = vsub.f32 %v1514, %v2791
    %v2793 = vand.u32 %v2792, 4294901760
    %2794 = vmatmul.mubr.f32.gmra.mrb[0].mxu0 %v2793
    %v2795 = vpop.f32.mrb[0].mxu0
    %v2796 = vadd.f32 %v2677, %v2795
    %v2797 = vpop.f32.mrb[0].mxu0
    %v2798 = vadd.f32 %v2679, %v2797
    %2799 = vmatprep.mubr.f32.mxu0 0.0
    %v2800 = vand.u32 %v1517, 4294901760
    %v2801 = vsub.f32 %v1517, %v2800
    %v2802 = vand.u32 %v2801, 4294901760
    %2803 = vmatmul.mubr.f32.gmra.mrb[0].mxu0 %v2802
    %v2804 = vpop.f32.mrb[0].mxu0
    %v2805 = vadd.f32 %v2685, %v2804
    %v2806 = vpop.f32.mrb[0].mxu0
    %v2807 = vadd.f32 %v2687, %v2806
    %2808 = vdwg.mxu0
    %v2809 = vand.u32 %v1461, 4294901760
    %v2810 = vsub.f32 %v1461, %v2809
    %v2811 = vand.u32 %v2810, 4294901760
    %2812 = vmatprep.subr.mxu0 %v2811
    %v2813 = vand.u32 %v1460, 4294901760
    %v2814 = vsub.f32 %v1460, %v2813
    %v2815 = vand.u32 %v2814, 4294901760
    %2816 = vmatpush1.msra.mxu0 %v2815
    %v2817 = vand.u32 %v1465, 4294901760
    %v2818 = vsub.f32 %v1465, %v2817
    %v2819 = vand.u32 %v2818, 4294901760
    %2820 = vmatprep.subr.mxu0 %v2819
    %v2821 = vand.u32 %v1464, 4294901760
    %v2822 = vsub.f32 %v1464, %v2821
    %v2823 = vand.u32 %v2822, 4294901760
    %2824 = vmatpush1.msra.mxu0 %v2823
    %v2825 = vand.u32 %v1469, 4294901760
    %v2826 = vsub.f32 %v1469, %v2825
    %v2827 = vand.u32 %v2826, 4294901760
    %2828 = vmatprep.subr.mxu0 %v2827
    %v2829 = vand.u32 %v1468, 4294901760
    %v2830 = vsub.f32 %v1468, %v2829
    %v2831 = vand.u32 %v2830, 4294901760
    %2832 = vmatpush1.msra.mxu0 %v2831
    %v2833 = vand.u32 %v1473, 4294901760
    %v2834 = vsub.f32 %v1473, %v2833
    %v2835 = vand.u32 %v2834, 4294901760
    %2836 = vmatprep.subr.mxu0 %v2835
    %v2837 = vand.u32 %v1472, 4294901760
    %v2838 = vsub.f32 %v1472, %v2837
    %v2839 = vand.u32 %v2838, 4294901760
    %2840 = vmatpush1.msra.mxu0 %v2839
    %v2841 = vand.u32 %v1477, 4294901760
    %v2842 = vsub.f32 %v1477, %v2841
    %v2843 = vand.u32 %v2842, 4294901760
    %2844 = vmatprep.subr.mxu0 %v2843
    %v2845 = vand.u32 %v1476, 4294901760
    %v2846 = vsub.f32 %v1476, %v2845
    %v2847 = vand.u32 %v2846, 4294901760
    %2848 = vmatpush1.msra.mxu0 %v2847
    %2849 = vmatprep.subr.mxu0 0.0
    %2850 = vmatpush1.msra.mxu0 0.0
    %2851 = vmatprep.subr.mxu0 0.0
    %2852 = vmatpush1.msra.mxu0 0.0
    %2853 = vmatprep.subr.mxu0 0.0
    %2854 = vmatpush1.msra.mxu0 0.0
    %2855 = vmatprep.subr.mxu0 0.0
    %2856 = vmatpush1.msra.mxu0 0.0
    %2857 = vmatprep.subr.mxu0 0.0
    %2858 = vmatpush1.msra.mxu0 0.0
    %2859 = vmatprep.subr.mxu0 0.0
    %2860 = vmatpush1.msra.mxu0 0.0
    %2861 = vmatprep.subr.mxu0 0.0
    %2862 = vmatpush1.msra.mxu0 0.0
    %2863 = vmatprep.subr.mxu0 0.0
    %2864 = vmatpush1.msra.mxu0 0.0
    %2865 = vmatprep.subr.mxu0 0.0
    %2866 = vmatpush1.msra.mxu0 0.0
    %2867 = vmatprep.subr.mxu0 0.0
    %2868 = vmatpush1.msra.mxu0 0.0
    %2869 = vmatprep.subr.mxu0 0.0
    %2870 = vmatpush1.msra.mxu0 0.0
    %2871 = vmatprep.subr.mxu0 0.0
    %2872 = vmatpush1.msra.mxu0 0.0
    %2873 = vmatprep.subr.mxu0 0.0
    %2874 = vmatpush1.msra.mxu0 0.0
    %2875 = vmatprep.subr.mxu0 0.0
    %2876 = vmatpush1.msra.mxu0 0.0
    %2877 = vmatprep.subr.mxu0 0.0
    %2878 = vmatpush1.msra.mxu0 0.0
    %2879 = vmatprep.subr.mxu0 0.0
    %2880 = vmatpush1.msra.mxu0 0.0
    %2881 = vmatprep.subr.mxu0 0.0
    %2882 = vmatpush1.msra.mxu0 0.0
    %2883 = vmatprep.subr.mxu0 0.0
    %2884 = vmatpush1.msra.mxu0 0.0
    %2885 = vmatprep.subr.mxu0 0.0
    %2886 = vmatpush1.msra.mxu0 0.0
    %2887 = vmatprep.subr.mxu0 0.0
    %2888 = vmatpush1.msra.mxu0 0.0
    %2889 = vmatprep.subr.mxu0 0.0
    %2890 = vmatpush1.msra.mxu0 0.0
    %2891 = vmatprep.subr.mxu0 0.0
    %2892 = vmatpush1.msra.mxu0 0.0
    %2893 = vmatprep.subr.mxu0 0.0
    %2894 = vmatpush1.msra.mxu0 0.0
    %2895 = vmatprep.subr.mxu0 0.0
    %2896 = vmatpush1.msra.mxu0 0.0
    %2897 = vmatprep.subr.mxu0 0.0
    %2898 = vmatpush1.msra.mxu0 0.0
    %2899 = vmatprep.subr.mxu0 0.0
    %2900 = vmatpush1.msra.mxu0 0.0
    %2901 = vmatprep.subr.mxu0 0.0
    %2902 = vmatpush1.msra.mxu0 0.0
    %2903 = vmatprep.mubr.f32.mxu0 0.0
    %v2904 = vand.u32 %v1505, 4294901760
    %2905 = vmatmul.mubr.f32.gmra.mrb[0].mxu0 %v2904
    %v2906 = vpop.f32.mrb[0].mxu0
    %v2907 = vadd.f32 %v2769, %v2906
    %v2908 = vpop.f32.mrb[0].mxu0
    %v2909 = vadd.f32 %v2771, %v2908
    %2910 = vmatprep.mubr.f32.mxu0 0.0
    %v2911 = vand.u32 %v1508, 4294901760
    %2912 = vmatmul.mubr.f32.gmra.mrb[0].mxu0 %v2911
    %v2913 = vpop.f32.mrb[0].mxu0
    %v2914 = vadd.f32 %v2778, %v2913
    %v2915 = vpop.f32.mrb[0].mxu0
    %v2916 = vadd.f32 %v2780, %v2915
    %2917 = vmatprep.mubr.f32.mxu0 0.0
    %v2918 = vand.u32 %v1511, 4294901760
    %2919 = vmatmul.mubr.f32.gmra.mrb[0].mxu0 %v2918
    %v2920 = vpop.f32.mrb[0].mxu0
    %v2921 = vadd.f32 %v2787, %v2920
    %v2922 = vpop.f32.mrb[0].mxu0
    %v2923 = vadd.f32 %v2789, %v2922
    %2924 = vmatprep.mubr.f32.mxu0 0.0
    %v2925 = vand.u32 %v1514, 4294901760
    %2926 = vmatmul.mubr.f32.gmra.mrb[0].mxu0 %v2925
    %v2927 = vpop.f32.mrb[0].mxu0
    %v2928 = vadd.f32 %v2796, %v2927
    %v2929 = vpop.f32.mrb[0].mxu0
    %v2930 = vadd.f32 %v2798, %v2929
    %2931 = vmatprep.mubr.f32.mxu0 0.0
    %v2932 = vand.u32 %v1517, 4294901760
    %2933 = vmatmul.mubr.f32.gmra.mrb[0].mxu0 %v2932
    %v2934 = vpop.f32.mrb[0].mxu0
    %v2935 = vadd.f32 %v2805, %v2934
    %v2936 = vpop.f32.mrb[0].mxu0
    %v2937 = vadd.f32 %v2807, %v2936
    %2938 = vdwg.mxu0
    %v2939 = vand.u32 %v1461, 4294901760
    %2940 = vmatprep.subr.mxu0 %v2939
    %v2941 = vand.u32 %v1460, 4294901760
    %2942 = vmatpush1.msra.mxu0 %v2941
    %v2943 = vand.u32 %v1465, 4294901760
    %2944 = vmatprep.subr.mxu0 %v2943
    %v2945 = vand.u32 %v1464, 4294901760
    %2946 = vmatpush1.msra.mxu0 %v2945
    %v2947 = vand.u32 %v1469, 4294901760
    %2948 = vmatprep.subr.mxu0 %v2947
    %v2949 = vand.u32 %v1468, 4294901760
    %2950 = vmatpush1.msra.mxu0 %v2949
    %v2951 = vand.u32 %v1473, 4294901760
    %2952 = vmatprep.subr.mxu0 %v2951
    %v2953 = vand.u32 %v1472, 4294901760
    %2954 = vmatpush1.msra.mxu0 %v2953
    %v2955 = vand.u32 %v1477, 4294901760
    %2956 = vmatprep.subr.mxu0 %v2955
    %v2957 = vand.u32 %v1476, 4294901760
    %2958 = vmatpush1.msra.mxu0 %v2957
    %2959 = vmatprep.subr.mxu0 0.0
    %2960 = vmatpush1.msra.mxu0 0.0
    %2961 = vmatprep.subr.mxu0 0.0
    %2962 = vmatpush1.msra.mxu0 0.0
    %2963 = vmatprep.subr.mxu0 0.0
    %2964 = vmatpush1.msra.mxu0 0.0
    %2965 = vmatprep.subr.mxu0 0.0
    %2966 = vmatpush1.msra.mxu0 0.0
    %2967 = vmatprep.subr.mxu0 0.0
    %2968 = vmatpush1.msra.mxu0 0.0
    %2969 = vmatprep.subr.mxu0 0.0
    %2970 = vmatpush1.msra.mxu0 0.0
    %2971 = vmatprep.subr.mxu0 0.0
    %2972 = vmatpush1.msra.mxu0 0.0
    %2973 = vmatprep.subr.mxu0 0.0
    %2974 = vmatpush1.msra.mxu0 0.0
    %2975 = vmatprep.subr.mxu0 0.0
    %2976 = vmatpush1.msra.mxu0 0.0
    %2977 = vmatprep.subr.mxu0 0.0
    %2978 = vmatpush1.msra.mxu0 0.0
    %2979 = vmatprep.subr.mxu0 0.0
    %2980 = vmatpush1.msra.mxu0 0.0
    %2981 = vmatprep.subr.mxu0 0.0
    %2982 = vmatpush1.msra.mxu0 0.0
    %2983 = vmatprep.subr.mxu0 0.0
    %2984 = vmatpush1.msra.mxu0 0.0
    %2985 = vmatprep.subr.mxu0 0.0
    %2986 = vmatpush1.msra.mxu0 0.0
    %2987 = vmatprep.subr.mxu0 0.0
    %2988 = vmatpush1.msra.mxu0 0.0
    %2989 = vmatprep.subr.mxu0 0.0
    %2990 = vmatpush1.msra.mxu0 0.0
    %2991 = vmatprep.subr.mxu0 0.0
    %2992 = vmatpush1.msra.mxu0 0.0
    %2993 = vmatprep.subr.mxu0 0.0
    %2994 = vmatpush1.msra.mxu0 0.0
    %2995 = vmatprep.subr.mxu0 0.0
    %2996 = vmatpush1.msra.mxu0 0.0
    %2997 = vmatprep.subr.mxu0 0.0
    %2998 = vmatpush1.msra.mxu0 0.0
    %2999 = vmatprep.subr.mxu0 0.0
    %3000 = vmatpush1.msra.mxu0 0.0
    %3001 = vmatprep.subr.mxu0 0.0
    %3002 = vmatpush1.msra.mxu0 0.0
    %3003 = vmatprep.subr.mxu0 0.0
    %3004 = vmatpush1.msra.mxu0 0.0
    %3005 = vmatprep.subr.mxu0 0.0
    %3006 = vmatpush1.msra.mxu0 0.0
    %3007 = vmatprep.subr.mxu0 0.0
    %3008 = vmatpush1.msra.mxu0 0.0
    %3009 = vmatprep.subr.mxu0 0.0
    %3010 = vmatpush1.msra.mxu0 0.0
    %3011 = vmatprep.subr.mxu0 0.0
    %3012 = vmatpush1.msra.mxu0 0.0
    %3013 = vmatprep.mubr.f32.mxu0 0.0
    %v3014 = vand.u32 %v1505, 4294901760
    %3015 = vmatmul.mubr.f32.gmra.mrb[0].mxu0 %v3014
    %v3016 = vpop.f32.mrb[0].mxu0
    %v3017 = vadd.f32 %v2907, %v3016
    %v3018 = vpop.f32.mrb[0].mxu0
    %v3019 = vadd.f32 %v2909, %v3018
    %3020 = vmatprep.mubr.f32.mxu0 0.0
    %v3021 = vand.u32 %v1508, 4294901760
    %3022 = vmatmul.mubr.f32.gmra.mrb[0].mxu0 %v3021
    %v3023 = vpop.f32.mrb[0].mxu0
    %v3024 = vadd.f32 %v2914, %v3023
    %v3025 = vpop.f32.mrb[0].mxu0
    %v3026 = vadd.f32 %v2916, %v3025
    %3027 = vmatprep.mubr.f32.mxu0 0.0
    %v3028 = vand.u32 %v1511, 4294901760
    %3029 = vmatmul.mubr.f32.gmra.mrb[0].mxu0 %v3028
    %v3030 = vpop.f32.mrb[0].mxu0
    %v3031 = vadd.f32 %v2921, %v3030
    %v3032 = vpop.f32.mrb[0].mxu0
    %v3033 = vadd.f32 %v2923, %v3032
    %3034 = vmatprep.mubr.f32.mxu0 0.0
    %v3035 = vand.u32 %v1514, 4294901760
    %3036 = vmatmul.mubr.f32.gmra.mrb[0].mxu0 %v3035
    %v3037 = vpop.f32.mrb[0].mxu0
    %v3038 = vadd.f32 %v2928, %v3037
    %v3039 = vpop.f32.mrb[0].mxu0
    %v3040 = vadd.f32 %v2930, %v3039
    %3041 = vmatprep.mubr.f32.mxu0 0.0
    %v3042 = vand.u32 %v1517, 4294901760
    %3043 = vmatmul.mubr.f32.gmra.mrb[0].mxu0 %v3042
    %v3044 = vpop.f32.mrb[0].mxu0
    %v3045 = vadd.f32 %v2935, %v3044
    %v3046 = vpop.f32.mrb[0].mxu0
    %v3047 = vadd.f32 %v2937, %v3046
    %3048 = vdwg.mxu0
    %v3049 = vtanh.pop %v2252
    %v3050 = vtanh.pop %v2254
    %v3051 = vtanh.pop %v3017
    %v3052 = vtanh.pop %v3019
    %v3053 = vtanh.pop %v2259
    %v3054 = vtanh.pop %v2261
    %v3055 = vtanh.pop %v3024
    %v3056 = vtanh.pop %v3026
    %v3057 = vtanh.pop %v2266
    %v3058 = vtanh.pop %v2268
    %v3059 = vtanh.pop %v3031
    %v3060 = vtanh.pop %v3033
    %v3061 = vtanh.pop %v2273
    %v3062 = vtanh.pop %v2275
    %v3063 = vtanh.pop %v3038
    %v3064 = vtanh.pop %v3040
    %v3065 = vtanh.pop %v2280
    %v3066 = vtanh.pop %v2282
    %v3067 = vtanh.pop %v3045
    %v3068 = vtanh.pop %v3047
    %3070 = vset.pattern.permute.xlu0 0
    %3071 = vperm.xlu0 %3070, %v60
    %v3072 = vpop.permute.xlu0 %3071
    %3075 = vset.pattern.permute.xlu0 0
    %3076 = vperm.xlu0 %3075, %v61
    %v3077 = vpop.permute.xlu0 %3076
    %3080 = vset.pattern.permute.xlu0 0
    %3081 = vperm.xlu0 %3080, %v62
    %v3082 = vpop.permute.xlu0 %3081
    %3085 = vset.pattern.permute.xlu0 0
    %3086 = vperm.xlu0 %3085, %v63
    %v3087 = vpop.permute.xlu0 %3086
    %3090 = vset.pattern.permute.xlu0 0
    %3091 = vperm.xlu0 %3090, %v64
    %v3092 = vpop.permute.xlu0 %3091
    %v3095 = vsel %vm1503, %v55, 0
    %v3098 = vsel %vm1503, %v56, 0
    %v3101 = vsel %vm1503, %v57, 0
    %v3104 = vsel %vm1503, %v58, 0
    %v3107 = vsel %vm1503, %v59, 0
    %v3109 = vand.u32 %v3050, 4294901760
    %3110 = vmatprep.subr.mxu0 %v3109
    %v3111 = vand.u32 %v3049, 4294901760
    %3112 = vmatpush1.msra.mxu0 %v3111
    %v3113 = vand.u32 %v3054, 4294901760
    %3114 = vmatprep.subr.mxu0 %v3113
    %v3115 = vand.u32 %v3053, 4294901760
    %3116 = vmatpush1.msra.mxu0 %v3115
    %v3117 = vand.u32 %v3058, 4294901760
    %3118 = vmatprep.subr.mxu0 %v3117
    %v3119 = vand.u32 %v3057, 4294901760
    %3120 = vmatpush1.msra.mxu0 %v3119
    %v3121 = vand.u32 %v3062, 4294901760
    %3122 = vmatprep.subr.mxu0 %v3121
    %v3123 = vand.u32 %v3061, 4294901760
    %3124 = vmatpush1.msra.mxu0 %v3123
    %v3125 = vand.u32 %v3066, 4294901760
    %3126 = vmatprep.subr.mxu0 %v3125
    %v3127 = vand.u32 %v3065, 4294901760
    %3128 = vmatpush1.msra.mxu0 %v3127
    %3129 = vmatprep.subr.mxu0 0.0
    %3130 = vmatpush1.msra.mxu0 0.0
    %3131 = vmatprep.subr.mxu0 0.0
    %3132 = vmatpush1.msra.mxu0 0.0
    %3133 = vmatprep.subr.mxu0 0.0
    %3134 = vmatpush1.msra.mxu0 0.0
    %3135 = vmatprep.subr.mxu0 0.0
    %3136 = vmatpush1.msra.mxu0 0.0
    %3137 = vmatprep.subr.mxu0 0.0
    %3138 = vmatpush1.msra.mxu0 0.0
    %3139 = vmatprep.subr.mxu0 0.0
    %3140 = vmatpush1.msra.mxu0 0.0
    %3141 = vmatprep.subr.mxu0 0.0
    %3142 = vmatpush1.msra.mxu0 0.0
    %3143 = vmatprep.subr.mxu0 0.0
    %3144 = vmatpush1.msra.mxu0 0.0
    %3145 = vmatprep.subr.mxu0 0.0
    %3146 = vmatpush1.msra.mxu0 0.0
    %3147 = vmatprep.subr.mxu0 0.0
    %3148 = vmatpush1.msra.mxu0 0.0
    %3149 = vmatprep.subr.mxu0 0.0
    %3150 = vmatpush1.msra.mxu0 0.0
    %3151 = vmatprep.subr.mxu0 0.0
    %3152 = vmatpush1.msra.mxu0 0.0
    %3153 = vmatprep.subr.mxu0 0.0
    %3154 = vmatpush1.msra.mxu0 0.0
    %3155 = vmatprep.subr.mxu0 0.0
    %3156 = vmatpush1.msra.mxu0 0.0
    %3157 = vmatprep.subr.mxu0 0.0
    %3158 = vmatpush1.msra.mxu0 0.0
    %3159 = vmatprep.subr.mxu0 0.0
    %3160 = vmatpush1.msra.mxu0 0.0
    %3161 = vmatprep.subr.mxu0 0.0
    %3162 = vmatpush1.msra.mxu0 0.0
    %3163 = vmatprep.subr.mxu0 0.0
    %3164 = vmatpush1.msra.mxu0 0.0
    %3165 = vmatprep.subr.mxu0 0.0
    %3166 = vmatpush1.msra.mxu0 0.0
    %3167 = vmatprep.subr.mxu0 0.0
    %3168 = vmatpush1.msra.mxu0 0.0
    %3169 = vmatprep.subr.mxu0 0.0
    %3170 = vmatpush1.msra.mxu0 0.0
    %3171 = vmatprep.subr.mxu0 0.0
    %3172 = vmatpush1.msra.mxu0 0.0
    %3173 = vmatprep.subr.mxu0 0.0
    %3174 = vmatpush1.msra.mxu0 0.0
    %3175 = vmatprep.subr.mxu0 0.0
    %3176 = vmatpush1.msra.mxu0 0.0
    %3177 = vmatprep.subr.mxu0 0.0
    %3178 = vmatpush1.msra.mxu0 0.0
    %3179 = vmatprep.subr.mxu0 0.0
    %3180 = vmatpush1.msra.mxu0 0.0
    %3181 = vmatprep.subr.mxu0 0.0
    %3182 = vmatpush1.msra.mxu0 0.0
    %3183 = vmatprep.mubr.f32.mxu0 0.0
    %v3184 = vand.u32 %v3095, 4294901760
    %v3185 = vsub.f32 %v3095, %v3184
    %v3186 = vand.u32 %v3185, 4294901760
    %v3187 = vsub.f32 %v3185, %v3186
    %v3188 = vand.u32 %v3187, 4294901760
    %3189 = vmatmul.mubr.f32.gmra.mrb[0].mxu0 %v3188
    %v3190 = vpop.f32.mrb[0].mxu0
    %v3191 = vadd.f32 %v3072, %v3190
    %v3192 = vpop.f32.mrb[0].mxu0
    %v3193 = vadd.f32 %v3072, %v3192
    %3194 = vmatprep.mubr.f32.mxu0 0.0
    %v3195 = vand.u32 %v3098, 4294901760
    %v3196 = vsub.f32 %v3098, %v3195
    %v3197 = vand.u32 %v3196, 4294901760
    %v3198 = vsub.f32 %v3196, %v3197
    %v3199 = vand.u32 %v3198, 4294901760
    %3200 = vmatmul.mubr.f32.gmra.mrb[0].mxu0 %v3199
    %v3201 = vpop.f32.mrb[0].mxu0
    %v3202 = vadd.f32 %v3077, %v3201
    %v3203 = vpop.f32.mrb[0].mxu0
    %v3204 = vadd.f32 %v3077, %v3203
    %3205 = vmatprep.mubr.f32.mxu0 0.0
    %v3206 = vand.u32 %v3101, 4294901760
    %v3207 = vsub.f32 %v3101, %v3206
    %v3208 = vand.u32 %v3207, 4294901760
    %v3209 = vsub.f32 %v3207, %v3208
    %v3210 = vand.u32 %v3209, 4294901760
    %3211 = vmatmul.mubr.f32.gmra.mrb[0].mxu0 %v3210
    %v3212 = vpop.f32.mrb[0].mxu0
    %v3213 = vadd.f32 %v3082, %v3212
    %v3214 = vpop.f32.mrb[0].mxu0
    %v3215 = vadd.f32 %v3082, %v3214
    %3216 = vmatprep.mubr.f32.mxu0 0.0
    %v3217 = vand.u32 %v3104, 4294901760
    %v3218 = vsub.f32 %v3104, %v3217
    %v3219 = vand.u32 %v3218, 4294901760
    %v3220 = vsub.f32 %v3218, %v3219
    %v3221 = vand.u32 %v3220, 4294901760
    %3222 = vmatmul.mubr.f32.gmra.mrb[0].mxu0 %v3221
    %v3223 = vpop.f32.mrb[0].mxu0
    %v3224 = vadd.f32 %v3087, %v3223
    %v3225 = vpop.f32.mrb[0].mxu0
    %v3226 = vadd.f32 %v3087, %v3225
    %3227 = vmatprep.mubr.f32.mxu0 0.0
    %v3228 = vand.u32 %v3107, 4294901760
    %v3229 = vsub.f32 %v3107, %v3228
    %v3230 = vand.u32 %v3229, 4294901760
    %v3231 = vsub.f32 %v3229, %v3230
    %v3232 = vand.u32 %v3231, 4294901760
    %3233 = vmatmul.mubr.f32.gmra.mrb[0].mxu0 %v3232
    %v3234 = vpop.f32.mrb[0].mxu0
    %v3235 = vadd.f32 %v3092, %v3234
    %v3236 = vpop.f32.mrb[0].mxu0
    %v3237 = vadd.f32 %v3092, %v3236
    %3238 = vdwg.mxu0
    %v3239 = vand.u32 %v3050, 4294901760
    %v3240 = vsub.f32 %v3050, %v3239
    %v3241 = vand.u32 %v3240, 4294901760
    %v3242 = vsub.f32 %v3240, %v3241
    %v3243 = vand.u32 %v3242, 4294901760
    %3244 = vmatprep.subr.mxu0 %v3243
    %v3245 = vand.u32 %v3049, 4294901760
    %v3246 = vsub.f32 %v3049, %v3245
    %v3247 = vand.u32 %v3246, 4294901760
    %v3248 = vsub.f32 %v3246, %v3247
    %v3249 = vand.u32 %v3248, 4294901760
    %3250 = vmatpush1.msra.mxu0 %v3249
    %v3251 = vand.u32 %v3054, 4294901760
    %v3252 = vsub.f32 %v3054, %v3251
    %v3253 = vand.u32 %v3252, 4294901760
    %v3254 = vsub.f32 %v3252, %v3253
    %v3255 = vand.u32 %v3254, 4294901760
    %3256 = vmatprep.subr.mxu0 %v3255
    %v3257 = vand.u32 %v3053, 4294901760
    %v3258 = vsub.f32 %v3053, %v3257
    %v3259 = vand.u32 %v3258, 4294901760
    %v3260 = vsub.f32 %v3258, %v3259
    %v3261 = vand.u32 %v3260, 4294901760
    %3262 = vmatpush1.msra.mxu0 %v3261
    %v3263 = vand.u32 %v3058, 4294901760
    %v3264 = vsub.f32 %v3058, %v3263
    %v3265 = vand.u32 %v3264, 4294901760
    %v3266 = vsub.f32 %v3264, %v3265
    %v3267 = vand.u32 %v3266, 4294901760
    %3268 = vmatprep.subr.mxu0 %v3267
    %v3269 = vand.u32 %v3057, 4294901760
    %v3270 = vsub.f32 %v3057, %v3269
    %v3271 = vand.u32 %v3270, 4294901760
    %v3272 = vsub.f32 %v3270, %v3271
    %v3273 = vand.u32 %v3272, 4294901760
    %3274 = vmatpush1.msra.mxu0 %v3273
    %v3275 = vand.u32 %v3062, 4294901760
    %v3276 = vsub.f32 %v3062, %v3275
    %v3277 = vand.u32 %v3276, 4294901760
    %v3278 = vsub.f32 %v3276, %v3277
    %v3279 = vand.u32 %v3278, 4294901760
    %3280 = vmatprep.subr.mxu0 %v3279
    %v3281 = vand.u32 %v3061, 4294901760
    %v3282 = vsub.f32 %v3061, %v3281
    %v3283 = vand.u32 %v3282, 4294901760
    %v3284 = vsub.f32 %v3282, %v3283
    %v3285 = vand.u32 %v3284, 4294901760
    %3286 = vmatpush1.msra.mxu0 %v3285
    %v3287 = vand.u32 %v3066, 4294901760
    %v3288 = vsub.f32 %v3066, %v3287
    %v3289 = vand.u32 %v3288, 4294901760
    %v3290 = vsub.f32 %v3288, %v3289
    %v3291 = vand.u32 %v3290, 4294901760
    %3292 = vmatprep.subr.mxu0 %v3291
    %v3293 = vand.u32 %v3065, 4294901760
    %v3294 = vsub.f32 %v3065, %v3293
    %v3295 = vand.u32 %v3294, 4294901760
    %v3296 = vsub.f32 %v3294, %v3295
    %v3297 = vand.u32 %v3296, 4294901760
    %3298 = vmatpush1.msra.mxu0 %v3297
    %3299 = vmatprep.subr.mxu0 0.0
    %3300 = vmatpush1.msra.mxu0 0.0
    %3301 = vmatprep.subr.mxu0 0.0
    %3302 = vmatpush1.msra.mxu0 0.0
    %3303 = vmatprep.subr.mxu0 0.0
    %3304 = vmatpush1.msra.mxu0 0.0
    %3305 = vmatprep.subr.mxu0 0.0
    %3306 = vmatpush1.msra.mxu0 0.0
    %3307 = vmatprep.subr.mxu0 0.0
    %3308 = vmatpush1.msra.mxu0 0.0
    %3309 = vmatprep.subr.mxu0 0.0
    %3310 = vmatpush1.msra.mxu0 0.0
    %3311 = vmatprep.subr.mxu0 0.0
    %3312 = vmatpush1.msra.mxu0 0.0
    %3313 = vmatprep.subr.mxu0 0.0
    %3314 = vmatpush1.msra.mxu0 0.0
    %3315 = vmatprep.subr.mxu0 0.0
    %3316 = vmatpush1.msra.mxu0 0.0
    %3317 = vmatprep.subr.mxu0 0.0
    %3318 = vmatpush1.msra.mxu0 0.0
    %3319 = vmatprep.subr.mxu0 0.0
    %3320 = vmatpush1.msra.mxu0 0.0
    %3321 = vmatprep.subr.mxu0 0.0
    %3322 = vmatpush1.msra.mxu0 0.0
    %3323 = vmatprep.subr.mxu0 0.0
    %3324 = vmatpush1.msra.mxu0 0.0
    %3325 = vmatprep.subr.mxu0 0.0
    %3326 = vmatpush1.msra.mxu0 0.0
    %3327 = vmatprep.subr.mxu0 0.0
    %3328 = vmatpush1.msra.mxu0 0.0
    %3329 = vmatprep.subr.mxu0 0.0
    %3330 = vmatpush1.msra.mxu0 0.0
    %3331 = vmatprep.subr.mxu0 0.0
    %3332 = vmatpush1.msra.mxu0 0.0
    %3333 = vmatprep.subr.mxu0 0.0
    %3334 = vmatpush1.msra.mxu0 0.0
    %3335 = vmatprep.subr.mxu0 0.0
    %3336 = vmatpush1.msra.mxu0 0.0
    %3337 = vmatprep.subr.mxu0 0.0
    %3338 = vmatpush1.msra.mxu0 0.0
    %3339 = vmatprep.subr.mxu0 0.0
    %3340 = vmatpush1.msra.mxu0 0.0
    %3341 = vmatprep.subr.mxu0 0.0
    %3342 = vmatpush1.msra.mxu0 0.0
    %3343 = vmatprep.subr.mxu0 0.0
    %3344 = vmatpush1.msra.mxu0 0.0
    %3345 = vmatprep.subr.mxu0 0.0
    %3346 = vmatpush1.msra.mxu0 0.0
    %3347 = vmatprep.subr.mxu0 0.0
    %3348 = vmatpush1.msra.mxu0 0.0
    %3349 = vmatprep.subr.mxu0 0.0
    %3350 = vmatpush1.msra.mxu0 0.0
    %3351 = vmatprep.subr.mxu0 0.0
    %3352 = vmatpush1.msra.mxu0 0.0
    %3353 = vmatprep.mubr.f32.mxu0 0.0
    %v3354 = vand.u32 %v3095, 4294901760
    %3355 = vmatmul.mubr.f32.gmra.mrb[0].mxu0 %v3354
    %v3356 = vpop.f32.mrb[0].mxu0
    %v3357 = vadd.f32 %v3191, %v3356
    %v3358 = vpop.f32.mrb[0].mxu0
    %v3359 = vadd.f32 %v3193, %v3358
    %3360 = vmatprep.mubr.f32.mxu0 0.0
    %v3361 = vand.u32 %v3098, 4294901760
    %3362 = vmatmul.mubr.f32.gmra.mrb[0].mxu0 %v3361
    %v3363 = vpop.f32.mrb[0].mxu0
    %v3364 = vadd.f32 %v3202, %v3363
    %v3365 = vpop.f32.mrb[0].mxu0
    %v3366 = vadd.f32 %v3204, %v3365
    %3367 = vmatprep.mubr.f32.mxu0 0.0
    %v3368 = vand.u32 %v3101, 4294901760
    %3369 = vmatmul.mubr.f32.gmra.mrb[0].mxu0 %v3368
    %v3370 = vpop.f32.mrb[0].mxu0
    %v3371 = vadd.f32 %v3213, %v3370
    %v3372 = vpop.f32.mrb[0].mxu0
    %v3373 = vadd.f32 %v3215, %v3372
    %3374 = vmatprep.mubr.f32.mxu0 0.0
    %v3375 = vand.u32 %v3104, 4294901760
    %3376 = vmatmul.mubr.f32.gmra.mrb[0].mxu0 %v3375
    %v3377 = vpop.f32.mrb[0].mxu0
    %v3378 = vadd.f32 %v3224, %v3377
    %v3379 = vpop.f32.mrb[0].mxu0
    %v3380 = vadd.f32 %v3226, %v3379
    %3381 = vmatprep.mubr.f32.mxu0 0.0
    %v3382 = vand.u32 %v3107, 4294901760
    %3383 = vmatmul.mubr.f32.gmra.mrb[0].mxu0 %v3382
    %v3384 = vpop.f32.mrb[0].mxu0
    %v3385 = vadd.f32 %v3235, %v3384
    %v3386 = vpop.f32.mrb[0].mxu0
    %v3387 = vadd.f32 %v3237, %v3386
    %3388 = vdwg.mxu0
    %v3389 = vand.u32 %v3050, 4294901760
    %v3390 = vsub.f32 %v3050, %v3389
    %3391 = vmatprep.subr.mxu0 %v3390
    %v3392 = vand.u32 %v3049, 4294901760
    %v3393 = vsub.f32 %v3049, %v3392
    %3394 = vmatpush1.msra.mxu0 %v3393
    %v3395 = vand.u32 %v3054, 4294901760
    %v3396 = vsub.f32 %v3054, %v3395
    %3397 = vmatprep.subr.mxu0 %v3396
    %v3398 = vand.u32 %v3053, 4294901760
    %v3399 = vsub.f32 %v3053, %v3398
    %3400 = vmatpush1.msra.mxu0 %v3399
    %v3401 = vand.u32 %v3058, 4294901760
    %v3402 = vsub.f32 %v3058, %v3401
    %3403 = vmatprep.subr.mxu0 %v3402
    %v3404 = vand.u32 %v3057, 4294901760
    %v3405 = vsub.f32 %v3057, %v3404
    %3406 = vmatpush1.msra.mxu0 %v3405
    %v3407 = vand.u32 %v3062, 4294901760
    %v3408 = vsub.f32 %v3062, %v3407
    %3409 = vmatprep.subr.mxu0 %v3408
    %v3410 = vand.u32 %v3061, 4294901760
    %v3411 = vsub.f32 %v3061, %v3410
    %3412 = vmatpush1.msra.mxu0 %v3411
    %v3413 = vand.u32 %v3066, 4294901760
    %v3414 = vsub.f32 %v3066, %v3413
    %3415 = vmatprep.subr.mxu0 %v3414
    %v3416 = vand.u32 %v3065, 4294901760
    %v3417 = vsub.f32 %v3065, %v3416
    %3418 = vmatpush1.msra.mxu0 %v3417
    %3419 = vmatprep.subr.mxu0 0.0
    %3420 = vmatpush1.msra.mxu0 0.0
    %3421 = vmatprep.subr.mxu0 0.0
    %3422 = vmatpush1.msra.mxu0 0.0
    %3423 = vmatprep.subr.mxu0 0.0
    %3424 = vmatpush1.msra.mxu0 0.0
    %3425 = vmatprep.subr.mxu0 0.0
    %3426 = vmatpush1.msra.mxu0 0.0
    %3427 = vmatprep.subr.mxu0 0.0
    %3428 = vmatpush1.msra.mxu0 0.0
    %3429 = vmatprep.subr.mxu0 0.0
    %3430 = vmatpush1.msra.mxu0 0.0
    %3431 = vmatprep.subr.mxu0 0.0
    %3432 = vmatpush1.msra.mxu0 0.0
    %3433 = vmatprep.subr.mxu0 0.0
    %3434 = vmatpush1.msra.mxu0 0.0
    %3435 = vmatprep.subr.mxu0 0.0
    %3436 = vmatpush1.msra.mxu0 0.0
    %3437 = vmatprep.subr.mxu0 0.0
    %3438 = vmatpush1.msra.mxu0 0.0
    %3439 = vmatprep.subr.mxu0 0.0
    %3440 = vmatpush1.msra.mxu0 0.0
    %3441 = vmatprep.subr.mxu0 0.0
    %3442 = vmatpush1.msra.mxu0 0.0
    %3443 = vmatprep.subr.mxu0 0.0
    %3444 = vmatpush1.msra.mxu0 0.0
    %3445 = vmatprep.subr.mxu0 0.0
    %3446 = vmatpush1.msra.mxu0 0.0
    %3447 = vmatprep.subr.mxu0 0.0
    %3448 = vmatpush1.msra.mxu0 0.0
    %3449 = vmatprep.subr.mxu0 0.0
    %3450 = vmatpush1.msra.mxu0 0.0
    %3451 = vmatprep.subr.mxu0 0.0
    %3452 = vmatpush1.msra.mxu0 0.0
    %3453 = vmatprep.subr.mxu0 0.0
    %3454 = vmatpush1.msra.mxu0 0.0
    %3455 = vmatprep.subr.mxu0 0.0
    %3456 = vmatpush1.msra.mxu0 0.0
    %3457 = vmatprep.subr.mxu0 0.0
    %3458 = vmatpush1.msra.mxu0 0.0
    %3459 = vmatprep.subr.mxu0 0.0
    %3460 = vmatpush1.msra.mxu0 0.0
    %3461 = vmatprep.subr.mxu0 0.0
    %3462 = vmatpush1.msra.mxu0 0.0
    %3463 = vmatprep.subr.mxu0 0.0
    %3464 = vmatpush1.msra.mxu0 0.0
    %3465 = vmatprep.subr.mxu0 0.0
    %3466 = vmatpush1.msra.mxu0 0.0
    %3467 = vmatprep.subr.mxu0 0.0
    %3468 = vmatpush1.msra.mxu0 0.0
    %3469 = vmatprep.subr.mxu0 0.0
    %3470 = vmatpush1.msra.mxu0 0.0
    %3471 = vmatprep.subr.mxu0 0.0
    %3472 = vmatpush1.msra.mxu0 0.0
    %3473 = vmatprep.mubr.f32.mxu0 0.0
    %v3474 = vand.u32 %v3095, 4294901760
    %v3475 = vsub.f32 %v3095, %v3474
    %3476 = vmatmul.mubr.f32.gmra.mrb[0].mxu0 %v3475
    %v3477 = vpop.f32.mrb[0].mxu0
    %v3478 = vadd.f32 %v3357, %v3477
    %v3479 = vpop.f32.mrb[0].mxu0
    %v3480 = vadd.f32 %v3359, %v3479
    %3481 = vmatprep.mubr.f32.mxu0 0.0
    %v3482 = vand.u32 %v3098, 4294901760
    %v3483 = vsub.f32 %v3098, %v3482
    %3484 = vmatmul.mubr.f32.gmra.mrb[0].mxu0 %v3483
    %v3485 = vpop.f32.mrb[0].mxu0
    %v3486 = vadd.f32 %v3364, %v3485
    %v3487 = vpop.f32.mrb[0].mxu0
    %v3488 = vadd.f32 %v3366, %v3487
    %3489 = vmatprep.mubr.f32.mxu0 0.0
    %v3490 = vand.u32 %v3101, 4294901760
    %v3491 = vsub.f32 %v3101, %v3490
    %3492 = vmatmul.mubr.f32.gmra.mrb[0].mxu0 %v3491
    %v3493 = vpop.f32.mrb[0].mxu0
    %v3494 = vadd.f32 %v3371, %v3493
    %v3495 = vpop.f32.mrb[0].mxu0
    %v3496 = vadd.f32 %v3373, %v3495
    %3497 = vmatprep.mubr.f32.mxu0 0.0
    %v3498 = vand.u32 %v3104, 4294901760
    %v3499 = vsub.f32 %v3104, %v3498
    %3500 = vmatmul.mubr.f32.gmra.mrb[0].mxu0 %v3499
    %v3501 = vpop.f32.mrb[0].mxu0
    %v3502 = vadd.f32 %v3378, %v3501
    %v3503 = vpop.f32.mrb[0].mxu0
    %v3504 = vadd.f32 %v3380, %v3503
    %3505 = vmatprep.mubr.f32.mxu0 0.0
    %v3506 = vand.u32 %v3107, 4294901760
    %v3507 = vsub.f32 %v3107, %v3506
    %3508 = vmatmul.mubr.f32.gmra.mrb[0].mxu0 %v3507
    %v3509 = vpop.f32.mrb[0].mxu0
    %v3510 = vadd.f32 %v3385, %v3509
    %v3511 = vpop.f32.mrb[0].mxu0
    %v3512 = vadd.f32 %v3387, %v3511
    %3513 = vdwg.mxu0
    %v3514 = vand.u32 %v3050, 4294901760
    %3515 = vmatprep.subr.mxu0 %v3514
    %v3516 = vand.u32 %v3049, 4294901760
    %3517 = vmatpush1.msra.mxu0 %v3516
    %v3518 = vand.u32 %v3054, 4294901760
    %3519 = vmatprep.subr.mxu0 %v3518
    %v3520 = vand.u32 %v3053, 4294901760
    %3521 = vmatpush1.msra.mxu0 %v3520
    %v3522 = vand.u32 %v3058, 4294901760
    %3523 = vmatprep.subr.mxu0 %v3522
    %v3524 = vand.u32 %v3057, 4294901760
    %3525 = vmatpush1.msra.mxu0 %v3524
    %v3526 = vand.u32 %v3062, 4294901760
    %3527 = vmatprep.subr.mxu0 %v3526
    %v3528 = vand.u32 %v3061, 4294901760
    %3529 = vmatpush1.msra.mxu0 %v3528
    %v3530 = vand.u32 %v3066, 4294901760
    %3531 = vmatprep.subr.mxu0 %v3530
    %v3532 = vand.u32 %v3065, 4294901760
    %3533 = vmatpush1.msra.mxu0 %v3532
    %3534 = vmatprep.subr.mxu0 0.0
    %3535 = vmatpush1.msra.mxu0 0.0
    %3536 = vmatprep.subr.mxu0 0.0
    %3537 = vmatpush1.msra.mxu0 0.0
    %3538 = vmatprep.subr.mxu0 0.0
    %3539 = vmatpush1.msra.mxu0 0.0
    %3540 = vmatprep.subr.mxu0 0.0
    %3541 = vmatpush1.msra.mxu0 0.0
    %3542 = vmatprep.subr.mxu0 0.0
    %3543 = vmatpush1.msra.mxu0 0.0
    %3544 = vmatprep.subr.mxu0 0.0
    %3545 = vmatpush1.msra.mxu0 0.0
    %3546 = vmatprep.subr.mxu0 0.0
    %3547 = vmatpush1.msra.mxu0 0.0
    %3548 = vmatprep.subr.mxu0 0.0
    %3549 = vmatpush1.msra.mxu0 0.0
    %3550 = vmatprep.subr.mxu0 0.0
    %3551 = vmatpush1.msra.mxu0 0.0
    %3552 = vmatprep.subr.mxu0 0.0
    %3553 = vmatpush1.msra.mxu0 0.0
    %3554 = vmatprep.subr.mxu0 0.0
    %3555 = vmatpush1.msra.mxu0 0.0
    %3556 = vmatprep.subr.mxu0 0.0
    %3557 = vmatpush1.msra.mxu0 0.0
    %3558 = vmatprep.subr.mxu0 0.0
    %3559 = vmatpush1.msra.mxu0 0.0
    %3560 = vmatprep.subr.mxu0 0.0
    %3561 = vmatpush1.msra.mxu0 0.0
    %3562 = vmatprep.subr.mxu0 0.0
    %3563 = vmatpush1.msra.mxu0 0.0
    %3564 = vmatprep.subr.mxu0 0.0
    %3565 = vmatpush1.msra.mxu0 0.0
    %3566 = vmatprep.subr.mxu0 0.0
    %3567 = vmatpush1.msra.mxu0 0.0
    %3568 = vmatprep.subr.mxu0 0.0
    %3569 = vmatpush1.msra.mxu0 0.0
    %3570 = vmatprep.subr.mxu0 0.0
    %3571 = vmatpush1.msra.mxu0 0.0
    %3572 = vmatprep.subr.mxu0 0.0
    %3573 = vmatpush1.msra.mxu0 0.0
    %3574 = vmatprep.subr.mxu0 0.0
    %3575 = vmatpush1.msra.mxu0 0.0
    %3576 = vmatprep.subr.mxu0 0.0
    %3577 = vmatpush1.msra.mxu0 0.0
    %3578 = vmatprep.subr.mxu0 0.0
    %3579 = vmatpush1.msra.mxu0 0.0
    %3580 = vmatprep.subr.mxu0 0.0
    %3581 = vmatpush1.msra.mxu0 0.0
    %3582 = vmatprep.subr.mxu0 0.0
    %3583 = vmatpush1.msra.mxu0 0.0
    %3584 = vmatprep.subr.mxu0 0.0
    %3585 = vmatpush1.msra.mxu0 0.0
    %3586 = vmatprep.subr.mxu0 0.0
    %3587 = vmatpush1.msra.mxu0 0.0
    %3588 = vmatprep.mubr.f32.mxu0 0.0
    %v3589 = vand.u32 %v3095, 4294901760
    %v3590 = vsub.f32 %v3095, %v3589
    %v3591 = vand.u32 %v3590, 4294901760
    %3592 = vmatmul.mubr.f32.gmra.mrb[0].mxu0 %v3591
    %v3593 = vpop.f32.mrb[0].mxu0
    %v3594 = vadd.f32 %v3478, %v3593
    %v3595 = vpop.f32.mrb[0].mxu0
    %v3596 = vadd.f32 %v3480, %v3595
    %3597 = vmatprep.mubr.f32.mxu0 0.0
    %v3598 = vand.u32 %v3098, 4294901760
    %v3599 = vsub.f32 %v3098, %v3598
    %v3600 = vand.u32 %v3599, 4294901760
    %3601 = vmatmul.mubr.f32.gmra.mrb[0].mxu0 %v3600
    %v3602 = vpop.f32.mrb[0].mxu0
    %v3603 = vadd.f32 %v3486, %v3602
    %v3604 = vpop.f32.mrb[0].mxu0
    %v3605 = vadd.f32 %v3488, %v3604
    %3606 = vmatprep.mubr.f32.mxu0 0.0
    %v3607 = vand.u32 %v3101, 4294901760
    %v3608 = vsub.f32 %v3101, %v3607
    %v3609 = vand.u32 %v3608, 4294901760
    %3610 = vmatmul.mubr.f32.gmra.mrb[0].mxu0 %v3609
    %v3611 = vpop.f32.mrb[0].mxu0
    %v3612 = vadd.f32 %v3494, %v3611
    %v3613 = vpop.f32.mrb[0].mxu0
    %v3614 = vadd.f32 %v3496, %v3613
    %3615 = vmatprep.mubr.f32.mxu0 0.0
    %v3616 = vand.u32 %v3104, 4294901760
    %v3617 = vsub.f32 %v3104, %v3616
    %v3618 = vand.u32 %v3617, 4294901760
    %3619 = vmatmul.mubr.f32.gmra.mrb[0].mxu0 %v3618
    %v3620 = vpop.f32.mrb[0].mxu0
    %v3621 = vadd.f32 %v3502, %v3620
    %v3622 = vpop.f32.mrb[0].mxu0
    %v3623 = vadd.f32 %v3504, %v3622
    %3624 = vmatprep.mubr.f32.mxu0 0.0
    %v3625 = vand.u32 %v3107, 4294901760
    %v3626 = vsub.f32 %v3107, %v3625
    %v3627 = vand.u32 %v3626, 4294901760
    %3628 = vmatmul.mubr.f32.gmra.mrb[0].mxu0 %v3627
    %v3629 = vpop.f32.mrb[0].mxu0
    %v3630 = vadd.f32 %v3510, %v3629
    %v3631 = vpop.f32.mrb[0].mxu0
    %v3632 = vadd.f32 %v3512, %v3631
    %3633 = vdwg.mxu0
    %v3634 = vand.u32 %v3050, 4294901760
    %v3635 = vsub.f32 %v3050, %v3634
    %v3636 = vand.u32 %v3635, 4294901760
    %3637 = vmatprep.subr.mxu0 %v3636
    %v3638 = vand.u32 %v3049, 4294901760
    %v3639 = vsub.f32 %v3049, %v3638
    %v3640 = vand.u32 %v3639, 4294901760
    %3641 = vmatpush1.msra.mxu0 %v3640
    %v3642 = vand.u32 %v3054, 4294901760
    %v3643 = vsub.f32 %v3054, %v3642
    %v3644 = vand.u32 %v3643, 4294901760
    %3645 = vmatprep.subr.mxu0 %v3644
    %v3646 = vand.u32 %v3053, 4294901760
    %v3647 = vsub.f32 %v3053, %v3646
    %v3648 = vand.u32 %v3647, 4294901760
    %3649 = vmatpush1.msra.mxu0 %v3648
    %v3650 = vand.u32 %v3058, 4294901760
    %v3651 = vsub.f32 %v3058, %v3650
    %v3652 = vand.u32 %v3651, 4294901760
    %3653 = vmatprep.subr.mxu0 %v3652
    %v3654 = vand.u32 %v3057, 4294901760
    %v3655 = vsub.f32 %v3057, %v3654
    %v3656 = vand.u32 %v3655, 4294901760
    %3657 = vmatpush1.msra.mxu0 %v3656
    %v3658 = vand.u32 %v3062, 4294901760
    %v3659 = vsub.f32 %v3062, %v3658
    %v3660 = vand.u32 %v3659, 4294901760
    %3661 = vmatprep.subr.mxu0 %v3660
    %v3662 = vand.u32 %v3061, 4294901760
    %v3663 = vsub.f32 %v3061, %v3662
    %v3664 = vand.u32 %v3663, 4294901760
    %3665 = vmatpush1.msra.mxu0 %v3664
    %v3666 = vand.u32 %v3066, 4294901760
    %v3667 = vsub.f32 %v3066, %v3666
    %v3668 = vand.u32 %v3667, 4294901760
    %3669 = vmatprep.subr.mxu0 %v3668
    %v3670 = vand.u32 %v3065, 4294901760
    %v3671 = vsub.f32 %v3065, %v3670
    %v3672 = vand.u32 %v3671, 4294901760
    %3673 = vmatpush1.msra.mxu0 %v3672
    %3674 = vmatprep.subr.mxu0 0.0
    %3675 = vmatpush1.msra.mxu0 0.0
    %3676 = vmatprep.subr.mxu0 0.0
    %3677 = vmatpush1.msra.mxu0 0.0
    %3678 = vmatprep.subr.mxu0 0.0
    %3679 = vmatpush1.msra.mxu0 0.0
    %3680 = vmatprep.subr.mxu0 0.0
    %3681 = vmatpush1.msra.mxu0 0.0
    %3682 = vmatprep.subr.mxu0 0.0
    %3683 = vmatpush1.msra.mxu0 0.0
    %3684 = vmatprep.subr.mxu0 0.0
    %3685 = vmatpush1.msra.mxu0 0.0
    %3686 = vmatprep.subr.mxu0 0.0
    %3687 = vmatpush1.msra.mxu0 0.0
    %3688 = vmatprep.subr.mxu0 0.0
    %3689 = vmatpush1.msra.mxu0 0.0
    %3690 = vmatprep.subr.mxu0 0.0
    %3691 = vmatpush1.msra.mxu0 0.0
    %3692 = vmatprep.subr.mxu0 0.0
    %3693 = vmatpush1.msra.mxu0 0.0
    %3694 = vmatprep.subr.mxu0 0.0
    %3695 = vmatpush1.msra.mxu0 0.0
    %3696 = vmatprep.subr.mxu0 0.0
    %3697 = vmatpush1.msra.mxu0 0.0
    %3698 = vmatprep.subr.mxu0 0.0
    %3699 = vmatpush1.msra.mxu0 0.0
    %3700 = vmatprep.subr.mxu0 0.0
    %3701 = vmatpush1.msra.mxu0 0.0
    %3702 = vmatprep.subr.mxu0 0.0
    %3703 = vmatpush1.msra.mxu0 0.0
    %3704 = vmatprep.subr.mxu0 0.0
    %3705 = vmatpush1.msra.mxu0 0.0
    %3706 = vmatprep.subr.mxu0 0.0
    %3707 = vmatpush1.msra.mxu0 0.0
    %3708 = vmatprep.subr.mxu0 0.0
    %3709 = vmatpush1.msra.mxu0 0.0
    %3710 = vmatprep.subr.mxu0 0.0
    %3711 = vmatpush1.msra.mxu0 0.0
    %3712 = vmatprep.subr.mxu0 0.0
    %3713 = vmatpush1.msra.mxu0 0.0
    %3714 = vmatprep.subr.mxu0 0.0
    %3715 = vmatpush1.msra.mxu0 0.0
    %3716 = vmatprep.subr.mxu0 0.0
    %3717 = vmatpush1.msra.mxu0 0.0
    %3718 = vmatprep.subr.mxu0 0.0
    %3719 = vmatpush1.msra.mxu0 0.0
    %3720 = vmatprep.subr.mxu0 0.0
    %3721 = vmatpush1.msra.mxu0 0.0
    %3722 = vmatprep.subr.mxu0 0.0
    %3723 = vmatpush1.msra.mxu0 0.0
    %3724 = vmatprep.subr.mxu0 0.0
    %3725 = vmatpush1.msra.mxu0 0.0
    %3726 = vmatprep.subr.mxu0 0.0
    %3727 = vmatpush1.msra.mxu0 0.0
    %3728 = vmatprep.mubr.f32.mxu0 0.0
    %v3729 = vand.u32 %v3095, 4294901760
    %3730 = vmatmul.mubr.f32.gmra.mrb[0].mxu0 %v3729
    %v3731 = vpop.f32.mrb[0].mxu0
    %v3732 = vadd.f32 %v3594, %v3731
    %v3733 = vpop.f32.mrb[0].mxu0
    %v3734 = vadd.f32 %v3596, %v3733
    %3735 = vmatprep.mubr.f32.mxu0 0.0
    %v3736 = vand.u32 %v3098, 4294901760
    %3737 = vmatmul.mubr.f32.gmra.mrb[0].mxu0 %v3736
    %v3738 = vpop.f32.mrb[0].mxu0
    %v3739 = vadd.f32 %v3603, %v3738
    %v3740 = vpop.f32.mrb[0].mxu0
    %v3741 = vadd.f32 %v3605, %v3740
    %3742 = vmatprep.mubr.f32.mxu0 0.0
    %v3743 = vand.u32 %v3101, 4294901760
    %3744 = vmatmul.mubr.f32.gmra.mrb[0].mxu0 %v3743
    %v3745 = vpop.f32.mrb[0].mxu0
    %v3746 = vadd.f32 %v3612, %v3745
    %v3747 = vpop.f32.mrb[0].mxu0
    %v3748 = vadd.f32 %v3614, %v3747
    %3749 = vmatprep.mubr.f32.mxu0 0.0
    %v3750 = vand.u32 %v3104, 4294901760
    %3751 = vmatmul.mubr.f32.gmra.mrb[0].mxu0 %v3750
    %v3752 = vpop.f32.mrb[0].mxu0
    %v3753 = vadd.f32 %v3621, %v3752
    %v3754 = vpop.f32.mrb[0].mxu0
    %v3755 = vadd.f32 %v3623, %v3754
    %3756 = vmatprep.mubr.f32.mxu0 0.0
    %v3757 = vand.u32 %v3107, 4294901760
    %3758 = vmatmul.mubr.f32.gmra.mrb[0].mxu0 %v3757
    %v3759 = vpop.f32.mrb[0].mxu0
    %v3760 = vadd.f32 %v3630, %v3759
    %v3761 = vpop.f32.mrb[0].mxu0
    %v3762 = vadd.f32 %v3632, %v3761
    %3763 = vdwg.mxu0
    %v3764 = vand.u32 %v3050, 4294901760
    %3765 = vmatprep.subr.mxu0 %v3764
    %v3766 = vand.u32 %v3049, 4294901760
    %3767 = vmatpush1.msra.mxu0 %v3766
    %v3768 = vand.u32 %v3054, 4294901760
    %3769 = vmatprep.subr.mxu0 %v3768
    %v3770 = vand.u32 %v3053, 4294901760
    %3771 = vmatpush1.msra.mxu0 %v3770
    %v3772 = vand.u32 %v3058, 4294901760
    %3773 = vmatprep.subr.mxu0 %v3772
    %v3774 = vand.u32 %v3057, 4294901760
    %3775 = vmatpush1.msra.mxu0 %v3774
    %v3776 = vand.u32 %v3062, 4294901760
    %3777 = vmatprep.subr.mxu0 %v3776
    %v3778 = vand.u32 %v3061, 4294901760
    %3779 = vmatpush1.msra.mxu0 %v3778
    %v3780 = vand.u32 %v3066, 4294901760
    %3781 = vmatprep.subr.mxu0 %v3780
    %v3782 = vand.u32 %v3065, 4294901760
    %3783 = vmatpush1.msra.mxu0 %v3782
    %3784 = vmatprep.subr.mxu0 0.0
    %3785 = vmatpush1.msra.mxu0 0.0
    %3786 = vmatprep.subr.mxu0 0.0
    %3787 = vmatpush1.msra.mxu0 0.0
    %3788 = vmatprep.subr.mxu0 0.0
    %3789 = vmatpush1.msra.mxu0 0.0
    %3790 = vmatprep.subr.mxu0 0.0
    %3791 = vmatpush1.msra.mxu0 0.0
    %3792 = vmatprep.subr.mxu0 0.0
    %3793 = vmatpush1.msra.mxu0 0.0
    %3794 = vmatprep.subr.mxu0 0.0
    %3795 = vmatpush1.msra.mxu0 0.0
    %3796 = vmatprep.subr.mxu0 0.0
    %3797 = vmatpush1.msra.mxu0 0.0
    %3798 = vmatprep.subr.mxu0 0.0
    %3799 = vmatpush1.msra.mxu0 0.0
    %3800 = vmatprep.subr.mxu0 0.0
    %3801 = vmatpush1.msra.mxu0 0.0
    %3802 = vmatprep.subr.mxu0 0.0
    %3803 = vmatpush1.msra.mxu0 0.0
    %3804 = vmatprep.subr.mxu0 0.0
    %3805 = vmatpush1.msra.mxu0 0.0
    %3806 = vmatprep.subr.mxu0 0.0
    %3807 = vmatpush1.msra.mxu0 0.0
    %3808 = vmatprep.subr.mxu0 0.0
    %3809 = vmatpush1.msra.mxu0 0.0
    %3810 = vmatprep.subr.mxu0 0.0
    %3811 = vmatpush1.msra.mxu0 0.0
    %3812 = vmatprep.subr.mxu0 0.0
    %3813 = vmatpush1.msra.mxu0 0.0
    %3814 = vmatprep.subr.mxu0 0.0
    %3815 = vmatpush1.msra.mxu0 0.0
    %3816 = vmatprep.subr.mxu0 0.0
    %3817 = vmatpush1.msra.mxu0 0.0
    %3818 = vmatprep.subr.mxu0 0.0
    %3819 = vmatpush1.msra.mxu0 0.0
    %3820 = vmatprep.subr.mxu0 0.0
    %3821 = vmatpush1.msra.mxu0 0.0
    %3822 = vmatprep.subr.mxu0 0.0
    %3823 = vmatpush1.msra.mxu0 0.0
    %3824 = vmatprep.subr.mxu0 0.0
    %3825 = vmatpush1.msra.mxu0 0.0
    %3826 = vmatprep.subr.mxu0 0.0
    %3827 = vmatpush1.msra.mxu0 0.0
    %3828 = vmatprep.subr.mxu0 0.0
    %3829 = vmatpush1.msra.mxu0 0.0
    %3830 = vmatprep.subr.mxu0 0.0
    %3831 = vmatpush1.msra.mxu0 0.0
    %3832 = vmatprep.subr.mxu0 0.0
    %3833 = vmatpush1.msra.mxu0 0.0
    %3834 = vmatprep.subr.mxu0 0.0
    %3835 = vmatpush1.msra.mxu0 0.0
    %3836 = vmatprep.subr.mxu0 0.0
    %3837 = vmatpush1.msra.mxu0 0.0
    %3838 = vmatprep.mubr.f32.mxu0 0.0
    %v3839 = vand.u32 %v3095, 4294901760
    %3840 = vmatmul.mubr.f32.gmra.mrb[0].mxu0 %v3839
    %v3841 = vpop.f32.mrb[0].mxu0
    %v3842 = vadd.f32 %v3732, %v3841
    %v3843 = vpop.f32.mrb[0].mxu0
    %v3844 = vadd.f32 %v3734, %v3843
    %3845 = vmatprep.mubr.f32.mxu0 0.0
    %v3846 = vand.u32 %v3098, 4294901760
    %3847 = vmatmul.mubr.f32.gmra.mrb[0].mxu0 %v3846
    %v3848 = vpop.f32.mrb[0].mxu0
    %v3849 = vadd.f32 %v3739, %v3848
    %v3850 = vpop.f32.mrb[0].mxu0
    %v3851 = vadd.f32 %v3741, %v3850
    %3852 = vmatprep.mubr.f32.mxu0 0.0
    %v3853 = vand.u32 %v3101, 4294901760
    %3854 = vmatmul.mubr.f32.gmra.mrb[0].mxu0 %v3853
    %v3855 = vpop.f32.mrb[0].mxu0
    %v3856 = vadd.f32 %v3746, %v3855
    %v3857 = vpop.f32.mrb[0].mxu0
    %v3858 = vadd.f32 %v3748, %v3857
    %3859 = vmatprep.mubr.f32.mxu0 0.0
    %v3860 = vand.u32 %v3104, 4294901760
    %3861 = vmatmul.mubr.f32.gmra.mrb[0].mxu0 %v3860
    %v3862 = vpop.f32.mrb[0].mxu0
    %v3863 = vadd.f32 %v3753, %v3862
    %v3864 = vpop.f32.mrb[0].mxu0
    %v3865 = vadd.f32 %v3755, %v3864
    %3866 = vmatprep.mubr.f32.mxu0 0.0
    %v3867 = vand.u32 %v3107, 4294901760
    %3868 = vmatmul.mubr.f32.gmra.mrb[0].mxu0 %v3867
    %v3869 = vpop.f32.mrb[0].mxu0
    %v3870 = vadd.f32 %v3760, %v3869
    %v3871 = vpop.f32.mrb[0].mxu0
    %v3872 = vadd.f32 %v3762, %v3871
    %3873 = vdwg.mxu0
    %v3874 = vand.u32 %v3052, 4294901760
    %3875 = vmatprep.subr.mxu0 %v3874
    %v3876 = vand.u32 %v3051, 4294901760
    %3877 = vmatpush1.msra.mxu0 %v3876
    %v3878 = vand.u32 %v3056, 4294901760
    %3879 = vmatprep.subr.mxu0 %v3878
    %v3880 = vand.u32 %v3055, 4294901760
    %3881 = vmatpush1.msra.mxu0 %v3880
    %v3882 = vand.u32 %v3060, 4294901760
    %3883 = vmatprep.subr.mxu0 %v3882
    %v3884 = vand.u32 %v3059, 4294901760
    %3885 = vmatpush1.msra.mxu0 %v3884
    %v3886 = vand.u32 %v3064, 4294901760
    %3887 = vmatprep.subr.mxu0 %v3886
    %v3888 = vand.u32 %v3063, 4294901760
    %3889 = vmatpush1.msra.mxu0 %v3888
    %v3890 = vand.u32 %v3068, 4294901760
    %3891 = vmatprep.subr.mxu0 %v3890
    %v3892 = vand.u32 %v3067, 4294901760
    %3893 = vmatpush1.msra.mxu0 %v3892
    %3894 = vmatprep.subr.mxu0 0.0
    %3895 = vmatpush1.msra.mxu0 0.0
    %3896 = vmatprep.subr.mxu0 0.0
    %3897 = vmatpush1.msra.mxu0 0.0
    %3898 = vmatprep.subr.mxu0 0.0
    %3899 = vmatpush1.msra.mxu0 0.0
    %3900 = vmatprep.subr.mxu0 0.0
    %3901 = vmatpush1.msra.mxu0 0.0
    %3902 = vmatprep.subr.mxu0 0.0
    %3903 = vmatpush1.msra.mxu0 0.0
    %3904 = vmatprep.subr.mxu0 0.0
    %3905 = vmatpush1.msra.mxu0 0.0
    %3906 = vmatprep.subr.mxu0 0.0
    %3907 = vmatpush1.msra.mxu0 0.0
    %3908 = vmatprep.subr.mxu0 0.0
    %3909 = vmatpush1.msra.mxu0 0.0
    %3910 = vmatprep.subr.mxu0 0.0
    %3911 = vmatpush1.msra.mxu0 0.0
    %3912 = vmatprep.subr.mxu0 0.0
    %3913 = vmatpush1.msra.mxu0 0.0
    %3914 = vmatprep.subr.mxu0 0.0
    %3915 = vmatpush1.msra.mxu0 0.0
    %3916 = vmatprep.subr.mxu0 0.0
    %3917 = vmatpush1.msra.mxu0 0.0
    %3918 = vmatprep.subr.mxu0 0.0
    %3919 = vmatpush1.msra.mxu0 0.0
    %3920 = vmatprep.subr.mxu0 0.0
    %3921 = vmatpush1.msra.mxu0 0.0
    %3922 = vmatprep.subr.mxu0 0.0
    %3923 = vmatpush1.msra.mxu0 0.0
    %3924 = vmatprep.subr.mxu0 0.0
    %3925 = vmatpush1.msra.mxu0 0.0
    %3926 = vmatprep.subr.mxu0 0.0
    %3927 = vmatpush1.msra.mxu0 0.0
    %3928 = vmatprep.subr.mxu0 0.0
    %3929 = vmatpush1.msra.mxu0 0.0
    %3930 = vmatprep.subr.mxu0 0.0
    %3931 = vmatpush1.msra.mxu0 0.0
    %3932 = vmatprep.subr.mxu0 0.0
    %3933 = vmatpush1.msra.mxu0 0.0
    %3934 = vmatprep.subr.mxu0 0.0
    %3935 = vmatpush1.msra.mxu0 0.0
    %3936 = vmatprep.subr.mxu0 0.0
    %3937 = vmatpush1.msra.mxu0 0.0
    %3938 = vmatprep.subr.mxu0 0.0
    %3939 = vmatpush1.msra.mxu0 0.0
    %3940 = vmatprep.subr.mxu0 0.0
    %3941 = vmatpush1.msra.mxu0 0.0
    %3942 = vmatprep.subr.mxu0 0.0
    %3943 = vmatpush1.msra.mxu0 0.0
    %3944 = vmatprep.subr.mxu0 0.0
    %3945 = vmatpush1.msra.mxu0 0.0
    %3946 = vmatprep.subr.mxu0 0.0
    %3947 = vmatpush1.msra.mxu0 0.0
    %3948 = vmatprep.mubr.f32.mxu0 0.0
    %v3949 = vand.u32 %v3095, 4294901760
    %v3950 = vsub.f32 %v3095, %v3949
    %v3951 = vand.u32 %v3950, 4294901760
    %v3952 = vsub.f32 %v3950, %v3951
    %v3953 = vand.u32 %v3952, 4294901760
    %3954 = vmatmul.mubr.f32.gmra.mrb[0].mxu0 %v3953
    %v3955 = vpop.f32.mrb[0].mxu0
    %v3956 = vadd.f32 %v3072, %v3955
    %v3957 = vpop.f32.mrb[0].mxu0
    %v3958 = vadd.f32 %v3072, %v3957
    %3959 = vmatprep.mubr.f32.mxu0 0.0
    %v3960 = vand.u32 %v3098, 4294901760
    %v3961 = vsub.f32 %v3098, %v3960
    %v3962 = vand.u32 %v3961, 4294901760
    %v3963 = vsub.f32 %v3961, %v3962
    %v3964 = vand.u32 %v3963, 4294901760
    %3965 = vmatmul.mubr.f32.gmra.mrb[0].mxu0 %v3964
    %v3966 = vpop.f32.mrb[0].mxu0
    %v3967 = vadd.f32 %v3077, %v3966
    %v3968 = vpop.f32.mrb[0].mxu0
    %v3969 = vadd.f32 %v3077, %v3968
    %3970 = vmatprep.mubr.f32.mxu0 0.0
    %v3971 = vand.u32 %v3101, 4294901760
    %v3972 = vsub.f32 %v3101, %v3971
    %v3973 = vand.u32 %v3972, 4294901760
    %v3974 = vsub.f32 %v3972, %v3973
    %v3975 = vand.u32 %v3974, 4294901760
    %3976 = vmatmul.mubr.f32.gmra.mrb[0].mxu0 %v3975
    %v3977 = vpop.f32.mrb[0].mxu0
    %v3978 = vadd.f32 %v3082, %v3977
    %v3979 = vpop.f32.mrb[0].mxu0
    %v3980 = vadd.f32 %v3082, %v3979
    %3981 = vmatprep.mubr.f32.mxu0 0.0
    %v3982 = vand.u32 %v3104, 4294901760
    %v3983 = vsub.f32 %v3104, %v3982
    %v3984 = vand.u32 %v3983, 4294901760
    %v3985 = vsub.f32 %v3983, %v3984
    %v3986 = vand.u32 %v3985, 4294901760
    %3987 = vmatmul.mubr.f32.gmra.mrb[0].mxu0 %v3986
    %v3988 = vpop.f32.mrb[0].mxu0
    %v3989 = vadd.f32 %v3087, %v3988
    %v3990 = vpop.f32.mrb[0].mxu0
    %v3991 = vadd.f32 %v3087, %v3990
    %3992 = vmatprep.mubr.f32.mxu0 0.0
    %v3993 = vand.u32 %v3107, 4294901760
    %v3994 = vsub.f32 %v3107, %v3993
    %v3995 = vand.u32 %v3994, 4294901760
    %v3996 = vsub.f32 %v3994, %v3995
    %v3997 = vand.u32 %v3996, 4294901760
    %3998 = vmatmul.mubr.f32.gmra.mrb[0].mxu0 %v3997
    %v3999 = vpop.f32.mrb[0].mxu0
    %v4000 = vadd.f32 %v3092, %v3999
    %v4001 = vpop.f32.mrb[0].mxu0
    %v4002 = vadd.f32 %v3092, %v4001
    %4003 = vdwg.mxu0
    %v4004 = vand.u32 %v3052, 4294901760
    %v4005 = vsub.f32 %v3052, %v4004
    %v4006 = vand.u32 %v4005, 4294901760
    %v4007 = vsub.f32 %v4005, %v4006
    %v4008 = vand.u32 %v4007, 4294901760
    %4009 = vmatprep.subr.mxu0 %v4008
    %v4010 = vand.u32 %v3051, 4294901760
    %v4011 = vsub.f32 %v3051, %v4010
    %v4012 = vand.u32 %v4011, 4294901760
    %v4013 = vsub.f32 %v4011, %v4012
    %v4014 = vand.u32 %v4013, 4294901760
    %4015 = vmatpush1.msra.mxu0 %v4014
    %v4016 = vand.u32 %v3056, 4294901760
    %v4017 = vsub.f32 %v3056, %v4016
    %v4018 = vand.u32 %v4017, 4294901760
    %v4019 = vsub.f32 %v4017, %v4018
    %v4020 = vand.u32 %v4019, 4294901760
    %4021 = vmatprep.subr.mxu0 %v4020
    %v4022 = vand.u32 %v3055, 4294901760
    %v4023 = vsub.f32 %v3055, %v4022
    %v4024 = vand.u32 %v4023, 4294901760
    %v4025 = vsub.f32 %v4023, %v4024
    %v4026 = vand.u32 %v4025, 4294901760
    %4027 = vmatpush1.msra.mxu0 %v4026
    %v4028 = vand.u32 %v3060, 4294901760
    %v4029 = vsub.f32 %v3060, %v4028
    %v4030 = vand.u32 %v4029, 4294901760
    %v4031 = vsub.f32 %v4029, %v4030
    %v4032 = vand.u32 %v4031, 4294901760
    %4033 = vmatprep.subr.mxu0 %v4032
    %v4034 = vand.u32 %v3059, 4294901760
    %v4035 = vsub.f32 %v3059, %v4034
    %v4036 = vand.u32 %v4035, 4294901760
    %v4037 = vsub.f32 %v4035, %v4036
    %v4038 = vand.u32 %v4037, 4294901760
    %4039 = vmatpush1.msra.mxu0 %v4038
    %v4040 = vand.u32 %v3064, 4294901760
    %v4041 = vsub.f32 %v3064, %v4040
    %v4042 = vand.u32 %v4041, 4294901760
    %v4043 = vsub.f32 %v4041, %v4042
    %v4044 = vand.u32 %v4043, 4294901760
    %4045 = vmatprep.subr.mxu0 %v4044
    %v4046 = vand.u32 %v3063, 4294901760
    %v4047 = vsub.f32 %v3063, %v4046
    %v4048 = vand.u32 %v4047, 4294901760
    %v4049 = vsub.f32 %v4047, %v4048
    %v4050 = vand.u32 %v4049, 4294901760
    %4051 = vmatpush1.msra.mxu0 %v4050
    %v4052 = vand.u32 %v3068, 4294901760
    %v4053 = vsub.f32 %v3068, %v4052
    %v4054 = vand.u32 %v4053, 4294901760
    %v4055 = vsub.f32 %v4053, %v4054
    %v4056 = vand.u32 %v4055, 4294901760
    %4057 = vmatprep.subr.mxu0 %v4056
    %v4058 = vand.u32 %v3067, 4294901760
    %v4059 = vsub.f32 %v3067, %v4058
    %v4060 = vand.u32 %v4059, 4294901760
    %v4061 = vsub.f32 %v4059, %v4060
    %v4062 = vand.u32 %v4061, 4294901760
    %4063 = vmatpush1.msra.mxu0 %v4062
    %4064 = vmatprep.subr.mxu0 0.0
    %4065 = vmatpush1.msra.mxu0 0.0
    %4066 = vmatprep.subr.mxu0 0.0
    %4067 = vmatpush1.msra.mxu0 0.0
    %4068 = vmatprep.subr.mxu0 0.0
    %4069 = vmatpush1.msra.mxu0 0.0
    %4070 = vmatprep.subr.mxu0 0.0
    %4071 = vmatpush1.msra.mxu0 0.0
    %4072 = vmatprep.subr.mxu0 0.0
    %4073 = vmatpush1.msra.mxu0 0.0
    %4074 = vmatprep.subr.mxu0 0.0
    %4075 = vmatpush1.msra.mxu0 0.0
    %4076 = vmatprep.subr.mxu0 0.0
    %4077 = vmatpush1.msra.mxu0 0.0
    %4078 = vmatprep.subr.mxu0 0.0
    %4079 = vmatpush1.msra.mxu0 0.0
    %4080 = vmatprep.subr.mxu0 0.0
    %4081 = vmatpush1.msra.mxu0 0.0
    %4082 = vmatprep.subr.mxu0 0.0
    %4083 = vmatpush1.msra.mxu0 0.0
    %4084 = vmatprep.subr.mxu0 0.0
    %4085 = vmatpush1.msra.mxu0 0.0
    %4086 = vmatprep.subr.mxu0 0.0
    %4087 = vmatpush1.msra.mxu0 0.0
    %4088 = vmatprep.subr.mxu0 0.0
    %4089 = vmatpush1.msra.mxu0 0.0
    %4090 = vmatprep.subr.mxu0 0.0
    %4091 = vmatpush1.msra.mxu0 0.0
    %4092 = vmatprep.subr.mxu0 0.0
    %4093 = vmatpush1.msra.mxu0 0.0
    %4094 = vmatprep.subr.mxu0 0.0
    %4095 = vmatpush1.msra.mxu0 0.0
    %4096 = vmatprep.subr.mxu0 0.0
    %4097 = vmatpush1.msra.mxu0 0.0
    %4098 = vmatprep.subr.mxu0 0.0
    %4099 = vmatpush1.msra.mxu0 0.0
    %4100 = vmatprep.subr.mxu0 0.0
    %4101 = vmatpush1.msra.mxu0 0.0
    %4102 = vmatprep.subr.mxu0 0.0
    %4103 = vmatpush1.msra.mxu0 0.0
    %4104 = vmatprep.subr.mxu0 0.0
    %4105 = vmatpush1.msra.mxu0 0.0
    %4106 = vmatprep.subr.mxu0 0.0
    %4107 = vmatpush1.msra.mxu0 0.0
    %4108 = vmatprep.subr.mxu0 0.0
    %4109 = vmatpush1.msra.mxu0 0.0
    %4110 = vmatprep.subr.mxu0 0.0
    %4111 = vmatpush1.msra.mxu0 0.0
    %4112 = vmatprep.subr.mxu0 0.0
    %4113 = vmatpush1.msra.mxu0 0.0
    %4114 = vmatprep.subr.mxu0 0.0
    %4115 = vmatpush1.msra.mxu0 0.0
    %4116 = vmatprep.subr.mxu0 0.0
    %4117 = vmatpush1.msra.mxu0 0.0
    %4118 = vmatprep.mubr.f32.mxu0 0.0
    %v4119 = vand.u32 %v3095, 4294901760
    %4120 = vmatmul.mubr.f32.gmra.mrb[0].mxu0 %v4119
    %v4121 = vpop.f32.mrb[0].mxu0
    %v4122 = vadd.f32 %v3956, %v4121
    %v4123 = vpop.f32.mrb[0].mxu0
    %v4124 = vadd.f32 %v3958, %v4123
    %4125 = vmatprep.mubr.f32.mxu0 0.0
    %v4126 = vand.u32 %v3098, 4294901760
    %4127 = vmatmul.mubr.f32.gmra.mrb[0].mxu0 %v4126
    %v4128 = vpop.f32.mrb[0].mxu0
    %v4129 = vadd.f32 %v3967, %v4128
    %v4130 = vpop.f32.mrb[0].mxu0
    %v4131 = vadd.f32 %v3969, %v4130
    %4132 = vmatprep.mubr.f32.mxu0 0.0
    %v4133 = vand.u32 %v3101, 4294901760
    %4134 = vmatmul.mubr.f32.gmra.mrb[0].mxu0 %v4133
    %v4135 = vpop.f32.mrb[0].mxu0
    %v4136 = vadd.f32 %v3978, %v4135
    %v4137 = vpop.f32.mrb[0].mxu0
    %v4138 = vadd.f32 %v3980, %v4137
    %4139 = vmatprep.mubr.f32.mxu0 0.0
    %v4140 = vand.u32 %v3104, 4294901760
    %4141 = vmatmul.mubr.f32.gmra.mrb[0].mxu0 %v4140
    %v4142 = vpop.f32.mrb[0].mxu0
    %v4143 = vadd.f32 %v3989, %v4142
    %v4144 = vpop.f32.mrb[0].mxu0
    %v4145 = vadd.f32 %v3991, %v4144
    %4146 = vmatprep.mubr.f32.mxu0 0.0
    %v4147 = vand.u32 %v3107, 4294901760
    %4148 = vmatmul.mubr.f32.gmra.mrb[0].mxu0 %v4147
    %v4149 = vpop.f32.mrb[0].mxu0
    %v4150 = vadd.f32 %v4000, %v4149
    %v4151 = vpop.f32.mrb[0].mxu0
    %v4152 = vadd.f32 %v4002, %v4151
    %4153 = vdwg.mxu0
    %v4154 = vand.u32 %v3052, 4294901760
    %v4155 = vsub.f32 %v3052, %v4154
    %4156 = vmatprep.subr.mxu0 %v4155
    %v4157 = vand.u32 %v3051, 4294901760
    %v4158 = vsub.f32 %v3051, %v4157
    %4159 = vmatpush1.msra.mxu0 %v4158
    %v4160 = vand.u32 %v3056, 4294901760
    %v4161 = vsub.f32 %v3056, %v4160
    %4162 = vmatprep.subr.mxu0 %v4161
    %v4163 = vand.u32 %v3055, 4294901760
    %v4164 = vsub.f32 %v3055, %v4163
    %4165 = vmatpush1.msra.mxu0 %v4164
    %v4166 = vand.u32 %v3060, 4294901760
    %v4167 = vsub.f32 %v3060, %v4166
    %4168 = vmatprep.subr.mxu0 %v4167
    %v4169 = vand.u32 %v3059, 4294901760
    %v4170 = vsub.f32 %v3059, %v4169
    %4171 = vmatpush1.msra.mxu0 %v4170
    %v4172 = vand.u32 %v3064, 4294901760
    %v4173 = vsub.f32 %v3064, %v4172
    %4174 = vmatprep.subr.mxu0 %v4173
    %v4175 = vand.u32 %v3063, 4294901760
    %v4176 = vsub.f32 %v3063, %v4175
    %4177 = vmatpush1.msra.mxu0 %v4176
    %v4178 = vand.u32 %v3068, 4294901760
    %v4179 = vsub.f32 %v3068, %v4178
    %4180 = vmatprep.subr.mxu0 %v4179
    %v4181 = vand.u32 %v3067, 4294901760
    %v4182 = vsub.f32 %v3067, %v4181
    %4183 = vmatpush1.msra.mxu0 %v4182
    %4184 = vmatprep.subr.mxu0 0.0
    %4185 = vmatpush1.msra.mxu0 0.0
    %4186 = vmatprep.subr.mxu0 0.0
    %4187 = vmatpush1.msra.mxu0 0.0
    %4188 = vmatprep.subr.mxu0 0.0
    %4189 = vmatpush1.msra.mxu0 0.0
    %4190 = vmatprep.subr.mxu0 0.0
    %4191 = vmatpush1.msra.mxu0 0.0
    %4192 = vmatprep.subr.mxu0 0.0
    %4193 = vmatpush1.msra.mxu0 0.0
    %4194 = vmatprep.subr.mxu0 0.0
    %4195 = vmatpush1.msra.mxu0 0.0
    %4196 = vmatprep.subr.mxu0 0.0
    %4197 = vmatpush1.msra.mxu0 0.0
    %4198 = vmatprep.subr.mxu0 0.0
    %4199 = vmatpush1.msra.mxu0 0.0
    %4200 = vmatprep.subr.mxu0 0.0
    %4201 = vmatpush1.msra.mxu0 0.0
    %4202 = vmatprep.subr.mxu0 0.0
    %4203 = vmatpush1.msra.mxu0 0.0
    %4204 = vmatprep.subr.mxu0 0.0
    %4205 = vmatpush1.msra.mxu0 0.0
    %4206 = vmatprep.subr.mxu0 0.0
    %4207 = vmatpush1.msra.mxu0 0.0
    %4208 = vmatprep.subr.mxu0 0.0
    %4209 = vmatpush1.msra.mxu0 0.0
    %4210 = vmatprep.subr.mxu0 0.0
    %4211 = vmatpush1.msra.mxu0 0.0
    %4212 = vmatprep.subr.mxu0 0.0
    %4213 = vmatpush1.msra.mxu0 0.0
    %4214 = vmatprep.subr.mxu0 0.0
    %4215 = vmatpush1.msra.mxu0 0.0
    %4216 = vmatprep.subr.mxu0 0.0
    %4217 = vmatpush1.msra.mxu0 0.0
    %4218 = vmatprep.subr.mxu0 0.0
    %4219 = vmatpush1.msra.mxu0 0.0
    %4220 = vmatprep.subr.mxu0 0.0
    %4221 = vmatpush1.msra.mxu0 0.0
    %4222 = vmatprep.subr.mxu0 0.0
    %4223 = vmatpush1.msra.mxu0 0.0
    %4224 = vmatprep.subr.mxu0 0.0
    %4225 = vmatpush1.msra.mxu0 0.0
    %4226 = vmatprep.subr.mxu0 0.0
    %4227 = vmatpush1.msra.mxu0 0.0
    %4228 = vmatprep.subr.mxu0 0.0
    %4229 = vmatpush1.msra.mxu0 0.0
    %4230 = vmatprep.subr.mxu0 0.0
    %4231 = vmatpush1.msra.mxu0 0.0
    %4232 = vmatprep.subr.mxu0 0.0
    %4233 = vmatpush1.msra.mxu0 0.0
    %4234 = vmatprep.subr.mxu0 0.0
    %4235 = vmatpush1.msra.mxu0 0.0
    %4236 = vmatprep.subr.mxu0 0.0
    %4237 = vmatpush1.msra.mxu0 0.0
    %4238 = vmatprep.mubr.f32.mxu0 0.0
    %v4239 = vand.u32 %v3095, 4294901760
    %v4240 = vsub.f32 %v3095, %v4239
    %4241 = vmatmul.mubr.f32.gmra.mrb[0].mxu0 %v4240
    %v4242 = vpop.f32.mrb[0].mxu0
    %v4243 = vadd.f32 %v4122, %v4242
    %v4244 = vpop.f32.mrb[0].mxu0
    %v4245 = vadd.f32 %v4124, %v4244
    %4246 = vmatprep.mubr.f32.mxu0 0.0
    %v4247 = vand.u32 %v3098, 4294901760
    %v4248 = vsub.f32 %v3098, %v4247
    %4249 = vmatmul.mubr.f32.gmra.mrb[0].mxu0 %v4248
    %v4250 = vpop.f32.mrb[0].mxu0
    %v4251 = vadd.f32 %v4129, %v4250
    %v4252 = vpop.f32.mrb[0].mxu0
    %v4253 = vadd.f32 %v4131, %v4252
    %4254 = vmatprep.mubr.f32.mxu0 0.0
    %v4255 = vand.u32 %v3101, 4294901760
    %v4256 = vsub.f32 %v3101, %v4255
    %4257 = vmatmul.mubr.f32.gmra.mrb[0].mxu0 %v4256
    %v4258 = vpop.f32.mrb[0].mxu0
    %v4259 = vadd.f32 %v4136, %v4258
    %v4260 = vpop.f32.mrb[0].mxu0
    %v4261 = vadd.f32 %v4138, %v4260
    %4262 = vmatprep.mubr.f32.mxu0 0.0
    %v4263 = vand.u32 %v3104, 4294901760
    %v4264 = vsub.f32 %v3104, %v4263
    %4265 = vmatmul.mubr.f32.gmra.mrb[0].mxu0 %v4264
    %v4266 = vpop.f32.mrb[0].mxu0
    %v4267 = vadd.f32 %v4143, %v4266
    %v4268 = vpop.f32.mrb[0].mxu0
    %v4269 = vadd.f32 %v4145, %v4268
    %4270 = vmatprep.mubr.f32.mxu0 0.0
    %v4271 = vand.u32 %v3107, 4294901760
    %v4272 = vsub.f32 %v3107, %v4271
    %4273 = vmatmul.mubr.f32.gmra.mrb[0].mxu0 %v4272
    %v4274 = vpop.f32.mrb[0].mxu0
    %v4275 = vadd.f32 %v4150, %v4274
    %v4276 = vpop.f32.mrb[0].mxu0
    %v4277 = vadd.f32 %v4152, %v4276
    %4278 = vdwg.mxu0
    %v4279 = vand.u32 %v3052, 4294901760
    %4280 = vmatprep.subr.mxu0 %v4279
    %v4281 = vand.u32 %v3051, 4294901760
    %4282 = vmatpush1.msra.mxu0 %v4281
    %v4283 = vand.u32 %v3056, 4294901760
    %4284 = vmatprep.subr.mxu0 %v4283
    %v4285 = vand.u32 %v3055, 4294901760
    %4286 = vmatpush1.msra.mxu0 %v4285
    %v4287 = vand.u32 %v3060, 4294901760
    %4288 = vmatprep.subr.mxu0 %v4287
    %v4289 = vand.u32 %v3059, 4294901760
    %4290 = vmatpush1.msra.mxu0 %v4289
    %v4291 = vand.u32 %v3064, 4294901760
    %4292 = vmatprep.subr.mxu0 %v4291
    %v4293 = vand.u32 %v3063, 4294901760
    %4294 = vmatpush1.msra.mxu0 %v4293
    %v4295 = vand.u32 %v3068, 4294901760
    %4296 = vmatprep.subr.mxu0 %v4295
    %v4297 = vand.u32 %v3067, 4294901760
    %4298 = vmatpush1.msra.mxu0 %v4297
    %4299 = vmatprep.subr.mxu0 0.0
    %4300 = vmatpush1.msra.mxu0 0.0
    %4301 = vmatprep.subr.mxu0 0.0
    %4302 = vmatpush1.msra.mxu0 0.0
    %4303 = vmatprep.subr.mxu0 0.0
    %4304 = vmatpush1.msra.mxu0 0.0
    %4305 = vmatprep.subr.mxu0 0.0
    %4306 = vmatpush1.msra.mxu0 0.0
    %4307 = vmatprep.subr.mxu0 0.0
    %4308 = vmatpush1.msra.mxu0 0.0
    %4309 = vmatprep.subr.mxu0 0.0
    %4310 = vmatpush1.msra.mxu0 0.0
    %4311 = vmatprep.subr.mxu0 0.0
    %4312 = vmatpush1.msra.mxu0 0.0
    %4313 = vmatprep.subr.mxu0 0.0
    %4314 = vmatpush1.msra.mxu0 0.0
    %4315 = vmatprep.subr.mxu0 0.0
    %4316 = vmatpush1.msra.mxu0 0.0
    %4317 = vmatprep.subr.mxu0 0.0
    %4318 = vmatpush1.msra.mxu0 0.0
    %4319 = vmatprep.subr.mxu0 0.0
    %4320 = vmatpush1.msra.mxu0 0.0
    %4321 = vmatprep.subr.mxu0 0.0
    %4322 = vmatpush1.msra.mxu0 0.0
    %4323 = vmatprep.subr.mxu0 0.0
    %4324 = vmatpush1.msra.mxu0 0.0
    %4325 = vmatprep.subr.mxu0 0.0
    %4326 = vmatpush1.msra.mxu0 0.0
    %4327 = vmatprep.subr.mxu0 0.0
    %4328 = vmatpush1.msra.mxu0 0.0
    %4329 = vmatprep.subr.mxu0 0.0
    %4330 = vmatpush1.msra.mxu0 0.0
    %4331 = vmatprep.subr.mxu0 0.0
    %4332 = vmatpush1.msra.mxu0 0.0
    %4333 = vmatprep.subr.mxu0 0.0
    %4334 = vmatpush1.msra.mxu0 0.0
    %4335 = vmatprep.subr.mxu0 0.0
    %4336 = vmatpush1.msra.mxu0 0.0
    %4337 = vmatprep.subr.mxu0 0.0
    %4338 = vmatpush1.msra.mxu0 0.0
    %4339 = vmatprep.subr.mxu0 0.0
    %4340 = vmatpush1.msra.mxu0 0.0
    %4341 = vmatprep.subr.mxu0 0.0
    %4342 = vmatpush1.msra.mxu0 0.0
    %4343 = vmatprep.subr.mxu0 0.0
    %4344 = vmatpush1.msra.mxu0 0.0
    %4345 = vmatprep.subr.mxu0 0.0
    %4346 = vmatpush1.msra.mxu0 0.0
    %4347 = vmatprep.subr.mxu0 0.0
    %4348 = vmatpush1.msra.mxu0 0.0
    %4349 = vmatprep.subr.mxu0 0.0
    %4350 = vmatpush1.msra.mxu0 0.0
    %4351 = vmatprep.subr.mxu0 0.0
    %4352 = vmatpush1.msra.mxu0 0.0
    %4353 = vmatprep.mubr.f32.mxu0 0.0
    %v4354 = vand.u32 %v3095, 4294901760
    %v4355 = vsub.f32 %v3095, %v4354
    %v4356 = vand.u32 %v4355, 4294901760
    %4357 = vmatmul.mubr.f32.gmra.mrb[0].mxu0 %v4356
    %v4358 = vpop.f32.mrb[0].mxu0
    %v4359 = vadd.f32 %v4243, %v4358
    %v4360 = vpop.f32.mrb[0].mxu0
    %v4361 = vadd.f32 %v4245, %v4360
    %4362 = vmatprep.mubr.f32.mxu0 0.0
    %v4363 = vand.u32 %v3098, 4294901760
    %v4364 = vsub.f32 %v3098, %v4363
    %v4365 = vand.u32 %v4364, 4294901760
    %4366 = vmatmul.mubr.f32.gmra.mrb[0].mxu0 %v4365
    %v4367 = vpop.f32.mrb[0].mxu0
    %v4368 = vadd.f32 %v4251, %v4367
    %v4369 = vpop.f32.mrb[0].mxu0
    %v4370 = vadd.f32 %v4253, %v4369
    %4371 = vmatprep.mubr.f32.mxu0 0.0
    %v4372 = vand.u32 %v3101, 4294901760
    %v4373 = vsub.f32 %v3101, %v4372
    %v4374 = vand.u32 %v4373, 4294901760
    %4375 = vmatmul.mubr.f32.gmra.mrb[0].mxu0 %v4374
    %v4376 = vpop.f32.mrb[0].mxu0
    %v4377 = vadd.f32 %v4259, %v4376
    %v4378 = vpop.f32.mrb[0].mxu0
    %v4379 = vadd.f32 %v4261, %v4378
    %4380 = vmatprep.mubr.f32.mxu0 0.0
    %v4381 = vand.u32 %v3104, 4294901760
    %v4382 = vsub.f32 %v3104, %v4381
    %v4383 = vand.u32 %v4382, 4294901760
    %4384 = vmatmul.mubr.f32.gmra.mrb[0].mxu0 %v4383
    %v4385 = vpop.f32.mrb[0].mxu0
    %v4386 = vadd.f32 %v4267, %v4385
    %v4387 = vpop.f32.mrb[0].mxu0
    %v4388 = vadd.f32 %v4269, %v4387
    %4389 = vmatprep.mubr.f32.mxu0 0.0
    %v4390 = vand.u32 %v3107, 4294901760
    %v4391 = vsub.f32 %v3107, %v4390
    %v4392 = vand.u32 %v4391, 4294901760
    %4393 = vmatmul.mubr.f32.gmra.mrb[0].mxu0 %v4392
    %v4394 = vpop.f32.mrb[0].mxu0
    %v4395 = vadd.f32 %v4275, %v4394
    %v4396 = vpop.f32.mrb[0].mxu0
    %v4397 = vadd.f32 %v4277, %v4396
    %4398 = vdwg.mxu0
    %v4399 = vand.u32 %v3052, 4294901760
    %v4400 = vsub.f32 %v3052, %v4399
    %v4401 = vand.u32 %v4400, 4294901760
    %4402 = vmatprep.subr.mxu0 %v4401
    %v4403 = vand.u32 %v3051, 4294901760
    %v4404 = vsub.f32 %v3051, %v4403
    %v4405 = vand.u32 %v4404, 4294901760
    %4406 = vmatpush1.msra.mxu0 %v4405
    %v4407 = vand.u32 %v3056, 4294901760
    %v4408 = vsub.f32 %v3056, %v4407
    %v4409 = vand.u32 %v4408, 4294901760
    %4410 = vmatprep.subr.mxu0 %v4409
    %v4411 = vand.u32 %v3055, 4294901760
    %v4412 = vsub.f32 %v3055, %v4411
    %v4413 = vand.u32 %v4412, 4294901760
    %4414 = vmatpush1.msra.mxu0 %v4413
    %v4415 = vand.u32 %v3060, 4294901760
    %v4416 = vsub.f32 %v3060, %v4415
    %v4417 = vand.u32 %v4416, 4294901760
    %4418 = vmatprep.subr.mxu0 %v4417
    %v4419 = vand.u32 %v3059, 4294901760
    %v4420 = vsub.f32 %v3059, %v4419
    %v4421 = vand.u32 %v4420, 4294901760
    %4422 = vmatpush1.msra.mxu0 %v4421
    %v4423 = vand.u32 %v3064, 4294901760
    %v4424 = vsub.f32 %v3064, %v4423
    %v4425 = vand.u32 %v4424, 4294901760
    %4426 = vmatprep.subr.mxu0 %v4425
    %v4427 = vand.u32 %v3063, 4294901760
    %v4428 = vsub.f32 %v3063, %v4427
    %v4429 = vand.u32 %v4428, 4294901760
    %4430 = vmatpush1.msra.mxu0 %v4429
    %v4431 = vand.u32 %v3068, 4294901760
    %v4432 = vsub.f32 %v3068, %v4431
    %v4433 = vand.u32 %v4432, 4294901760
    %4434 = vmatprep.subr.mxu0 %v4433
    %v4435 = vand.u32 %v3067, 4294901760
    %v4436 = vsub.f32 %v3067, %v4435
    %v4437 = vand.u32 %v4436, 4294901760
    %4438 = vmatpush1.msra.mxu0 %v4437
    %4439 = vmatprep.subr.mxu0 0.0
    %4440 = vmatpush1.msra.mxu0 0.0
    %4441 = vmatprep.subr.mxu0 0.0
    %4442 = vmatpush1.msra.mxu0 0.0
    %4443 = vmatprep.subr.mxu0 0.0
    %4444 = vmatpush1.msra.mxu0 0.0
    %4445 = vmatprep.subr.mxu0 0.0
    %4446 = vmatpush1.msra.mxu0 0.0
    %4447 = vmatprep.subr.mxu0 0.0
    %4448 = vmatpush1.msra.mxu0 0.0
    %4449 = vmatprep.subr.mxu0 0.0
    %4450 = vmatpush1.msra.mxu0 0.0
    %4451 = vmatprep.subr.mxu0 0.0
    %4452 = vmatpush1.msra.mxu0 0.0
    %4453 = vmatprep.subr.mxu0 0.0
    %4454 = vmatpush1.msra.mxu0 0.0
    %4455 = vmatprep.subr.mxu0 0.0
    %4456 = vmatpush1.msra.mxu0 0.0
    %4457 = vmatprep.subr.mxu0 0.0
    %4458 = vmatpush1.msra.mxu0 0.0
    %4459 = vmatprep.subr.mxu0 0.0
    %4460 = vmatpush1.msra.mxu0 0.0
    %4461 = vmatprep.subr.mxu0 0.0
    %4462 = vmatpush1.msra.mxu0 0.0
    %4463 = vmatprep.subr.mxu0 0.0
    %4464 = vmatpush1.msra.mxu0 0.0
    %4465 = vmatprep.subr.mxu0 0.0
    %4466 = vmatpush1.msra.mxu0 0.0
    %4467 = vmatprep.subr.mxu0 0.0
    %4468 = vmatpush1.msra.mxu0 0.0
    %4469 = vmatprep.subr.mxu0 0.0
    %4470 = vmatpush1.msra.mxu0 0.0
    %4471 = vmatprep.subr.mxu0 0.0
    %4472 = vmatpush1.msra.mxu0 0.0
    %4473 = vmatprep.subr.mxu0 0.0
    %4474 = vmatpush1.msra.mxu0 0.0
    %4475 = vmatprep.subr.mxu0 0.0
    %4476 = vmatpush1.msra.mxu0 0.0
    %4477 = vmatprep.subr.mxu0 0.0
    %4478 = vmatpush1.msra.mxu0 0.0
    %4479 = vmatprep.subr.mxu0 0.0
    %4480 = vmatpush1.msra.mxu0 0.0
    %4481 = vmatprep.subr.mxu0 0.0
    %4482 = vmatpush1.msra.mxu0 0.0
    %4483 = vmatprep.subr.mxu0 0.0
    %4484 = vmatpush1.msra.mxu0 0.0
    %4485 = vmatprep.subr.mxu0 0.0
    %4486 = vmatpush1.msra.mxu0 0.0
    %4487 = vmatprep.subr.mxu0 0.0
    %4488 = vmatpush1.msra.mxu0 0.0
    %4489 = vmatprep.subr.mxu0 0.0
    %4490 = vmatpush1.msra.mxu0 0.0
    %4491 = vmatprep.subr.mxu0 0.0
    %4492 = vmatpush1.msra.mxu0 0.0
    %4493 = vmatprep.mubr.f32.mxu0 0.0
    %v4494 = vand.u32 %v3095, 4294901760
    %4495 = vmatmul.mubr.f32.gmra.mrb[0].mxu0 %v4494
    %v4496 = vpop.f32.mrb[0].mxu0
    %v4497 = vadd.f32 %v4359, %v4496
    %v4498 = vpop.f32.mrb[0].mxu0
    %v4499 = vadd.f32 %v4361, %v4498
    %4500 = vmatprep.mubr.f32.mxu0 0.0
    %v4501 = vand.u32 %v3098, 4294901760
    %4502 = vmatmul.mubr.f32.gmra.mrb[0].mxu0 %v4501
    %v4503 = vpop.f32.mrb[0].mxu0
    %v4504 = vadd.f32 %v4368, %v4503
    %v4505 = vpop.f32.mrb[0].mxu0
    %v4506 = vadd.f32 %v4370, %v4505
    %4507 = vmatprep.mubr.f32.mxu0 0.0
    %v4508 = vand.u32 %v3101, 4294901760
    %4509 = vmatmul.mubr.f32.gmra.mrb[0].mxu0 %v4508
    %v4510 = vpop.f32.mrb[0].mxu0
    %v4511 = vadd.f32 %v4377, %v4510
    %v4512 = vpop.f32.mrb[0].mxu0
    %v4513 = vadd.f32 %v4379, %v4512
    %4514 = vmatprep.mubr.f32.mxu0 0.0
    %v4515 = vand.u32 %v3104, 4294901760
    %4516 = vmatmul.mubr.f32.gmra.mrb[0].mxu0 %v4515
    %v4517 = vpop.f32.mrb[0].mxu0
    %v4518 = vadd.f32 %v4386, %v4517
    %v4519 = vpop.f32.mrb[0].mxu0
    %v4520 = vadd.f32 %v4388, %v4519
    %4521 = vmatprep.mubr.f32.mxu0 0.0
    %v4522 = vand.u32 %v3107, 4294901760
    %4523 = vmatmul.mubr.f32.gmra.mrb[0].mxu0 %v4522
    %v4524 = vpop.f32.mrb[0].mxu0
    %v4525 = vadd.f32 %v4395, %v4524
    %v4526 = vpop.f32.mrb[0].mxu0
    %v4527 = vadd.f32 %v4397, %v4526
    %4528 = vdwg.mxu0
    %v4529 = vand.u32 %v3052, 4294901760
    %4530 = vmatprep.subr.mxu0 %v4529
    %v4531 = vand.u32 %v3051, 4294901760
    %4532 = vmatpush1.msra.mxu0 %v4531
    %v4533 = vand.u32 %v3056, 4294901760
    %4534 = vmatprep.subr.mxu0 %v4533
    %v4535 = vand.u32 %v3055, 4294901760
    %4536 = vmatpush1.msra.mxu0 %v4535
    %v4537 = vand.u32 %v3060, 4294901760
    %4538 = vmatprep.subr.mxu0 %v4537
    %v4539 = vand.u32 %v3059, 4294901760
    %4540 = vmatpush1.msra.mxu0 %v4539
    %v4541 = vand.u32 %v3064, 4294901760
    %4542 = vmatprep.subr.mxu0 %v4541
    %v4543 = vand.u32 %v3063, 4294901760
    %4544 = vmatpush1.msra.mxu0 %v4543
    %v4545 = vand.u32 %v3068, 4294901760
    %4546 = vmatprep.subr.mxu0 %v4545
    %v4547 = vand.u32 %v3067, 4294901760
    %4548 = vmatpush1.msra.mxu0 %v4547
    %4549 = vmatprep.subr.mxu0 0.0
    %4550 = vmatpush1.msra.mxu0 0.0
    %4551 = vmatprep.subr.mxu0 0.0
    %4552 = vmatpush1.msra.mxu0 0.0
    %4553 = vmatprep.subr.mxu0 0.0
    %4554 = vmatpush1.msra.mxu0 0.0
    %4555 = vmatprep.subr.mxu0 0.0
    %4556 = vmatpush1.msra.mxu0 0.0
    %4557 = vmatprep.subr.mxu0 0.0
    %4558 = vmatpush1.msra.mxu0 0.0
    %4559 = vmatprep.subr.mxu0 0.0
    %4560 = vmatpush1.msra.mxu0 0.0
    %4561 = vmatprep.subr.mxu0 0.0
    %4562 = vmatpush1.msra.mxu0 0.0
    %4563 = vmatprep.subr.mxu0 0.0
    %4564 = vmatpush1.msra.mxu0 0.0
    %4565 = vmatprep.subr.mxu0 0.0
    %4566 = vmatpush1.msra.mxu0 0.0
    %4567 = vmatprep.subr.mxu0 0.0
    %4568 = vmatpush1.msra.mxu0 0.0
    %4569 = vmatprep.subr.mxu0 0.0
    %4570 = vmatpush1.msra.mxu0 0.0
    %4571 = vmatprep.subr.mxu0 0.0
    %4572 = vmatpush1.msra.mxu0 0.0
    %4573 = vmatprep.subr.mxu0 0.0
    %4574 = vmatpush1.msra.mxu0 0.0
    %4575 = vmatprep.subr.mxu0 0.0
    %4576 = vmatpush1.msra.mxu0 0.0
    %4577 = vmatprep.subr.mxu0 0.0
    %4578 = vmatpush1.msra.mxu0 0.0
    %4579 = vmatprep.subr.mxu0 0.0
    %4580 = vmatpush1.msra.mxu0 0.0
    %4581 = vmatprep.subr.mxu0 0.0
    %4582 = vmatpush1.msra.mxu0 0.0
    %4583 = vmatprep.subr.mxu0 0.0
    %4584 = vmatpush1.msra.mxu0 0.0
    %4585 = vmatprep.subr.mxu0 0.0
    %4586 = vmatpush1.msra.mxu0 0.0
    %4587 = vmatprep.subr.mxu0 0.0
    %4588 = vmatpush1.msra.mxu0 0.0
    %4589 = vmatprep.subr.mxu0 0.0
    %4590 = vmatpush1.msra.mxu0 0.0
    %4591 = vmatprep.subr.mxu0 0.0
    %4592 = vmatpush1.msra.mxu0 0.0
    %4593 = vmatprep.subr.mxu0 0.0
    %4594 = vmatpush1.msra.mxu0 0.0
    %4595 = vmatprep.subr.mxu0 0.0
    %4596 = vmatpush1.msra.mxu0 0.0
    %4597 = vmatprep.subr.mxu0 0.0
    %4598 = vmatpush1.msra.mxu0 0.0
    %4599 = vmatprep.subr.mxu0 0.0
    %4600 = vmatpush1.msra.mxu0 0.0
    %4601 = vmatprep.subr.mxu0 0.0
    %4602 = vmatpush1.msra.mxu0 0.0
    %4603 = vmatprep.mubr.f32.mxu0 0.0
    %v4604 = vand.u32 %v3095, 4294901760
    %4605 = vmatmul.mubr.f32.gmra.mrb[0].mxu0 %v4604
    %v4606 = vpop.f32.mrb[0].mxu0
    %v4607 = vadd.f32 %v4497, %v4606
    %v4608 = vpop.f32.mrb[0].mxu0
    %v4609 = vadd.f32 %v4499, %v4608
    %4610 = vmatprep.mubr.f32.mxu0 0.0
    %v4611 = vand.u32 %v3098, 4294901760
    %4612 = vmatmul.mubr.f32.gmra.mrb[0].mxu0 %v4611
    %v4613 = vpop.f32.mrb[0].mxu0
    %v4614 = vadd.f32 %v4504, %v4613
    %v4615 = vpop.f32.mrb[0].mxu0
    %v4616 = vadd.f32 %v4506, %v4615
    %4617 = vmatprep.mubr.f32.mxu0 0.0
    %v4618 = vand.u32 %v3101, 4294901760
    %4619 = vmatmul.mubr.f32.gmra.mrb[0].mxu0 %v4618
    %v4620 = vpop.f32.mrb[0].mxu0
    %v4621 = vadd.f32 %v4511, %v4620
    %v4622 = vpop.f32.mrb[0].mxu0
    %v4623 = vadd.f32 %v4513, %v4622
    %4624 = vmatprep.mubr.f32.mxu0 0.0
    %v4625 = vand.u32 %v3104, 4294901760
    %4626 = vmatmul.mubr.f32.gmra.mrb[0].mxu0 %v4625
    %v4627 = vpop.f32.mrb[0].mxu0
    %v4628 = vadd.f32 %v4518, %v4627
    %v4629 = vpop.f32.mrb[0].mxu0
    %v4630 = vadd.f32 %v4520, %v4629
    %4631 = vmatprep.mubr.f32.mxu0 0.0
    %v4632 = vand.u32 %v3107, 4294901760
    %4633 = vmatmul.mubr.f32.gmra.mrb[0].mxu0 %v4632
    %v4634 = vpop.f32.mrb[0].mxu0
    %v4635 = vadd.f32 %v4525, %v4634
    %v4636 = vpop.f32.mrb[0].mxu0
    %v4637 = vadd.f32 %v4527, %v4636
    %4638 = vdwg.mxu0
    %v4639 = vtanh.pop %v3842
    %v4640 = vtanh.pop %v3844
    %v4641 = vtanh.pop %v4607
    %v4642 = vtanh.pop %v4609
    %v4643 = vtanh.pop %v3849
    %v4644 = vtanh.pop %v3851
    %v4645 = vtanh.pop %v4614
    %v4646 = vtanh.pop %v4616
    %v4647 = vtanh.pop %v3856
    %v4648 = vtanh.pop %v3858
    %v4649 = vtanh.pop %v4621
    %v4650 = vtanh.pop %v4623
    %v4651 = vtanh.pop %v3863
    %v4652 = vtanh.pop %v3865
    %v4653 = vtanh.pop %v4628
    %v4654 = vtanh.pop %v4630
    %v4655 = vtanh.pop %v3870
    %v4656 = vtanh.pop %v3872
    %v4657 = vtanh.pop %v4635
    %v4658 = vtanh.pop %v4637
    %4660 = vset.pattern.permute.xlu0 0
    %4661 = vperm.xlu0 %4660, %v66
    %v4662 = vpop.permute.xlu0 %4661
    %v4664 = vlaneseq
    %v4665 = vshrl.u32 %v4664, 7
    %v4666 = vsub.s32 0, %v4665
    %v4667 = vrot.slane %v4662, %v4666
    %v4669 = vsel %vm1503, %v65, 0
    %v4671 = vand.u32 %v4640, 4294901760
    %4672 = vmatprep.subr.mxu0 %v4671
    %v4673 = vand.u32 %v4639, 4294901760
    %4674 = vmatpush1.msra.mxu0 %v4673
    %v4675 = vand.u32 %v4644, 4294901760
    %4676 = vmatprep.subr.mxu0 %v4675
    %v4677 = vand.u32 %v4643, 4294901760
    %4678 = vmatpush1.msra.mxu0 %v4677
    %v4679 = vand.u32 %v4648, 4294901760
    %4680 = vmatprep.subr.mxu0 %v4679
    %v4681 = vand.u32 %v4647, 4294901760
    %4682 = vmatpush1.msra.mxu0 %v4681
    %v4683 = vand.u32 %v4652, 4294901760
    %4684 = vmatprep.subr.mxu0 %v4683
    %v4685 = vand.u32 %v4651, 4294901760
    %4686 = vmatpush1.msra.mxu0 %v4685
    %v4687 = vand.u32 %v4656, 4294901760
    %4688 = vmatprep.subr.mxu0 %v4687
    %v4689 = vand.u32 %v4655, 4294901760
    %4690 = vmatpush1.msra.mxu0 %v4689
    %4691 = vmatprep.subr.mxu0 0.0
    %4692 = vmatpush1.msra.mxu0 0.0
    %4693 = vmatprep.subr.mxu0 0.0
    %4694 = vmatpush1.msra.mxu0 0.0
    %4695 = vmatprep.subr.mxu0 0.0
    %4696 = vmatpush1.msra.mxu0 0.0
    %4697 = vmatprep.subr.mxu0 0.0
    %4698 = vmatpush1.msra.mxu0 0.0
    %4699 = vmatprep.subr.mxu0 0.0
    %4700 = vmatpush1.msra.mxu0 0.0
    %4701 = vmatprep.subr.mxu0 0.0
    %4702 = vmatpush1.msra.mxu0 0.0
    %4703 = vmatprep.subr.mxu0 0.0
    %4704 = vmatpush1.msra.mxu0 0.0
    %4705 = vmatprep.subr.mxu0 0.0
    %4706 = vmatpush1.msra.mxu0 0.0
    %4707 = vmatprep.subr.mxu0 0.0
    %4708 = vmatpush1.msra.mxu0 0.0
    %4709 = vmatprep.subr.mxu0 0.0
    %4710 = vmatpush1.msra.mxu0 0.0
    %4711 = vmatprep.subr.mxu0 0.0
    %4712 = vmatpush1.msra.mxu0 0.0
    %4713 = vmatprep.subr.mxu0 0.0
    %4714 = vmatpush1.msra.mxu0 0.0
    %4715 = vmatprep.subr.mxu0 0.0
    %4716 = vmatpush1.msra.mxu0 0.0
    %4717 = vmatprep.subr.mxu0 0.0
    %4718 = vmatpush1.msra.mxu0 0.0
    %4719 = vmatprep.subr.mxu0 0.0
    %4720 = vmatpush1.msra.mxu0 0.0
    %4721 = vmatprep.subr.mxu0 0.0
    %4722 = vmatpush1.msra.mxu0 0.0
    %4723 = vmatprep.subr.mxu0 0.0
    %4724 = vmatpush1.msra.mxu0 0.0
    %4725 = vmatprep.subr.mxu0 0.0
    %4726 = vmatpush1.msra.mxu0 0.0
    %4727 = vmatprep.subr.mxu0 0.0
    %4728 = vmatpush1.msra.mxu0 0.0
    %4729 = vmatprep.subr.mxu0 0.0
    %4730 = vmatpush1.msra.mxu0 0.0
    %4731 = vmatprep.subr.mxu0 0.0
    %4732 = vmatpush1.msra.mxu0 0.0
    %4733 = vmatprep.subr.mxu0 0.0
    %4734 = vmatpush1.msra.mxu0 0.0
    %4735 = vmatprep.subr.mxu0 0.0
    %4736 = vmatpush1.msra.mxu0 0.0
    %4737 = vmatprep.subr.mxu0 0.0
    %4738 = vmatpush1.msra.mxu0 0.0
    %4739 = vmatprep.subr.mxu0 0.0
    %4740 = vmatpush1.msra.mxu0 0.0
    %4741 = vmatprep.subr.mxu0 0.0
    %4742 = vmatpush1.msra.mxu0 0.0
    %4743 = vmatprep.subr.mxu0 0.0
    %4744 = vmatpush1.msra.mxu0 0.0
    %4745 = vmatprep.mubr.f32.mxu0 0.0
    %v4746 = vand.u32 %v4669, 4294901760
    %v4747 = vsub.f32 %v4669, %v4746
    %v4748 = vand.u32 %v4747, 4294901760
    %v4749 = vsub.f32 %v4747, %v4748
    %v4750 = vand.u32 %v4749, 4294901760
    %4751 = vmatmul.mubr.f32.gmra.mrb[0].mxu0 %v4750
    %v4752 = vpop.f32.mrb[0].mxu0
    %v4753 = vadd.f32 %v4667, %v4752
    %v4754 = vpop.f32.mrb[0].mxu0
    %v4755 = vadd.f32 %v4667, %v4754
    %4756 = vdwg.mxu0
    %v4757 = vand.u32 %v4640, 4294901760
    %v4758 = vsub.f32 %v4640, %v4757
    %v4759 = vand.u32 %v4758, 4294901760
    %v4760 = vsub.f32 %v4758, %v4759
    %v4761 = vand.u32 %v4760, 4294901760
    %4762 = vmatprep.subr.mxu0 %v4761
    %v4763 = vand.u32 %v4639, 4294901760
    %v4764 = vsub.f32 %v4639, %v4763
    %v4765 = vand.u32 %v4764, 4294901760
    %v4766 = vsub.f32 %v4764, %v4765
    %v4767 = vand.u32 %v4766, 4294901760
    %4768 = vmatpush1.msra.mxu0 %v4767
    %v4769 = vand.u32 %v4644, 4294901760
    %v4770 = vsub.f32 %v4644, %v4769
    %v4771 = vand.u32 %v4770, 4294901760
    %v4772 = vsub.f32 %v4770, %v4771
    %v4773 = vand.u32 %v4772, 4294901760
    %4774 = vmatprep.subr.mxu0 %v4773
    %v4775 = vand.u32 %v4643, 4294901760
    %v4776 = vsub.f32 %v4643, %v4775
    %v4777 = vand.u32 %v4776, 4294901760
    %v4778 = vsub.f32 %v4776, %v4777
    %v4779 = vand.u32 %v4778, 4294901760
    %4780 = vmatpush1.msra.mxu0 %v4779
    %v4781 = vand.u32 %v4648, 4294901760
    %v4782 = vsub.f32 %v4648, %v4781
    %v4783 = vand.u32 %v4782, 4294901760
    %v4784 = vsub.f32 %v4782, %v4783
    %v4785 = vand.u32 %v4784, 4294901760
    %4786 = vmatprep.subr.mxu0 %v4785
    %v4787 = vand.u32 %v4647, 4294901760
    %v4788 = vsub.f32 %v4647, %v4787
    %v4789 = vand.u32 %v4788, 4294901760
    %v4790 = vsub.f32 %v4788, %v4789
    %v4791 = vand.u32 %v4790, 4294901760
    %4792 = vmatpush1.msra.mxu0 %v4791
    %v4793 = vand.u32 %v4652, 4294901760
    %v4794 = vsub.f32 %v4652, %v4793
    %v4795 = vand.u32 %v4794, 4294901760
    %v4796 = vsub.f32 %v4794, %v4795
    %v4797 = vand.u32 %v4796, 4294901760
    %4798 = vmatprep.subr.mxu0 %v4797
    %v4799 = vand.u32 %v4651, 4294901760
    %v4800 = vsub.f32 %v4651, %v4799
    %v4801 = vand.u32 %v4800, 4294901760
    %v4802 = vsub.f32 %v4800, %v4801
    %v4803 = vand.u32 %v4802, 4294901760
    %4804 = vmatpush1.msra.mxu0 %v4803
    %v4805 = vand.u32 %v4656, 4294901760
    %v4806 = vsub.f32 %v4656, %v4805
    %v4807 = vand.u32 %v4806, 4294901760
    %v4808 = vsub.f32 %v4806, %v4807
    %v4809 = vand.u32 %v4808, 4294901760
    %4810 = vmatprep.subr.mxu0 %v4809
    %v4811 = vand.u32 %v4655, 4294901760
    %v4812 = vsub.f32 %v4655, %v4811
    %v4813 = vand.u32 %v4812, 4294901760
    %v4814 = vsub.f32 %v4812, %v4813
    %v4815 = vand.u32 %v4814, 4294901760
    %4816 = vmatpush1.msra.mxu0 %v4815
    %4817 = vmatprep.subr.mxu0 0.0
    %4818 = vmatpush1.msra.mxu0 0.0
    %4819 = vmatprep.subr.mxu0 0.0
    %4820 = vmatpush1.msra.mxu0 0.0
    %4821 = vmatprep.subr.mxu0 0.0
    %4822 = vmatpush1.msra.mxu0 0.0
    %4823 = vmatprep.subr.mxu0 0.0
    %4824 = vmatpush1.msra.mxu0 0.0
    %4825 = vmatprep.subr.mxu0 0.0
    %4826 = vmatpush1.msra.mxu0 0.0
    %4827 = vmatprep.subr.mxu0 0.0
    %4828 = vmatpush1.msra.mxu0 0.0
    %4829 = vmatprep.subr.mxu0 0.0
    %4830 = vmatpush1.msra.mxu0 0.0
    %4831 = vmatprep.subr.mxu0 0.0
    %4832 = vmatpush1.msra.mxu0 0.0
    %4833 = vmatprep.subr.mxu0 0.0
    %4834 = vmatpush1.msra.mxu0 0.0
    %4835 = vmatprep.subr.mxu0 0.0
    %4836 = vmatpush1.msra.mxu0 0.0
    %4837 = vmatprep.subr.mxu0 0.0
    %4838 = vmatpush1.msra.mxu0 0.0
    %4839 = vmatprep.subr.mxu0 0.0
    %4840 = vmatpush1.msra.mxu0 0.0
    %4841 = vmatprep.subr.mxu0 0.0
    %4842 = vmatpush1.msra.mxu0 0.0
    %4843 = vmatprep.subr.mxu0 0.0
    %4844 = vmatpush1.msra.mxu0 0.0
    %4845 = vmatprep.subr.mxu0 0.0
    %4846 = vmatpush1.msra.mxu0 0.0
    %4847 = vmatprep.subr.mxu0 0.0
    %4848 = vmatpush1.msra.mxu0 0.0
    %4849 = vmatprep.subr.mxu0 0.0
    %4850 = vmatpush1.msra.mxu0 0.0
    %4851 = vmatprep.subr.mxu0 0.0
    %4852 = vmatpush1.msra.mxu0 0.0
    %4853 = vmatprep.subr.mxu0 0.0
    %4854 = vmatpush1.msra.mxu0 0.0
    %4855 = vmatprep.subr.mxu0 0.0
    %4856 = vmatpush1.msra.mxu0 0.0
    %4857 = vmatprep.subr.mxu0 0.0
    %4858 = vmatpush1.msra.mxu0 0.0
    %4859 = vmatprep.subr.mxu0 0.0
    %4860 = vmatpush1.msra.mxu0 0.0
    %4861 = vmatprep.subr.mxu0 0.0
    %4862 = vmatpush1.msra.mxu0 0.0
    %4863 = vmatprep.subr.mxu0 0.0
    %4864 = vmatpush1.msra.mxu0 0.0
    %4865 = vmatprep.subr.mxu0 0.0
    %4866 = vmatpush1.msra.mxu0 0.0
    %4867 = vmatprep.subr.mxu0 0.0
    %4868 = vmatpush1.msra.mxu0 0.0
    %4869 = vmatprep.subr.mxu0 0.0
    %4870 = vmatpush1.msra.mxu0 0.0
    %4871 = vmatprep.mubr.f32.mxu0 0.0
    %v4872 = vand.u32 %v4669, 4294901760
    %4873 = vmatmul.mubr.f32.gmra.mrb[0].mxu0 %v4872
    %v4874 = vpop.f32.mrb[0].mxu0
    %v4875 = vadd.f32 %v4753, %v4874
    %v4876 = vpop.f32.mrb[0].mxu0
    %v4877 = vadd.f32 %v4755, %v4876
    %4878 = vdwg.mxu0
    %v4879 = vand.u32 %v4640, 4294901760
    %v4880 = vsub.f32 %v4640, %v4879
    %4881 = vmatprep.subr.mxu0 %v4880
    %v4882 = vand.u32 %v4639, 4294901760
    %v4883 = vsub.f32 %v4639, %v4882
    %4884 = vmatpush1.msra.mxu0 %v4883
    %v4885 = vand.u32 %v4644, 4294901760
    %v4886 = vsub.f32 %v4644, %v4885
    %4887 = vmatprep.subr.mxu0 %v4886
    %v4888 = vand.u32 %v4643, 4294901760
    %v4889 = vsub.f32 %v4643, %v4888
    %4890 = vmatpush1.msra.mxu0 %v4889
    %v4891 = vand.u32 %v4648, 4294901760
    %v4892 = vsub.f32 %v4648, %v4891
    %4893 = vmatprep.subr.mxu0 %v4892
    %v4894 = vand.u32 %v4647, 4294901760
    %v4895 = vsub.f32 %v4647, %v4894
    %4896 = vmatpush1.msra.mxu0 %v4895
    %v4897 = vand.u32 %v4652, 4294901760
    %v4898 = vsub.f32 %v4652, %v4897
    %4899 = vmatprep.subr.mxu0 %v4898
    %v4900 = vand.u32 %v4651, 4294901760
    %v4901 = vsub.f32 %v4651, %v4900
    %4902 = vmatpush1.msra.mxu0 %v4901
    %v4903 = vand.u32 %v4656, 4294901760
    %v4904 = vsub.f32 %v4656, %v4903
    %4905 = vmatprep.subr.mxu0 %v4904
    %v4906 = vand.u32 %v4655, 4294901760
    %v4907 = vsub.f32 %v4655, %v4906
    %4908 = vmatpush1.msra.mxu0 %v4907
    %4909 = vmatprep.subr.mxu0 0.0
    %4910 = vmatpush1.msra.mxu0 0.0
    %4911 = vmatprep.subr.mxu0 0.0
    %4912 = vmatpush1.msra.mxu0 0.0
    %4913 = vmatprep.subr.mxu0 0.0
    %4914 = vmatpush1.msra.mxu0 0.0
    %4915 = vmatprep.subr.mxu0 0.0
    %4916 = vmatpush1.msra.mxu0 0.0
    %4917 = vmatprep.subr.mxu0 0.0
    %4918 = vmatpush1.msra.mxu0 0.0
    %4919 = vmatprep.subr.mxu0 0.0
    %4920 = vmatpush1.msra.mxu0 0.0
    %4921 = vmatprep.subr.mxu0 0.0
    %4922 = vmatpush1.msra.mxu0 0.0
    %4923 = vmatprep.subr.mxu0 0.0
    %4924 = vmatpush1.msra.mxu0 0.0
    %4925 = vmatprep.subr.mxu0 0.0
    %4926 = vmatpush1.msra.mxu0 0.0
    %4927 = vmatprep.subr.mxu0 0.0
    %4928 = vmatpush1.msra.mxu0 0.0
    %4929 = vmatprep.subr.mxu0 0.0
    %4930 = vmatpush1.msra.mxu0 0.0
    %4931 = vmatprep.subr.mxu0 0.0
    %4932 = vmatpush1.msra.mxu0 0.0
    %4933 = vmatprep.subr.mxu0 0.0
    %4934 = vmatpush1.msra.mxu0 0.0
    %4935 = vmatprep.subr.mxu0 0.0
    %4936 = vmatpush1.msra.mxu0 0.0
    %4937 = vmatprep.subr.mxu0 0.0
    %4938 = vmatpush1.msra.mxu0 0.0
    %4939 = vmatprep.subr.mxu0 0.0
    %4940 = vmatpush1.msra.mxu0 0.0
    %4941 = vmatprep.subr.mxu0 0.0
    %4942 = vmatpush1.msra.mxu0 0.0
    %4943 = vmatprep.subr.mxu0 0.0
    %4944 = vmatpush1.msra.mxu0 0.0
    %4945 = vmatprep.subr.mxu0 0.0
    %4946 = vmatpush1.msra.mxu0 0.0
    %4947 = vmatprep.subr.mxu0 0.0
    %4948 = vmatpush1.msra.mxu0 0.0
    %4949 = vmatprep.subr.mxu0 0.0
    %4950 = vmatpush1.msra.mxu0 0.0
    %4951 = vmatprep.subr.mxu0 0.0
    %4952 = vmatpush1.msra.mxu0 0.0
    %4953 = vmatprep.subr.mxu0 0.0
    %4954 = vmatpush1.msra.mxu0 0.0
    %4955 = vmatprep.subr.mxu0 0.0
    %4956 = vmatpush1.msra.mxu0 0.0
    %4957 = vmatprep.subr.mxu0 0.0
    %4958 = vmatpush1.msra.mxu0 0.0
    %4959 = vmatprep.subr.mxu0 0.0
    %4960 = vmatpush1.msra.mxu0 0.0
    %4961 = vmatprep.subr.mxu0 0.0
    %4962 = vmatpush1.msra.mxu0 0.0
    %4963 = vmatprep.mubr.f32.mxu0 0.0
    %v4964 = vand.u32 %v4669, 4294901760
    %v4965 = vsub.f32 %v4669, %v4964
    %4966 = vmatmul.mubr.f32.gmra.mrb[0].mxu0 %v4965
    %v4967 = vpop.f32.mrb[0].mxu0
    %v4968 = vadd.f32 %v4875, %v4967
    %v4969 = vpop.f32.mrb[0].mxu0
    %v4970 = vadd.f32 %v4877, %v4969
    %4971 = vdwg.mxu0
    %v4972 = vand.u32 %v4640, 4294901760
    %4973 = vmatprep.subr.mxu0 %v4972
    %v4974 = vand.u32 %v4639, 4294901760
    %4975 = vmatpush1.msra.mxu0 %v4974
    %v4976 = vand.u32 %v4644, 4294901760
    %4977 = vmatprep.subr.mxu0 %v4976
    %v4978 = vand.u32 %v4643, 4294901760
    %4979 = vmatpush1.msra.mxu0 %v4978
    %v4980 = vand.u32 %v4648, 4294901760
    %4981 = vmatprep.subr.mxu0 %v4980
    %v4982 = vand.u32 %v4647, 4294901760
    %4983 = vmatpush1.msra.mxu0 %v4982
    %v4984 = vand.u32 %v4652, 4294901760
    %4985 = vmatprep.subr.mxu0 %v4984
    %v4986 = vand.u32 %v4651, 4294901760
    %4987 = vmatpush1.msra.mxu0 %v4986
    %v4988 = vand.u32 %v4656, 4294901760
    %4989 = vmatprep.subr.mxu0 %v4988
    %v4990 = vand.u32 %v4655, 4294901760
    %4991 = vmatpush1.msra.mxu0 %v4990
    %4992 = vmatprep.subr.mxu0 0.0
    %4993 = vmatpush1.msra.mxu0 0.0
    %4994 = vmatprep.subr.mxu0 0.0
    %4995 = vmatpush1.msra.mxu0 0.0
    %4996 = vmatprep.subr.mxu0 0.0
    %4997 = vmatpush1.msra.mxu0 0.0
    %4998 = vmatprep.subr.mxu0 0.0
    %4999 = vmatpush1.msra.mxu0 0.0
    %5000 = vmatprep.subr.mxu0 0.0
    %5001 = vmatpush1.msra.mxu0 0.0
    %5002 = vmatprep.subr.mxu0 0.0
    %5003 = vmatpush1.msra.mxu0 0.0
    %5004 = vmatprep.subr.mxu0 0.0
    %5005 = vmatpush1.msra.mxu0 0.0
    %5006 = vmatprep.subr.mxu0 0.0
    %5007 = vmatpush1.msra.mxu0 0.0
    %5008 = vmatprep.subr.mxu0 0.0
    %5009 = vmatpush1.msra.mxu0 0.0
    %5010 = vmatprep.subr.mxu0 0.0
    %5011 = vmatpush1.msra.mxu0 0.0
    %5012 = vmatprep.subr.mxu0 0.0
    %5013 = vmatpush1.msra.mxu0 0.0
    %5014 = vmatprep.subr.mxu0 0.0
    %5015 = vmatpush1.msra.mxu0 0.0
    %5016 = vmatprep.subr.mxu0 0.0
    %5017 = vmatpush1.msra.mxu0 0.0
    %5018 = vmatprep.subr.mxu0 0.0
    %5019 = vmatpush1.msra.mxu0 0.0
    %5020 = vmatprep.subr.mxu0 0.0
    %5021 = vmatpush1.msra.mxu0 0.0
    %5022 = vmatprep.subr.mxu0 0.0
    %5023 = vmatpush1.msra.mxu0 0.0
    %5024 = vmatprep.subr.mxu0 0.0
    %5025 = vmatpush1.msra.mxu0 0.0
    %5026 = vmatprep.subr.mxu0 0.0
    %5027 = vmatpush1.msra.mxu0 0.0
    %5028 = vmatprep.subr.mxu0 0.0
    %5029 = vmatpush1.msra.mxu0 0.0
    %5030 = vmatprep.subr.mxu0 0.0
    %5031 = vmatpush1.msra.mxu0 0.0
    %5032 = vmatprep.subr.mxu0 0.0
    %5033 = vmatpush1.msra.mxu0 0.0
    %5034 = vmatprep.subr.mxu0 0.0
    %5035 = vmatpush1.msra.mxu0 0.0
    %5036 = vmatprep.subr.mxu0 0.0
    %5037 = vmatpush1.msra.mxu0 0.0
    %5038 = vmatprep.subr.mxu0 0.0
    %5039 = vmatpush1.msra.mxu0 0.0
    %5040 = vmatprep.subr.mxu0 0.0
    %5041 = vmatpush1.msra.mxu0 0.0
    %5042 = vmatprep.subr.mxu0 0.0
    %5043 = vmatpush1.msra.mxu0 0.0
    %5044 = vmatprep.subr.mxu0 0.0
    %5045 = vmatpush1.msra.mxu0 0.0
    %5046 = vmatprep.mubr.f32.mxu0 0.0
    %v5047 = vand.u32 %v4669, 4294901760
    %v5048 = vsub.f32 %v4669, %v5047
    %v5049 = vand.u32 %v5048, 4294901760
    %5050 = vmatmul.mubr.f32.gmra.mrb[0].mxu0 %v5049
    %v5051 = vpop.f32.mrb[0].mxu0
    %v5052 = vadd.f32 %v4968, %v5051
    %v5053 = vpop.f32.mrb[0].mxu0
    %v5054 = vadd.f32 %v4970, %v5053
    %5055 = vdwg.mxu0
    %v5056 = vand.u32 %v4640, 4294901760
    %v5057 = vsub.f32 %v4640, %v5056
    %v5058 = vand.u32 %v5057, 4294901760
    %5059 = vmatprep.subr.mxu0 %v5058
    %v5060 = vand.u32 %v4639, 4294901760
    %v5061 = vsub.f32 %v4639, %v5060
    %v5062 = vand.u32 %v5061, 4294901760
    %5063 = vmatpush1.msra.mxu0 %v5062
    %v5064 = vand.u32 %v4644, 4294901760
    %v5065 = vsub.f32 %v4644, %v5064
    %v5066 = vand.u32 %v5065, 4294901760
    %5067 = vmatprep.subr.mxu0 %v5066
    %v5068 = vand.u32 %v4643, 4294901760
    %v5069 = vsub.f32 %v4643, %v5068
    %v5070 = vand.u32 %v5069, 4294901760
    %5071 = vmatpush1.msra.mxu0 %v5070
    %v5072 = vand.u32 %v4648, 4294901760
    %v5073 = vsub.f32 %v4648, %v5072
    %v5074 = vand.u32 %v5073, 4294901760
    %5075 = vmatprep.subr.mxu0 %v5074
    %v5076 = vand.u32 %v4647, 4294901760
    %v5077 = vsub.f32 %v4647, %v5076
    %v5078 = vand.u32 %v5077, 4294901760
    %5079 = vmatpush1.msra.mxu0 %v5078
    %v5080 = vand.u32 %v4652, 4294901760
    %v5081 = vsub.f32 %v4652, %v5080
    %v5082 = vand.u32 %v5081, 4294901760
    %5083 = vmatprep.subr.mxu0 %v5082
    %v5084 = vand.u32 %v4651, 4294901760
    %v5085 = vsub.f32 %v4651, %v5084
    %v5086 = vand.u32 %v5085, 4294901760
    %5087 = vmatpush1.msra.mxu0 %v5086
    %v5088 = vand.u32 %v4656, 4294901760
    %v5089 = vsub.f32 %v4656, %v5088
    %v5090 = vand.u32 %v5089, 4294901760
    %5091 = vmatprep.subr.mxu0 %v5090
    %v5092 = vand.u32 %v4655, 4294901760
    %v5093 = vsub.f32 %v4655, %v5092
    %v5094 = vand.u32 %v5093, 4294901760
    %5095 = vmatpush1.msra.mxu0 %v5094
    %5096 = vmatprep.subr.mxu0 0.0
    %5097 = vmatpush1.msra.mxu0 0.0
    %5098 = vmatprep.subr.mxu0 0.0
    %5099 = vmatpush1.msra.mxu0 0.0
    %5100 = vmatprep.subr.mxu0 0.0
    %5101 = vmatpush1.msra.mxu0 0.0
    %5102 = vmatprep.subr.mxu0 0.0
    %5103 = vmatpush1.msra.mxu0 0.0
    %5104 = vmatprep.subr.mxu0 0.0
    %5105 = vmatpush1.msra.mxu0 0.0
    %5106 = vmatprep.subr.mxu0 0.0
    %5107 = vmatpush1.msra.mxu0 0.0
    %5108 = vmatprep.subr.mxu0 0.0
    %5109 = vmatpush1.msra.mxu0 0.0
    %5110 = vmatprep.subr.mxu0 0.0
    %5111 = vmatpush1.msra.mxu0 0.0
    %5112 = vmatprep.subr.mxu0 0.0
    %5113 = vmatpush1.msra.mxu0 0.0
    %5114 = vmatprep.subr.mxu0 0.0
    %5115 = vmatpush1.msra.mxu0 0.0
    %5116 = vmatprep.subr.mxu0 0.0
    %5117 = vmatpush1.msra.mxu0 0.0
    %5118 = vmatprep.subr.mxu0 0.0
    %5119 = vmatpush1.msra.mxu0 0.0
    %5120 = vmatprep.subr.mxu0 0.0
    %5121 = vmatpush1.msra.mxu0 0.0
    %5122 = vmatprep.subr.mxu0 0.0
    %5123 = vmatpush1.msra.mxu0 0.0
    %5124 = vmatprep.subr.mxu0 0.0
    %5125 = vmatpush1.msra.mxu0 0.0
    %5126 = vmatprep.subr.mxu0 0.0
    %5127 = vmatpush1.msra.mxu0 0.0
    %5128 = vmatprep.subr.mxu0 0.0
    %5129 = vmatpush1.msra.mxu0 0.0
    %5130 = vmatprep.subr.mxu0 0.0
    %5131 = vmatpush1.msra.mxu0 0.0
    %5132 = vmatprep.subr.mxu0 0.0
    %5133 = vmatpush1.msra.mxu0 0.0
    %5134 = vmatprep.subr.mxu0 0.0
    %5135 = vmatpush1.msra.mxu0 0.0
    %5136 = vmatprep.subr.mxu0 0.0
    %5137 = vmatpush1.msra.mxu0 0.0
    %5138 = vmatprep.subr.mxu0 0.0
    %5139 = vmatpush1.msra.mxu0 0.0
    %5140 = vmatprep.subr.mxu0 0.0
    %5141 = vmatpush1.msra.mxu0 0.0
    %5142 = vmatprep.subr.mxu0 0.0
    %5143 = vmatpush1.msra.mxu0 0.0
    %5144 = vmatprep.subr.mxu0 0.0
    %5145 = vmatpush1.msra.mxu0 0.0
    %5146 = vmatprep.subr.mxu0 0.0
    %5147 = vmatpush1.msra.mxu0 0.0
    %5148 = vmatprep.subr.mxu0 0.0
    %5149 = vmatpush1.msra.mxu0 0.0
    %5150 = vmatprep.mubr.f32.mxu0 0.0
    %v5151 = vand.u32 %v4669, 4294901760
    %5152 = vmatmul.mubr.f32.gmra.mrb[0].mxu0 %v5151
    %v5153 = vpop.f32.mrb[0].mxu0
    %v5154 = vadd.f32 %v5052, %v5153
    %v5155 = vpop.f32.mrb[0].mxu0
    %v5156 = vadd.f32 %v5054, %v5155
    %5157 = vdwg.mxu0
    %v5158 = vand.u32 %v4640, 4294901760
    %5159 = vmatprep.subr.mxu0 %v5158
    %v5160 = vand.u32 %v4639, 4294901760
    %5161 = vmatpush1.msra.mxu0 %v5160
    %v5162 = vand.u32 %v4644, 4294901760
    %5163 = vmatprep.subr.mxu0 %v5162
    %v5164 = vand.u32 %v4643, 4294901760
    %5165 = vmatpush1.msra.mxu0 %v5164
    %v5166 = vand.u32 %v4648, 4294901760
    %5167 = vmatprep.subr.mxu0 %v5166
    %v5168 = vand.u32 %v4647, 4294901760
    %5169 = vmatpush1.msra.mxu0 %v5168
    %v5170 = vand.u32 %v4652, 4294901760
    %5171 = vmatprep.subr.mxu0 %v5170
    %v5172 = vand.u32 %v4651, 4294901760
    %5173 = vmatpush1.msra.mxu0 %v5172
    %v5174 = vand.u32 %v4656, 4294901760
    %5175 = vmatprep.subr.mxu0 %v5174
    %v5176 = vand.u32 %v4655, 4294901760
    %5177 = vmatpush1.msra.mxu0 %v5176
    %5178 = vmatprep.subr.mxu0 0.0
    %5179 = vmatpush1.msra.mxu0 0.0
    %5180 = vmatprep.subr.mxu0 0.0
    %5181 = vmatpush1.msra.mxu0 0.0
    %5182 = vmatprep.subr.mxu0 0.0
    %5183 = vmatpush1.msra.mxu0 0.0
    %5184 = vmatprep.subr.mxu0 0.0
    %5185 = vmatpush1.msra.mxu0 0.0
    %5186 = vmatprep.subr.mxu0 0.0
    %5187 = vmatpush1.msra.mxu0 0.0
    %5188 = vmatprep.subr.mxu0 0.0
    %5189 = vmatpush1.msra.mxu0 0.0
    %5190 = vmatprep.subr.mxu0 0.0
    %5191 = vmatpush1.msra.mxu0 0.0
    %5192 = vmatprep.subr.mxu0 0.0
    %5193 = vmatpush1.msra.mxu0 0.0
    %5194 = vmatprep.subr.mxu0 0.0
    %5195 = vmatpush1.msra.mxu0 0.0
    %5196 = vmatprep.subr.mxu0 0.0
    %5197 = vmatpush1.msra.mxu0 0.0
    %5198 = vmatprep.subr.mxu0 0.0
    %5199 = vmatpush1.msra.mxu0 0.0
    %5200 = vmatprep.subr.mxu0 0.0
    %5201 = vmatpush1.msra.mxu0 0.0
    %5202 = vmatprep.subr.mxu0 0.0
    %5203 = vmatpush1.msra.mxu0 0.0
    %5204 = vmatprep.subr.mxu0 0.0
    %5205 = vmatpush1.msra.mxu0 0.0
    %5206 = vmatprep.subr.mxu0 0.0
    %5207 = vmatpush1.msra.mxu0 0.0
    %5208 = vmatprep.subr.mxu0 0.0
    %5209 = vmatpush1.msra.mxu0 0.0
    %5210 = vmatprep.subr.mxu0 0.0
    %5211 = vmatpush1.msra.mxu0 0.0
    %5212 = vmatprep.subr.mxu0 0.0
    %5213 = vmatpush1.msra.mxu0 0.0
    %5214 = vmatprep.subr.mxu0 0.0
    %5215 = vmatpush1.msra.mxu0 0.0
    %5216 = vmatprep.subr.mxu0 0.0
    %5217 = vmatpush1.msra.mxu0 0.0
    %5218 = vmatprep.subr.mxu0 0.0
    %5219 = vmatpush1.msra.mxu0 0.0
    %5220 = vmatprep.subr.mxu0 0.0
    %5221 = vmatpush1.msra.mxu0 0.0
    %5222 = vmatprep.subr.mxu0 0.0
    %5223 = vmatpush1.msra.mxu0 0.0
    %5224 = vmatprep.subr.mxu0 0.0
    %5225 = vmatpush1.msra.mxu0 0.0
    %5226 = vmatprep.subr.mxu0 0.0
    %5227 = vmatpush1.msra.mxu0 0.0
    %5228 = vmatprep.subr.mxu0 0.0
    %5229 = vmatpush1.msra.mxu0 0.0
    %5230 = vmatprep.subr.mxu0 0.0
    %5231 = vmatpush1.msra.mxu0 0.0
    %5232 = vmatprep.mubr.f32.mxu0 0.0
    %v5233 = vand.u32 %v4669, 4294901760
    %5234 = vmatmul.mubr.f32.gmra.mrb[0].mxu0 %v5233
    %v5235 = vpop.f32.mrb[0].mxu0
    %v5236 = vadd.f32 %v5154, %v5235
    %v5237 = vpop.f32.mrb[0].mxu0
    %v5238 = vadd.f32 %v5156, %v5237
    %5239 = vdwg.mxu0
    %v5240 = vand.u32 %v4642, 4294901760
    %5241 = vmatprep.subr.mxu0 %v5240
    %v5242 = vand.u32 %v4641, 4294901760
    %5243 = vmatpush1.msra.mxu0 %v5242
    %v5244 = vand.u32 %v4646, 4294901760
    %5245 = vmatprep.subr.mxu0 %v5244
    %v5246 = vand.u32 %v4645, 4294901760
    %5247 = vmatpush1.msra.mxu0 %v5246
    %v5248 = vand.u32 %v4650, 4294901760
    %5249 = vmatprep.subr.mxu0 %v5248
    %v5250 = vand.u32 %v4649, 4294901760
    %5251 = vmatpush1.msra.mxu0 %v5250
    %v5252 = vand.u32 %v4654, 4294901760
    %5253 = vmatprep.subr.mxu0 %v5252
    %v5254 = vand.u32 %v4653, 4294901760
    %5255 = vmatpush1.msra.mxu0 %v5254
    %v5256 = vand.u32 %v4658, 4294901760
    %5257 = vmatprep.subr.mxu0 %v5256
    %v5258 = vand.u32 %v4657, 4294901760
    %5259 = vmatpush1.msra.mxu0 %v5258
    %5260 = vmatprep.subr.mxu0 0.0
    %5261 = vmatpush1.msra.mxu0 0.0
    %5262 = vmatprep.subr.mxu0 0.0
    %5263 = vmatpush1.msra.mxu0 0.0
    %5264 = vmatprep.subr.mxu0 0.0
    %5265 = vmatpush1.msra.mxu0 0.0
    %5266 = vmatprep.subr.mxu0 0.0
    %5267 = vmatpush1.msra.mxu0 0.0
    %5268 = vmatprep.subr.mxu0 0.0
    %5269 = vmatpush1.msra.mxu0 0.0
    %5270 = vmatprep.subr.mxu0 0.0
    %5271 = vmatpush1.msra.mxu0 0.0
    %5272 = vmatprep.subr.mxu0 0.0
    %5273 = vmatpush1.msra.mxu0 0.0
    %5274 = vmatprep.subr.mxu0 0.0
    %5275 = vmatpush1.msra.mxu0 0.0
    %5276 = vmatprep.subr.mxu0 0.0
    %5277 = vmatpush1.msra.mxu0 0.0
    %5278 = vmatprep.subr.mxu0 0.0
    %5279 = vmatpush1.msra.mxu0 0.0
    %5280 = vmatprep.subr.mxu0 0.0
    %5281 = vmatpush1.msra.mxu0 0.0
    %5282 = vmatprep.subr.mxu0 0.0
    %5283 = vmatpush1.msra.mxu0 0.0
    %5284 = vmatprep.subr.mxu0 0.0
    %5285 = vmatpush1.msra.mxu0 0.0
    %5286 = vmatprep.subr.mxu0 0.0
    %5287 = vmatpush1.msra.mxu0 0.0
    %5288 = vmatprep.subr.mxu0 0.0
    %5289 = vmatpush1.msra.mxu0 0.0
    %5290 = vmatprep.subr.mxu0 0.0
    %5291 = vmatpush1.msra.mxu0 0.0
    %5292 = vmatprep.subr.mxu0 0.0
    %5293 = vmatpush1.msra.mxu0 0.0
    %5294 = vmatprep.subr.mxu0 0.0
    %5295 = vmatpush1.msra.mxu0 0.0
    %5296 = vmatprep.subr.mxu0 0.0
    %5297 = vmatpush1.msra.mxu0 0.0
    %5298 = vmatprep.subr.mxu0 0.0
    %5299 = vmatpush1.msra.mxu0 0.0
    %5300 = vmatprep.subr.mxu0 0.0
    %5301 = vmatpush1.msra.mxu0 0.0
    %5302 = vmatprep.subr.mxu0 0.0
    %5303 = vmatpush1.msra.mxu0 0.0
    %5304 = vmatprep.subr.mxu0 0.0
    %5305 = vmatpush1.msra.mxu0 0.0
    %5306 = vmatprep.subr.mxu0 0.0
    %5307 = vmatpush1.msra.mxu0 0.0
    %5308 = vmatprep.subr.mxu0 0.0
    %5309 = vmatpush1.msra.mxu0 0.0
    %5310 = vmatprep.subr.mxu0 0.0
    %5311 = vmatpush1.msra.mxu0 0.0
    %5312 = vmatprep.subr.mxu0 0.0
    %5313 = vmatpush1.msra.mxu0 0.0
    %5314 = vmatprep.mubr.f32.mxu0 0.0
    %v5315 = vand.u32 %v4669, 4294901760
    %v5316 = vsub.f32 %v4669, %v5315
    %v5317 = vand.u32 %v5316, 4294901760
    %v5318 = vsub.f32 %v5316, %v5317
    %v5319 = vand.u32 %v5318, 4294901760
    %5320 = vmatmul.mubr.f32.gmra.mrb[0].mxu0 %v5319
    %v5321 = vpop.f32.mrb[0].mxu0
    %v5322 = vadd.f32 %v4667, %v5321
    %v5323 = vpop.f32.mrb[0].mxu0
    %v5324 = vadd.f32 %v4667, %v5323
    %5325 = vdwg.mxu0
    %v5326 = vand.u32 %v4642, 4294901760
    %v5327 = vsub.f32 %v4642, %v5326
    %v5328 = vand.u32 %v5327, 4294901760
    %v5329 = vsub.f32 %v5327, %v5328
    %v5330 = vand.u32 %v5329, 4294901760
    %5331 = vmatprep.subr.mxu0 %v5330
    %v5332 = vand.u32 %v4641, 4294901760
    %v5333 = vsub.f32 %v4641, %v5332
    %v5334 = vand.u32 %v5333, 4294901760
    %v5335 = vsub.f32 %v5333, %v5334
    %v5336 = vand.u32 %v5335, 4294901760
    %5337 = vmatpush1.msra.mxu0 %v5336
    %v5338 = vand.u32 %v4646, 4294901760
    %v5339 = vsub.f32 %v4646, %v5338
    %v5340 = vand.u32 %v5339, 4294901760
    %v5341 = vsub.f32 %v5339, %v5340
    %v5342 = vand.u32 %v5341, 4294901760
    %5343 = vmatprep.subr.mxu0 %v5342
    %v5344 = vand.u32 %v4645, 4294901760
    %v5345 = vsub.f32 %v4645, %v5344
    %v5346 = vand.u32 %v5345, 4294901760
    %v5347 = vsub.f32 %v5345, %v5346
    %v5348 = vand.u32 %v5347, 4294901760
    %5349 = vmatpush1.msra.mxu0 %v5348
    %v5350 = vand.u32 %v4650, 4294901760
    %v5351 = vsub.f32 %v4650, %v5350
    %v5352 = vand.u32 %v5351, 4294901760
    %v5353 = vsub.f32 %v5351, %v5352
    %v5354 = vand.u32 %v5353, 4294901760
    %5355 = vmatprep.subr.mxu0 %v5354
    %v5356 = vand.u32 %v4649, 4294901760
    %v5357 = vsub.f32 %v4649, %v5356
    %v5358 = vand.u32 %v5357, 4294901760
    %v5359 = vsub.f32 %v5357, %v5358
    %v5360 = vand.u32 %v5359, 4294901760
    %5361 = vmatpush1.msra.mxu0 %v5360
    %v5362 = vand.u32 %v4654, 4294901760
    %v5363 = vsub.f32 %v4654, %v5362
    %v5364 = vand.u32 %v5363, 4294901760
    %v5365 = vsub.f32 %v5363, %v5364
    %v5366 = vand.u32 %v5365, 4294901760
    %5367 = vmatprep.subr.mxu0 %v5366
    %v5368 = vand.u32 %v4653, 4294901760
    %v5369 = vsub.f32 %v4653, %v5368
    %v5370 = vand.u32 %v5369, 4294901760
    %v5371 = vsub.f32 %v5369, %v5370
    %v5372 = vand.u32 %v5371, 4294901760
    %5373 = vmatpush1.msra.mxu0 %v5372
    %v5374 = vand.u32 %v4658, 4294901760
    %v5375 = vsub.f32 %v4658, %v5374
    %v5376 = vand.u32 %v5375, 4294901760
    %v5377 = vsub.f32 %v5375, %v5376
    %v5378 = vand.u32 %v5377, 4294901760
    %5379 = vmatprep.subr.mxu0 %v5378
    %v5380 = vand.u32 %v4657, 4294901760
    %v5381 = vsub.f32 %v4657, %v5380
    %v5382 = vand.u32 %v5381, 4294901760
    %v5383 = vsub.f32 %v5381, %v5382
    %v5384 = vand.u32 %v5383, 4294901760
    %5385 = vmatpush1.msra.mxu0 %v5384
    %5386 = vmatprep.subr.mxu0 0.0
    %5387 = vmatpush1.msra.mxu0 0.0
    %5388 = vmatprep.subr.mxu0 0.0
    %5389 = vmatpush1.msra.mxu0 0.0
    %5390 = vmatprep.subr.mxu0 0.0
    %5391 = vmatpush1.msra.mxu0 0.0
    %5392 = vmatprep.subr.mxu0 0.0
    %5393 = vmatpush1.msra.mxu0 0.0
    %5394 = vmatprep.subr.mxu0 0.0
    %5395 = vmatpush1.msra.mxu0 0.0
    %5396 = vmatprep.subr.mxu0 0.0
    %5397 = vmatpush1.msra.mxu0 0.0
    %5398 = vmatprep.subr.mxu0 0.0
    %5399 = vmatpush1.msra.mxu0 0.0
    %5400 = vmatprep.subr.mxu0 0.0
    %5401 = vmatpush1.msra.mxu0 0.0
    %5402 = vmatprep.subr.mxu0 0.0
    %5403 = vmatpush1.msra.mxu0 0.0
    %5404 = vmatprep.subr.mxu0 0.0
    %5405 = vmatpush1.msra.mxu0 0.0
    %5406 = vmatprep.subr.mxu0 0.0
    %5407 = vmatpush1.msra.mxu0 0.0
    %5408 = vmatprep.subr.mxu0 0.0
    %5409 = vmatpush1.msra.mxu0 0.0
    %5410 = vmatprep.subr.mxu0 0.0
    %5411 = vmatpush1.msra.mxu0 0.0
    %5412 = vmatprep.subr.mxu0 0.0
    %5413 = vmatpush1.msra.mxu0 0.0
    %5414 = vmatprep.subr.mxu0 0.0
    %5415 = vmatpush1.msra.mxu0 0.0
    %5416 = vmatprep.subr.mxu0 0.0
    %5417 = vmatpush1.msra.mxu0 0.0
    %5418 = vmatprep.subr.mxu0 0.0
    %5419 = vmatpush1.msra.mxu0 0.0
    %5420 = vmatprep.subr.mxu0 0.0
    %5421 = vmatpush1.msra.mxu0 0.0
    %5422 = vmatprep.subr.mxu0 0.0
    %5423 = vmatpush1.msra.mxu0 0.0
    %5424 = vmatprep.subr.mxu0 0.0
    %5425 = vmatpush1.msra.mxu0 0.0
    %5426 = vmatprep.subr.mxu0 0.0
    %5427 = vmatpush1.msra.mxu0 0.0
    %5428 = vmatprep.subr.mxu0 0.0
    %5429 = vmatpush1.msra.mxu0 0.0
    %5430 = vmatprep.subr.mxu0 0.0
    %5431 = vmatpush1.msra.mxu0 0.0
    %5432 = vmatprep.subr.mxu0 0.0
    %5433 = vmatpush1.msra.mxu0 0.0
    %5434 = vmatprep.subr.mxu0 0.0
    %5435 = vmatpush1.msra.mxu0 0.0
    %5436 = vmatprep.subr.mxu0 0.0
    %5437 = vmatpush1.msra.mxu0 0.0
    %5438 = vmatprep.subr.mxu0 0.0
    %5439 = vmatpush1.msra.mxu0 0.0
    %5440 = vmatprep.mubr.f32.mxu0 0.0
    %v5441 = vand.u32 %v4669, 4294901760
    %5442 = vmatmul.mubr.f32.gmra.mrb[0].mxu0 %v5441
    %v5443 = vpop.f32.mrb[0].mxu0
    %v5444 = vadd.f32 %v5322, %v5443
    %v5445 = vpop.f32.mrb[0].mxu0
    %v5446 = vadd.f32 %v5324, %v5445
    %5447 = vdwg.mxu0
    %v5448 = vand.u32 %v4642, 4294901760
    %v5449 = vsub.f32 %v4642, %v5448
    %5450 = vmatprep.subr.mxu0 %v5449
    %v5451 = vand.u32 %v4641, 4294901760
    %v5452 = vsub.f32 %v4641, %v5451
    %5453 = vmatpush1.msra.mxu0 %v5452
    %v5454 = vand.u32 %v4646, 4294901760
    %v5455 = vsub.f32 %v4646, %v5454
    %5456 = vmatprep.subr.mxu0 %v5455
    %v5457 = vand.u32 %v4645, 4294901760
    %v5458 = vsub.f32 %v4645, %v5457
    %5459 = vmatpush1.msra.mxu0 %v5458
    %v5460 = vand.u32 %v4650, 4294901760
    %v5461 = vsub.f32 %v4650, %v5460
    %5462 = vmatprep.subr.mxu0 %v5461
    %v5463 = vand.u32 %v4649, 4294901760
    %v5464 = vsub.f32 %v4649, %v5463
    %5465 = vmatpush1.msra.mxu0 %v5464
    %v5466 = vand.u32 %v4654, 4294901760
    %v5467 = vsub.f32 %v4654, %v5466
    %5468 = vmatprep.subr.mxu0 %v5467
    %v5469 = vand.u32 %v4653, 4294901760
    %v5470 = vsub.f32 %v4653, %v5469
    %5471 = vmatpush1.msra.mxu0 %v5470
    %v5472 = vand.u32 %v4658, 4294901760
    %v5473 = vsub.f32 %v4658, %v5472
    %5474 = vmatprep.subr.mxu0 %v5473
    %v5475 = vand.u32 %v4657, 4294901760
    %v5476 = vsub.f32 %v4657, %v5475
    %5477 = vmatpush1.msra.mxu0 %v5476
    %5478 = vmatprep.subr.mxu0 0.0
    %5479 = vmatpush1.msra.mxu0 0.0
    %5480 = vmatprep.subr.mxu0 0.0
    %5481 = vmatpush1.msra.mxu0 0.0
    %5482 = vmatprep.subr.mxu0 0.0
    %5483 = vmatpush1.msra.mxu0 0.0
    %5484 = vmatprep.subr.mxu0 0.0
    %5485 = vmatpush1.msra.mxu0 0.0
    %5486 = vmatprep.subr.mxu0 0.0
    %5487 = vmatpush1.msra.mxu0 0.0
    %5488 = vmatprep.subr.mxu0 0.0
    %5489 = vmatpush1.msra.mxu0 0.0
    %5490 = vmatprep.subr.mxu0 0.0
    %5491 = vmatpush1.msra.mxu0 0.0
    %5492 = vmatprep.subr.mxu0 0.0
    %5493 = vmatpush1.msra.mxu0 0.0
    %5494 = vmatprep.subr.mxu0 0.0
    %5495 = vmatpush1.msra.mxu0 0.0
    %5496 = vmatprep.subr.mxu0 0.0
    %5497 = vmatpush1.msra.mxu0 0.0
    %5498 = vmatprep.subr.mxu0 0.0
    %5499 = vmatpush1.msra.mxu0 0.0
    %5500 = vmatprep.subr.mxu0 0.0
    %5501 = vmatpush1.msra.mxu0 0.0
    %5502 = vmatprep.subr.mxu0 0.0
    %5503 = vmatpush1.msra.mxu0 0.0
    %5504 = vmatprep.subr.mxu0 0.0
    %5505 = vmatpush1.msra.mxu0 0.0
    %5506 = vmatprep.subr.mxu0 0.0
    %5507 = vmatpush1.msra.mxu0 0.0
    %5508 = vmatprep.subr.mxu0 0.0
    %5509 = vmatpush1.msra.mxu0 0.0
    %5510 = vmatprep.subr.mxu0 0.0
    %5511 = vmatpush1.msra.mxu0 0.0
    %5512 = vmatprep.subr.mxu0 0.0
    %5513 = vmatpush1.msra.mxu0 0.0
    %5514 = vmatprep.subr.mxu0 0.0
    %5515 = vmatpush1.msra.mxu0 0.0
    %5516 = vmatprep.subr.mxu0 0.0
    %5517 = vmatpush1.msra.mxu0 0.0
    %5518 = vmatprep.subr.mxu0 0.0
    %5519 = vmatpush1.msra.mxu0 0.0
    %5520 = vmatprep.subr.mxu0 0.0
    %5521 = vmatpush1.msra.mxu0 0.0
    %5522 = vmatprep.subr.mxu0 0.0
    %5523 = vmatpush1.msra.mxu0 0.0
    %5524 = vmatprep.subr.mxu0 0.0
    %5525 = vmatpush1.msra.mxu0 0.0
    %5526 = vmatprep.subr.mxu0 0.0
    %5527 = vmatpush1.msra.mxu0 0.0
    %5528 = vmatprep.subr.mxu0 0.0
    %5529 = vmatpush1.msra.mxu0 0.0
    %5530 = vmatprep.subr.mxu0 0.0
    %5531 = vmatpush1.msra.mxu0 0.0
    %5532 = vmatprep.mubr.f32.mxu0 0.0
    %v5533 = vand.u32 %v4669, 4294901760
    %v5534 = vsub.f32 %v4669, %v5533
    %5535 = vmatmul.mubr.f32.gmra.mrb[0].mxu0 %v5534
    %v5536 = vpop.f32.mrb[0].mxu0
    %v5537 = vadd.f32 %v5444, %v5536
    %v5538 = vpop.f32.mrb[0].mxu0
    %v5539 = vadd.f32 %v5446, %v5538
    %5540 = vdwg.mxu0
    %v5541 = vand.u32 %v4642, 4294901760
    %5542 = vmatprep.subr.mxu0 %v5541
    %v5543 = vand.u32 %v4641, 4294901760
    %5544 = vmatpush1.msra.mxu0 %v5543
    %v5545 = vand.u32 %v4646, 4294901760
    %5546 = vmatprep.subr.mxu0 %v5545
    %v5547 = vand.u32 %v4645, 4294901760
    %5548 = vmatpush1.msra.mxu0 %v5547
    %v5549 = vand.u32 %v4650, 4294901760
    %5550 = vmatprep.subr.mxu0 %v5549
    %v5551 = vand.u32 %v4649, 4294901760
    %5552 = vmatpush1.msra.mxu0 %v5551
    %v5553 = vand.u32 %v4654, 4294901760
    %5554 = vmatprep.subr.mxu0 %v5553
    %v5555 = vand.u32 %v4653, 4294901760
    %5556 = vmatpush1.msra.mxu0 %v5555
    %v5557 = vand.u32 %v4658, 4294901760
    %5558 = vmatprep.subr.mxu0 %v5557
    %v5559 = vand.u32 %v4657, 4294901760
    %5560 = vmatpush1.msra.mxu0 %v5559
    %5561 = vmatprep.subr.mxu0 0.0
    %5562 = vmatpush1.msra.mxu0 0.0
    %5563 = vmatprep.subr.mxu0 0.0
    %5564 = vmatpush1.msra.mxu0 0.0
    %5565 = vmatprep.subr.mxu0 0.0
    %5566 = vmatpush1.msra.mxu0 0.0
    %5567 = vmatprep.subr.mxu0 0.0
    %5568 = vmatpush1.msra.mxu0 0.0
    %5569 = vmatprep.subr.mxu0 0.0
    %5570 = vmatpush1.msra.mxu0 0.0
    %5571 = vmatprep.subr.mxu0 0.0
    %5572 = vmatpush1.msra.mxu0 0.0
    %5573 = vmatprep.subr.mxu0 0.0
    %5574 = vmatpush1.msra.mxu0 0.0
    %5575 = vmatprep.subr.mxu0 0.0
    %5576 = vmatpush1.msra.mxu0 0.0
    %5577 = vmatprep.subr.mxu0 0.0
    %5578 = vmatpush1.msra.mxu0 0.0
    %5579 = vmatprep.subr.mxu0 0.0
    %5580 = vmatpush1.msra.mxu0 0.0
    %5581 = vmatprep.subr.mxu0 0.0
    %5582 = vmatpush1.msra.mxu0 0.0
    %5583 = vmatprep.subr.mxu0 0.0
    %5584 = vmatpush1.msra.mxu0 0.0
    %5585 = vmatprep.subr.mxu0 0.0
    %5586 = vmatpush1.msra.mxu0 0.0
    %5587 = vmatprep.subr.mxu0 0.0
    %5588 = vmatpush1.msra.mxu0 0.0
    %5589 = vmatprep.subr.mxu0 0.0
    %5590 = vmatpush1.msra.mxu0 0.0
    %5591 = vmatprep.subr.mxu0 0.0
    %5592 = vmatpush1.msra.mxu0 0.0
    %5593 = vmatprep.subr.mxu0 0.0
    %5594 = vmatpush1.msra.mxu0 0.0
    %5595 = vmatprep.subr.mxu0 0.0
    %5596 = vmatpush1.msra.mxu0 0.0
    %5597 = vmatprep.subr.mxu0 0.0
    %5598 = vmatpush1.msra.mxu0 0.0
    %5599 = vmatprep.subr.mxu0 0.0
    %5600 = vmatpush1.msra.mxu0 0.0
    %5601 = vmatprep.subr.mxu0 0.0
    %5602 = vmatpush1.msra.mxu0 0.0
    %5603 = vmatprep.subr.mxu0 0.0
    %5604 = vmatpush1.msra.mxu0 0.0
    %5605 = vmatprep.subr.mxu0 0.0
    %5606 = vmatpush1.msra.mxu0 0.0
    %5607 = vmatprep.subr.mxu0 0.0
    %5608 = vmatpush1.msra.mxu0 0.0
    %5609 = vmatprep.subr.mxu0 0.0
    %5610 = vmatpush1.msra.mxu0 0.0
    %5611 = vmatprep.subr.mxu0 0.0
    %5612 = vmatpush1.msra.mxu0 0.0
    %5613 = vmatprep.subr.mxu0 0.0
    %5614 = vmatpush1.msra.mxu0 0.0
    %5615 = vmatprep.mubr.f32.mxu0 0.0
    %v5616 = vand.u32 %v4669, 4294901760
    %v5617 = vsub.f32 %v4669, %v5616
    %v5618 = vand.u32 %v5617, 4294901760
    %5619 = vmatmul.mubr.f32.gmra.mrb[0].mxu0 %v5618
    %v5620 = vpop.f32.mrb[0].mxu0
    %v5621 = vadd.f32 %v5537, %v5620
    %v5622 = vpop.f32.mrb[0].mxu0
    %v5623 = vadd.f32 %v5539, %v5622
    %5624 = vdwg.mxu0
    %v5625 = vand.u32 %v4642, 4294901760
    %v5626 = vsub.f32 %v4642, %v5625
    %v5627 = vand.u32 %v5626, 4294901760
    %5628 = vmatprep.subr.mxu0 %v5627
    %v5629 = vand.u32 %v4641, 4294901760
    %v5630 = vsub.f32 %v4641, %v5629
    %v5631 = vand.u32 %v5630, 4294901760
    %5632 = vmatpush1.msra.mxu0 %v5631
    %v5633 = vand.u32 %v4646, 4294901760
    %v5634 = vsub.f32 %v4646, %v5633
    %v5635 = vand.u32 %v5634, 4294901760
    %5636 = vmatprep.subr.mxu0 %v5635
    %v5637 = vand.u32 %v4645, 4294901760
    %v5638 = vsub.f32 %v4645, %v5637
    %v5639 = vand.u32 %v5638, 4294901760
    %5640 = vmatpush1.msra.mxu0 %v5639
    %v5641 = vand.u32 %v4650, 4294901760
    %v5642 = vsub.f32 %v4650, %v5641
    %v5643 = vand.u32 %v5642, 4294901760
    %5644 = vmatprep.subr.mxu0 %v5643
    %v5645 = vand.u32 %v4649, 4294901760
    %v5646 = vsub.f32 %v4649, %v5645
    %v5647 = vand.u32 %v5646, 4294901760
    %5648 = vmatpush1.msra.mxu0 %v5647
    %v5649 = vand.u32 %v4654, 4294901760
    %v5650 = vsub.f32 %v4654, %v5649
    %v5651 = vand.u32 %v5650, 4294901760
    %5652 = vmatprep.subr.mxu0 %v5651
    %v5653 = vand.u32 %v4653, 4294901760
    %v5654 = vsub.f32 %v4653, %v5653
    %v5655 = vand.u32 %v5654, 4294901760
    %5656 = vmatpush1.msra.mxu0 %v5655
    %v5657 = vand.u32 %v4658, 4294901760
    %v5658 = vsub.f32 %v4658, %v5657
    %v5659 = vand.u32 %v5658, 4294901760
    %5660 = vmatprep.subr.mxu0 %v5659
    %v5661 = vand.u32 %v4657, 4294901760
    %v5662 = vsub.f32 %v4657, %v5661
    %v5663 = vand.u32 %v5662, 4294901760
    %5664 = vmatpush1.msra.mxu0 %v5663
    %5665 = vmatprep.subr.mxu0 0.0
    %5666 = vmatpush1.msra.mxu0 0.0
    %5667 = vmatprep.subr.mxu0 0.0
    %5668 = vmatpush1.msra.mxu0 0.0
    %5669 = vmatprep.subr.mxu0 0.0
    %5670 = vmatpush1.msra.mxu0 0.0
    %5671 = vmatprep.subr.mxu0 0.0
    %5672 = vmatpush1.msra.mxu0 0.0
    %5673 = vmatprep.subr.mxu0 0.0
    %5674 = vmatpush1.msra.mxu0 0.0
    %5675 = vmatprep.subr.mxu0 0.0
    %5676 = vmatpush1.msra.mxu0 0.0
    %5677 = vmatprep.subr.mxu0 0.0
    %5678 = vmatpush1.msra.mxu0 0.0
    %5679 = vmatprep.subr.mxu0 0.0
    %5680 = vmatpush1.msra.mxu0 0.0
    %5681 = vmatprep.subr.mxu0 0.0
    %5682 = vmatpush1.msra.mxu0 0.0
    %5683 = vmatprep.subr.mxu0 0.0
    %5684 = vmatpush1.msra.mxu0 0.0
    %5685 = vmatprep.subr.mxu0 0.0
    %5686 = vmatpush1.msra.mxu0 0.0
    %5687 = vmatprep.subr.mxu0 0.0
    %5688 = vmatpush1.msra.mxu0 0.0
    %5689 = vmatprep.subr.mxu0 0.0
    %5690 = vmatpush1.msra.mxu0 0.0
    %5691 = vmatprep.subr.mxu0 0.0
    %5692 = vmatpush1.msra.mxu0 0.0
    %5693 = vmatprep.subr.mxu0 0.0
    %5694 = vmatpush1.msra.mxu0 0.0
    %5695 = vmatprep.subr.mxu0 0.0
    %5696 = vmatpush1.msra.mxu0 0.0
    %5697 = vmatprep.subr.mxu0 0.0
    %5698 = vmatpush1.msra.mxu0 0.0
    %5699 = vmatprep.subr.mxu0 0.0
    %5700 = vmatpush1.msra.mxu0 0.0
    %5701 = vmatprep.subr.mxu0 0.0
    %5702 = vmatpush1.msra.mxu0 0.0
    %5703 = vmatprep.subr.mxu0 0.0
    %5704 = vmatpush1.msra.mxu0 0.0
    %5705 = vmatprep.subr.mxu0 0.0
    %5706 = vmatpush1.msra.mxu0 0.0
    %5707 = vmatprep.subr.mxu0 0.0
    %5708 = vmatpush1.msra.mxu0 0.0
    %5709 = vmatprep.subr.mxu0 0.0
    %5710 = vmatpush1.msra.mxu0 0.0
    %5711 = vmatprep.subr.mxu0 0.0
    %5712 = vmatpush1.msra.mxu0 0.0
    %5713 = vmatprep.subr.mxu0 0.0
    %5714 = vmatpush1.msra.mxu0 0.0
    %5715 = vmatprep.subr.mxu0 0.0
    %5716 = vmatpush1.msra.mxu0 0.0
    %5717 = vmatprep.subr.mxu0 0.0
    %5718 = vmatpush1.msra.mxu0 0.0
    %5719 = vmatprep.mubr.f32.mxu0 0.0
    %v5720 = vand.u32 %v4669, 4294901760
    %5721 = vmatmul.mubr.f32.gmra.mrb[0].mxu0 %v5720
    %v5722 = vpop.f32.mrb[0].mxu0
    %v5723 = vadd.f32 %v5621, %v5722
    %v5724 = vpop.f32.mrb[0].mxu0
    %v5725 = vadd.f32 %v5623, %v5724
    %5726 = vdwg.mxu0
    %v5727 = vand.u32 %v4642, 4294901760
    %5728 = vmatprep.subr.mxu0 %v5727
    %v5729 = vand.u32 %v4641, 4294901760
    %5730 = vmatpush1.msra.mxu0 %v5729
    %v5731 = vand.u32 %v4646, 4294901760
    %5732 = vmatprep.subr.mxu0 %v5731
    %v5733 = vand.u32 %v4645, 4294901760
    %5734 = vmatpush1.msra.mxu0 %v5733
    %v5735 = vand.u32 %v4650, 4294901760
    %5736 = vmatprep.subr.mxu0 %v5735
    %v5737 = vand.u32 %v4649, 4294901760
    %5738 = vmatpush1.msra.mxu0 %v5737
    %v5739 = vand.u32 %v4654, 4294901760
    %5740 = vmatprep.subr.mxu0 %v5739
    %v5741 = vand.u32 %v4653, 4294901760
    %5742 = vmatpush1.msra.mxu0 %v5741
    %v5743 = vand.u32 %v4658, 4294901760
    %5744 = vmatprep.subr.mxu0 %v5743
    %v5745 = vand.u32 %v4657, 4294901760
    %5746 = vmatpush1.msra.mxu0 %v5745
    %5747 = vmatprep.subr.mxu0 0.0
    %5748 = vmatpush1.msra.mxu0 0.0
    %5749 = vmatprep.subr.mxu0 0.0
    %5750 = vmatpush1.msra.mxu0 0.0
    %5751 = vmatprep.subr.mxu0 0.0
    %5752 = vmatpush1.msra.mxu0 0.0
    %5753 = vmatprep.subr.mxu0 0.0
    %5754 = vmatpush1.msra.mxu0 0.0
    %5755 = vmatprep.subr.mxu0 0.0
    %5756 = vmatpush1.msra.mxu0 0.0
    %5757 = vmatprep.subr.mxu0 0.0
    %5758 = vmatpush1.msra.mxu0 0.0
    %5759 = vmatprep.subr.mxu0 0.0
    %5760 = vmatpush1.msra.mxu0 0.0
    %5761 = vmatprep.subr.mxu0 0.0
    %5762 = vmatpush1.msra.mxu0 0.0
    %5763 = vmatprep.subr.mxu0 0.0
    %5764 = vmatpush1.msra.mxu0 0.0
    %5765 = vmatprep.subr.mxu0 0.0
    %5766 = vmatpush1.msra.mxu0 0.0
    %5767 = vmatprep.subr.mxu0 0.0
    %5768 = vmatpush1.msra.mxu0 0.0
    %5769 = vmatprep.subr.mxu0 0.0
    %5770 = vmatpush1.msra.mxu0 0.0
    %5771 = vmatprep.subr.mxu0 0.0
    %5772 = vmatpush1.msra.mxu0 0.0
    %5773 = vmatprep.subr.mxu0 0.0
    %5774 = vmatpush1.msra.mxu0 0.0
    %5775 = vmatprep.subr.mxu0 0.0
    %5776 = vmatpush1.msra.mxu0 0.0
    %5777 = vmatprep.subr.mxu0 0.0
    %5778 = vmatpush1.msra.mxu0 0.0
    %5779 = vmatprep.subr.mxu0 0.0
    %5780 = vmatpush1.msra.mxu0 0.0
    %5781 = vmatprep.subr.mxu0 0.0
    %5782 = vmatpush1.msra.mxu0 0.0
    %5783 = vmatprep.subr.mxu0 0.0
    %5784 = vmatpush1.msra.mxu0 0.0
    %5785 = vmatprep.subr.mxu0 0.0
    %5786 = vmatpush1.msra.mxu0 0.0
    %5787 = vmatprep.subr.mxu0 0.0
    %5788 = vmatpush1.msra.mxu0 0.0
    %5789 = vmatprep.subr.mxu0 0.0
    %5790 = vmatpush1.msra.mxu0 0.0
    %5791 = vmatprep.subr.mxu0 0.0
    %5792 = vmatpush1.msra.mxu0 0.0
    %5793 = vmatprep.subr.mxu0 0.0
    %5794 = vmatpush1.msra.mxu0 0.0
    %5795 = vmatprep.subr.mxu0 0.0
    %5796 = vmatpush1.msra.mxu0 0.0
    %5797 = vmatprep.subr.mxu0 0.0
    %5798 = vmatpush1.msra.mxu0 0.0
    %5799 = vmatprep.subr.mxu0 0.0
    %5800 = vmatpush1.msra.mxu0 0.0
    %5801 = vmatprep.mubr.f32.mxu0 0.0
    %v5802 = vand.u32 %v4669, 4294901760
    %5803 = vmatmul.mubr.f32.gmra.mrb[0].mxu0 %v5802
    %v5804 = vpop.f32.mrb[0].mxu0
    %v5805 = vadd.f32 %v5723, %v5804
    %v5806 = vpop.f32.mrb[0].mxu0
    %v5807 = vadd.f32 %v5725, %v5806
    %5808 = vdwg.mxu0
    %v5813 = vcombine.low %v5236, %v5238
    %v5814 = vcombine.low %v5805, %v5807
    %v5816 = vunpack.c.l.s4 1966171168
    %v5817 = vunpack.c.0.s8 %v5816
    %v5818 = vlaneseq
    %v5819 = vshrl.u32 %v5818, 7
    %v5820 = vsub.s32 %v5817, %v5819
    %v5821 = vrot.slane %v5813, %v5820
    %v5823 = vunpack.c.l.s4 1966171168
    %v5824 = vunpack.c.0.s8 %v5823
    %v5825 = vlaneseq
    %v5826 = vshrl.u32 %v5825, 7
    %v5827 = vsub.s32 %v5824, %v5826
    %v5828 = vrot.slane %v5814, %v5827
    %v5829 = vcombine.low %v5821, %v5828
    %v5831 = vunpack.c.l.s4 1966171168
    %v5832 = vunpack.c.0.s8 %v5831
    %v5833 = vlaneseq
    %v5834 = vshrl.u32 %v5833, 7
    %v5835 = vsub.s32 %v5832, %v5834
    %v5836 = vrot.slane %v5829, %v5835
    %v5838 = vlaneseq
    %vm5839 = vcmp.ge.s32.totalorder %v5838, 0
    %vm5840 = vcmp.lt.s32.totalorder %v5838, 512
    %vm5841 = vmand %vm5839, %vm5840
    %5842 = vst.msk [vmem:[#allocation3] sm:$0xf] %vm5841, %v5836
    %s5843 = scalar_lea.vmem %s0, 8
    %v5844 = vld [vmem:[%s5843] sm:$0xff]
    %v5846 = vcombine.high %v5844, %v5844
    %v5848 = vunpack.c.l.s4 1983009808
    %v5849 = vunpack.c.0.s8 %v5848
    %v5850 = vlaneseq
    %v5851 = vshrl.u32 %v5850, 7
    %v5852 = vsub.s32 %v5849, %v5851
    %v5853 = vrot.slane %v5844, %v5852
    %v5855 = vunpack.c.l.s4 1983009808
    %v5856 = vunpack.c.0.s8 %v5855
    %v5857 = vlaneseq
    %v5858 = vshrl.u32 %v5857, 7
    %v5859 = vsub.s32 %v5856, %v5858
    %v5860 = vrot.slane %v5846, %v5859
    %v5861 = vcombine.high %v5853, %v5853
    %v5862 = vcombine.high %v5860, %v5860
    %v5863 = vsel %vm127, %v5853, 0
    %v5865 = vsel %vm127, %v5861, 0
    %v5867 = vsel %vm127, %v5860, 0
    %v5869 = vsel %vm127, %v5862, 0
    %v5871 = vand.u32 %v5865, 4294901760
    %5872 = vmatprep.subr.mxu0 %v5871
    %v5873 = vand.u32 %v5863, 4294901760
    %5874 = vmatpush1.msra.mxu0 %v5873
    %5875 = vmatprep.subr.mxu0 0.0
    %5876 = vmatpush1.msra.mxu0 0.0
    %5877 = vmatprep.subr.mxu0 0.0
    %5878 = vmatpush1.msra.mxu0 0.0
    %5879 = vmatprep.subr.mxu0 0.0
    %5880 = vmatpush1.msra.mxu0 0.0
    %5881 = vmatprep.subr.mxu0 0.0
    %5882 = vmatpush1.msra.mxu0 0.0
    %5883 = vmatprep.subr.mxu0 0.0
    %5884 = vmatpush1.msra.mxu0 0.0
    %5885 = vmatprep.subr.mxu0 0.0
    %5886 = vmatpush1.msra.mxu0 0.0
    %5887 = vmatprep.subr.mxu0 0.0
    %5888 = vmatpush1.msra.mxu0 0.0
    %5889 = vmatprep.subr.mxu0 0.0
    %5890 = vmatpush1.msra.mxu0 0.0
    %5891 = vmatprep.subr.mxu0 0.0
    %5892 = vmatpush1.msra.mxu0 0.0
    %5893 = vmatprep.subr.mxu0 0.0
    %5894 = vmatpush1.msra.mxu0 0.0
    %5895 = vmatprep.subr.mxu0 0.0
    %5896 = vmatpush1.msra.mxu0 0.0
    %5897 = vmatprep.subr.mxu0 0.0
    %5898 = vmatpush1.msra.mxu0 0.0
    %5899 = vmatprep.subr.mxu0 0.0
    %5900 = vmatpush1.msra.mxu0 0.0
    %5901 = vmatprep.subr.mxu0 0.0
    %5902 = vmatpush1.msra.mxu0 0.0
    %5903 = vmatprep.subr.mxu0 0.0
    %5904 = vmatpush1.msra.mxu0 0.0
    %5905 = vmatprep.subr.mxu0 0.0
    %5906 = vmatpush1.msra.mxu0 0.0
    %5907 = vmatprep.subr.mxu0 0.0
    %5908 = vmatpush1.msra.mxu0 0.0
    %5909 = vmatprep.subr.mxu0 0.0
    %5910 = vmatpush1.msra.mxu0 0.0
    %5911 = vmatprep.subr.mxu0 0.0
    %5912 = vmatpush1.msra.mxu0 0.0
    %5913 = vmatprep.subr.mxu0 0.0
    %5914 = vmatpush1.msra.mxu0 0.0
    %5915 = vmatprep.subr.mxu0 0.0
    %5916 = vmatpush1.msra.mxu0 0.0
    %5917 = vmatprep.subr.mxu0 0.0
    %5918 = vmatpush1.msra.mxu0 0.0
    %5919 = vmatprep.subr.mxu0 0.0
    %5920 = vmatpush1.msra.mxu0 0.0
    %5921 = vmatprep.subr.mxu0 0.0
    %5922 = vmatpush1.msra.mxu0 0.0
    %5923 = vmatprep.subr.mxu0 0.0
    %5924 = vmatpush1.msra.mxu0 0.0
    %5925 = vmatprep.subr.mxu0 0.0
    %5926 = vmatpush1.msra.mxu0 0.0
    %5927 = vmatprep.subr.mxu0 0.0
    %5928 = vmatpush1.msra.mxu0 0.0
    %5929 = vmatprep.subr.mxu0 0.0
    %5930 = vmatpush1.msra.mxu0 0.0
    %5931 = vmatprep.subr.mxu0 0.0
    %5932 = vmatpush1.msra.mxu0 0.0
    %5933 = vmatprep.subr.mxu0 0.0
    %5934 = vmatpush1.msra.mxu0 0.0
    %5935 = vmatprep.subr.mxu0 0.0
    %5936 = vmatpush1.msra.mxu0 0.0
    %5937 = vmatprep.mubr.f32.mxu0 0.0
    %v5938 = vand.u32 %v113, 4294901760
    %v5939 = vsub.f32 %v113, %v5938
    %v5940 = vand.u32 %v5939, 4294901760
    %v5941 = vsub.f32 %v5939, %v5940
    %v5942 = vand.u32 %v5941, 4294901760
    %5943 = vmatmul.mubr.f32.gmra.mrb[0].mxu0 %v5942
    %v5944 = vpop.f32.mrb[0].mxu0
    %v5945 = vadd.f32 %v71, %v5944
    %v5946 = vpop.f32.mrb[0].mxu0
    %v5947 = vadd.f32 %v71, %v5946
    %5948 = vmatprep.mubr.f32.mxu0 0.0
    %v5949 = vand.u32 %v116, 4294901760
    %v5950 = vsub.f32 %v116, %v5949
    %v5951 = vand.u32 %v5950, 4294901760
    %v5952 = vsub.f32 %v5950, %v5951
    %v5953 = vand.u32 %v5952, 4294901760
    %5954 = vmatmul.mubr.f32.gmra.mrb[0].mxu0 %v5953
    %v5955 = vpop.f32.mrb[0].mxu0
    %v5956 = vadd.f32 %v76, %v5955
    %v5957 = vpop.f32.mrb[0].mxu0
    %v5958 = vadd.f32 %v76, %v5957
    %5959 = vmatprep.mubr.f32.mxu0 0.0
    %v5960 = vand.u32 %v119, 4294901760
    %v5961 = vsub.f32 %v119, %v5960
    %v5962 = vand.u32 %v5961, 4294901760
    %v5963 = vsub.f32 %v5961, %v5962
    %v5964 = vand.u32 %v5963, 4294901760
    %5965 = vmatmul.mubr.f32.gmra.mrb[0].mxu0 %v5964
    %v5966 = vpop.f32.mrb[0].mxu0
    %v5967 = vadd.f32 %v81, %v5966
    %v5968 = vpop.f32.mrb[0].mxu0
    %v5969 = vadd.f32 %v81, %v5968
    %5970 = vmatprep.mubr.f32.mxu0 0.0
    %v5971 = vand.u32 %v122, 4294901760
    %v5972 = vsub.f32 %v122, %v5971
    %v5973 = vand.u32 %v5972, 4294901760
    %v5974 = vsub.f32 %v5972, %v5973
    %v5975 = vand.u32 %v5974, 4294901760
    %5976 = vmatmul.mubr.f32.gmra.mrb[0].mxu0 %v5975
    %v5977 = vpop.f32.mrb[0].mxu0
    %v5978 = vadd.f32 %v86, %v5977
    %v5979 = vpop.f32.mrb[0].mxu0
    %v5980 = vadd.f32 %v86, %v5979
    %5981 = vmatprep.mubr.f32.mxu0 0.0
    %v5982 = vand.u32 %v125, 4294901760
    %v5983 = vsub.f32 %v125, %v5982
    %v5984 = vand.u32 %v5983, 4294901760
    %v5985 = vsub.f32 %v5983, %v5984
    %v5986 = vand.u32 %v5985, 4294901760
    %5987 = vmatmul.mubr.f32.gmra.mrb[0].mxu0 %v5986
    %v5988 = vpop.f32.mrb[0].mxu0
    %v5989 = vadd.f32 %v91, %v5988
    %v5990 = vpop.f32.mrb[0].mxu0
    %v5991 = vadd.f32 %v91, %v5990
    %5992 = vdwg.mxu0
    %v5993 = vand.u32 %v5865, 4294901760
    %v5994 = vsub.f32 %v5865, %v5993
    %v5995 = vand.u32 %v5994, 4294901760
    %v5996 = vsub.f32 %v5994, %v5995
    %v5997 = vand.u32 %v5996, 4294901760
    %5998 = vmatprep.subr.mxu0 %v5997
    %v5999 = vand.u32 %v5863, 4294901760
    %v6000 = vsub.f32 %v5863, %v5999
    %v6001 = vand.u32 %v6000, 4294901760
    %v6002 = vsub.f32 %v6000, %v6001
    %v6003 = vand.u32 %v6002, 4294901760
    %6004 = vmatpush1.msra.mxu0 %v6003
    %6005 = vmatprep.subr.mxu0 0.0
    %6006 = vmatpush1.msra.mxu0 0.0
    %6007 = vmatprep.subr.mxu0 0.0
    %6008 = vmatpush1.msra.mxu0 0.0
    %6009 = vmatprep.subr.mxu0 0.0
    %6010 = vmatpush1.msra.mxu0 0.0
    %6011 = vmatprep.subr.mxu0 0.0
    %6012 = vmatpush1.msra.mxu0 0.0
    %6013 = vmatprep.subr.mxu0 0.0
    %6014 = vmatpush1.msra.mxu0 0.0
    %6015 = vmatprep.subr.mxu0 0.0
    %6016 = vmatpush1.msra.mxu0 0.0
    %6017 = vmatprep.subr.mxu0 0.0
    %6018 = vmatpush1.msra.mxu0 0.0
    %6019 = vmatprep.subr.mxu0 0.0
    %6020 = vmatpush1.msra.mxu0 0.0
    %6021 = vmatprep.subr.mxu0 0.0
    %6022 = vmatpush1.msra.mxu0 0.0
    %6023 = vmatprep.subr.mxu0 0.0
    %6024 = vmatpush1.msra.mxu0 0.0
    %6025 = vmatprep.subr.mxu0 0.0
    %6026 = vmatpush1.msra.mxu0 0.0
    %6027 = vmatprep.subr.mxu0 0.0
    %6028 = vmatpush1.msra.mxu0 0.0
    %6029 = vmatprep.subr.mxu0 0.0
    %6030 = vmatpush1.msra.mxu0 0.0
    %6031 = vmatprep.subr.mxu0 0.0
    %6032 = vmatpush1.msra.mxu0 0.0
    %6033 = vmatprep.subr.mxu0 0.0
    %6034 = vmatpush1.msra.mxu0 0.0
    %6035 = vmatprep.subr.mxu0 0.0
    %6036 = vmatpush1.msra.mxu0 0.0
    %6037 = vmatprep.subr.mxu0 0.0
    %6038 = vmatpush1.msra.mxu0 0.0
    %6039 = vmatprep.subr.mxu0 0.0
    %6040 = vmatpush1.msra.mxu0 0.0
    %6041 = vmatprep.subr.mxu0 0.0
    %6042 = vmatpush1.msra.mxu0 0.0
    %6043 = vmatprep.subr.mxu0 0.0
    %6044 = vmatpush1.msra.mxu0 0.0
    %6045 = vmatprep.subr.mxu0 0.0
    %6046 = vmatpush1.msra.mxu0 0.0
    %6047 = vmatprep.subr.mxu0 0.0
    %6048 = vmatpush1.msra.mxu0 0.0
    %6049 = vmatprep.subr.mxu0 0.0
    %6050 = vmatpush1.msra.mxu0 0.0
    %6051 = vmatprep.subr.mxu0 0.0
    %6052 = vmatpush1.msra.mxu0 0.0
    %6053 = vmatprep.subr.mxu0 0.0
    %6054 = vmatpush1.msra.mxu0 0.0
    %6055 = vmatprep.subr.mxu0 0.0
    %6056 = vmatpush1.msra.mxu0 0.0
    %6057 = vmatprep.subr.mxu0 0.0
    %6058 = vmatpush1.msra.mxu0 0.0
    %6059 = vmatprep.subr.mxu0 0.0
    %6060 = vmatpush1.msra.mxu0 0.0
    %6061 = vmatprep.subr.mxu0 0.0
    %6062 = vmatpush1.msra.mxu0 0.0
    %6063 = vmatprep.subr.mxu0 0.0
    %6064 = vmatpush1.msra.mxu0 0.0
    %6065 = vmatprep.subr.mxu0 0.0
    %6066 = vmatpush1.msra.mxu0 0.0
    %6067 = vmatprep.mubr.f32.mxu0 0.0
    %v6068 = vand.u32 %v113, 4294901760
    %6069 = vmatmul.mubr.f32.gmra.mrb[0].mxu0 %v6068
    %v6070 = vpop.f32.mrb[0].mxu0
    %v6071 = vadd.f32 %v5945, %v6070
    %v6072 = vpop.f32.mrb[0].mxu0
    %v6073 = vadd.f32 %v5947, %v6072
    %6074 = vmatprep.mubr.f32.mxu0 0.0
    %v6075 = vand.u32 %v116, 4294901760
    %6076 = vmatmul.mubr.f32.gmra.mrb[0].mxu0 %v6075
    %v6077 = vpop.f32.mrb[0].mxu0
    %v6078 = vadd.f32 %v5956, %v6077
    %v6079 = vpop.f32.mrb[0].mxu0
    %v6080 = vadd.f32 %v5958, %v6079
    %6081 = vmatprep.mubr.f32.mxu0 0.0
    %v6082 = vand.u32 %v119, 4294901760
    %6083 = vmatmul.mubr.f32.gmra.mrb[0].mxu0 %v6082
    %v6084 = vpop.f32.mrb[0].mxu0
    %v6085 = vadd.f32 %v5967, %v6084
    %v6086 = vpop.f32.mrb[0].mxu0
    %v6087 = vadd.f32 %v5969, %v6086
    %6088 = vmatprep.mubr.f32.mxu0 0.0
    %v6089 = vand.u32 %v122, 4294901760
    %6090 = vmatmul.mubr.f32.gmra.mrb[0].mxu0 %v6089
    %v6091 = vpop.f32.mrb[0].mxu0
    %v6092 = vadd.f32 %v5978, %v6091
    %v6093 = vpop.f32.mrb[0].mxu0
    %v6094 = vadd.f32 %v5980, %v6093
    %6095 = vmatprep.mubr.f32.mxu0 0.0
    %v6096 = vand.u32 %v125, 4294901760
    %6097 = vmatmul.mubr.f32.gmra.mrb[0].mxu0 %v6096
    %v6098 = vpop.f32.mrb[0].mxu0
    %v6099 = vadd.f32 %v5989, %v6098
    %v6100 = vpop.f32.mrb[0].mxu0
    %v6101 = vadd.f32 %v5991, %v6100
    %6102 = vdwg.mxu0
    %v6103 = vand.u32 %v5865, 4294901760
    %v6104 = vsub.f32 %v5865, %v6103
    %6105 = vmatprep.subr.mxu0 %v6104
    %v6106 = vand.u32 %v5863, 4294901760
    %v6107 = vsub.f32 %v5863, %v6106
    %6108 = vmatpush1.msra.mxu0 %v6107
    %6109 = vmatprep.subr.mxu0 0.0
    %6110 = vmatpush1.msra.mxu0 0.0
    %6111 = vmatprep.subr.mxu0 0.0
    %6112 = vmatpush1.msra.mxu0 0.0
    %6113 = vmatprep.subr.mxu0 0.0
    %6114 = vmatpush1.msra.mxu0 0.0
    %6115 = vmatprep.subr.mxu0 0.0
    %6116 = vmatpush1.msra.mxu0 0.0
    %6117 = vmatprep.subr.mxu0 0.0
    %6118 = vmatpush1.msra.mxu0 0.0
    %6119 = vmatprep.subr.mxu0 0.0
    %6120 = vmatpush1.msra.mxu0 0.0
    %6121 = vmatprep.subr.mxu0 0.0
    %6122 = vmatpush1.msra.mxu0 0.0
    %6123 = vmatprep.subr.mxu0 0.0
    %6124 = vmatpush1.msra.mxu0 0.0
    %6125 = vmatprep.subr.mxu0 0.0
    %6126 = vmatpush1.msra.mxu0 0.0
    %6127 = vmatprep.subr.mxu0 0.0
    %6128 = vmatpush1.msra.mxu0 0.0
    %6129 = vmatprep.subr.mxu0 0.0
    %6130 = vmatpush1.msra.mxu0 0.0
    %6131 = vmatprep.subr.mxu0 0.0
    %6132 = vmatpush1.msra.mxu0 0.0
    %6133 = vmatprep.subr.mxu0 0.0
    %6134 = vmatpush1.msra.mxu0 0.0
    %6135 = vmatprep.subr.mxu0 0.0
    %6136 = vmatpush1.msra.mxu0 0.0
    %6137 = vmatprep.subr.mxu0 0.0
    %6138 = vmatpush1.msra.mxu0 0.0
    %6139 = vmatprep.subr.mxu0 0.0
    %6140 = vmatpush1.msra.mxu0 0.0
    %6141 = vmatprep.subr.mxu0 0.0
    %6142 = vmatpush1.msra.mxu0 0.0
    %6143 = vmatprep.subr.mxu0 0.0
    %6144 = vmatpush1.msra.mxu0 0.0
    %6145 = vmatprep.subr.mxu0 0.0
    %6146 = vmatpush1.msra.mxu0 0.0
    %6147 = vmatprep.subr.mxu0 0.0
    %6148 = vmatpush1.msra.mxu0 0.0
    %6149 = vmatprep.subr.mxu0 0.0
    %6150 = vmatpush1.msra.mxu0 0.0
    %6151 = vmatprep.subr.mxu0 0.0
    %6152 = vmatpush1.msra.mxu0 0.0
    %6153 = vmatprep.subr.mxu0 0.0
    %6154 = vmatpush1.msra.mxu0 0.0
    %6155 = vmatprep.subr.mxu0 0.0
    %6156 = vmatpush1.msra.mxu0 0.0
    %6157 = vmatprep.subr.mxu0 0.0
    %6158 = vmatpush1.msra.mxu0 0.0
    %6159 = vmatprep.subr.mxu0 0.0
    %6160 = vmatpush1.msra.mxu0 0.0
    %6161 = vmatprep.subr.mxu0 0.0
    %6162 = vmatpush1.msra.mxu0 0.0
    %6163 = vmatprep.subr.mxu0 0.0
    %6164 = vmatpush1.msra.mxu0 0.0
    %6165 = vmatprep.subr.mxu0 0.0
    %6166 = vmatpush1.msra.mxu0 0.0
    %6167 = vmatprep.subr.mxu0 0.0
    %6168 = vmatpush1.msra.mxu0 0.0
    %6169 = vmatprep.subr.mxu0 0.0
    %6170 = vmatpush1.msra.mxu0 0.0
    %6171 = vmatprep.mubr.f32.mxu0 0.0
    %v6172 = vand.u32 %v113, 4294901760
    %v6173 = vsub.f32 %v113, %v6172
    %6174 = vmatmul.mubr.f32.gmra.mrb[0].mxu0 %v6173
    %v6175 = vpop.f32.mrb[0].mxu0
    %v6176 = vadd.f32 %v6071, %v6175
    %v6177 = vpop.f32.mrb[0].mxu0
    %v6178 = vadd.f32 %v6073, %v6177
    %6179 = vmatprep.mubr.f32.mxu0 0.0
    %v6180 = vand.u32 %v116, 4294901760
    %v6181 = vsub.f32 %v116, %v6180
    %6182 = vmatmul.mubr.f32.gmra.mrb[0].mxu0 %v6181
    %v6183 = vpop.f32.mrb[0].mxu0
    %v6184 = vadd.f32 %v6078, %v6183
    %v6185 = vpop.f32.mrb[0].mxu0
    %v6186 = vadd.f32 %v6080, %v6185
    %6187 = vmatprep.mubr.f32.mxu0 0.0
    %v6188 = vand.u32 %v119, 4294901760
    %v6189 = vsub.f32 %v119, %v6188
    %6190 = vmatmul.mubr.f32.gmra.mrb[0].mxu0 %v6189
    %v6191 = vpop.f32.mrb[0].mxu0
    %v6192 = vadd.f32 %v6085, %v6191
    %v6193 = vpop.f32.mrb[0].mxu0
    %v6194 = vadd.f32 %v6087, %v6193
    %6195 = vmatprep.mubr.f32.mxu0 0.0
    %v6196 = vand.u32 %v122, 4294901760
    %v6197 = vsub.f32 %v122, %v6196
    %6198 = vmatmul.mubr.f32.gmra.mrb[0].mxu0 %v6197
    %v6199 = vpop.f32.mrb[0].mxu0
    %v6200 = vadd.f32 %v6092, %v6199
    %v6201 = vpop.f32.mrb[0].mxu0
    %v6202 = vadd.f32 %v6094, %v6201
    %6203 = vmatprep.mubr.f32.mxu0 0.0
    %v6204 = vand.u32 %v125, 4294901760
    %v6205 = vsub.f32 %v125, %v6204
    %6206 = vmatmul.mubr.f32.gmra.mrb[0].mxu0 %v6205
    %v6207 = vpop.f32.mrb[0].mxu0
    %v6208 = vadd.f32 %v6099, %v6207
    %v6209 = vpop.f32.mrb[0].mxu0
    %v6210 = vadd.f32 %v6101, %v6209
    %6211 = vdwg.mxu0
    %v6212 = vand.u32 %v5865, 4294901760
    %6213 = vmatprep.subr.mxu0 %v6212
    %v6214 = vand.u32 %v5863, 4294901760
    %6215 = vmatpush1.msra.mxu0 %v6214
    %6216 = vmatprep.subr.mxu0 0.0
    %6217 = vmatpush1.msra.mxu0 0.0
    %6218 = vmatprep.subr.mxu0 0.0
    %6219 = vmatpush1.msra.mxu0 0.0
    %6220 = vmatprep.subr.mxu0 0.0
    %6221 = vmatpush1.msra.mxu0 0.0
    %6222 = vmatprep.subr.mxu0 0.0
    %6223 = vmatpush1.msra.mxu0 0.0
    %6224 = vmatprep.subr.mxu0 0.0
    %6225 = vmatpush1.msra.mxu0 0.0
    %6226 = vmatprep.subr.mxu0 0.0
    %6227 = vmatpush1.msra.mxu0 0.0
    %6228 = vmatprep.subr.mxu0 0.0
    %6229 = vmatpush1.msra.mxu0 0.0
    %6230 = vmatprep.subr.mxu0 0.0
    %6231 = vmatpush1.msra.mxu0 0.0
    %6232 = vmatprep.subr.mxu0 0.0
    %6233 = vmatpush1.msra.mxu0 0.0
    %6234 = vmatprep.subr.mxu0 0.0
    %6235 = vmatpush1.msra.mxu0 0.0
    %6236 = vmatprep.subr.mxu0 0.0
    %6237 = vmatpush1.msra.mxu0 0.0
    %6238 = vmatprep.subr.mxu0 0.0
    %6239 = vmatpush1.msra.mxu0 0.0
    %6240 = vmatprep.subr.mxu0 0.0
    %6241 = vmatpush1.msra.mxu0 0.0
    %6242 = vmatprep.subr.mxu0 0.0
    %6243 = vmatpush1.msra.mxu0 0.0
    %6244 = vmatprep.subr.mxu0 0.0
    %6245 = vmatpush1.msra.mxu0 0.0
    %6246 = vmatprep.subr.mxu0 0.0
    %6247 = vmatpush1.msra.mxu0 0.0
    %6248 = vmatprep.subr.mxu0 0.0
    %6249 = vmatpush1.msra.mxu0 0.0
    %6250 = vmatprep.subr.mxu0 0.0
    %6251 = vmatpush1.msra.mxu0 0.0
    %6252 = vmatprep.subr.mxu0 0.0
    %6253 = vmatpush1.msra.mxu0 0.0
    %6254 = vmatprep.subr.mxu0 0.0
    %6255 = vmatpush1.msra.mxu0 0.0
    %6256 = vmatprep.subr.mxu0 0.0
    %6257 = vmatpush1.msra.mxu0 0.0
    %6258 = vmatprep.subr.mxu0 0.0
    %6259 = vmatpush1.msra.mxu0 0.0
    %6260 = vmatprep.subr.mxu0 0.0
    %6261 = vmatpush1.msra.mxu0 0.0
    %6262 = vmatprep.subr.mxu0 0.0
    %6263 = vmatpush1.msra.mxu0 0.0
    %6264 = vmatprep.subr.mxu0 0.0
    %6265 = vmatpush1.msra.mxu0 0.0
    %6266 = vmatprep.subr.mxu0 0.0
    %6267 = vmatpush1.msra.mxu0 0.0
    %6268 = vmatprep.subr.mxu0 0.0
    %6269 = vmatpush1.msra.mxu0 0.0
    %6270 = vmatprep.subr.mxu0 0.0
    %6271 = vmatpush1.msra.mxu0 0.0
    %6272 = vmatprep.subr.mxu0 0.0
    %6273 = vmatpush1.msra.mxu0 0.0
    %6274 = vmatprep.subr.mxu0 0.0
    %6275 = vmatpush1.msra.mxu0 0.0
    %6276 = vmatprep.subr.mxu0 0.0
    %6277 = vmatpush1.msra.mxu0 0.0
    %6278 = vmatprep.mubr.f32.mxu0 0.0
    %v6279 = vand.u32 %v113, 4294901760
    %v6280 = vsub.f32 %v113, %v6279
    %v6281 = vand.u32 %v6280, 4294901760
    %6282 = vmatmul.mubr.f32.gmra.mrb[0].mxu0 %v6281
    %v6283 = vpop.f32.mrb[0].mxu0
    %v6284 = vadd.f32 %v6176, %v6283
    %v6285 = vpop.f32.mrb[0].mxu0
    %v6286 = vadd.f32 %v6178, %v6285
    %6287 = vmatprep.mubr.f32.mxu0 0.0
    %v6288 = vand.u32 %v116, 4294901760
    %v6289 = vsub.f32 %v116, %v6288
    %v6290 = vand.u32 %v6289, 4294901760
    %6291 = vmatmul.mubr.f32.gmra.mrb[0].mxu0 %v6290
    %v6292 = vpop.f32.mrb[0].mxu0
    %v6293 = vadd.f32 %v6184, %v6292
    %v6294 = vpop.f32.mrb[0].mxu0
    %v6295 = vadd.f32 %v6186, %v6294
    %6296 = vmatprep.mubr.f32.mxu0 0.0
    %v6297 = vand.u32 %v119, 4294901760
    %v6298 = vsub.f32 %v119, %v6297
    %v6299 = vand.u32 %v6298, 4294901760
    %6300 = vmatmul.mubr.f32.gmra.mrb[0].mxu0 %v6299
    %v6301 = vpop.f32.mrb[0].mxu0
    %v6302 = vadd.f32 %v6192, %v6301
    %v6303 = vpop.f32.mrb[0].mxu0
    %v6304 = vadd.f32 %v6194, %v6303
    %6305 = vmatprep.mubr.f32.mxu0 0.0
    %v6306 = vand.u32 %v122, 4294901760
    %v6307 = vsub.f32 %v122, %v6306
    %v6308 = vand.u32 %v6307, 4294901760
    %6309 = vmatmul.mubr.f32.gmra.mrb[0].mxu0 %v6308
    %v6310 = vpop.f32.mrb[0].mxu0
    %v6311 = vadd.f32 %v6200, %v6310
    %v6312 = vpop.f32.mrb[0].mxu0
    %v6313 = vadd.f32 %v6202, %v6312
    %6314 = vmatprep.mubr.f32.mxu0 0.0
    %v6315 = vand.u32 %v125, 4294901760
    %v6316 = vsub.f32 %v125, %v6315
    %v6317 = vand.u32 %v6316, 4294901760
    %6318 = vmatmul.mubr.f32.gmra.mrb[0].mxu0 %v6317
    %v6319 = vpop.f32.mrb[0].mxu0
    %v6320 = vadd.f32 %v6208, %v6319
    %v6321 = vpop.f32.mrb[0].mxu0
    %v6322 = vadd.f32 %v6210, %v6321
    %6323 = vdwg.mxu0
    %v6324 = vand.u32 %v5865, 4294901760
    %v6325 = vsub.f32 %v5865, %v6324
    %v6326 = vand.u32 %v6325, 4294901760
    %6327 = vmatprep.subr.mxu0 %v6326
    %v6328 = vand.u32 %v5863, 4294901760
    %v6329 = vsub.f32 %v5863, %v6328
    %v6330 = vand.u32 %v6329, 4294901760
    %6331 = vmatpush1.msra.mxu0 %v6330
    %6332 = vmatprep.subr.mxu0 0.0
    %6333 = vmatpush1.msra.mxu0 0.0
    %6334 = vmatprep.subr.mxu0 0.0
    %6335 = vmatpush1.msra.mxu0 0.0
    %6336 = vmatprep.subr.mxu0 0.0
    %6337 = vmatpush1.msra.mxu0 0.0
    %6338 = vmatprep.subr.mxu0 0.0
    %6339 = vmatpush1.msra.mxu0 0.0
    %6340 = vmatprep.subr.mxu0 0.0
    %6341 = vmatpush1.msra.mxu0 0.0
    %6342 = vmatprep.subr.mxu0 0.0
    %6343 = vmatpush1.msra.mxu0 0.0
    %6344 = vmatprep.subr.mxu0 0.0
    %6345 = vmatpush1.msra.mxu0 0.0
    %6346 = vmatprep.subr.mxu0 0.0
    %6347 = vmatpush1.msra.mxu0 0.0
    %6348 = vmatprep.subr.mxu0 0.0
    %6349 = vmatpush1.msra.mxu0 0.0
    %6350 = vmatprep.subr.mxu0 0.0
    %6351 = vmatpush1.msra.mxu0 0.0
    %6352 = vmatprep.subr.mxu0 0.0
    %6353 = vmatpush1.msra.mxu0 0.0
    %6354 = vmatprep.subr.mxu0 0.0
    %6355 = vmatpush1.msra.mxu0 0.0
    %6356 = vmatprep.subr.mxu0 0.0
    %6357 = vmatpush1.msra.mxu0 0.0
    %6358 = vmatprep.subr.mxu0 0.0
    %6359 = vmatpush1.msra.mxu0 0.0
    %6360 = vmatprep.subr.mxu0 0.0
    %6361 = vmatpush1.msra.mxu0 0.0
    %6362 = vmatprep.subr.mxu0 0.0
    %6363 = vmatpush1.msra.mxu0 0.0
    %6364 = vmatprep.subr.mxu0 0.0
    %6365 = vmatpush1.msra.mxu0 0.0
    %6366 = vmatprep.subr.mxu0 0.0
    %6367 = vmatpush1.msra.mxu0 0.0
    %6368 = vmatprep.subr.mxu0 0.0
    %6369 = vmatpush1.msra.mxu0 0.0
    %6370 = vmatprep.subr.mxu0 0.0
    %6371 = vmatpush1.msra.mxu0 0.0
    %6372 = vmatprep.subr.mxu0 0.0
    %6373 = vmatpush1.msra.mxu0 0.0
    %6374 = vmatprep.subr.mxu0 0.0
    %6375 = vmatpush1.msra.mxu0 0.0
    %6376 = vmatprep.subr.mxu0 0.0
    %6377 = vmatpush1.msra.mxu0 0.0
    %6378 = vmatprep.subr.mxu0 0.0
    %6379 = vmatpush1.msra.mxu0 0.0
    %6380 = vmatprep.subr.mxu0 0.0
    %6381 = vmatpush1.msra.mxu0 0.0
    %6382 = vmatprep.subr.mxu0 0.0
    %6383 = vmatpush1.msra.mxu0 0.0
    %6384 = vmatprep.subr.mxu0 0.0
    %6385 = vmatpush1.msra.mxu0 0.0
    %6386 = vmatprep.subr.mxu0 0.0
    %6387 = vmatpush1.msra.mxu0 0.0
    %6388 = vmatprep.subr.mxu0 0.0
    %6389 = vmatpush1.msra.mxu0 0.0
    %6390 = vmatprep.subr.mxu0 0.0
    %6391 = vmatpush1.msra.mxu0 0.0
    %6392 = vmatprep.subr.mxu0 0.0
    %6393 = vmatpush1.msra.mxu0 0.0
    %6394 = vmatprep.mubr.f32.mxu0 0.0
    %v6395 = vand.u32 %v113, 4294901760
    %6396 = vmatmul.mubr.f32.gmra.mrb[0].mxu0 %v6395
    %v6397 = vpop.f32.mrb[0].mxu0
    %v6398 = vadd.f32 %v6284, %v6397
    %v6399 = vpop.f32.mrb[0].mxu0
    %v6400 = vadd.f32 %v6286, %v6399
    %6401 = vmatprep.mubr.f32.mxu0 0.0
    %v6402 = vand.u32 %v116, 4294901760
    %6403 = vmatmul.mubr.f32.gmra.mrb[0].mxu0 %v6402
    %v6404 = vpop.f32.mrb[0].mxu0
    %v6405 = vadd.f32 %v6293, %v6404
    %v6406 = vpop.f32.mrb[0].mxu0
    %v6407 = vadd.f32 %v6295, %v6406
    %6408 = vmatprep.mubr.f32.mxu0 0.0
    %v6409 = vand.u32 %v119, 4294901760
    %6410 = vmatmul.mubr.f32.gmra.mrb[0].mxu0 %v6409
    %v6411 = vpop.f32.mrb[0].mxu0
    %v6412 = vadd.f32 %v6302, %v6411
    %v6413 = vpop.f32.mrb[0].mxu0
    %v6414 = vadd.f32 %v6304, %v6413
    %6415 = vmatprep.mubr.f32.mxu0 0.0
    %v6416 = vand.u32 %v122, 4294901760
    %6417 = vmatmul.mubr.f32.gmra.mrb[0].mxu0 %v6416
    %v6418 = vpop.f32.mrb[0].mxu0
    %v6419 = vadd.f32 %v6311, %v6418
    %v6420 = vpop.f32.mrb[0].mxu0
    %v6421 = vadd.f32 %v6313, %v6420
    %6422 = vmatprep.mubr.f32.mxu0 0.0
    %v6423 = vand.u32 %v125, 4294901760
    %6424 = vmatmul.mubr.f32.gmra.mrb[0].mxu0 %v6423
    %v6425 = vpop.f32.mrb[0].mxu0
    %v6426 = vadd.f32 %v6320, %v6425
    %v6427 = vpop.f32.mrb[0].mxu0
    %v6428 = vadd.f32 %v6322, %v6427
    %6429 = vdwg.mxu0
    %v6430 = vand.u32 %v5865, 4294901760
    %6431 = vmatprep.subr.mxu0 %v6430
    %v6432 = vand.u32 %v5863, 4294901760
    %6433 = vmatpush1.msra.mxu0 %v6432
    %6434 = vmatprep.subr.mxu0 0.0
    %6435 = vmatpush1.msra.mxu0 0.0
    %6436 = vmatprep.subr.mxu0 0.0
    %6437 = vmatpush1.msra.mxu0 0.0
    %6438 = vmatprep.subr.mxu0 0.0
    %6439 = vmatpush1.msra.mxu0 0.0
    %6440 = vmatprep.subr.mxu0 0.0
    %6441 = vmatpush1.msra.mxu0 0.0
    %6442 = vmatprep.subr.mxu0 0.0
    %6443 = vmatpush1.msra.mxu0 0.0
    %6444 = vmatprep.subr.mxu0 0.0
    %6445 = vmatpush1.msra.mxu0 0.0
    %6446 = vmatprep.subr.mxu0 0.0
    %6447 = vmatpush1.msra.mxu0 0.0
    %6448 = vmatprep.subr.mxu0 0.0
    %6449 = vmatpush1.msra.mxu0 0.0
    %6450 = vmatprep.subr.mxu0 0.0
    %6451 = vmatpush1.msra.mxu0 0.0
    %6452 = vmatprep.subr.mxu0 0.0
    %6453 = vmatpush1.msra.mxu0 0.0
    %6454 = vmatprep.subr.mxu0 0.0
    %6455 = vmatpush1.msra.mxu0 0.0
    %6456 = vmatprep.subr.mxu0 0.0
    %6457 = vmatpush1.msra.mxu0 0.0
    %6458 = vmatprep.subr.mxu0 0.0
    %6459 = vmatpush1.msra.mxu0 0.0
    %6460 = vmatprep.subr.mxu0 0.0
    %6461 = vmatpush1.msra.mxu0 0.0
    %6462 = vmatprep.subr.mxu0 0.0
    %6463 = vmatpush1.msra.mxu0 0.0
    %6464 = vmatprep.subr.mxu0 0.0
    %6465 = vmatpush1.msra.mxu0 0.0
    %6466 = vmatprep.subr.mxu0 0.0
    %6467 = vmatpush1.msra.mxu0 0.0
    %6468 = vmatprep.subr.mxu0 0.0
    %6469 = vmatpush1.msra.mxu0 0.0
    %6470 = vmatprep.subr.mxu0 0.0
    %6471 = vmatpush1.msra.mxu0 0.0
    %6472 = vmatprep.subr.mxu0 0.0
    %6473 = vmatpush1.msra.mxu0 0.0
    %6474 = vmatprep.subr.mxu0 0.0
    %6475 = vmatpush1.msra.mxu0 0.0
    %6476 = vmatprep.subr.mxu0 0.0
    %6477 = vmatpush1.msra.mxu0 0.0
    %6478 = vmatprep.subr.mxu0 0.0
    %6479 = vmatpush1.msra.mxu0 0.0
    %6480 = vmatprep.subr.mxu0 0.0
    %6481 = vmatpush1.msra.mxu0 0.0
    %6482 = vmatprep.subr.mxu0 0.0
    %6483 = vmatpush1.msra.mxu0 0.0
    %6484 = vmatprep.subr.mxu0 0.0
    %6485 = vmatpush1.msra.mxu0 0.0
    %6486 = vmatprep.subr.mxu0 0.0
    %6487 = vmatpush1.msra.mxu0 0.0
    %6488 = vmatprep.subr.mxu0 0.0
    %6489 = vmatpush1.msra.mxu0 0.0
    %6490 = vmatprep.subr.mxu0 0.0
    %6491 = vmatpush1.msra.mxu0 0.0
    %6492 = vmatprep.subr.mxu0 0.0
    %6493 = vmatpush1.msra.mxu0 0.0
    %6494 = vmatprep.subr.mxu0 0.0
    %6495 = vmatpush1.msra.mxu0 0.0
    %6496 = vmatprep.mubr.f32.mxu0 0.0
    %v6497 = vand.u32 %v113, 4294901760
    %6498 = vmatmul.mubr.f32.gmra.mrb[0].mxu0 %v6497
    %v6499 = vpop.f32.mrb[0].mxu0
    %v6500 = vadd.f32 %v6398, %v6499
    %v6501 = vpop.f32.mrb[0].mxu0
    %v6502 = vadd.f32 %v6400, %v6501
    %6503 = vmatprep.mubr.f32.mxu0 0.0
    %v6504 = vand.u32 %v116, 4294901760
    %6505 = vmatmul.mubr.f32.gmra.mrb[0].mxu0 %v6504
    %v6506 = vpop.f32.mrb[0].mxu0
    %v6507 = vadd.f32 %v6405, %v6506
    %v6508 = vpop.f32.mrb[0].mxu0
    %v6509 = vadd.f32 %v6407, %v6508
    %6510 = vmatprep.mubr.f32.mxu0 0.0
    %v6511 = vand.u32 %v119, 4294901760
    %6512 = vmatmul.mubr.f32.gmra.mrb[0].mxu0 %v6511
    %v6513 = vpop.f32.mrb[0].mxu0
    %v6514 = vadd.f32 %v6412, %v6513
    %v6515 = vpop.f32.mrb[0].mxu0
    %v6516 = vadd.f32 %v6414, %v6515
    %6517 = vmatprep.mubr.f32.mxu0 0.0
    %v6518 = vand.u32 %v122, 4294901760
    %6519 = vmatmul.mubr.f32.gmra.mrb[0].mxu0 %v6518
    %v6520 = vpop.f32.mrb[0].mxu0
    %v6521 = vadd.f32 %v6419, %v6520
    %v6522 = vpop.f32.mrb[0].mxu0
    %v6523 = vadd.f32 %v6421, %v6522
    %6524 = vmatprep.mubr.f32.mxu0 0.0
    %v6525 = vand.u32 %v125, 4294901760
    %6526 = vmatmul.mubr.f32.gmra.mrb[0].mxu0 %v6525
    %v6527 = vpop.f32.mrb[0].mxu0
    %v6528 = vadd.f32 %v6426, %v6527
    %v6529 = vpop.f32.mrb[0].mxu0
    %v6530 = vadd.f32 %v6428, %v6529
    %6531 = vdwg.mxu0
    %v6532 = vand.u32 %v5869, 4294901760
    %6533 = vmatprep.subr.mxu0 %v6532
    %v6534 = vand.u32 %v5867, 4294901760
    %6535 = vmatpush1.msra.mxu0 %v6534
    %6536 = vmatprep.subr.mxu0 0.0
    %6537 = vmatpush1.msra.mxu0 0.0
    %6538 = vmatprep.subr.mxu0 0.0
    %6539 = vmatpush1.msra.mxu0 0.0
    %6540 = vmatprep.subr.mxu0 0.0
    %6541 = vmatpush1.msra.mxu0 0.0
    %6542 = vmatprep.subr.mxu0 0.0
    %6543 = vmatpush1.msra.mxu0 0.0
    %6544 = vmatprep.subr.mxu0 0.0
    %6545 = vmatpush1.msra.mxu0 0.0
    %6546 = vmatprep.subr.mxu0 0.0
    %6547 = vmatpush1.msra.mxu0 0.0
    %6548 = vmatprep.subr.mxu0 0.0
    %6549 = vmatpush1.msra.mxu0 0.0
    %6550 = vmatprep.subr.mxu0 0.0
    %6551 = vmatpush1.msra.mxu0 0.0
    %6552 = vmatprep.subr.mxu0 0.0
    %6553 = vmatpush1.msra.mxu0 0.0
    %6554 = vmatprep.subr.mxu0 0.0
    %6555 = vmatpush1.msra.mxu0 0.0
    %6556 = vmatprep.subr.mxu0 0.0
    %6557 = vmatpush1.msra.mxu0 0.0
    %6558 = vmatprep.subr.mxu0 0.0
    %6559 = vmatpush1.msra.mxu0 0.0
    %6560 = vmatprep.subr.mxu0 0.0
    %6561 = vmatpush1.msra.mxu0 0.0
    %6562 = vmatprep.subr.mxu0 0.0
    %6563 = vmatpush1.msra.mxu0 0.0
    %6564 = vmatprep.subr.mxu0 0.0
    %6565 = vmatpush1.msra.mxu0 0.0
    %6566 = vmatprep.subr.mxu0 0.0
    %6567 = vmatpush1.msra.mxu0 0.0
    %6568 = vmatprep.subr.mxu0 0.0
    %6569 = vmatpush1.msra.mxu0 0.0
    %6570 = vmatprep.subr.mxu0 0.0
    %6571 = vmatpush1.msra.mxu0 0.0
    %6572 = vmatprep.subr.mxu0 0.0
    %6573 = vmatpush1.msra.mxu0 0.0
    %6574 = vmatprep.subr.mxu0 0.0
    %6575 = vmatpush1.msra.mxu0 0.0
    %6576 = vmatprep.subr.mxu0 0.0
    %6577 = vmatpush1.msra.mxu0 0.0
    %6578 = vmatprep.subr.mxu0 0.0
    %6579 = vmatpush1.msra.mxu0 0.0
    %6580 = vmatprep.subr.mxu0 0.0
    %6581 = vmatpush1.msra.mxu0 0.0
    %6582 = vmatprep.subr.mxu0 0.0
    %6583 = vmatpush1.msra.mxu0 0.0
    %6584 = vmatprep.subr.mxu0 0.0
    %6585 = vmatpush1.msra.mxu0 0.0
    %6586 = vmatprep.subr.mxu0 0.0
    %6587 = vmatpush1.msra.mxu0 0.0
    %6588 = vmatprep.subr.mxu0 0.0
    %6589 = vmatpush1.msra.mxu0 0.0
    %6590 = vmatprep.subr.mxu0 0.0
    %6591 = vmatpush1.msra.mxu0 0.0
    %6592 = vmatprep.subr.mxu0 0.0
    %6593 = vmatpush1.msra.mxu0 0.0
    %6594 = vmatprep.subr.mxu0 0.0
    %6595 = vmatpush1.msra.mxu0 0.0
    %6596 = vmatprep.subr.mxu0 0.0
    %6597 = vmatpush1.msra.mxu0 0.0
    %6598 = vmatprep.mubr.f32.mxu0 0.0
    %v6599 = vand.u32 %v113, 4294901760
    %v6600 = vsub.f32 %v113, %v6599
    %v6601 = vand.u32 %v6600, 4294901760
    %v6602 = vsub.f32 %v6600, %v6601
    %v6603 = vand.u32 %v6602, 4294901760
    %6604 = vmatmul.mubr.f32.gmra.mrb[0].mxu0 %v6603
    %v6605 = vpop.f32.mrb[0].mxu0
    %v6606 = vadd.f32 %v71, %v6605
    %v6607 = vpop.f32.mrb[0].mxu0
    %v6608 = vadd.f32 %v71, %v6607
    %6609 = vmatprep.mubr.f32.mxu0 0.0
    %v6610 = vand.u32 %v116, 4294901760
    %v6611 = vsub.f32 %v116, %v6610
    %v6612 = vand.u32 %v6611, 4294901760
    %v6613 = vsub.f32 %v6611, %v6612
    %v6614 = vand.u32 %v6613, 4294901760
    %6615 = vmatmul.mubr.f32.gmra.mrb[0].mxu0 %v6614
    %v6616 = vpop.f32.mrb[0].mxu0
    %v6617 = vadd.f32 %v76, %v6616
    %v6618 = vpop.f32.mrb[0].mxu0
    %v6619 = vadd.f32 %v76, %v6618
    %6620 = vmatprep.mubr.f32.mxu0 0.0
    %v6621 = vand.u32 %v119, 4294901760
    %v6622 = vsub.f32 %v119, %v6621
    %v6623 = vand.u32 %v6622, 4294901760
    %v6624 = vsub.f32 %v6622, %v6623
    %v6625 = vand.u32 %v6624, 4294901760
    %6626 = vmatmul.mubr.f32.gmra.mrb[0].mxu0 %v6625
    %v6627 = vpop.f32.mrb[0].mxu0
    %v6628 = vadd.f32 %v81, %v6627
    %v6629 = vpop.f32.mrb[0].mxu0
    %v6630 = vadd.f32 %v81, %v6629
    %6631 = vmatprep.mubr.f32.mxu0 0.0
    %v6632 = vand.u32 %v122, 4294901760
    %v6633 = vsub.f32 %v122, %v6632
    %v6634 = vand.u32 %v6633, 4294901760
    %v6635 = vsub.f32 %v6633, %v6634
    %v6636 = vand.u32 %v6635, 4294901760
    %6637 = vmatmul.mubr.f32.gmra.mrb[0].mxu0 %v6636
    %v6638 = vpop.f32.mrb[0].mxu0
    %v6639 = vadd.f32 %v86, %v6638
    %v6640 = vpop.f32.mrb[0].mxu0
    %v6641 = vadd.f32 %v86, %v6640
    %6642 = vmatprep.mubr.f32.mxu0 0.0
    %v6643 = vand.u32 %v125, 4294901760
    %v6644 = vsub.f32 %v125, %v6643
    %v6645 = vand.u32 %v6644, 4294901760
    %v6646 = vsub.f32 %v6644, %v6645
    %v6647 = vand.u32 %v6646, 4294901760
    %6648 = vmatmul.mubr.f32.gmra.mrb[0].mxu0 %v6647
    %v6649 = vpop.f32.mrb[0].mxu0
    %v6650 = vadd.f32 %v91, %v6649
    %v6651 = vpop.f32.mrb[0].mxu0
    %v6652 = vadd.f32 %v91, %v6651
    %6653 = vdwg.mxu0
    %v6654 = vand.u32 %v5869, 4294901760
    %v6655 = vsub.f32 %v5869, %v6654
    %v6656 = vand.u32 %v6655, 4294901760
    %v6657 = vsub.f32 %v6655, %v6656
    %v6658 = vand.u32 %v6657, 4294901760
    %6659 = vmatprep.subr.mxu0 %v6658
    %v6660 = vand.u32 %v5867, 4294901760
    %v6661 = vsub.f32 %v5867, %v6660
    %v6662 = vand.u32 %v6661, 4294901760
    %v6663 = vsub.f32 %v6661, %v6662
    %v6664 = vand.u32 %v6663, 4294901760
    %6665 = vmatpush1.msra.mxu0 %v6664
    %6666 = vmatprep.subr.mxu0 0.0
    %6667 = vmatpush1.msra.mxu0 0.0
    %6668 = vmatprep.subr.mxu0 0.0
    %6669 = vmatpush1.msra.mxu0 0.0
    %6670 = vmatprep.subr.mxu0 0.0
    %6671 = vmatpush1.msra.mxu0 0.0
    %6672 = vmatprep.subr.mxu0 0.0
    %6673 = vmatpush1.msra.mxu0 0.0
    %6674 = vmatprep.subr.mxu0 0.0
    %6675 = vmatpush1.msra.mxu0 0.0
    %6676 = vmatprep.subr.mxu0 0.0
    %6677 = vmatpush1.msra.mxu0 0.0
    %6678 = vmatprep.subr.mxu0 0.0
    %6679 = vmatpush1.msra.mxu0 0.0
    %6680 = vmatprep.subr.mxu0 0.0
    %6681 = vmatpush1.msra.mxu0 0.0
    %6682 = vmatprep.subr.mxu0 0.0
    %6683 = vmatpush1.msra.mxu0 0.0
    %6684 = vmatprep.subr.mxu0 0.0
    %6685 = vmatpush1.msra.mxu0 0.0
    %6686 = vmatprep.subr.mxu0 0.0
    %6687 = vmatpush1.msra.mxu0 0.0
    %6688 = vmatprep.subr.mxu0 0.0
    %6689 = vmatpush1.msra.mxu0 0.0
    %6690 = vmatprep.subr.mxu0 0.0
    %6691 = vmatpush1.msra.mxu0 0.0
    %6692 = vmatprep.subr.mxu0 0.0
    %6693 = vmatpush1.msra.mxu0 0.0
    %6694 = vmatprep.subr.mxu0 0.0
    %6695 = vmatpush1.msra.mxu0 0.0
    %6696 = vmatprep.subr.mxu0 0.0
    %6697 = vmatpush1.msra.mxu0 0.0
    %6698 = vmatprep.subr.mxu0 0.0
    %6699 = vmatpush1.msra.mxu0 0.0
    %6700 = vmatprep.subr.mxu0 0.0
    %6701 = vmatpush1.msra.mxu0 0.0
    %6702 = vmatprep.subr.mxu0 0.0
    %6703 = vmatpush1.msra.mxu0 0.0
    %6704 = vmatprep.subr.mxu0 0.0
    %6705 = vmatpush1.msra.mxu0 0.0
    %6706 = vmatprep.subr.mxu0 0.0
    %6707 = vmatpush1.msra.mxu0 0.0
    %6708 = vmatprep.subr.mxu0 0.0
    %6709 = vmatpush1.msra.mxu0 0.0
    %6710 = vmatprep.subr.mxu0 0.0
    %6711 = vmatpush1.msra.mxu0 0.0
    %6712 = vmatprep.subr.mxu0 0.0
    %6713 = vmatpush1.msra.mxu0 0.0
    %6714 = vmatprep.subr.mxu0 0.0
    %6715 = vmatpush1.msra.mxu0 0.0
    %6716 = vmatprep.subr.mxu0 0.0
    %6717 = vmatpush1.msra.mxu0 0.0
    %6718 = vmatprep.subr.mxu0 0.0
    %6719 = vmatpush1.msra.mxu0 0.0
    %6720 = vmatprep.subr.mxu0 0.0
    %6721 = vmatpush1.msra.mxu0 0.0
    %6722 = vmatprep.subr.mxu0 0.0
    %6723 = vmatpush1.msra.mxu0 0.0
    %6724 = vmatprep.subr.mxu0 0.0
    %6725 = vmatpush1.msra.mxu0 0.0
    %6726 = vmatprep.subr.mxu0 0.0
    %6727 = vmatpush1.msra.mxu0 0.0
    %6728 = vmatprep.mubr.f32.mxu0 0.0
    %v6729 = vand.u32 %v113, 4294901760
    %6730 = vmatmul.mubr.f32.gmra.mrb[0].mxu0 %v6729
    %v6731 = vpop.f32.mrb[0].mxu0
    %v6732 = vadd.f32 %v6606, %v6731
    %v6733 = vpop.f32.mrb[0].mxu0
    %v6734 = vadd.f32 %v6608, %v6733
    %6735 = vmatprep.mubr.f32.mxu0 0.0
    %v6736 = vand.u32 %v116, 4294901760
    %6737 = vmatmul.mubr.f32.gmra.mrb[0].mxu0 %v6736
    %v6738 = vpop.f32.mrb[0].mxu0
    %v6739 = vadd.f32 %v6617, %v6738
    %v6740 = vpop.f32.mrb[0].mxu0
    %v6741 = vadd.f32 %v6619, %v6740
    %6742 = vmatprep.mubr.f32.mxu0 0.0
    %v6743 = vand.u32 %v119, 4294901760
    %6744 = vmatmul.mubr.f32.gmra.mrb[0].mxu0 %v6743
    %v6745 = vpop.f32.mrb[0].mxu0
    %v6746 = vadd.f32 %v6628, %v6745
    %v6747 = vpop.f32.mrb[0].mxu0
    %v6748 = vadd.f32 %v6630, %v6747
    %6749 = vmatprep.mubr.f32.mxu0 0.0
    %v6750 = vand.u32 %v122, 4294901760
    %6751 = vmatmul.mubr.f32.gmra.mrb[0].mxu0 %v6750
    %v6752 = vpop.f32.mrb[0].mxu0
    %v6753 = vadd.f32 %v6639, %v6752
    %v6754 = vpop.f32.mrb[0].mxu0
    %v6755 = vadd.f32 %v6641, %v6754
    %6756 = vmatprep.mubr.f32.mxu0 0.0
    %v6757 = vand.u32 %v125, 4294901760
    %6758 = vmatmul.mubr.f32.gmra.mrb[0].mxu0 %v6757
    %v6759 = vpop.f32.mrb[0].mxu0
    %v6760 = vadd.f32 %v6650, %v6759
    %v6761 = vpop.f32.mrb[0].mxu0
    %v6762 = vadd.f32 %v6652, %v6761
    %6763 = vdwg.mxu0
    %v6764 = vand.u32 %v5869, 4294901760
    %v6765 = vsub.f32 %v5869, %v6764
    %6766 = vmatprep.subr.mxu0 %v6765
    %v6767 = vand.u32 %v5867, 4294901760
    %v6768 = vsub.f32 %v5867, %v6767
    %6769 = vmatpush1.msra.mxu0 %v6768
    %6770 = vmatprep.subr.mxu0 0.0
    %6771 = vmatpush1.msra.mxu0 0.0
    %6772 = vmatprep.subr.mxu0 0.0
    %6773 = vmatpush1.msra.mxu0 0.0
    %6774 = vmatprep.subr.mxu0 0.0
    %6775 = vmatpush1.msra.mxu0 0.0
    %6776 = vmatprep.subr.mxu0 0.0
    %6777 = vmatpush1.msra.mxu0 0.0
    %6778 = vmatprep.subr.mxu0 0.0
    %6779 = vmatpush1.msra.mxu0 0.0
    %6780 = vmatprep.subr.mxu0 0.0
    %6781 = vmatpush1.msra.mxu0 0.0
    %6782 = vmatprep.subr.mxu0 0.0
    %6783 = vmatpush1.msra.mxu0 0.0
    %6784 = vmatprep.subr.mxu0 0.0
    %6785 = vmatpush1.msra.mxu0 0.0
    %6786 = vmatprep.subr.mxu0 0.0
    %6787 = vmatpush1.msra.mxu0 0.0
    %6788 = vmatprep.subr.mxu0 0.0
    %6789 = vmatpush1.msra.mxu0 0.0
    %6790 = vmatprep.subr.mxu0 0.0
    %6791 = vmatpush1.msra.mxu0 0.0
    %6792 = vmatprep.subr.mxu0 0.0
    %6793 = vmatpush1.msra.mxu0 0.0
    %6794 = vmatprep.subr.mxu0 0.0
    %6795 = vmatpush1.msra.mxu0 0.0
    %6796 = vmatprep.subr.mxu0 0.0
    %6797 = vmatpush1.msra.mxu0 0.0
    %6798 = vmatprep.subr.mxu0 0.0
    %6799 = vmatpush1.msra.mxu0 0.0
    %6800 = vmatprep.subr.mxu0 0.0
    %6801 = vmatpush1.msra.mxu0 0.0
    %6802 = vmatprep.subr.mxu0 0.0
    %6803 = vmatpush1.msra.mxu0 0.0
    %6804 = vmatprep.subr.mxu0 0.0
    %6805 = vmatpush1.msra.mxu0 0.0
    %6806 = vmatprep.subr.mxu0 0.0
    %6807 = vmatpush1.msra.mxu0 0.0
    %6808 = vmatprep.subr.mxu0 0.0
    %6809 = vmatpush1.msra.mxu0 0.0
    %6810 = vmatprep.subr.mxu0 0.0
    %6811 = vmatpush1.msra.mxu0 0.0
    %6812 = vmatprep.subr.mxu0 0.0
    %6813 = vmatpush1.msra.mxu0 0.0
    %6814 = vmatprep.subr.mxu0 0.0
    %6815 = vmatpush1.msra.mxu0 0.0
    %6816 = vmatprep.subr.mxu0 0.0
    %6817 = vmatpush1.msra.mxu0 0.0
    %6818 = vmatprep.subr.mxu0 0.0
    %6819 = vmatpush1.msra.mxu0 0.0
    %6820 = vmatprep.subr.mxu0 0.0
    %6821 = vmatpush1.msra.mxu0 0.0
    %6822 = vmatprep.subr.mxu0 0.0
    %6823 = vmatpush1.msra.mxu0 0.0
    %6824 = vmatprep.subr.mxu0 0.0
    %6825 = vmatpush1.msra.mxu0 0.0
    %6826 = vmatprep.subr.mxu0 0.0
    %6827 = vmatpush1.msra.mxu0 0.0
    %6828 = vmatprep.subr.mxu0 0.0
    %6829 = vmatpush1.msra.mxu0 0.0
    %6830 = vmatprep.subr.mxu0 0.0
    %6831 = vmatpush1.msra.mxu0 0.0
    %6832 = vmatprep.mubr.f32.mxu0 0.0
    %v6833 = vand.u32 %v113, 4294901760
    %v6834 = vsub.f32 %v113, %v6833
    %6835 = vmatmul.mubr.f32.gmra.mrb[0].mxu0 %v6834
    %v6836 = vpop.f32.mrb[0].mxu0
    %v6837 = vadd.f32 %v6732, %v6836
    %v6838 = vpop.f32.mrb[0].mxu0
    %v6839 = vadd.f32 %v6734, %v6838
    %6840 = vmatprep.mubr.f32.mxu0 0.0
    %v6841 = vand.u32 %v116, 4294901760
    %v6842 = vsub.f32 %v116, %v6841
    %6843 = vmatmul.mubr.f32.gmra.mrb[0].mxu0 %v6842
    %v6844 = vpop.f32.mrb[0].mxu0
    %v6845 = vadd.f32 %v6739, %v6844
    %v6846 = vpop.f32.mrb[0].mxu0
    %v6847 = vadd.f32 %v6741, %v6846
    %6848 = vmatprep.mubr.f32.mxu0 0.0
    %v6849 = vand.u32 %v119, 4294901760
    %v6850 = vsub.f32 %v119, %v6849
    %6851 = vmatmul.mubr.f32.gmra.mrb[0].mxu0 %v6850
    %v6852 = vpop.f32.mrb[0].mxu0
    %v6853 = vadd.f32 %v6746, %v6852
    %v6854 = vpop.f32.mrb[0].mxu0
    %v6855 = vadd.f32 %v6748, %v6854
    %6856 = vmatprep.mubr.f32.mxu0 0.0
    %v6857 = vand.u32 %v122, 4294901760
    %v6858 = vsub.f32 %v122, %v6857
    %6859 = vmatmul.mubr.f32.gmra.mrb[0].mxu0 %v6858
    %v6860 = vpop.f32.mrb[0].mxu0
    %v6861 = vadd.f32 %v6753, %v6860
    %v6862 = vpop.f32.mrb[0].mxu0
    %v6863 = vadd.f32 %v6755, %v6862
    %6864 = vmatprep.mubr.f32.mxu0 0.0
    %v6865 = vand.u32 %v125, 4294901760
    %v6866 = vsub.f32 %v125, %v6865
    %6867 = vmatmul.mubr.f32.gmra.mrb[0].mxu0 %v6866
    %v6868 = vpop.f32.mrb[0].mxu0
    %v6869 = vadd.f32 %v6760, %v6868
    %v6870 = vpop.f32.mrb[0].mxu0
    %v6871 = vadd.f32 %v6762, %v6870
    %6872 = vdwg.mxu0
    %v6873 = vand.u32 %v5869, 4294901760
    %6874 = vmatprep.subr.mxu0 %v6873
    %v6875 = vand.u32 %v5867, 4294901760
    %6876 = vmatpush1.msra.mxu0 %v6875
    %6877 = vmatprep.subr.mxu0 0.0
    %6878 = vmatpush1.msra.mxu0 0.0
    %6879 = vmatprep.subr.mxu0 0.0
    %6880 = vmatpush1.msra.mxu0 0.0
    %6881 = vmatprep.subr.mxu0 0.0
    %6882 = vmatpush1.msra.mxu0 0.0
    %6883 = vmatprep.subr.mxu0 0.0
    %6884 = vmatpush1.msra.mxu0 0.0
    %6885 = vmatprep.subr.mxu0 0.0
    %6886 = vmatpush1.msra.mxu0 0.0
    %6887 = vmatprep.subr.mxu0 0.0
    %6888 = vmatpush1.msra.mxu0 0.0
    %6889 = vmatprep.subr.mxu0 0.0
    %6890 = vmatpush1.msra.mxu0 0.0
    %6891 = vmatprep.subr.mxu0 0.0
    %6892 = vmatpush1.msra.mxu0 0.0
    %6893 = vmatprep.subr.mxu0 0.0
    %6894 = vmatpush1.msra.mxu0 0.0
    %6895 = vmatprep.subr.mxu0 0.0
    %6896 = vmatpush1.msra.mxu0 0.0
    %6897 = vmatprep.subr.mxu0 0.0
    %6898 = vmatpush1.msra.mxu0 0.0
    %6899 = vmatprep.subr.mxu0 0.0
    %6900 = vmatpush1.msra.mxu0 0.0
    %6901 = vmatprep.subr.mxu0 0.0
    %6902 = vmatpush1.msra.mxu0 0.0
    %6903 = vmatprep.subr.mxu0 0.0
    %6904 = vmatpush1.msra.mxu0 0.0
    %6905 = vmatprep.subr.mxu0 0.0
    %6906 = vmatpush1.msra.mxu0 0.0
    %6907 = vmatprep.subr.mxu0 0.0
    %6908 = vmatpush1.msra.mxu0 0.0
    %6909 = vmatprep.subr.mxu0 0.0
    %6910 = vmatpush1.msra.mxu0 0.0
    %6911 = vmatprep.subr.mxu0 0.0
    %6912 = vmatpush1.msra.mxu0 0.0
    %6913 = vmatprep.subr.mxu0 0.0
    %6914 = vmatpush1.msra.mxu0 0.0
    %6915 = vmatprep.subr.mxu0 0.0
    %6916 = vmatpush1.msra.mxu0 0.0
    %6917 = vmatprep.subr.mxu0 0.0
    %6918 = vmatpush1.msra.mxu0 0.0
    %6919 = vmatprep.subr.mxu0 0.0
    %6920 = vmatpush1.msra.mxu0 0.0
    %6921 = vmatprep.subr.mxu0 0.0
    %6922 = vmatpush1.msra.mxu0 0.0
    %6923 = vmatprep.subr.mxu0 0.0
    %6924 = vmatpush1.msra.mxu0 0.0
    %6925 = vmatprep.subr.mxu0 0.0
    %6926 = vmatpush1.msra.mxu0 0.0
    %6927 = vmatprep.subr.mxu0 0.0
    %6928 = vmatpush1.msra.mxu0 0.0
    %6929 = vmatprep.subr.mxu0 0.0
    %6930 = vmatpush1.msra.mxu0 0.0
    %6931 = vmatprep.subr.mxu0 0.0
    %6932 = vmatpush1.msra.mxu0 0.0
    %6933 = vmatprep.subr.mxu0 0.0
    %6934 = vmatpush1.msra.mxu0 0.0
    %6935 = vmatprep.subr.mxu0 0.0
    %6936 = vmatpush1.msra.mxu0 0.0
    %6937 = vmatprep.subr.mxu0 0.0
    %6938 = vmatpush1.msra.mxu0 0.0
    %6939 = vmatprep.mubr.f32.mxu0 0.0
    %v6940 = vand.u32 %v113, 4294901760
    %v6941 = vsub.f32 %v113, %v6940
    %v6942 = vand.u32 %v6941, 4294901760
    %6943 = vmatmul.mubr.f32.gmra.mrb[0].mxu0 %v6942
    %v6944 = vpop.f32.mrb[0].mxu0
    %v6945 = vadd.f32 %v6837, %v6944
    %v6946 = vpop.f32.mrb[0].mxu0
    %v6947 = vadd.f32 %v6839, %v6946
    %6948 = vmatprep.mubr.f32.mxu0 0.0
    %v6949 = vand.u32 %v116, 4294901760
    %v6950 = vsub.f32 %v116, %v6949
    %v6951 = vand.u32 %v6950, 4294901760
    %6952 = vmatmul.mubr.f32.gmra.mrb[0].mxu0 %v6951
    %v6953 = vpop.f32.mrb[0].mxu0
    %v6954 = vadd.f32 %v6845, %v6953
    %v6955 = vpop.f32.mrb[0].mxu0
    %v6956 = vadd.f32 %v6847, %v6955
    %6957 = vmatprep.mubr.f32.mxu0 0.0
    %v6958 = vand.u32 %v119, 4294901760
    %v6959 = vsub.f32 %v119, %v6958
    %v6960 = vand.u32 %v6959, 4294901760
    %6961 = vmatmul.mubr.f32.gmra.mrb[0].mxu0 %v6960
    %v6962 = vpop.f32.mrb[0].mxu0
    %v6963 = vadd.f32 %v6853, %v6962
    %v6964 = vpop.f32.mrb[0].mxu0
    %v6965 = vadd.f32 %v6855, %v6964
    %6966 = vmatprep.mubr.f32.mxu0 0.0
    %v6967 = vand.u32 %v122, 4294901760
    %v6968 = vsub.f32 %v122, %v6967
    %v6969 = vand.u32 %v6968, 4294901760
    %6970 = vmatmul.mubr.f32.gmra.mrb[0].mxu0 %v6969
    %v6971 = vpop.f32.mrb[0].mxu0
    %v6972 = vadd.f32 %v6861, %v6971
    %v6973 = vpop.f32.mrb[0].mxu0
    %v6974 = vadd.f32 %v6863, %v6973
    %6975 = vmatprep.mubr.f32.mxu0 0.0
    %v6976 = vand.u32 %v125, 4294901760
    %v6977 = vsub.f32 %v125, %v6976
    %v6978 = vand.u32 %v6977, 4294901760
    %6979 = vmatmul.mubr.f32.gmra.mrb[0].mxu0 %v6978
    %v6980 = vpop.f32.mrb[0].mxu0
    %v6981 = vadd.f32 %v6869, %v6980
    %v6982 = vpop.f32.mrb[0].mxu0
    %v6983 = vadd.f32 %v6871, %v6982
    %6984 = vdwg.mxu0
    %v6985 = vand.u32 %v5869, 4294901760
    %v6986 = vsub.f32 %v5869, %v6985
    %v6987 = vand.u32 %v6986, 4294901760
    %6988 = vmatprep.subr.mxu0 %v6987
    %v6989 = vand.u32 %v5867, 4294901760
    %v6990 = vsub.f32 %v5867, %v6989
    %v6991 = vand.u32 %v6990, 4294901760
    %6992 = vmatpush1.msra.mxu0 %v6991
    %6993 = vmatprep.subr.mxu0 0.0
    %6994 = vmatpush1.msra.mxu0 0.0
    %6995 = vmatprep.subr.mxu0 0.0
    %6996 = vmatpush1.msra.mxu0 0.0
    %6997 = vmatprep.subr.mxu0 0.0
    %6998 = vmatpush1.msra.mxu0 0.0
    %6999 = vmatprep.subr.mxu0 0.0
    %7000 = vmatpush1.msra.mxu0 0.0
    %7001 = vmatprep.subr.mxu0 0.0
    %7002 = vmatpush1.msra.mxu0 0.0
    %7003 = vmatprep.subr.mxu0 0.0
    %7004 = vmatpush1.msra.mxu0 0.0
    %7005 = vmatprep.subr.mxu0 0.0
    %7006 = vmatpush1.msra.mxu0 0.0
    %7007 = vmatprep.subr.mxu0 0.0
    %7008 = vmatpush1.msra.mxu0 0.0
    %7009 = vmatprep.subr.mxu0 0.0
    %7010 = vmatpush1.msra.mxu0 0.0
    %7011 = vmatprep.subr.mxu0 0.0
    %7012 = vmatpush1.msra.mxu0 0.0
    %7013 = vmatprep.subr.mxu0 0.0
    %7014 = vmatpush1.msra.mxu0 0.0
    %7015 = vmatprep.subr.mxu0 0.0
    %7016 = vmatpush1.msra.mxu0 0.0
    %7017 = vmatprep.subr.mxu0 0.0
    %7018 = vmatpush1.msra.mxu0 0.0
    %7019 = vmatprep.subr.mxu0 0.0
    %7020 = vmatpush1.msra.mxu0 0.0
    %7021 = vmatprep.subr.mxu0 0.0
    %7022 = vmatpush1.msra.mxu0 0.0
    %7023 = vmatprep.subr.mxu0 0.0
    %7024 = vmatpush1.msra.mxu0 0.0
    %7025 = vmatprep.subr.mxu0 0.0
    %7026 = vmatpush1.msra.mxu0 0.0
    %7027 = vmatprep.subr.mxu0 0.0
    %7028 = vmatpush1.msra.mxu0 0.0
    %7029 = vmatprep.subr.mxu0 0.0
    %7030 = vmatpush1.msra.mxu0 0.0
    %7031 = vmatprep.subr.mxu0 0.0
    %7032 = vmatpush1.msra.mxu0 0.0
    %7033 = vmatprep.subr.mxu0 0.0
    %7034 = vmatpush1.msra.mxu0 0.0
    %7035 = vmatprep.subr.mxu0 0.0
    %7036 = vmatpush1.msra.mxu0 0.0
    %7037 = vmatprep.subr.mxu0 0.0
    %7038 = vmatpush1.msra.mxu0 0.0
    %7039 = vmatprep.subr.mxu0 0.0
    %7040 = vmatpush1.msra.mxu0 0.0
    %7041 = vmatprep.subr.mxu0 0.0
    %7042 = vmatpush1.msra.mxu0 0.0
    %7043 = vmatprep.subr.mxu0 0.0
    %7044 = vmatpush1.msra.mxu0 0.0
    %7045 = vmatprep.subr.mxu0 0.0
    %7046 = vmatpush1.msra.mxu0 0.0
    %7047 = vmatprep.subr.mxu0 0.0
    %7048 = vmatpush1.msra.mxu0 0.0
    %7049 = vmatprep.subr.mxu0 0.0
    %7050 = vmatpush1.msra.mxu0 0.0
    %7051 = vmatprep.subr.mxu0 0.0
    %7052 = vmatpush1.msra.mxu0 0.0
    %7053 = vmatprep.subr.mxu0 0.0
    %7054 = vmatpush1.msra.mxu0 0.0
    %7055 = vmatprep.mubr.f32.mxu0 0.0
    %v7056 = vand.u32 %v113, 4294901760
    %7057 = vmatmul.mubr.f32.gmra.mrb[0].mxu0 %v7056
    %v7058 = vpop.f32.mrb[0].mxu0
    %v7059 = vadd.f32 %v6945, %v7058
    %v7060 = vpop.f32.mrb[0].mxu0
    %v7061 = vadd.f32 %v6947, %v7060
    %7062 = vmatprep.mubr.f32.mxu0 0.0
    %v7063 = vand.u32 %v116, 4294901760
    %7064 = vmatmul.mubr.f32.gmra.mrb[0].mxu0 %v7063
    %v7065 = vpop.f32.mrb[0].mxu0
    %v7066 = vadd.f32 %v6954, %v7065
    %v7067 = vpop.f32.mrb[0].mxu0
    %v7068 = vadd.f32 %v6956, %v7067
    %7069 = vmatprep.mubr.f32.mxu0 0.0
    %v7070 = vand.u32 %v119, 4294901760
    %7071 = vmatmul.mubr.f32.gmra.mrb[0].mxu0 %v7070
    %v7072 = vpop.f32.mrb[0].mxu0
    %v7073 = vadd.f32 %v6963, %v7072
    %v7074 = vpop.f32.mrb[0].mxu0
    %v7075 = vadd.f32 %v6965, %v7074
    %7076 = vmatprep.mubr.f32.mxu0 0.0
    %v7077 = vand.u32 %v122, 4294901760
    %7078 = vmatmul.mubr.f32.gmra.mrb[0].mxu0 %v7077
    %v7079 = vpop.f32.mrb[0].mxu0
    %v7080 = vadd.f32 %v6972, %v7079
    %v7081 = vpop.f32.mrb[0].mxu0
    %v7082 = vadd.f32 %v6974, %v7081
    %7083 = vmatprep.mubr.f32.mxu0 0.0
    %v7084 = vand.u32 %v125, 4294901760
    %7085 = vmatmul.mubr.f32.gmra.mrb[0].mxu0 %v7084
    %v7086 = vpop.f32.mrb[0].mxu0
    %v7087 = vadd.f32 %v6981, %v7086
    %v7088 = vpop.f32.mrb[0].mxu0
    %v7089 = vadd.f32 %v6983, %v7088
    %7090 = vdwg.mxu0
    %v7091 = vand.u32 %v5869, 4294901760
    %7092 = vmatprep.subr.mxu0 %v7091
    %v7093 = vand.u32 %v5867, 4294901760
    %7094 = vmatpush1.msra.mxu0 %v7093
    %7095 = vmatprep.subr.mxu0 0.0
    %7096 = vmatpush1.msra.mxu0 0.0
    %7097 = vmatprep.subr.mxu0 0.0
    %7098 = vmatpush1.msra.mxu0 0.0
    %7099 = vmatprep.subr.mxu0 0.0
    %7100 = vmatpush1.msra.mxu0 0.0
    %7101 = vmatprep.subr.mxu0 0.0
    %7102 = vmatpush1.msra.mxu0 0.0
    %7103 = vmatprep.subr.mxu0 0.0
    %7104 = vmatpush1.msra.mxu0 0.0
    %7105 = vmatprep.subr.mxu0 0.0
    %7106 = vmatpush1.msra.mxu0 0.0
    %7107 = vmatprep.subr.mxu0 0.0
    %7108 = vmatpush1.msra.mxu0 0.0
    %7109 = vmatprep.subr.mxu0 0.0
    %7110 = vmatpush1.msra.mxu0 0.0
    %7111 = vmatprep.subr.mxu0 0.0
    %7112 = vmatpush1.msra.mxu0 0.0
    %7113 = vmatprep.subr.mxu0 0.0
    %7114 = vmatpush1.msra.mxu0 0.0
    %7115 = vmatprep.subr.mxu0 0.0
    %7116 = vmatpush1.msra.mxu0 0.0
    %7117 = vmatprep.subr.mxu0 0.0
    %7118 = vmatpush1.msra.mxu0 0.0
    %7119 = vmatprep.subr.mxu0 0.0
    %7120 = vmatpush1.msra.mxu0 0.0
    %7121 = vmatprep.subr.mxu0 0.0
    %7122 = vmatpush1.msra.mxu0 0.0
    %7123 = vmatprep.subr.mxu0 0.0
    %7124 = vmatpush1.msra.mxu0 0.0
    %7125 = vmatprep.subr.mxu0 0.0
    %7126 = vmatpush1.msra.mxu0 0.0
    %7127 = vmatprep.subr.mxu0 0.0
    %7128 = vmatpush1.msra.mxu0 0.0
    %7129 = vmatprep.subr.mxu0 0.0
    %7130 = vmatpush1.msra.mxu0 0.0
    %7131 = vmatprep.subr.mxu0 0.0
    %7132 = vmatpush1.msra.mxu0 0.0
    %7133 = vmatprep.subr.mxu0 0.0
    %7134 = vmatpush1.msra.mxu0 0.0
    %7135 = vmatprep.subr.mxu0 0.0
    %7136 = vmatpush1.msra.mxu0 0.0
    %7137 = vmatprep.subr.mxu0 0.0
    %7138 = vmatpush1.msra.mxu0 0.0
    %7139 = vmatprep.subr.mxu0 0.0
    %7140 = vmatpush1.msra.mxu0 0.0
    %7141 = vmatprep.subr.mxu0 0.0
    %7142 = vmatpush1.msra.mxu0 0.0
    %7143 = vmatprep.subr.mxu0 0.0
    %7144 = vmatpush1.msra.mxu0 0.0
    %7145 = vmatprep.subr.mxu0 0.0
    %7146 = vmatpush1.msra.mxu0 0.0
    %7147 = vmatprep.subr.mxu0 0.0
    %7148 = vmatpush1.msra.mxu0 0.0
    %7149 = vmatprep.subr.mxu0 0.0
    %7150 = vmatpush1.msra.mxu0 0.0
    %7151 = vmatprep.subr.mxu0 0.0
    %7152 = vmatpush1.msra.mxu0 0.0
    %7153 = vmatprep.subr.mxu0 0.0
    %7154 = vmatpush1.msra.mxu0 0.0
    %7155 = vmatprep.subr.mxu0 0.0
    %7156 = vmatpush1.msra.mxu0 0.0
    %7157 = vmatprep.mubr.f32.mxu0 0.0
    %v7158 = vand.u32 %v113, 4294901760
    %7159 = vmatmul.mubr.f32.gmra.mrb[0].mxu0 %v7158
    %v7160 = vpop.f32.mrb[0].mxu0
    %v7161 = vadd.f32 %v7059, %v7160
    %v7162 = vpop.f32.mrb[0].mxu0
    %v7163 = vadd.f32 %v7061, %v7162
    %7164 = vmatprep.mubr.f32.mxu0 0.0
    %v7165 = vand.u32 %v116, 4294901760
    %7166 = vmatmul.mubr.f32.gmra.mrb[0].mxu0 %v7165
    %v7167 = vpop.f32.mrb[0].mxu0
    %v7168 = vadd.f32 %v7066, %v7167
    %v7169 = vpop.f32.mrb[0].mxu0
    %v7170 = vadd.f32 %v7068, %v7169
    %7171 = vmatprep.mubr.f32.mxu0 0.0
    %v7172 = vand.u32 %v119, 4294901760
    %7173 = vmatmul.mubr.f32.gmra.mrb[0].mxu0 %v7172
    %v7174 = vpop.f32.mrb[0].mxu0
    %v7175 = vadd.f32 %v7073, %v7174
    %v7176 = vpop.f32.mrb[0].mxu0
    %v7177 = vadd.f32 %v7075, %v7176
    %7178 = vmatprep.mubr.f32.mxu0 0.0
    %v7179 = vand.u32 %v122, 4294901760
    %7180 = vmatmul.mubr.f32.gmra.mrb[0].mxu0 %v7179
    %v7181 = vpop.f32.mrb[0].mxu0
    %v7182 = vadd.f32 %v7080, %v7181
    %v7183 = vpop.f32.mrb[0].mxu0
    %v7184 = vadd.f32 %v7082, %v7183
    %7185 = vmatprep.mubr.f32.mxu0 0.0
    %v7186 = vand.u32 %v125, 4294901760
    %7187 = vmatmul.mubr.f32.gmra.mrb[0].mxu0 %v7186
    %v7188 = vpop.f32.mrb[0].mxu0
    %v7189 = vadd.f32 %v7087, %v7188
    %v7190 = vpop.f32.mrb[0].mxu0
    %v7191 = vadd.f32 %v7089, %v7190
    %7192 = vdwg.mxu0
    %v7193 = vtanh.pop %v6500
    %v7194 = vtanh.pop %v6502
    %v7195 = vtanh.pop %v7161
    %v7196 = vtanh.pop %v7163
    %v7197 = vtanh.pop %v6507
    %v7198 = vtanh.pop %v6509
    %v7199 = vtanh.pop %v7168
    %v7200 = vtanh.pop %v7170
    %v7201 = vtanh.pop %v6514
    %v7202 = vtanh.pop %v6516
    %v7203 = vtanh.pop %v7175
    %v7204 = vtanh.pop %v7177
    %v7205 = vtanh.pop %v6521
    %v7206 = vtanh.pop %v6523
    %v7207 = vtanh.pop %v7182
    %v7208 = vtanh.pop %v7184
    %v7209 = vtanh.pop %v6528
    %v7210 = vtanh.pop %v6530
    %v7211 = vtanh.pop %v7189
    %v7212 = vtanh.pop %v7191
    %v7213 = vand.u32 %v7194, 4294901760
    %7214 = vmatprep.subr.mxu0 %v7213
    %v7215 = vand.u32 %v7193, 4294901760
    %7216 = vmatpush1.msra.mxu0 %v7215
    %v7217 = vand.u32 %v7198, 4294901760
    %7218 = vmatprep.subr.mxu0 %v7217
    %v7219 = vand.u32 %v7197, 4294901760
    %7220 = vmatpush1.msra.mxu0 %v7219
    %v7221 = vand.u32 %v7202, 4294901760
    %7222 = vmatprep.subr.mxu0 %v7221
    %v7223 = vand.u32 %v7201, 4294901760
    %7224 = vmatpush1.msra.mxu0 %v7223
    %v7225 = vand.u32 %v7206, 4294901760
    %7226 = vmatprep.subr.mxu0 %v7225
    %v7227 = vand.u32 %v7205, 4294901760
    %7228 = vmatpush1.msra.mxu0 %v7227
    %v7229 = vand.u32 %v7210, 4294901760
    %7230 = vmatprep.subr.mxu0 %v7229
    %v7231 = vand.u32 %v7209, 4294901760
    %7232 = vmatpush1.msra.mxu0 %v7231
    %7233 = vmatprep.subr.mxu0 0.0
    %7234 = vmatpush1.msra.mxu0 0.0
    %7235 = vmatprep.subr.mxu0 0.0
    %7236 = vmatpush1.msra.mxu0 0.0
    %7237 = vmatprep.subr.mxu0 0.0
    %7238 = vmatpush1.msra.mxu0 0.0
    %7239 = vmatprep.subr.mxu0 0.0
    %7240 = vmatpush1.msra.mxu0 0.0
    %7241 = vmatprep.subr.mxu0 0.0
    %7242 = vmatpush1.msra.mxu0 0.0
    %7243 = vmatprep.subr.mxu0 0.0
    %7244 = vmatpush1.msra.mxu0 0.0
    %7245 = vmatprep.subr.mxu0 0.0
    %7246 = vmatpush1.msra.mxu0 0.0
    %7247 = vmatprep.subr.mxu0 0.0
    %7248 = vmatpush1.msra.mxu0 0.0
    %7249 = vmatprep.subr.mxu0 0.0
    %7250 = vmatpush1.msra.mxu0 0.0
    %7251 = vmatprep.subr.mxu0 0.0
    %7252 = vmatpush1.msra.mxu0 0.0
    %7253 = vmatprep.subr.mxu0 0.0
    %7254 = vmatpush1.msra.mxu0 0.0
    %7255 = vmatprep.subr.mxu0 0.0
    %7256 = vmatpush1.msra.mxu0 0.0
    %7257 = vmatprep.subr.mxu0 0.0
    %7258 = vmatpush1.msra.mxu0 0.0
    %7259 = vmatprep.subr.mxu0 0.0
    %7260 = vmatpush1.msra.mxu0 0.0
    %7261 = vmatprep.subr.mxu0 0.0
    %7262 = vmatpush1.msra.mxu0 0.0
    %7263 = vmatprep.subr.mxu0 0.0
    %7264 = vmatpush1.msra.mxu0 0.0
    %7265 = vmatprep.subr.mxu0 0.0
    %7266 = vmatpush1.msra.mxu0 0.0
    %7267 = vmatprep.subr.mxu0 0.0
    %7268 = vmatpush1.msra.mxu0 0.0
    %7269 = vmatprep.subr.mxu0 0.0
    %7270 = vmatpush1.msra.mxu0 0.0
    %7271 = vmatprep.subr.mxu0 0.0
    %7272 = vmatpush1.msra.mxu0 0.0
    %7273 = vmatprep.subr.mxu0 0.0
    %7274 = vmatpush1.msra.mxu0 0.0
    %7275 = vmatprep.subr.mxu0 0.0
    %7276 = vmatpush1.msra.mxu0 0.0
    %7277 = vmatprep.subr.mxu0 0.0
    %7278 = vmatpush1.msra.mxu0 0.0
    %7279 = vmatprep.subr.mxu0 0.0
    %7280 = vmatpush1.msra.mxu0 0.0
    %7281 = vmatprep.subr.mxu0 0.0
    %7282 = vmatpush1.msra.mxu0 0.0
    %7283 = vmatprep.subr.mxu0 0.0
    %7284 = vmatpush1.msra.mxu0 0.0
    %7285 = vmatprep.subr.mxu0 0.0
    %7286 = vmatpush1.msra.mxu0 0.0
    %7287 = vmatprep.mubr.f32.mxu0 0.0
    %v7288 = vand.u32 %v1505, 4294901760
    %v7289 = vsub.f32 %v1505, %v7288
    %v7290 = vand.u32 %v7289, 4294901760
    %v7291 = vsub.f32 %v7289, %v7290
    %v7292 = vand.u32 %v7291, 4294901760
    %7293 = vmatmul.mubr.f32.gmra.mrb[0].mxu0 %v7292
    %v7294 = vpop.f32.mrb[0].mxu0
    %v7295 = vadd.f32 %v1481, %v7294
    %v7296 = vpop.f32.mrb[0].mxu0
    %v7297 = vadd.f32 %v1481, %v7296
    %7298 = vmatprep.mubr.f32.mxu0 0.0
    %v7299 = vand.u32 %v1508, 4294901760
    %v7300 = vsub.f32 %v1508, %v7299
    %v7301 = vand.u32 %v7300, 4294901760
    %v7302 = vsub.f32 %v7300, %v7301
    %v7303 = vand.u32 %v7302, 4294901760
    %7304 = vmatmul.mubr.f32.gmra.mrb[0].mxu0 %v7303
    %v7305 = vpop.f32.mrb[0].mxu0
    %v7306 = vadd.f32 %v1486, %v7305
    %v7307 = vpop.f32.mrb[0].mxu0
    %v7308 = vadd.f32 %v1486, %v7307
    %7309 = vmatprep.mubr.f32.mxu0 0.0
    %v7310 = vand.u32 %v1511, 4294901760
    %v7311 = vsub.f32 %v1511, %v7310
    %v7312 = vand.u32 %v7311, 4294901760
    %v7313 = vsub.f32 %v7311, %v7312
    %v7314 = vand.u32 %v7313, 4294901760
    %7315 = vmatmul.mubr.f32.gmra.mrb[0].mxu0 %v7314
    %v7316 = vpop.f32.mrb[0].mxu0
    %v7317 = vadd.f32 %v1491, %v7316
    %v7318 = vpop.f32.mrb[0].mxu0
    %v7319 = vadd.f32 %v1491, %v7318
    %7320 = vmatprep.mubr.f32.mxu0 0.0
    %v7321 = vand.u32 %v1514, 4294901760
    %v7322 = vsub.f32 %v1514, %v7321
    %v7323 = vand.u32 %v7322, 4294901760
    %v7324 = vsub.f32 %v7322, %v7323
    %v7325 = vand.u32 %v7324, 4294901760
    %7326 = vmatmul.mubr.f32.gmra.mrb[0].mxu0 %v7325
    %v7327 = vpop.f32.mrb[0].mxu0
    %v7328 = vadd.f32 %v1496, %v7327
    %v7329 = vpop.f32.mrb[0].mxu0
    %v7330 = vadd.f32 %v1496, %v7329
    %7331 = vmatprep.mubr.f32.mxu0 0.0
    %v7332 = vand.u32 %v1517, 4294901760
    %v7333 = vsub.f32 %v1517, %v7332
    %v7334 = vand.u32 %v7333, 4294901760
    %v7335 = vsub.f32 %v7333, %v7334
    %v7336 = vand.u32 %v7335, 4294901760
    %7337 = vmatmul.mubr.f32.gmra.mrb[0].mxu0 %v7336
    %v7338 = vpop.f32.mrb[0].mxu0
    %v7339 = vadd.f32 %v1501, %v7338
    %v7340 = vpop.f32.mrb[0].mxu0
    %v7341 = vadd.f32 %v1501, %v7340
    %7342 = vdwg.mxu0
    %v7343 = vand.u32 %v7194, 4294901760
    %v7344 = vsub.f32 %v7194, %v7343
    %v7345 = vand.u32 %v7344, 4294901760
    %v7346 = vsub.f32 %v7344, %v7345
    %v7347 = vand.u32 %v7346, 4294901760
    %7348 = vmatprep.subr.mxu0 %v7347
    %v7349 = vand.u32 %v7193, 4294901760
    %v7350 = vsub.f32 %v7193, %v7349
    %v7351 = vand.u32 %v7350, 4294901760
    %v7352 = vsub.f32 %v7350, %v7351
    %v7353 = vand.u32 %v7352, 4294901760
    %7354 = vmatpush1.msra.mxu0 %v7353
    %v7355 = vand.u32 %v7198, 4294901760
    %v7356 = vsub.f32 %v7198, %v7355
    %v7357 = vand.u32 %v7356, 4294901760
    %v7358 = vsub.f32 %v7356, %v7357
    %v7359 = vand.u32 %v7358, 4294901760
    %7360 = vmatprep.subr.mxu0 %v7359
    %v7361 = vand.u32 %v7197, 4294901760
    %v7362 = vsub.f32 %v7197, %v7361
    %v7363 = vand.u32 %v7362, 4294901760
    %v7364 = vsub.f32 %v7362, %v7363
    %v7365 = vand.u32 %v7364, 4294901760
    %7366 = vmatpush1.msra.mxu0 %v7365
    %v7367 = vand.u32 %v7202, 4294901760
    %v7368 = vsub.f32 %v7202, %v7367
    %v7369 = vand.u32 %v7368, 4294901760
    %v7370 = vsub.f32 %v7368, %v7369
    %v7371 = vand.u32 %v7370, 4294901760
    %7372 = vmatprep.subr.mxu0 %v7371
    %v7373 = vand.u32 %v7201, 4294901760
    %v7374 = vsub.f32 %v7201, %v7373
    %v7375 = vand.u32 %v7374, 4294901760
    %v7376 = vsub.f32 %v7374, %v7375
    %v7377 = vand.u32 %v7376, 4294901760
    %7378 = vmatpush1.msra.mxu0 %v7377
    %v7379 = vand.u32 %v7206, 4294901760
    %v7380 = vsub.f32 %v7206, %v7379
    %v7381 = vand.u32 %v7380, 4294901760
    %v7382 = vsub.f32 %v7380, %v7381
    %v7383 = vand.u32 %v7382, 4294901760
    %7384 = vmatprep.subr.mxu0 %v7383
    %v7385 = vand.u32 %v7205, 4294901760
    %v7386 = vsub.f32 %v7205, %v7385
    %v7387 = vand.u32 %v7386, 4294901760
    %v7388 = vsub.f32 %v7386, %v7387
    %v7389 = vand.u32 %v7388, 4294901760
    %7390 = vmatpush1.msra.mxu0 %v7389
    %v7391 = vand.u32 %v7210, 4294901760
    %v7392 = vsub.f32 %v7210, %v7391
    %v7393 = vand.u32 %v7392, 4294901760
    %v7394 = vsub.f32 %v7392, %v7393
    %v7395 = vand.u32 %v7394, 4294901760
    %7396 = vmatprep.subr.mxu0 %v7395
    %v7397 = vand.u32 %v7209, 4294901760
    %v7398 = vsub.f32 %v7209, %v7397
    %v7399 = vand.u32 %v7398, 4294901760
    %v7400 = vsub.f32 %v7398, %v7399
    %v7401 = vand.u32 %v7400, 4294901760
    %7402 = vmatpush1.msra.mxu0 %v7401
    %7403 = vmatprep.subr.mxu0 0.0
    %7404 = vmatpush1.msra.mxu0 0.0
    %7405 = vmatprep.subr.mxu0 0.0
    %7406 = vmatpush1.msra.mxu0 0.0
    %7407 = vmatprep.subr.mxu0 0.0
    %7408 = vmatpush1.msra.mxu0 0.0
    %7409 = vmatprep.subr.mxu0 0.0
    %7410 = vmatpush1.msra.mxu0 0.0
    %7411 = vmatprep.subr.mxu0 0.0
    %7412 = vmatpush1.msra.mxu0 0.0
    %7413 = vmatprep.subr.mxu0 0.0
    %7414 = vmatpush1.msra.mxu0 0.0
    %7415 = vmatprep.subr.mxu0 0.0
    %7416 = vmatpush1.msra.mxu0 0.0
    %7417 = vmatprep.subr.mxu0 0.0
    %7418 = vmatpush1.msra.mxu0 0.0
    %7419 = vmatprep.subr.mxu0 0.0
    %7420 = vmatpush1.msra.mxu0 0.0
    %7421 = vmatprep.subr.mxu0 0.0
    %7422 = vmatpush1.msra.mxu0 0.0
    %7423 = vmatprep.subr.mxu0 0.0
    %7424 = vmatpush1.msra.mxu0 0.0
    %7425 = vmatprep.subr.mxu0 0.0
    %7426 = vmatpush1.msra.mxu0 0.0
    %7427 = vmatprep.subr.mxu0 0.0
    %7428 = vmatpush1.msra.mxu0 0.0
    %7429 = vmatprep.subr.mxu0 0.0
    %7430 = vmatpush1.msra.mxu0 0.0
    %7431 = vmatprep.subr.mxu0 0.0
    %7432 = vmatpush1.msra.mxu0 0.0
    %7433 = vmatprep.subr.mxu0 0.0
    %7434 = vmatpush1.msra.mxu0 0.0
    %7435 = vmatprep.subr.mxu0 0.0
    %7436 = vmatpush1.msra.mxu0 0.0
    %7437 = vmatprep.subr.mxu0 0.0
    %7438 = vmatpush1.msra.mxu0 0.0
    %7439 = vmatprep.subr.mxu0 0.0
    %7440 = vmatpush1.msra.mxu0 0.0
    %7441 = vmatprep.subr.mxu0 0.0
    %7442 = vmatpush1.msra.mxu0 0.0
    %7443 = vmatprep.subr.mxu0 0.0
    %7444 = vmatpush1.msra.mxu0 0.0
    %7445 = vmatprep.subr.mxu0 0.0
    %7446 = vmatpush1.msra.mxu0 0.0
    %7447 = vmatprep.subr.mxu0 0.0
    %7448 = vmatpush1.msra.mxu0 0.0
    %7449 = vmatprep.subr.mxu0 0.0
    %7450 = vmatpush1.msra.mxu0 0.0
    %7451 = vmatprep.subr.mxu0 0.0
    %7452 = vmatpush1.msra.mxu0 0.0
    %7453 = vmatprep.subr.mxu0 0.0
    %7454 = vmatpush1.msra.mxu0 0.0
    %7455 = vmatprep.subr.mxu0 0.0
    %7456 = vmatpush1.msra.mxu0 0.0
    %7457 = vmatprep.mubr.f32.mxu0 0.0
    %v7458 = vand.u32 %v1505, 4294901760
    %7459 = vmatmul.mubr.f32.gmra.mrb[0].mxu0 %v7458
    %v7460 = vpop.f32.mrb[0].mxu0
    %v7461 = vadd.f32 %v7295, %v7460
    %v7462 = vpop.f32.mrb[0].mxu0
    %v7463 = vadd.f32 %v7297, %v7462
    %7464 = vmatprep.mubr.f32.mxu0 0.0
    %v7465 = vand.u32 %v1508, 4294901760
    %7466 = vmatmul.mubr.f32.gmra.mrb[0].mxu0 %v7465
    %v7467 = vpop.f32.mrb[0].mxu0
    %v7468 = vadd.f32 %v7306, %v7467
    %v7469 = vpop.f32.mrb[0].mxu0
    %v7470 = vadd.f32 %v7308, %v7469
    %7471 = vmatprep.mubr.f32.mxu0 0.0
    %v7472 = vand.u32 %v1511, 4294901760
    %7473 = vmatmul.mubr.f32.gmra.mrb[0].mxu0 %v7472
    %v7474 = vpop.f32.mrb[0].mxu0
    %v7475 = vadd.f32 %v7317, %v7474
    %v7476 = vpop.f32.mrb[0].mxu0
    %v7477 = vadd.f32 %v7319, %v7476
    %7478 = vmatprep.mubr.f32.mxu0 0.0
    %v7479 = vand.u32 %v1514, 4294901760
    %7480 = vmatmul.mubr.f32.gmra.mrb[0].mxu0 %v7479
    %v7481 = vpop.f32.mrb[0].mxu0
    %v7482 = vadd.f32 %v7328, %v7481
    %v7483 = vpop.f32.mrb[0].mxu0
    %v7484 = vadd.f32 %v7330, %v7483
    %7485 = vmatprep.mubr.f32.mxu0 0.0
    %v7486 = vand.u32 %v1517, 4294901760
    %7487 = vmatmul.mubr.f32.gmra.mrb[0].mxu0 %v7486
    %v7488 = vpop.f32.mrb[0].mxu0
    %v7489 = vadd.f32 %v7339, %v7488
    %v7490 = vpop.f32.mrb[0].mxu0
    %v7491 = vadd.f32 %v7341, %v7490
    %7492 = vdwg.mxu0
    %v7493 = vand.u32 %v7194, 4294901760
    %v7494 = vsub.f32 %v7194, %v7493
    %7495 = vmatprep.subr.mxu0 %v7494
    %v7496 = vand.u32 %v7193, 4294901760
    %v7497 = vsub.f32 %v7193, %v7496
    %7498 = vmatpush1.msra.mxu0 %v7497
    %v7499 = vand.u32 %v7198, 4294901760
    %v7500 = vsub.f32 %v7198, %v7499
    %7501 = vmatprep.subr.mxu0 %v7500
    %v7502 = vand.u32 %v7197, 4294901760
    %v7503 = vsub.f32 %v7197, %v7502
    %7504 = vmatpush1.msra.mxu0 %v7503
    %v7505 = vand.u32 %v7202, 4294901760
    %v7506 = vsub.f32 %v7202, %v7505
    %7507 = vmatprep.subr.mxu0 %v7506
    %v7508 = vand.u32 %v7201, 4294901760
    %v7509 = vsub.f32 %v7201, %v7508
    %7510 = vmatpush1.msra.mxu0 %v7509
    %v7511 = vand.u32 %v7206, 4294901760
    %v7512 = vsub.f32 %v7206, %v7511
    %7513 = vmatprep.subr.mxu0 %v7512
    %v7514 = vand.u32 %v7205, 4294901760
    %v7515 = vsub.f32 %v7205, %v7514
    %7516 = vmatpush1.msra.mxu0 %v7515
    %v7517 = vand.u32 %v7210, 4294901760
    %v7518 = vsub.f32 %v7210, %v7517
    %7519 = vmatprep.subr.mxu0 %v7518
    %v7520 = vand.u32 %v7209, 4294901760
    %v7521 = vsub.f32 %v7209, %v7520
    %7522 = vmatpush1.msra.mxu0 %v7521
    %7523 = vmatprep.subr.mxu0 0.0
    %7524 = vmatpush1.msra.mxu0 0.0
    %7525 = vmatprep.subr.mxu0 0.0
    %7526 = vmatpush1.msra.mxu0 0.0
    %7527 = vmatprep.subr.mxu0 0.0
    %7528 = vmatpush1.msra.mxu0 0.0
    %7529 = vmatprep.subr.mxu0 0.0
    %7530 = vmatpush1.msra.mxu0 0.0
    %7531 = vmatprep.subr.mxu0 0.0
    %7532 = vmatpush1.msra.mxu0 0.0
    %7533 = vmatprep.subr.mxu0 0.0
    %7534 = vmatpush1.msra.mxu0 0.0
    %7535 = vmatprep.subr.mxu0 0.0
    %7536 = vmatpush1.msra.mxu0 0.0
    %7537 = vmatprep.subr.mxu0 0.0
    %7538 = vmatpush1.msra.mxu0 0.0
    %7539 = vmatprep.subr.mxu0 0.0
    %7540 = vmatpush1.msra.mxu0 0.0
    %7541 = vmatprep.subr.mxu0 0.0
    %7542 = vmatpush1.msra.mxu0 0.0
    %7543 = vmatprep.subr.mxu0 0.0
    %7544 = vmatpush1.msra.mxu0 0.0
    %7545 = vmatprep.subr.mxu0 0.0
    %7546 = vmatpush1.msra.mxu0 0.0
    %7547 = vmatprep.subr.mxu0 0.0
    %7548 = vmatpush1.msra.mxu0 0.0
    %7549 = vmatprep.subr.mxu0 0.0
    %7550 = vmatpush1.msra.mxu0 0.0
    %7551 = vmatprep.subr.mxu0 0.0
    %7552 = vmatpush1.msra.mxu0 0.0
    %7553 = vmatprep.subr.mxu0 0.0
    %7554 = vmatpush1.msra.mxu0 0.0
    %7555 = vmatprep.subr.mxu0 0.0
    %7556 = vmatpush1.msra.mxu0 0.0
    %7557 = vmatprep.subr.mxu0 0.0
    %7558 = vmatpush1.msra.mxu0 0.0
    %7559 = vmatprep.subr.mxu0 0.0
    %7560 = vmatpush1.msra.mxu0 0.0
    %7561 = vmatprep.subr.mxu0 0.0
    %7562 = vmatpush1.msra.mxu0 0.0
    %7563 = vmatprep.subr.mxu0 0.0
    %7564 = vmatpush1.msra.mxu0 0.0
    %7565 = vmatprep.subr.mxu0 0.0
    %7566 = vmatpush1.msra.mxu0 0.0
    %7567 = vmatprep.subr.mxu0 0.0
    %7568 = vmatpush1.msra.mxu0 0.0
    %7569 = vmatprep.subr.mxu0 0.0
    %7570 = vmatpush1.msra.mxu0 0.0
    %7571 = vmatprep.subr.mxu0 0.0
    %7572 = vmatpush1.msra.mxu0 0.0
    %7573 = vmatprep.subr.mxu0 0.0
    %7574 = vmatpush1.msra.mxu0 0.0
    %7575 = vmatprep.subr.mxu0 0.0
    %7576 = vmatpush1.msra.mxu0 0.0
    %7577 = vmatprep.mubr.f32.mxu0 0.0
    %v7578 = vand.u32 %v1505, 4294901760
    %v7579 = vsub.f32 %v1505, %v7578
    %7580 = vmatmul.mubr.f32.gmra.mrb[0].mxu0 %v7579
    %v7581 = vpop.f32.mrb[0].mxu0
    %v7582 = vadd.f32 %v7461, %v7581
    %v7583 = vpop.f32.mrb[0].mxu0
    %v7584 = vadd.f32 %v7463, %v7583
    %7585 = vmatprep.mubr.f32.mxu0 0.0
    %v7586 = vand.u32 %v1508, 4294901760
    %v7587 = vsub.f32 %v1508, %v7586
    %7588 = vmatmul.mubr.f32.gmra.mrb[0].mxu0 %v7587
    %v7589 = vpop.f32.mrb[0].mxu0
    %v7590 = vadd.f32 %v7468, %v7589
    %v7591 = vpop.f32.mrb[0].mxu0
    %v7592 = vadd.f32 %v7470, %v7591
    %7593 = vmatprep.mubr.f32.mxu0 0.0
    %v7594 = vand.u32 %v1511, 4294901760
    %v7595 = vsub.f32 %v1511, %v7594
    %7596 = vmatmul.mubr.f32.gmra.mrb[0].mxu0 %v7595
    %v7597 = vpop.f32.mrb[0].mxu0
    %v7598 = vadd.f32 %v7475, %v7597
    %v7599 = vpop.f32.mrb[0].mxu0
    %v7600 = vadd.f32 %v7477, %v7599
    %7601 = vmatprep.mubr.f32.mxu0 0.0
    %v7602 = vand.u32 %v1514, 4294901760
    %v7603 = vsub.f32 %v1514, %v7602
    %7604 = vmatmul.mubr.f32.gmra.mrb[0].mxu0 %v7603
    %v7605 = vpop.f32.mrb[0].mxu0
    %v7606 = vadd.f32 %v7482, %v7605
    %v7607 = vpop.f32.mrb[0].mxu0
    %v7608 = vadd.f32 %v7484, %v7607
    %7609 = vmatprep.mubr.f32.mxu0 0.0
    %v7610 = vand.u32 %v1517, 4294901760
    %v7611 = vsub.f32 %v1517, %v7610
    %7612 = vmatmul.mubr.f32.gmra.mrb[0].mxu0 %v7611
    %v7613 = vpop.f32.mrb[0].mxu0
    %v7614 = vadd.f32 %v7489, %v7613
    %v7615 = vpop.f32.mrb[0].mxu0
    %v7616 = vadd.f32 %v7491, %v7615
    %7617 = vdwg.mxu0
    %v7618 = vand.u32 %v7194, 4294901760
    %7619 = vmatprep.subr.mxu0 %v7618
    %v7620 = vand.u32 %v7193, 4294901760
    %7621 = vmatpush1.msra.mxu0 %v7620
    %v7622 = vand.u32 %v7198, 4294901760
    %7623 = vmatprep.subr.mxu0 %v7622
    %v7624 = vand.u32 %v7197, 4294901760
    %7625 = vmatpush1.msra.mxu0 %v7624
    %v7626 = vand.u32 %v7202, 4294901760
    %7627 = vmatprep.subr.mxu0 %v7626
    %v7628 = vand.u32 %v7201, 4294901760
    %7629 = vmatpush1.msra.mxu0 %v7628
    %v7630 = vand.u32 %v7206, 4294901760
    %7631 = vmatprep.subr.mxu0 %v7630
    %v7632 = vand.u32 %v7205, 4294901760
    %7633 = vmatpush1.msra.mxu0 %v7632
    %v7634 = vand.u32 %v7210, 4294901760
    %7635 = vmatprep.subr.mxu0 %v7634
    %v7636 = vand.u32 %v7209, 4294901760
    %7637 = vmatpush1.msra.mxu0 %v7636
    %7638 = vmatprep.subr.mxu0 0.0
    %7639 = vmatpush1.msra.mxu0 0.0
    %7640 = vmatprep.subr.mxu0 0.0
    %7641 = vmatpush1.msra.mxu0 0.0
    %7642 = vmatprep.subr.mxu0 0.0
    %7643 = vmatpush1.msra.mxu0 0.0
    %7644 = vmatprep.subr.mxu0 0.0
    %7645 = vmatpush1.msra.mxu0 0.0
    %7646 = vmatprep.subr.mxu0 0.0
    %7647 = vmatpush1.msra.mxu0 0.0
    %7648 = vmatprep.subr.mxu0 0.0
    %7649 = vmatpush1.msra.mxu0 0.0
    %7650 = vmatprep.subr.mxu0 0.0
    %7651 = vmatpush1.msra.mxu0 0.0
    %7652 = vmatprep.subr.mxu0 0.0
    %7653 = vmatpush1.msra.mxu0 0.0
    %7654 = vmatprep.subr.mxu0 0.0
    %7655 = vmatpush1.msra.mxu0 0.0
    %7656 = vmatprep.subr.mxu0 0.0
    %7657 = vmatpush1.msra.mxu0 0.0
    %7658 = vmatprep.subr.mxu0 0.0
    %7659 = vmatpush1.msra.mxu0 0.0
    %7660 = vmatprep.subr.mxu0 0.0
    %7661 = vmatpush1.msra.mxu0 0.0
    %7662 = vmatprep.subr.mxu0 0.0
    %7663 = vmatpush1.msra.mxu0 0.0
    %7664 = vmatprep.subr.mxu0 0.0
    %7665 = vmatpush1.msra.mxu0 0.0
    %7666 = vmatprep.subr.mxu0 0.0
    %7667 = vmatpush1.msra.mxu0 0.0
    %7668 = vmatprep.subr.mxu0 0.0
    %7669 = vmatpush1.msra.mxu0 0.0
    %7670 = vmatprep.subr.mxu0 0.0
    %7671 = vmatpush1.msra.mxu0 0.0
    %7672 = vmatprep.subr.mxu0 0.0
    %7673 = vmatpush1.msra.mxu0 0.0
    %7674 = vmatprep.subr.mxu0 0.0
    %7675 = vmatpush1.msra.mxu0 0.0
    %7676 = vmatprep.subr.mxu0 0.0
    %7677 = vmatpush1.msra.mxu0 0.0
    %7678 = vmatprep.subr.mxu0 0.0
    %7679 = vmatpush1.msra.mxu0 0.0
    %7680 = vmatprep.subr.mxu0 0.0
    %7681 = vmatpush1.msra.mxu0 0.0
    %7682 = vmatprep.subr.mxu0 0.0
    %7683 = vmatpush1.msra.mxu0 0.0
    %7684 = vmatprep.subr.mxu0 0.0
    %7685 = vmatpush1.msra.mxu0 0.0
    %7686 = vmatprep.subr.mxu0 0.0
    %7687 = vmatpush1.msra.mxu0 0.0
    %7688 = vmatprep.subr.mxu0 0.0
    %7689 = vmatpush1.msra.mxu0 0.0
    %7690 = vmatprep.subr.mxu0 0.0
    %7691 = vmatpush1.msra.mxu0 0.0
    %7692 = vmatprep.mubr.f32.mxu0 0.0
    %v7693 = vand.u32 %v1505, 4294901760
    %v7694 = vsub.f32 %v1505, %v7693
    %v7695 = vand.u32 %v7694, 4294901760
    %7696 = vmatmul.mubr.f32.gmra.mrb[0].mxu0 %v7695
    %v7697 = vpop.f32.mrb[0].mxu0
    %v7698 = vadd.f32 %v7582, %v7697
    %v7699 = vpop.f32.mrb[0].mxu0
    %v7700 = vadd.f32 %v7584, %v7699
    %7701 = vmatprep.mubr.f32.mxu0 0.0
    %v7702 = vand.u32 %v1508, 4294901760
    %v7703 = vsub.f32 %v1508, %v7702
    %v7704 = vand.u32 %v7703, 4294901760
    %7705 = vmatmul.mubr.f32.gmra.mrb[0].mxu0 %v7704
    %v7706 = vpop.f32.mrb[0].mxu0
    %v7707 = vadd.f32 %v7590, %v7706
    %v7708 = vpop.f32.mrb[0].mxu0
    %v7709 = vadd.f32 %v7592, %v7708
    %7710 = vmatprep.mubr.f32.mxu0 0.0
    %v7711 = vand.u32 %v1511, 4294901760
    %v7712 = vsub.f32 %v1511, %v7711
    %v7713 = vand.u32 %v7712, 4294901760
    %7714 = vmatmul.mubr.f32.gmra.mrb[0].mxu0 %v7713
    %v7715 = vpop.f32.mrb[0].mxu0
    %v7716 = vadd.f32 %v7598, %v7715
    %v7717 = vpop.f32.mrb[0].mxu0
    %v7718 = vadd.f32 %v7600, %v7717
    %7719 = vmatprep.mubr.f32.mxu0 0.0
    %v7720 = vand.u32 %v1514, 4294901760
    %v7721 = vsub.f32 %v1514, %v7720
    %v7722 = vand.u32 %v7721, 4294901760
    %7723 = vmatmul.mubr.f32.gmra.mrb[0].mxu0 %v7722
    %v7724 = vpop.f32.mrb[0].mxu0
    %v7725 = vadd.f32 %v7606, %v7724
    %v7726 = vpop.f32.mrb[0].mxu0
    %v7727 = vadd.f32 %v7608, %v7726
    %7728 = vmatprep.mubr.f32.mxu0 0.0
    %v7729 = vand.u32 %v1517, 4294901760
    %v7730 = vsub.f32 %v1517, %v7729
    %v7731 = vand.u32 %v7730, 4294901760
    %7732 = vmatmul.mubr.f32.gmra.mrb[0].mxu0 %v7731
    %v7733 = vpop.f32.mrb[0].mxu0
    %v7734 = vadd.f32 %v7614, %v7733
    %v7735 = vpop.f32.mrb[0].mxu0
    %v7736 = vadd.f32 %v7616, %v7735
    %7737 = vdwg.mxu0
    %v7738 = vand.u32 %v7194, 4294901760
    %v7739 = vsub.f32 %v7194, %v7738
    %v7740 = vand.u32 %v7739, 4294901760
    %7741 = vmatprep.subr.mxu0 %v7740
    %v7742 = vand.u32 %v7193, 4294901760
    %v7743 = vsub.f32 %v7193, %v7742
    %v7744 = vand.u32 %v7743, 4294901760
    %7745 = vmatpush1.msra.mxu0 %v7744
    %v7746 = vand.u32 %v7198, 4294901760
    %v7747 = vsub.f32 %v7198, %v7746
    %v7748 = vand.u32 %v7747, 4294901760
    %7749 = vmatprep.subr.mxu0 %v7748
    %v7750 = vand.u32 %v7197, 4294901760
    %v7751 = vsub.f32 %v7197, %v7750
    %v7752 = vand.u32 %v7751, 4294901760
    %7753 = vmatpush1.msra.mxu0 %v7752
    %v7754 = vand.u32 %v7202, 4294901760
    %v7755 = vsub.f32 %v7202, %v7754
    %v7756 = vand.u32 %v7755, 4294901760
    %7757 = vmatprep.subr.mxu0 %v7756
    %v7758 = vand.u32 %v7201, 4294901760
    %v7759 = vsub.f32 %v7201, %v7758
    %v7760 = vand.u32 %v7759, 4294901760
    %7761 = vmatpush1.msra.mxu0 %v7760
    %v7762 = vand.u32 %v7206, 4294901760
    %v7763 = vsub.f32 %v7206, %v7762
    %v7764 = vand.u32 %v7763, 4294901760
    %7765 = vmatprep.subr.mxu0 %v7764
    %v7766 = vand.u32 %v7205, 4294901760
    %v7767 = vsub.f32 %v7205, %v7766
    %v7768 = vand.u32 %v7767, 4294901760
    %7769 = vmatpush1.msra.mxu0 %v7768
    %v7770 = vand.u32 %v7210, 4294901760
    %v7771 = vsub.f32 %v7210, %v7770
    %v7772 = vand.u32 %v7771, 4294901760
    %7773 = vmatprep.subr.mxu0 %v7772
    %v7774 = vand.u32 %v7209, 4294901760
    %v7775 = vsub.f32 %v7209, %v7774
    %v7776 = vand.u32 %v7775, 4294901760
    %7777 = vmatpush1.msra.mxu0 %v7776
    %7778 = vmatprep.subr.mxu0 0.0
    %7779 = vmatpush1.msra.mxu0 0.0
    %7780 = vmatprep.subr.mxu0 0.0
    %7781 = vmatpush1.msra.mxu0 0.0
    %7782 = vmatprep.subr.mxu0 0.0
    %7783 = vmatpush1.msra.mxu0 0.0
    %7784 = vmatprep.subr.mxu0 0.0
    %7785 = vmatpush1.msra.mxu0 0.0
    %7786 = vmatprep.subr.mxu0 0.0
    %7787 = vmatpush1.msra.mxu0 0.0
    %7788 = vmatprep.subr.mxu0 0.0
    %7789 = vmatpush1.msra.mxu0 0.0
    %7790 = vmatprep.subr.mxu0 0.0
    %7791 = vmatpush1.msra.mxu0 0.0
    %7792 = vmatprep.subr.mxu0 0.0
    %7793 = vmatpush1.msra.mxu0 0.0
    %7794 = vmatprep.subr.mxu0 0.0
    %7795 = vmatpush1.msra.mxu0 0.0
    %7796 = vmatprep.subr.mxu0 0.0
    %7797 = vmatpush1.msra.mxu0 0.0
    %7798 = vmatprep.subr.mxu0 0.0
    %7799 = vmatpush1.msra.mxu0 0.0
    %7800 = vmatprep.subr.mxu0 0.0
    %7801 = vmatpush1.msra.mxu0 0.0
    %7802 = vmatprep.subr.mxu0 0.0
    %7803 = vmatpush1.msra.mxu0 0.0
    %7804 = vmatprep.subr.mxu0 0.0
    %7805 = vmatpush1.msra.mxu0 0.0
    %7806 = vmatprep.subr.mxu0 0.0
    %7807 = vmatpush1.msra.mxu0 0.0
    %7808 = vmatprep.subr.mxu0 0.0
    %7809 = vmatpush1.msra.mxu0 0.0
    %7810 = vmatprep.subr.mxu0 0.0
    %7811 = vmatpush1.msra.mxu0 0.0
    %7812 = vmatprep.subr.mxu0 0.0
    %7813 = vmatpush1.msra.mxu0 0.0
    %7814 = vmatprep.subr.mxu0 0.0
    %7815 = vmatpush1.msra.mxu0 0.0
    %7816 = vmatprep.subr.mxu0 0.0
    %7817 = vmatpush1.msra.mxu0 0.0
    %7818 = vmatprep.subr.mxu0 0.0
    %7819 = vmatpush1.msra.mxu0 0.0
    %7820 = vmatprep.subr.mxu0 0.0
    %7821 = vmatpush1.msra.mxu0 0.0
    %7822 = vmatprep.subr.mxu0 0.0
    %7823 = vmatpush1.msra.mxu0 0.0
    %7824 = vmatprep.subr.mxu0 0.0
    %7825 = vmatpush1.msra.mxu0 0.0
    %7826 = vmatprep.subr.mxu0 0.0
    %7827 = vmatpush1.msra.mxu0 0.0
    %7828 = vmatprep.subr.mxu0 0.0
    %7829 = vmatpush1.msra.mxu0 0.0
    %7830 = vmatprep.subr.mxu0 0.0
    %7831 = vmatpush1.msra.mxu0 0.0
    %7832 = vmatprep.mubr.f32.mxu0 0.0
    %v7833 = vand.u32 %v1505, 4294901760
    %7834 = vmatmul.mubr.f32.gmra.mrb[0].mxu0 %v7833
    %v7835 = vpop.f32.mrb[0].mxu0
    %v7836 = vadd.f32 %v7698, %v7835
    %v7837 = vpop.f32.mrb[0].mxu0
    %v7838 = vadd.f32 %v7700, %v7837
    %7839 = vmatprep.mubr.f32.mxu0 0.0
    %v7840 = vand.u32 %v1508, 4294901760
    %7841 = vmatmul.mubr.f32.gmra.mrb[0].mxu0 %v7840
    %v7842 = vpop.f32.mrb[0].mxu0
    %v7843 = vadd.f32 %v7707, %v7842
    %v7844 = vpop.f32.mrb[0].mxu0
    %v7845 = vadd.f32 %v7709, %v7844
    %7846 = vmatprep.mubr.f32.mxu0 0.0
    %v7847 = vand.u32 %v1511, 4294901760
    %7848 = vmatmul.mubr.f32.gmra.mrb[0].mxu0 %v7847
    %v7849 = vpop.f32.mrb[0].mxu0
    %v7850 = vadd.f32 %v7716, %v7849
    %v7851 = vpop.f32.mrb[0].mxu0
    %v7852 = vadd.f32 %v7718, %v7851
    %7853 = vmatprep.mubr.f32.mxu0 0.0
    %v7854 = vand.u32 %v1514, 4294901760
    %7855 = vmatmul.mubr.f32.gmra.mrb[0].mxu0 %v7854
    %v7856 = vpop.f32.mrb[0].mxu0
    %v7857 = vadd.f32 %v7725, %v7856
    %v7858 = vpop.f32.mrb[0].mxu0
    %v7859 = vadd.f32 %v7727, %v7858
    %7860 = vmatprep.mubr.f32.mxu0 0.0
    %v7861 = vand.u32 %v1517, 4294901760
    %7862 = vmatmul.mubr.f32.gmra.mrb[0].mxu0 %v7861
    %v7863 = vpop.f32.mrb[0].mxu0
    %v7864 = vadd.f32 %v7734, %v7863
    %v7865 = vpop.f32.mrb[0].mxu0
    %v7866 = vadd.f32 %v7736, %v7865
    %7867 = vdwg.mxu0
    %v7868 = vand.u32 %v7194, 4294901760
    %7869 = vmatprep.subr.mxu0 %v7868
    %v7870 = vand.u32 %v7193, 4294901760
    %7871 = vmatpush1.msra.mxu0 %v7870
    %v7872 = vand.u32 %v7198, 4294901760
    %7873 = vmatprep.subr.mxu0 %v7872
    %v7874 = vand.u32 %v7197, 4294901760
    %7875 = vmatpush1.msra.mxu0 %v7874
    %v7876 = vand.u32 %v7202, 4294901760
    %7877 = vmatprep.subr.mxu0 %v7876
    %v7878 = vand.u32 %v7201, 4294901760
    %7879 = vmatpush1.msra.mxu0 %v7878
    %v7880 = vand.u32 %v7206, 4294901760
    %7881 = vmatprep.subr.mxu0 %v7880
    %v7882 = vand.u32 %v7205, 4294901760
    %7883 = vmatpush1.msra.mxu0 %v7882
    %v7884 = vand.u32 %v7210, 4294901760
    %7885 = vmatprep.subr.mxu0 %v7884
    %v7886 = vand.u32 %v7209, 4294901760
    %7887 = vmatpush1.msra.mxu0 %v7886
    %7888 = vmatprep.subr.mxu0 0.0
    %7889 = vmatpush1.msra.mxu0 0.0
    %7890 = vmatprep.subr.mxu0 0.0
    %7891 = vmatpush1.msra.mxu0 0.0
    %7892 = vmatprep.subr.mxu0 0.0
    %7893 = vmatpush1.msra.mxu0 0.0
    %7894 = vmatprep.subr.mxu0 0.0
    %7895 = vmatpush1.msra.mxu0 0.0
    %7896 = vmatprep.subr.mxu0 0.0
    %7897 = vmatpush1.msra.mxu0 0.0
    %7898 = vmatprep.subr.mxu0 0.0
    %7899 = vmatpush1.msra.mxu0 0.0
    %7900 = vmatprep.subr.mxu0 0.0
    %7901 = vmatpush1.msra.mxu0 0.0
    %7902 = vmatprep.subr.mxu0 0.0
    %7903 = vmatpush1.msra.mxu0 0.0
    %7904 = vmatprep.subr.mxu0 0.0
    %7905 = vmatpush1.msra.mxu0 0.0
    %7906 = vmatprep.subr.mxu0 0.0
    %7907 = vmatpush1.msra.mxu0 0.0
    %7908 = vmatprep.subr.mxu0 0.0
    %7909 = vmatpush1.msra.mxu0 0.0
    %7910 = vmatprep.subr.mxu0 0.0
    %7911 = vmatpush1.msra.mxu0 0.0
    %7912 = vmatprep.subr.mxu0 0.0
    %7913 = vmatpush1.msra.mxu0 0.0
    %7914 = vmatprep.subr.mxu0 0.0
    %7915 = vmatpush1.msra.mxu0 0.0
    %7916 = vmatprep.subr.mxu0 0.0
    %7917 = vmatpush1.msra.mxu0 0.0
    %7918 = vmatprep.subr.mxu0 0.0
    %7919 = vmatpush1.msra.mxu0 0.0
    %7920 = vmatprep.subr.mxu0 0.0
    %7921 = vmatpush1.msra.mxu0 0.0
    %7922 = vmatprep.subr.mxu0 0.0
    %7923 = vmatpush1.msra.mxu0 0.0
    %7924 = vmatprep.subr.mxu0 0.0
    %7925 = vmatpush1.msra.mxu0 0.0
    %7926 = vmatprep.subr.mxu0 0.0
    %7927 = vmatpush1.msra.mxu0 0.0
    %7928 = vmatprep.subr.mxu0 0.0
    %7929 = vmatpush1.msra.mxu0 0.0
    %7930 = vmatprep.subr.mxu0 0.0
    %7931 = vmatpush1.msra.mxu0 0.0
    %7932 = vmatprep.subr.mxu0 0.0
    %7933 = vmatpush1.msra.mxu0 0.0
    %7934 = vmatprep.subr.mxu0 0.0
    %7935 = vmatpush1.msra.mxu0 0.0
    %7936 = vmatprep.subr.mxu0 0.0
    %7937 = vmatpush1.msra.mxu0 0.0
    %7938 = vmatprep.subr.mxu0 0.0
    %7939 = vmatpush1.msra.mxu0 0.0
    %7940 = vmatprep.subr.mxu0 0.0
    %7941 = vmatpush1.msra.mxu0 0.0
    %7942 = vmatprep.mubr.f32.mxu0 0.0
    %v7943 = vand.u32 %v1505, 4294901760
    %7944 = vmatmul.mubr.f32.gmra.mrb[0].mxu0 %v7943
    %v7945 = vpop.f32.mrb[0].mxu0
    %v7946 = vadd.f32 %v7836, %v7945
    %v7947 = vpop.f32.mrb[0].mxu0
    %v7948 = vadd.f32 %v7838, %v7947
    %7949 = vmatprep.mubr.f32.mxu0 0.0
    %v7950 = vand.u32 %v1508, 4294901760
    %7951 = vmatmul.mubr.f32.gmra.mrb[0].mxu0 %v7950
    %v7952 = vpop.f32.mrb[0].mxu0
    %v7953 = vadd.f32 %v7843, %v7952
    %v7954 = vpop.f32.mrb[0].mxu0
    %v7955 = vadd.f32 %v7845, %v7954
    %7956 = vmatprep.mubr.f32.mxu0 0.0
    %v7957 = vand.u32 %v1511, 4294901760
    %7958 = vmatmul.mubr.f32.gmra.mrb[0].mxu0 %v7957
    %v7959 = vpop.f32.mrb[0].mxu0
    %v7960 = vadd.f32 %v7850, %v7959
    %v7961 = vpop.f32.mrb[0].mxu0
    %v7962 = vadd.f32 %v7852, %v7961
    %7963 = vmatprep.mubr.f32.mxu0 0.0
    %v7964 = vand.u32 %v1514, 4294901760
    %7965 = vmatmul.mubr.f32.gmra.mrb[0].mxu0 %v7964
    %v7966 = vpop.f32.mrb[0].mxu0
    %v7967 = vadd.f32 %v7857, %v7966
    %v7968 = vpop.f32.mrb[0].mxu0
    %v7969 = vadd.f32 %v7859, %v7968
    %7970 = vmatprep.mubr.f32.mxu0 0.0
    %v7971 = vand.u32 %v1517, 4294901760
    %7972 = vmatmul.mubr.f32.gmra.mrb[0].mxu0 %v7971
    %v7973 = vpop.f32.mrb[0].mxu0
    %v7974 = vadd.f32 %v7864, %v7973
    %v7975 = vpop.f32.mrb[0].mxu0
    %v7976 = vadd.f32 %v7866, %v7975
    %7977 = vdwg.mxu0
    %v7978 = vand.u32 %v7196, 4294901760
    %7979 = vmatprep.subr.mxu0 %v7978
    %v7980 = vand.u32 %v7195, 4294901760
    %7981 = vmatpush1.msra.mxu0 %v7980
    %v7982 = vand.u32 %v7200, 4294901760
    %7983 = vmatprep.subr.mxu0 %v7982
    %v7984 = vand.u32 %v7199, 4294901760
    %7985 = vmatpush1.msra.mxu0 %v7984
    %v7986 = vand.u32 %v7204, 4294901760
    %7987 = vmatprep.subr.mxu0 %v7986
    %v7988 = vand.u32 %v7203, 4294901760
    %7989 = vmatpush1.msra.mxu0 %v7988
    %v7990 = vand.u32 %v7208, 4294901760
    %7991 = vmatprep.subr.mxu0 %v7990
    %v7992 = vand.u32 %v7207, 4294901760
    %7993 = vmatpush1.msra.mxu0 %v7992
    %v7994 = vand.u32 %v7212, 4294901760
    %7995 = vmatprep.subr.mxu0 %v7994
    %v7996 = vand.u32 %v7211, 4294901760
    %7997 = vmatpush1.msra.mxu0 %v7996
    %7998 = vmatprep.subr.mxu0 0.0
    %7999 = vmatpush1.msra.mxu0 0.0
    %8000 = vmatprep.subr.mxu0 0.0
    %8001 = vmatpush1.msra.mxu0 0.0
    %8002 = vmatprep.subr.mxu0 0.0
    %8003 = vmatpush1.msra.mxu0 0.0
    %8004 = vmatprep.subr.mxu0 0.0
    %8005 = vmatpush1.msra.mxu0 0.0
    %8006 = vmatprep.subr.mxu0 0.0
    %8007 = vmatpush1.msra.mxu0 0.0
    %8008 = vmatprep.subr.mxu0 0.0
    %8009 = vmatpush1.msra.mxu0 0.0
    %8010 = vmatprep.subr.mxu0 0.0
    %8011 = vmatpush1.msra.mxu0 0.0
    %8012 = vmatprep.subr.mxu0 0.0
    %8013 = vmatpush1.msra.mxu0 0.0
    %8014 = vmatprep.subr.mxu0 0.0
    %8015 = vmatpush1.msra.mxu0 0.0
    %8016 = vmatprep.subr.mxu0 0.0
    %8017 = vmatpush1.msra.mxu0 0.0
    %8018 = vmatprep.subr.mxu0 0.0
    %8019 = vmatpush1.msra.mxu0 0.0
    %8020 = vmatprep.subr.mxu0 0.0
    %8021 = vmatpush1.msra.mxu0 0.0
    %8022 = vmatprep.subr.mxu0 0.0
    %8023 = vmatpush1.msra.mxu0 0.0
    %8024 = vmatprep.subr.mxu0 0.0
    %8025 = vmatpush1.msra.mxu0 0.0
    %8026 = vmatprep.subr.mxu0 0.0
    %8027 = vmatpush1.msra.mxu0 0.0
    %8028 = vmatprep.subr.mxu0 0.0
    %8029 = vmatpush1.msra.mxu0 0.0
    %8030 = vmatprep.subr.mxu0 0.0
    %8031 = vmatpush1.msra.mxu0 0.0
    %8032 = vmatprep.subr.mxu0 0.0
    %8033 = vmatpush1.msra.mxu0 0.0
    %8034 = vmatprep.subr.mxu0 0.0
    %8035 = vmatpush1.msra.mxu0 0.0
    %8036 = vmatprep.subr.mxu0 0.0
    %8037 = vmatpush1.msra.mxu0 0.0
    %8038 = vmatprep.subr.mxu0 0.0
    %8039 = vmatpush1.msra.mxu0 0.0
    %8040 = vmatprep.subr.mxu0 0.0
    %8041 = vmatpush1.msra.mxu0 0.0
    %8042 = vmatprep.subr.mxu0 0.0
    %8043 = vmatpush1.msra.mxu0 0.0
    %8044 = vmatprep.subr.mxu0 0.0
    %8045 = vmatpush1.msra.mxu0 0.0
    %8046 = vmatprep.subr.mxu0 0.0
    %8047 = vmatpush1.msra.mxu0 0.0
    %8048 = vmatprep.subr.mxu0 0.0
    %8049 = vmatpush1.msra.mxu0 0.0
    %8050 = vmatprep.subr.mxu0 0.0
    %8051 = vmatpush1.msra.mxu0 0.0
    %8052 = vmatprep.mubr.f32.mxu0 0.0
    %v8053 = vand.u32 %v1505, 4294901760
    %v8054 = vsub.f32 %v1505, %v8053
    %v8055 = vand.u32 %v8054, 4294901760
    %v8056 = vsub.f32 %v8054, %v8055
    %v8057 = vand.u32 %v8056, 4294901760
    %8058 = vmatmul.mubr.f32.gmra.mrb[0].mxu0 %v8057
    %v8059 = vpop.f32.mrb[0].mxu0
    %v8060 = vadd.f32 %v1481, %v8059
    %v8061 = vpop.f32.mrb[0].mxu0
    %v8062 = vadd.f32 %v1481, %v8061
    %8063 = vmatprep.mubr.f32.mxu0 0.0
    %v8064 = vand.u32 %v1508, 4294901760
    %v8065 = vsub.f32 %v1508, %v8064
    %v8066 = vand.u32 %v8065, 4294901760
    %v8067 = vsub.f32 %v8065, %v8066
    %v8068 = vand.u32 %v8067, 4294901760
    %8069 = vmatmul.mubr.f32.gmra.mrb[0].mxu0 %v8068
    %v8070 = vpop.f32.mrb[0].mxu0
    %v8071 = vadd.f32 %v1486, %v8070
    %v8072 = vpop.f32.mrb[0].mxu0
    %v8073 = vadd.f32 %v1486, %v8072
    %8074 = vmatprep.mubr.f32.mxu0 0.0
    %v8075 = vand.u32 %v1511, 4294901760
    %v8076 = vsub.f32 %v1511, %v8075
    %v8077 = vand.u32 %v8076, 4294901760
    %v8078 = vsub.f32 %v8076, %v8077
    %v8079 = vand.u32 %v8078, 4294901760
    %8080 = vmatmul.mubr.f32.gmra.mrb[0].mxu0 %v8079
    %v8081 = vpop.f32.mrb[0].mxu0
    %v8082 = vadd.f32 %v1491, %v8081
    %v8083 = vpop.f32.mrb[0].mxu0
    %v8084 = vadd.f32 %v1491, %v8083
    %8085 = vmatprep.mubr.f32.mxu0 0.0
    %v8086 = vand.u32 %v1514, 4294901760
    %v8087 = vsub.f32 %v1514, %v8086
    %v8088 = vand.u32 %v8087, 4294901760
    %v8089 = vsub.f32 %v8087, %v8088
    %v8090 = vand.u32 %v8089, 4294901760
    %8091 = vmatmul.mubr.f32.gmra.mrb[0].mxu0 %v8090
    %v8092 = vpop.f32.mrb[0].mxu0
    %v8093 = vadd.f32 %v1496, %v8092
    %v8094 = vpop.f32.mrb[0].mxu0
    %v8095 = vadd.f32 %v1496, %v8094
    %8096 = vmatprep.mubr.f32.mxu0 0.0
    %v8097 = vand.u32 %v1517, 4294901760
    %v8098 = vsub.f32 %v1517, %v8097
    %v8099 = vand.u32 %v8098, 4294901760
    %v8100 = vsub.f32 %v8098, %v8099
    %v8101 = vand.u32 %v8100, 4294901760
    %8102 = vmatmul.mubr.f32.gmra.mrb[0].mxu0 %v8101
    %v8103 = vpop.f32.mrb[0].mxu0
    %v8104 = vadd.f32 %v1501, %v8103
    %v8105 = vpop.f32.mrb[0].mxu0
    %v8106 = vadd.f32 %v1501, %v8105
    %8107 = vdwg.mxu0
    %v8108 = vand.u32 %v7196, 4294901760
    %v8109 = vsub.f32 %v7196, %v8108
    %v8110 = vand.u32 %v8109, 4294901760
    %v8111 = vsub.f32 %v8109, %v8110
    %v8112 = vand.u32 %v8111, 4294901760
    %8113 = vmatprep.subr.mxu0 %v8112
    %v8114 = vand.u32 %v7195, 4294901760
    %v8115 = vsub.f32 %v7195, %v8114
    %v8116 = vand.u32 %v8115, 4294901760
    %v8117 = vsub.f32 %v8115, %v8116
    %v8118 = vand.u32 %v8117, 4294901760
    %8119 = vmatpush1.msra.mxu0 %v8118
    %v8120 = vand.u32 %v7200, 4294901760
    %v8121 = vsub.f32 %v7200, %v8120
    %v8122 = vand.u32 %v8121, 4294901760
    %v8123 = vsub.f32 %v8121, %v8122
    %v8124 = vand.u32 %v8123, 4294901760
    %8125 = vmatprep.subr.mxu0 %v8124
    %v8126 = vand.u32 %v7199, 4294901760
    %v8127 = vsub.f32 %v7199, %v8126
    %v8128 = vand.u32 %v8127, 4294901760
    %v8129 = vsub.f32 %v8127, %v8128
    %v8130 = vand.u32 %v8129, 4294901760
    %8131 = vmatpush1.msra.mxu0 %v8130
    %v8132 = vand.u32 %v7204, 4294901760
    %v8133 = vsub.f32 %v7204, %v8132
    %v8134 = vand.u32 %v8133, 4294901760
    %v8135 = vsub.f32 %v8133, %v8134
    %v8136 = vand.u32 %v8135, 4294901760
    %8137 = vmatprep.subr.mxu0 %v8136
    %v8138 = vand.u32 %v7203, 4294901760
    %v8139 = vsub.f32 %v7203, %v8138
    %v8140 = vand.u32 %v8139, 4294901760
    %v8141 = vsub.f32 %v8139, %v8140
    %v8142 = vand.u32 %v8141, 4294901760
    %8143 = vmatpush1.msra.mxu0 %v8142
    %v8144 = vand.u32 %v7208, 4294901760
    %v8145 = vsub.f32 %v7208, %v8144
    %v8146 = vand.u32 %v8145, 4294901760
    %v8147 = vsub.f32 %v8145, %v8146
    %v8148 = vand.u32 %v8147, 4294901760
    %8149 = vmatprep.subr.mxu0 %v8148
    %v8150 = vand.u32 %v7207, 4294901760
    %v8151 = vsub.f32 %v7207, %v8150
    %v8152 = vand.u32 %v8151, 4294901760
    %v8153 = vsub.f32 %v8151, %v8152
    %v8154 = vand.u32 %v8153, 4294901760
    %8155 = vmatpush1.msra.mxu0 %v8154
    %v8156 = vand.u32 %v7212, 4294901760
    %v8157 = vsub.f32 %v7212, %v8156
    %v8158 = vand.u32 %v8157, 4294901760
    %v8159 = vsub.f32 %v8157, %v8158
    %v8160 = vand.u32 %v8159, 4294901760
    %8161 = vmatprep.subr.mxu0 %v8160
    %v8162 = vand.u32 %v7211, 4294901760
    %v8163 = vsub.f32 %v7211, %v8162
    %v8164 = vand.u32 %v8163, 4294901760
    %v8165 = vsub.f32 %v8163, %v8164
    %v8166 = vand.u32 %v8165, 4294901760
    %8167 = vmatpush1.msra.mxu0 %v8166
    %8168 = vmatprep.subr.mxu0 0.0
    %8169 = vmatpush1.msra.mxu0 0.0
    %8170 = vmatprep.subr.mxu0 0.0
    %8171 = vmatpush1.msra.mxu0 0.0
    %8172 = vmatprep.subr.mxu0 0.0
    %8173 = vmatpush1.msra.mxu0 0.0
    %8174 = vmatprep.subr.mxu0 0.0
    %8175 = vmatpush1.msra.mxu0 0.0
    %8176 = vmatprep.subr.mxu0 0.0
    %8177 = vmatpush1.msra.mxu0 0.0
    %8178 = vmatprep.subr.mxu0 0.0
    %8179 = vmatpush1.msra.mxu0 0.0
    %8180 = vmatprep.subr.mxu0 0.0
    %8181 = vmatpush1.msra.mxu0 0.0
    %8182 = vmatprep.subr.mxu0 0.0
    %8183 = vmatpush1.msra.mxu0 0.0
    %8184 = vmatprep.subr.mxu0 0.0
    %8185 = vmatpush1.msra.mxu0 0.0
    %8186 = vmatprep.subr.mxu0 0.0
    %8187 = vmatpush1.msra.mxu0 0.0
    %8188 = vmatprep.subr.mxu0 0.0
    %8189 = vmatpush1.msra.mxu0 0.0
    %8190 = vmatprep.subr.mxu0 0.0
    %8191 = vmatpush1.msra.mxu0 0.0
    %8192 = vmatprep.subr.mxu0 0.0
    %8193 = vmatpush1.msra.mxu0 0.0
    %8194 = vmatprep.subr.mxu0 0.0
    %8195 = vmatpush1.msra.mxu0 0.0
    %8196 = vmatprep.subr.mxu0 0.0
    %8197 = vmatpush1.msra.mxu0 0.0
    %8198 = vmatprep.subr.mxu0 0.0
    %8199 = vmatpush1.msra.mxu0 0.0
    %8200 = vmatprep.subr.mxu0 0.0
    %8201 = vmatpush1.msra.mxu0 0.0
    %8202 = vmatprep.subr.mxu0 0.0
    %8203 = vmatpush1.msra.mxu0 0.0
    %8204 = vmatprep.subr.mxu0 0.0
    %8205 = vmatpush1.msra.mxu0 0.0
    %8206 = vmatprep.subr.mxu0 0.0
    %8207 = vmatpush1.msra.mxu0 0.0
    %8208 = vmatprep.subr.mxu0 0.0
    %8209 = vmatpush1.msra.mxu0 0.0
    %8210 = vmatprep.subr.mxu0 0.0
    %8211 = vmatpush1.msra.mxu0 0.0
    %8212 = vmatprep.subr.mxu0 0.0
    %8213 = vmatpush1.msra.mxu0 0.0
    %8214 = vmatprep.subr.mxu0 0.0
    %8215 = vmatpush1.msra.mxu0 0.0
    %8216 = vmatprep.subr.mxu0 0.0
    %8217 = vmatpush1.msra.mxu0 0.0
    %8218 = vmatprep.subr.mxu0 0.0
    %8219 = vmatpush1.msra.mxu0 0.0
    %8220 = vmatprep.subr.mxu0 0.0
    %8221 = vmatpush1.msra.mxu0 0.0
    %8222 = vmatprep.mubr.f32.mxu0 0.0
    %v8223 = vand.u32 %v1505, 4294901760
    %8224 = vmatmul.mubr.f32.gmra.mrb[0].mxu0 %v8223
    %v8225 = vpop.f32.mrb[0].mxu0
    %v8226 = vadd.f32 %v8060, %v8225
    %v8227 = vpop.f32.mrb[0].mxu0
    %v8228 = vadd.f32 %v8062, %v8227
    %8229 = vmatprep.mubr.f32.mxu0 0.0
    %v8230 = vand.u32 %v1508, 4294901760
    %8231 = vmatmul.mubr.f32.gmra.mrb[0].mxu0 %v8230
    %v8232 = vpop.f32.mrb[0].mxu0
    %v8233 = vadd.f32 %v8071, %v8232
    %v8234 = vpop.f32.mrb[0].mxu0
    %v8235 = vadd.f32 %v8073, %v8234
    %8236 = vmatprep.mubr.f32.mxu0 0.0
    %v8237 = vand.u32 %v1511, 4294901760
    %8238 = vmatmul.mubr.f32.gmra.mrb[0].mxu0 %v8237
    %v8239 = vpop.f32.mrb[0].mxu0
    %v8240 = vadd.f32 %v8082, %v8239
    %v8241 = vpop.f32.mrb[0].mxu0
    %v8242 = vadd.f32 %v8084, %v8241
    %8243 = vmatprep.mubr.f32.mxu0 0.0
    %v8244 = vand.u32 %v1514, 4294901760
    %8245 = vmatmul.mubr.f32.gmra.mrb[0].mxu0 %v8244
    %v8246 = vpop.f32.mrb[0].mxu0
    %v8247 = vadd.f32 %v8093, %v8246
    %v8248 = vpop.f32.mrb[0].mxu0
    %v8249 = vadd.f32 %v8095, %v8248
    %8250 = vmatprep.mubr.f32.mxu0 0.0
    %v8251 = vand.u32 %v1517, 4294901760
    %8252 = vmatmul.mubr.f32.gmra.mrb[0].mxu0 %v8251
    %v8253 = vpop.f32.mrb[0].mxu0
    %v8254 = vadd.f32 %v8104, %v8253
    %v8255 = vpop.f32.mrb[0].mxu0
    %v8256 = vadd.f32 %v8106, %v8255
    %8257 = vdwg.mxu0
    %v8258 = vand.u32 %v7196, 4294901760
    %v8259 = vsub.f32 %v7196, %v8258
    %8260 = vmatprep.subr.mxu0 %v8259
    %v8261 = vand.u32 %v7195, 4294901760
    %v8262 = vsub.f32 %v7195, %v8261
    %8263 = vmatpush1.msra.mxu0 %v8262
    %v8264 = vand.u32 %v7200, 4294901760
    %v8265 = vsub.f32 %v7200, %v8264
    %8266 = vmatprep.subr.mxu0 %v8265
    %v8267 = vand.u32 %v7199, 4294901760
    %v8268 = vsub.f32 %v7199, %v8267
    %8269 = vmatpush1.msra.mxu0 %v8268
    %v8270 = vand.u32 %v7204, 4294901760
    %v8271 = vsub.f32 %v7204, %v8270
    %8272 = vmatprep.subr.mxu0 %v8271
    %v8273 = vand.u32 %v7203, 4294901760
    %v8274 = vsub.f32 %v7203, %v8273
    %8275 = vmatpush1.msra.mxu0 %v8274
    %v8276 = vand.u32 %v7208, 4294901760
    %v8277 = vsub.f32 %v7208, %v8276
    %8278 = vmatprep.subr.mxu0 %v8277
    %v8279 = vand.u32 %v7207, 4294901760
    %v8280 = vsub.f32 %v7207, %v8279
    %8281 = vmatpush1.msra.mxu0 %v8280
    %v8282 = vand.u32 %v7212, 4294901760
    %v8283 = vsub.f32 %v7212, %v8282
    %8284 = vmatprep.subr.mxu0 %v8283
    %v8285 = vand.u32 %v7211, 4294901760
    %v8286 = vsub.f32 %v7211, %v8285
    %8287 = vmatpush1.msra.mxu0 %v8286
    %8288 = vmatprep.subr.mxu0 0.0
    %8289 = vmatpush1.msra.mxu0 0.0
    %8290 = vmatprep.subr.mxu0 0.0
    %8291 = vmatpush1.msra.mxu0 0.0
    %8292 = vmatprep.subr.mxu0 0.0
    %8293 = vmatpush1.msra.mxu0 0.0
    %8294 = vmatprep.subr.mxu0 0.0
    %8295 = vmatpush1.msra.mxu0 0.0
    %8296 = vmatprep.subr.mxu0 0.0
    %8297 = vmatpush1.msra.mxu0 0.0
    %8298 = vmatprep.subr.mxu0 0.0
    %8299 = vmatpush1.msra.mxu0 0.0
    %8300 = vmatprep.subr.mxu0 0.0
    %8301 = vmatpush1.msra.mxu0 0.0
    %8302 = vmatprep.subr.mxu0 0.0
    %8303 = vmatpush1.msra.mxu0 0.0
    %8304 = vmatprep.subr.mxu0 0.0
    %8305 = vmatpush1.msra.mxu0 0.0
    %8306 = vmatprep.subr.mxu0 0.0
    %8307 = vmatpush1.msra.mxu0 0.0
    %8308 = vmatprep.subr.mxu0 0.0
    %8309 = vmatpush1.msra.mxu0 0.0
    %8310 = vmatprep.subr.mxu0 0.0
    %8311 = vmatpush1.msra.mxu0 0.0
    %8312 = vmatprep.subr.mxu0 0.0
    %8313 = vmatpush1.msra.mxu0 0.0
    %8314 = vmatprep.subr.mxu0 0.0
    %8315 = vmatpush1.msra.mxu0 0.0
    %8316 = vmatprep.subr.mxu0 0.0
    %8317 = vmatpush1.msra.mxu0 0.0
    %8318 = vmatprep.subr.mxu0 0.0
    %8319 = vmatpush1.msra.mxu0 0.0
    %8320 = vmatprep.subr.mxu0 0.0
    %8321 = vmatpush1.msra.mxu0 0.0
    %8322 = vmatprep.subr.mxu0 0.0
    %8323 = vmatpush1.msra.mxu0 0.0
    %8324 = vmatprep.subr.mxu0 0.0
    %8325 = vmatpush1.msra.mxu0 0.0
    %8326 = vmatprep.subr.mxu0 0.0
    %8327 = vmatpush1.msra.mxu0 0.0
    %8328 = vmatprep.subr.mxu0 0.0
    %8329 = vmatpush1.msra.mxu0 0.0
    %8330 = vmatprep.subr.mxu0 0.0
    %8331 = vmatpush1.msra.mxu0 0.0
    %8332 = vmatprep.subr.mxu0 0.0
    %8333 = vmatpush1.msra.mxu0 0.0
    %8334 = vmatprep.subr.mxu0 0.0
    %8335 = vmatpush1.msra.mxu0 0.0
    %8336 = vmatprep.subr.mxu0 0.0
    %8337 = vmatpush1.msra.mxu0 0.0
    %8338 = vmatprep.subr.mxu0 0.0
    %8339 = vmatpush1.msra.mxu0 0.0
    %8340 = vmatprep.subr.mxu0 0.0
    %8341 = vmatpush1.msra.mxu0 0.0
    %8342 = vmatprep.mubr.f32.mxu0 0.0
    %v8343 = vand.u32 %v1505, 4294901760
    %v8344 = vsub.f32 %v1505, %v8343
    %8345 = vmatmul.mubr.f32.gmra.mrb[0].mxu0 %v8344
    %v8346 = vpop.f32.mrb[0].mxu0
    %v8347 = vadd.f32 %v8226, %v8346
    %v8348 = vpop.f32.mrb[0].mxu0
    %v8349 = vadd.f32 %v8228, %v8348
    %8350 = vmatprep.mubr.f32.mxu0 0.0
    %v8351 = vand.u32 %v1508, 4294901760
    %v8352 = vsub.f32 %v1508, %v8351
    %8353 = vmatmul.mubr.f32.gmra.mrb[0].mxu0 %v8352
    %v8354 = vpop.f32.mrb[0].mxu0
    %v8355 = vadd.f32 %v8233, %v8354
    %v8356 = vpop.f32.mrb[0].mxu0
    %v8357 = vadd.f32 %v8235, %v8356
    %8358 = vmatprep.mubr.f32.mxu0 0.0
    %v8359 = vand.u32 %v1511, 4294901760
    %v8360 = vsub.f32 %v1511, %v8359
    %8361 = vmatmul.mubr.f32.gmra.mrb[0].mxu0 %v8360
    %v8362 = vpop.f32.mrb[0].mxu0
    %v8363 = vadd.f32 %v8240, %v8362
    %v8364 = vpop.f32.mrb[0].mxu0
    %v8365 = vadd.f32 %v8242, %v8364
    %8366 = vmatprep.mubr.f32.mxu0 0.0
    %v8367 = vand.u32 %v1514, 4294901760
    %v8368 = vsub.f32 %v1514, %v8367
    %8369 = vmatmul.mubr.f32.gmra.mrb[0].mxu0 %v8368
    %v8370 = vpop.f32.mrb[0].mxu0
    %v8371 = vadd.f32 %v8247, %v8370
    %v8372 = vpop.f32.mrb[0].mxu0
    %v8373 = vadd.f32 %v8249, %v8372
    %8374 = vmatprep.mubr.f32.mxu0 0.0
    %v8375 = vand.u32 %v1517, 4294901760
    %v8376 = vsub.f32 %v1517, %v8375
    %8377 = vmatmul.mubr.f32.gmra.mrb[0].mxu0 %v8376
    %v8378 = vpop.f32.mrb[0].mxu0
    %v8379 = vadd.f32 %v8254, %v8378
    %v8380 = vpop.f32.mrb[0].mxu0
    %v8381 = vadd.f32 %v8256, %v8380
    %8382 = vdwg.mxu0
    %v8383 = vand.u32 %v7196, 4294901760
    %8384 = vmatprep.subr.mxu0 %v8383
    %v8385 = vand.u32 %v7195, 4294901760
    %8386 = vmatpush1.msra.mxu0 %v8385
    %v8387 = vand.u32 %v7200, 4294901760
    %8388 = vmatprep.subr.mxu0 %v8387
    %v8389 = vand.u32 %v7199, 4294901760
    %8390 = vmatpush1.msra.mxu0 %v8389
    %v8391 = vand.u32 %v7204, 4294901760
    %8392 = vmatprep.subr.mxu0 %v8391
    %v8393 = vand.u32 %v7203, 4294901760
    %8394 = vmatpush1.msra.mxu0 %v8393
    %v8395 = vand.u32 %v7208, 4294901760
    %8396 = vmatprep.subr.mxu0 %v8395
    %v8397 = vand.u32 %v7207, 4294901760
    %8398 = vmatpush1.msra.mxu0 %v8397
    %v8399 = vand.u32 %v7212, 4294901760
    %8400 = vmatprep.subr.mxu0 %v8399
    %v8401 = vand.u32 %v7211, 4294901760
    %8402 = vmatpush1.msra.mxu0 %v8401
    %8403 = vmatprep.subr.mxu0 0.0
    %8404 = vmatpush1.msra.mxu0 0.0
    %8405 = vmatprep.subr.mxu0 0.0
    %8406 = vmatpush1.msra.mxu0 0.0
    %8407 = vmatprep.subr.mxu0 0.0
    %8408 = vmatpush1.msra.mxu0 0.0
    %8409 = vmatprep.subr.mxu0 0.0
    %8410 = vmatpush1.msra.mxu0 0.0
    %8411 = vmatprep.subr.mxu0 0.0
    %8412 = vmatpush1.msra.mxu0 0.0
    %8413 = vmatprep.subr.mxu0 0.0
    %8414 = vmatpush1.msra.mxu0 0.0
    %8415 = vmatprep.subr.mxu0 0.0
    %8416 = vmatpush1.msra.mxu0 0.0
    %8417 = vmatprep.subr.mxu0 0.0
    %8418 = vmatpush1.msra.mxu0 0.0
    %8419 = vmatprep.subr.mxu0 0.0
    %8420 = vmatpush1.msra.mxu0 0.0
    %8421 = vmatprep.subr.mxu0 0.0
    %8422 = vmatpush1.msra.mxu0 0.0
    %8423 = vmatprep.subr.mxu0 0.0
    %8424 = vmatpush1.msra.mxu0 0.0
    %8425 = vmatprep.subr.mxu0 0.0
    %8426 = vmatpush1.msra.mxu0 0.0
    %8427 = vmatprep.subr.mxu0 0.0
    %8428 = vmatpush1.msra.mxu0 0.0
    %8429 = vmatprep.subr.mxu0 0.0
    %8430 = vmatpush1.msra.mxu0 0.0
    %8431 = vmatprep.subr.mxu0 0.0
    %8432 = vmatpush1.msra.mxu0 0.0
    %8433 = vmatprep.subr.mxu0 0.0
    %8434 = vmatpush1.msra.mxu0 0.0
    %8435 = vmatprep.subr.mxu0 0.0
    %8436 = vmatpush1.msra.mxu0 0.0
    %8437 = vmatprep.subr.mxu0 0.0
    %8438 = vmatpush1.msra.mxu0 0.0
    %8439 = vmatprep.subr.mxu0 0.0
    %8440 = vmatpush1.msra.mxu0 0.0
    %8441 = vmatprep.subr.mxu0 0.0
    %8442 = vmatpush1.msra.mxu0 0.0
    %8443 = vmatprep.subr.mxu0 0.0
    %8444 = vmatpush1.msra.mxu0 0.0
    %8445 = vmatprep.subr.mxu0 0.0
    %8446 = vmatpush1.msra.mxu0 0.0
    %8447 = vmatprep.subr.mxu0 0.0
    %8448 = vmatpush1.msra.mxu0 0.0
    %8449 = vmatprep.subr.mxu0 0.0
    %8450 = vmatpush1.msra.mxu0 0.0
    %8451 = vmatprep.subr.mxu0 0.0
    %8452 = vmatpush1.msra.mxu0 0.0
    %8453 = vmatprep.subr.mxu0 0.0
    %8454 = vmatpush1.msra.mxu0 0.0
    %8455 = vmatprep.subr.mxu0 0.0
    %8456 = vmatpush1.msra.mxu0 0.0
    %8457 = vmatprep.mubr.f32.mxu0 0.0
    %v8458 = vand.u32 %v1505, 4294901760
    %v8459 = vsub.f32 %v1505, %v8458
    %v8460 = vand.u32 %v8459, 4294901760
    %8461 = vmatmul.mubr.f32.gmra.mrb[0].mxu0 %v8460
    %v8462 = vpop.f32.mrb[0].mxu0
    %v8463 = vadd.f32 %v8347, %v8462
    %v8464 = vpop.f32.mrb[0].mxu0
    %v8465 = vadd.f32 %v8349, %v8464
    %8466 = vmatprep.mubr.f32.mxu0 0.0
    %v8467 = vand.u32 %v1508, 4294901760
    %v8468 = vsub.f32 %v1508, %v8467
    %v8469 = vand.u32 %v8468, 4294901760
    %8470 = vmatmul.mubr.f32.gmra.mrb[0].mxu0 %v8469
    %v8471 = vpop.f32.mrb[0].mxu0
    %v8472 = vadd.f32 %v8355, %v8471
    %v8473 = vpop.f32.mrb[0].mxu0
    %v8474 = vadd.f32 %v8357, %v8473
    %8475 = vmatprep.mubr.f32.mxu0 0.0
    %v8476 = vand.u32 %v1511, 4294901760
    %v8477 = vsub.f32 %v1511, %v8476
    %v8478 = vand.u32 %v8477, 4294901760
    %8479 = vmatmul.mubr.f32.gmra.mrb[0].mxu0 %v8478
    %v8480 = vpop.f32.mrb[0].mxu0
    %v8481 = vadd.f32 %v8363, %v8480
    %v8482 = vpop.f32.mrb[0].mxu0
    %v8483 = vadd.f32 %v8365, %v8482
    %8484 = vmatprep.mubr.f32.mxu0 0.0
    %v8485 = vand.u32 %v1514, 4294901760
    %v8486 = vsub.f32 %v1514, %v8485
    %v8487 = vand.u32 %v8486, 4294901760
    %8488 = vmatmul.mubr.f32.gmra.mrb[0].mxu0 %v8487
    %v8489 = vpop.f32.mrb[0].mxu0
    %v8490 = vadd.f32 %v8371, %v8489
    %v8491 = vpop.f32.mrb[0].mxu0
    %v8492 = vadd.f32 %v8373, %v8491
    %8493 = vmatprep.mubr.f32.mxu0 0.0
    %v8494 = vand.u32 %v1517, 4294901760
    %v8495 = vsub.f32 %v1517, %v8494
    %v8496 = vand.u32 %v8495, 4294901760
    %8497 = vmatmul.mubr.f32.gmra.mrb[0].mxu0 %v8496
    %v8498 = vpop.f32.mrb[0].mxu0
    %v8499 = vadd.f32 %v8379, %v8498
    %v8500 = vpop.f32.mrb[0].mxu0
    %v8501 = vadd.f32 %v8381, %v8500
    %8502 = vdwg.mxu0
    %v8503 = vand.u32 %v7196, 4294901760
    %v8504 = vsub.f32 %v7196, %v8503
    %v8505 = vand.u32 %v8504, 4294901760
    %8506 = vmatprep.subr.mxu0 %v8505
    %v8507 = vand.u32 %v7195, 4294901760
    %v8508 = vsub.f32 %v7195, %v8507
    %v8509 = vand.u32 %v8508, 4294901760
    %8510 = vmatpush1.msra.mxu0 %v8509
    %v8511 = vand.u32 %v7200, 4294901760
    %v8512 = vsub.f32 %v7200, %v8511
    %v8513 = vand.u32 %v8512, 4294901760
    %8514 = vmatprep.subr.mxu0 %v8513
    %v8515 = vand.u32 %v7199, 4294901760
    %v8516 = vsub.f32 %v7199, %v8515
    %v8517 = vand.u32 %v8516, 4294901760
    %8518 = vmatpush1.msra.mxu0 %v8517
    %v8519 = vand.u32 %v7204, 4294901760
    %v8520 = vsub.f32 %v7204, %v8519
    %v8521 = vand.u32 %v8520, 4294901760
    %8522 = vmatprep.subr.mxu0 %v8521
    %v8523 = vand.u32 %v7203, 4294901760
    %v8524 = vsub.f32 %v7203, %v8523
    %v8525 = vand.u32 %v8524, 4294901760
    %8526 = vmatpush1.msra.mxu0 %v8525
    %v8527 = vand.u32 %v7208, 4294901760
    %v8528 = vsub.f32 %v7208, %v8527
    %v8529 = vand.u32 %v8528, 4294901760
    %8530 = vmatprep.subr.mxu0 %v8529
    %v8531 = vand.u32 %v7207, 4294901760
    %v8532 = vsub.f32 %v7207, %v8531
    %v8533 = vand.u32 %v8532, 4294901760
    %8534 = vmatpush1.msra.mxu0 %v8533
    %v8535 = vand.u32 %v7212, 4294901760
    %v8536 = vsub.f32 %v7212, %v8535
    %v8537 = vand.u32 %v8536, 4294901760
    %8538 = vmatprep.subr.mxu0 %v8537
    %v8539 = vand.u32 %v7211, 4294901760
    %v8540 = vsub.f32 %v7211, %v8539
    %v8541 = vand.u32 %v8540, 4294901760
    %8542 = vmatpush1.msra.mxu0 %v8541
    %8543 = vmatprep.subr.mxu0 0.0
    %8544 = vmatpush1.msra.mxu0 0.0
    %8545 = vmatprep.subr.mxu0 0.0
    %8546 = vmatpush1.msra.mxu0 0.0
    %8547 = vmatprep.subr.mxu0 0.0
    %8548 = vmatpush1.msra.mxu0 0.0
    %8549 = vmatprep.subr.mxu0 0.0
    %8550 = vmatpush1.msra.mxu0 0.0
    %8551 = vmatprep.subr.mxu0 0.0
    %8552 = vmatpush1.msra.mxu0 0.0
    %8553 = vmatprep.subr.mxu0 0.0
    %8554 = vmatpush1.msra.mxu0 0.0
    %8555 = vmatprep.subr.mxu0 0.0
    %8556 = vmatpush1.msra.mxu0 0.0
    %8557 = vmatprep.subr.mxu0 0.0
    %8558 = vmatpush1.msra.mxu0 0.0
    %8559 = vmatprep.subr.mxu0 0.0
    %8560 = vmatpush1.msra.mxu0 0.0
    %8561 = vmatprep.subr.mxu0 0.0
    %8562 = vmatpush1.msra.mxu0 0.0
    %8563 = vmatprep.subr.mxu0 0.0
    %8564 = vmatpush1.msra.mxu0 0.0
    %8565 = vmatprep.subr.mxu0 0.0
    %8566 = vmatpush1.msra.mxu0 0.0
    %8567 = vmatprep.subr.mxu0 0.0
    %8568 = vmatpush1.msra.mxu0 0.0
    %8569 = vmatprep.subr.mxu0 0.0
    %8570 = vmatpush1.msra.mxu0 0.0
    %8571 = vmatprep.subr.mxu0 0.0
    %8572 = vmatpush1.msra.mxu0 0.0
    %8573 = vmatprep.subr.mxu0 0.0
    %8574 = vmatpush1.msra.mxu0 0.0
    %8575 = vmatprep.subr.mxu0 0.0
    %8576 = vmatpush1.msra.mxu0 0.0
    %8577 = vmatprep.subr.mxu0 0.0
    %8578 = vmatpush1.msra.mxu0 0.0
    %8579 = vmatprep.subr.mxu0 0.0
    %8580 = vmatpush1.msra.mxu0 0.0
    %8581 = vmatprep.subr.mxu0 0.0
    %8582 = vmatpush1.msra.mxu0 0.0
    %8583 = vmatprep.subr.mxu0 0.0
    %8584 = vmatpush1.msra.mxu0 0.0
    %8585 = vmatprep.subr.mxu0 0.0
    %8586 = vmatpush1.msra.mxu0 0.0
    %8587 = vmatprep.subr.mxu0 0.0
    %8588 = vmatpush1.msra.mxu0 0.0
    %8589 = vmatprep.subr.mxu0 0.0
    %8590 = vmatpush1.msra.mxu0 0.0
    %8591 = vmatprep.subr.mxu0 0.0
    %8592 = vmatpush1.msra.mxu0 0.0
    %8593 = vmatprep.subr.mxu0 0.0
    %8594 = vmatpush1.msra.mxu0 0.0
    %8595 = vmatprep.subr.mxu0 0.0
    %8596 = vmatpush1.msra.mxu0 0.0
    %8597 = vmatprep.mubr.f32.mxu0 0.0
    %v8598 = vand.u32 %v1505, 4294901760
    %8599 = vmatmul.mubr.f32.gmra.mrb[0].mxu0 %v8598
    %v8600 = vpop.f32.mrb[0].mxu0
    %v8601 = vadd.f32 %v8463, %v8600
    %v8602 = vpop.f32.mrb[0].mxu0
    %v8603 = vadd.f32 %v8465, %v8602
    %8604 = vmatprep.mubr.f32.mxu0 0.0
    %v8605 = vand.u32 %v1508, 4294901760
    %8606 = vmatmul.mubr.f32.gmra.mrb[0].mxu0 %v8605
    %v8607 = vpop.f32.mrb[0].mxu0
    %v8608 = vadd.f32 %v8472, %v8607
    %v8609 = vpop.f32.mrb[0].mxu0
    %v8610 = vadd.f32 %v8474, %v8609
    %8611 = vmatprep.mubr.f32.mxu0 0.0
    %v8612 = vand.u32 %v1511, 4294901760
    %8613 = vmatmul.mubr.f32.gmra.mrb[0].mxu0 %v8612
    %v8614 = vpop.f32.mrb[0].mxu0
    %v8615 = vadd.f32 %v8481, %v8614
    %v8616 = vpop.f32.mrb[0].mxu0
    %v8617 = vadd.f32 %v8483, %v8616
    %8618 = vmatprep.mubr.f32.mxu0 0.0
    %v8619 = vand.u32 %v1514, 4294901760
    %8620 = vmatmul.mubr.f32.gmra.mrb[0].mxu0 %v8619
    %v8621 = vpop.f32.mrb[0].mxu0
    %v8622 = vadd.f32 %v8490, %v8621
    %v8623 = vpop.f32.mrb[0].mxu0
    %v8624 = vadd.f32 %v8492, %v8623
    %8625 = vmatprep.mubr.f32.mxu0 0.0
    %v8626 = vand.u32 %v1517, 4294901760
    %8627 = vmatmul.mubr.f32.gmra.mrb[0].mxu0 %v8626
    %v8628 = vpop.f32.mrb[0].mxu0
    %v8629 = vadd.f32 %v8499, %v8628
    %v8630 = vpop.f32.mrb[0].mxu0
    %v8631 = vadd.f32 %v8501, %v8630
    %8632 = vdwg.mxu0
    %v8633 = vand.u32 %v7196, 4294901760
    %8634 = vmatprep.subr.mxu0 %v8633
    %v8635 = vand.u32 %v7195, 4294901760
    %8636 = vmatpush1.msra.mxu0 %v8635
    %v8637 = vand.u32 %v7200, 4294901760
    %8638 = vmatprep.subr.mxu0 %v8637
    %v8639 = vand.u32 %v7199, 4294901760
    %8640 = vmatpush1.msra.mxu0 %v8639
    %v8641 = vand.u32 %v7204, 4294901760
    %8642 = vmatprep.subr.mxu0 %v8641
    %v8643 = vand.u32 %v7203, 4294901760
    %8644 = vmatpush1.msra.mxu0 %v8643
    %v8645 = vand.u32 %v7208, 4294901760
    %8646 = vmatprep.subr.mxu0 %v8645
    %v8647 = vand.u32 %v7207, 4294901760
    %8648 = vmatpush1.msra.mxu0 %v8647
    %v8649 = vand.u32 %v7212, 4294901760
    %8650 = vmatprep.subr.mxu0 %v8649
    %v8651 = vand.u32 %v7211, 4294901760
    %8652 = vmatpush1.msra.mxu0 %v8651
    %8653 = vmatprep.subr.mxu0 0.0
    %8654 = vmatpush1.msra.mxu0 0.0
    %8655 = vmatprep.subr.mxu0 0.0
    %8656 = vmatpush1.msra.mxu0 0.0
    %8657 = vmatprep.subr.mxu0 0.0
    %8658 = vmatpush1.msra.mxu0 0.0
    %8659 = vmatprep.subr.mxu0 0.0
    %8660 = vmatpush1.msra.mxu0 0.0
    %8661 = vmatprep.subr.mxu0 0.0
    %8662 = vmatpush1.msra.mxu0 0.0
    %8663 = vmatprep.subr.mxu0 0.0
    %8664 = vmatpush1.msra.mxu0 0.0
    %8665 = vmatprep.subr.mxu0 0.0
    %8666 = vmatpush1.msra.mxu0 0.0
    %8667 = vmatprep.subr.mxu0 0.0
    %8668 = vmatpush1.msra.mxu0 0.0
    %8669 = vmatprep.subr.mxu0 0.0
    %8670 = vmatpush1.msra.mxu0 0.0
    %8671 = vmatprep.subr.mxu0 0.0
    %8672 = vmatpush1.msra.mxu0 0.0
    %8673 = vmatprep.subr.mxu0 0.0
    %8674 = vmatpush1.msra.mxu0 0.0
    %8675 = vmatprep.subr.mxu0 0.0
    %8676 = vmatpush1.msra.mxu0 0.0
    %8677 = vmatprep.subr.mxu0 0.0
    %8678 = vmatpush1.msra.mxu0 0.0
    %8679 = vmatprep.subr.mxu0 0.0
    %8680 = vmatpush1.msra.mxu0 0.0
    %8681 = vmatprep.subr.mxu0 0.0
    %8682 = vmatpush1.msra.mxu0 0.0
    %8683 = vmatprep.subr.mxu0 0.0
    %8684 = vmatpush1.msra.mxu0 0.0
    %8685 = vmatprep.subr.mxu0 0.0
    %8686 = vmatpush1.msra.mxu0 0.0
    %8687 = vmatprep.subr.mxu0 0.0
    %8688 = vmatpush1.msra.mxu0 0.0
    %8689 = vmatprep.subr.mxu0 0.0
    %8690 = vmatpush1.msra.mxu0 0.0
    %8691 = vmatprep.subr.mxu0 0.0
    %8692 = vmatpush1.msra.mxu0 0.0
    %8693 = vmatprep.subr.mxu0 0.0
    %8694 = vmatpush1.msra.mxu0 0.0
    %8695 = vmatprep.subr.mxu0 0.0
    %8696 = vmatpush1.msra.mxu0 0.0
    %8697 = vmatprep.subr.mxu0 0.0
    %8698 = vmatpush1.msra.mxu0 0.0
    %8699 = vmatprep.subr.mxu0 0.0
    %8700 = vmatpush1.msra.mxu0 0.0
    %8701 = vmatprep.subr.mxu0 0.0
    %8702 = vmatpush1.msra.mxu0 0.0
    %8703 = vmatprep.subr.mxu0 0.0
    %8704 = vmatpush1.msra.mxu0 0.0
    %8705 = vmatprep.subr.mxu0 0.0
    %8706 = vmatpush1.msra.mxu0 0.0
    %8707 = vmatprep.mubr.f32.mxu0 0.0
    %v8708 = vand.u32 %v1505, 4294901760
    %8709 = vmatmul.mubr.f32.gmra.mrb[0].mxu0 %v8708
    %v8710 = vpop.f32.mrb[0].mxu0
    %v8711 = vadd.f32 %v8601, %v8710
    %v8712 = vpop.f32.mrb[0].mxu0
    %v8713 = vadd.f32 %v8603, %v8712
    %8714 = vmatprep.mubr.f32.mxu0 0.0
    %v8715 = vand.u32 %v1508, 4294901760
    %8716 = vmatmul.mubr.f32.gmra.mrb[0].mxu0 %v8715
    %v8717 = vpop.f32.mrb[0].mxu0
    %v8718 = vadd.f32 %v8608, %v8717
    %v8719 = vpop.f32.mrb[0].mxu0
    %v8720 = vadd.f32 %v8610, %v8719
    %8721 = vmatprep.mubr.f32.mxu0 0.0
    %v8722 = vand.u32 %v1511, 4294901760
    %8723 = vmatmul.mubr.f32.gmra.mrb[0].mxu0 %v8722
    %v8724 = vpop.f32.mrb[0].mxu0
    %v8725 = vadd.f32 %v8615, %v8724
    %v8726 = vpop.f32.mrb[0].mxu0
    %v8727 = vadd.f32 %v8617, %v8726
    %8728 = vmatprep.mubr.f32.mxu0 0.0
    %v8729 = vand.u32 %v1514, 4294901760
    %8730 = vmatmul.mubr.f32.gmra.mrb[0].mxu0 %v8729
    %v8731 = vpop.f32.mrb[0].mxu0
    %v8732 = vadd.f32 %v8622, %v8731
    %v8733 = vpop.f32.mrb[0].mxu0
    %v8734 = vadd.f32 %v8624, %v8733
    %8735 = vmatprep.mubr.f32.mxu0 0.0
    %v8736 = vand.u32 %v1517, 4294901760
    %8737 = vmatmul.mubr.f32.gmra.mrb[0].mxu0 %v8736
    %v8738 = vpop.f32.mrb[0].mxu0
    %v8739 = vadd.f32 %v8629, %v8738
    %v8740 = vpop.f32.mrb[0].mxu0
    %v8741 = vadd.f32 %v8631, %v8740
    %8742 = vdwg.mxu0
    %v8743 = vtanh.pop %v7946
    %v8744 = vtanh.pop %v7948
    %v8745 = vtanh.pop %v8711
    %v8746 = vtanh.pop %v8713
    %v8747 = vtanh.pop %v7953
    %v8748 = vtanh.pop %v7955
    %v8749 = vtanh.pop %v8718
    %v8750 = vtanh.pop %v8720
    %v8751 = vtanh.pop %v7960
    %v8752 = vtanh.pop %v7962
    %v8753 = vtanh.pop %v8725
    %v8754 = vtanh.pop %v8727
    %v8755 = vtanh.pop %v7967
    %v8756 = vtanh.pop %v7969
    %v8757 = vtanh.pop %v8732
    %v8758 = vtanh.pop %v8734
    %v8759 = vtanh.pop %v7974
    %v8760 = vtanh.pop %v7976
    %v8761 = vtanh.pop %v8739
    %v8762 = vtanh.pop %v8741
    %v8763 = vand.u32 %v8744, 4294901760
    %8764 = vmatprep.subr.mxu0 %v8763
    %v8765 = vand.u32 %v8743, 4294901760
    %8766 = vmatpush1.msra.mxu0 %v8765
    %v8767 = vand.u32 %v8748, 4294901760
    %8768 = vmatprep.subr.mxu0 %v8767
    %v8769 = vand.u32 %v8747, 4294901760
    %8770 = vmatpush1.msra.mxu0 %v8769
    %v8771 = vand.u32 %v8752, 4294901760
    %8772 = vmatprep.subr.mxu0 %v8771
    %v8773 = vand.u32 %v8751, 4294901760
    %8774 = vmatpush1.msra.mxu0 %v8773
    %v8775 = vand.u32 %v8756, 4294901760
    %8776 = vmatprep.subr.mxu0 %v8775
    %v8777 = vand.u32 %v8755, 4294901760
    %8778 = vmatpush1.msra.mxu0 %v8777
    %v8779 = vand.u32 %v8760, 4294901760
    %8780 = vmatprep.subr.mxu0 %v8779
    %v8781 = vand.u32 %v8759, 4294901760
    %8782 = vmatpush1.msra.mxu0 %v8781
    %8783 = vmatprep.subr.mxu0 0.0
    %8784 = vmatpush1.msra.mxu0 0.0
    %8785 = vmatprep.subr.mxu0 0.0
    %8786 = vmatpush1.msra.mxu0 0.0
    %8787 = vmatprep.subr.mxu0 0.0
    %8788 = vmatpush1.msra.mxu0 0.0
    %8789 = vmatprep.subr.mxu0 0.0
    %8790 = vmatpush1.msra.mxu0 0.0
    %8791 = vmatprep.subr.mxu0 0.0
    %8792 = vmatpush1.msra.mxu0 0.0
    %8793 = vmatprep.subr.mxu0 0.0
    %8794 = vmatpush1.msra.mxu0 0.0
    %8795 = vmatprep.subr.mxu0 0.0
    %8796 = vmatpush1.msra.mxu0 0.0
    %8797 = vmatprep.subr.mxu0 0.0
    %8798 = vmatpush1.msra.mxu0 0.0
    %8799 = vmatprep.subr.mxu0 0.0
    %8800 = vmatpush1.msra.mxu0 0.0
    %8801 = vmatprep.subr.mxu0 0.0
    %8802 = vmatpush1.msra.mxu0 0.0
    %8803 = vmatprep.subr.mxu0 0.0
    %8804 = vmatpush1.msra.mxu0 0.0
    %8805 = vmatprep.subr.mxu0 0.0
    %8806 = vmatpush1.msra.mxu0 0.0
    %8807 = vmatprep.subr.mxu0 0.0
    %8808 = vmatpush1.msra.mxu0 0.0
    %8809 = vmatprep.subr.mxu0 0.0
    %8810 = vmatpush1.msra.mxu0 0.0
    %8811 = vmatprep.subr.mxu0 0.0
    %8812 = vmatpush1.msra.mxu0 0.0
    %8813 = vmatprep.subr.mxu0 0.0
    %8814 = vmatpush1.msra.mxu0 0.0
    %8815 = vmatprep.subr.mxu0 0.0
    %8816 = vmatpush1.msra.mxu0 0.0
    %8817 = vmatprep.subr.mxu0 0.0
    %8818 = vmatpush1.msra.mxu0 0.0
    %8819 = vmatprep.subr.mxu0 0.0
    %8820 = vmatpush1.msra.mxu0 0.0
    %8821 = vmatprep.subr.mxu0 0.0
    %8822 = vmatpush1.msra.mxu0 0.0
    %8823 = vmatprep.subr.mxu0 0.0
    %8824 = vmatpush1.msra.mxu0 0.0
    %8825 = vmatprep.subr.mxu0 0.0
    %8826 = vmatpush1.msra.mxu0 0.0
    %8827 = vmatprep.subr.mxu0 0.0
    %8828 = vmatpush1.msra.mxu0 0.0
    %8829 = vmatprep.subr.mxu0 0.0
    %8830 = vmatpush1.msra.mxu0 0.0
    %8831 = vmatprep.subr.mxu0 0.0
    %8832 = vmatpush1.msra.mxu0 0.0
    %8833 = vmatprep.subr.mxu0 0.0
    %8834 = vmatpush1.msra.mxu0 0.0
    %8835 = vmatprep.subr.mxu0 0.0
    %8836 = vmatpush1.msra.mxu0 0.0
    %8837 = vmatprep.mubr.f32.mxu0 0.0
    %v8838 = vand.u32 %v3095, 4294901760
    %v8839 = vsub.f32 %v3095, %v8838
    %v8840 = vand.u32 %v8839, 4294901760
    %v8841 = vsub.f32 %v8839, %v8840
    %v8842 = vand.u32 %v8841, 4294901760
    %8843 = vmatmul.mubr.f32.gmra.mrb[0].mxu0 %v8842
    %v8844 = vpop.f32.mrb[0].mxu0
    %v8845 = vadd.f32 %v3072, %v8844
    %v8846 = vpop.f32.mrb[0].mxu0
    %v8847 = vadd.f32 %v3072, %v8846
    %8848 = vmatprep.mubr.f32.mxu0 0.0
    %v8849 = vand.u32 %v3098, 4294901760
    %v8850 = vsub.f32 %v3098, %v8849
    %v8851 = vand.u32 %v8850, 4294901760
    %v8852 = vsub.f32 %v8850, %v8851
    %v8853 = vand.u32 %v8852, 4294901760
    %8854 = vmatmul.mubr.f32.gmra.mrb[0].mxu0 %v8853
    %v8855 = vpop.f32.mrb[0].mxu0
    %v8856 = vadd.f32 %v3077, %v8855
    %v8857 = vpop.f32.mrb[0].mxu0
    %v8858 = vadd.f32 %v3077, %v8857
    %8859 = vmatprep.mubr.f32.mxu0 0.0
    %v8860 = vand.u32 %v3101, 4294901760
    %v8861 = vsub.f32 %v3101, %v8860
    %v8862 = vand.u32 %v8861, 4294901760
    %v8863 = vsub.f32 %v8861, %v8862
    %v8864 = vand.u32 %v8863, 4294901760
    %8865 = vmatmul.mubr.f32.gmra.mrb[0].mxu0 %v8864
    %v8866 = vpop.f32.mrb[0].mxu0
    %v8867 = vadd.f32 %v3082, %v8866
    %v8868 = vpop.f32.mrb[0].mxu0
    %v8869 = vadd.f32 %v3082, %v8868
    %8870 = vmatprep.mubr.f32.mxu0 0.0
    %v8871 = vand.u32 %v3104, 4294901760
    %v8872 = vsub.f32 %v3104, %v8871
    %v8873 = vand.u32 %v8872, 4294901760
    %v8874 = vsub.f32 %v8872, %v8873
    %v8875 = vand.u32 %v8874, 4294901760
    %8876 = vmatmul.mubr.f32.gmra.mrb[0].mxu0 %v8875
    %v8877 = vpop.f32.mrb[0].mxu0
    %v8878 = vadd.f32 %v3087, %v8877
    %v8879 = vpop.f32.mrb[0].mxu0
    %v8880 = vadd.f32 %v3087, %v8879
    %8881 = vmatprep.mubr.f32.mxu0 0.0
    %v8882 = vand.u32 %v3107, 4294901760
    %v8883 = vsub.f32 %v3107, %v8882
    %v8884 = vand.u32 %v8883, 4294901760
    %v8885 = vsub.f32 %v8883, %v8884
    %v8886 = vand.u32 %v8885, 4294901760
    %8887 = vmatmul.mubr.f32.gmra.mrb[0].mxu0 %v8886
    %v8888 = vpop.f32.mrb[0].mxu0
    %v8889 = vadd.f32 %v3092, %v8888
    %v8890 = vpop.f32.mrb[0].mxu0
    %v8891 = vadd.f32 %v3092, %v8890
    %8892 = vdwg.mxu0
    %v8893 = vand.u32 %v8744, 4294901760
    %v8894 = vsub.f32 %v8744, %v8893
    %v8895 = vand.u32 %v8894, 4294901760
    %v8896 = vsub.f32 %v8894, %v8895
    %v8897 = vand.u32 %v8896, 4294901760
    %8898 = vmatprep.subr.mxu0 %v8897
    %v8899 = vand.u32 %v8743, 4294901760
    %v8900 = vsub.f32 %v8743, %v8899
    %v8901 = vand.u32 %v8900, 4294901760
    %v8902 = vsub.f32 %v8900, %v8901
    %v8903 = vand.u32 %v8902, 4294901760
    %8904 = vmatpush1.msra.mxu0 %v8903
    %v8905 = vand.u32 %v8748, 4294901760
    %v8906 = vsub.f32 %v8748, %v8905
    %v8907 = vand.u32 %v8906, 4294901760
    %v8908 = vsub.f32 %v8906, %v8907
    %v8909 = vand.u32 %v8908, 4294901760
    %8910 = vmatprep.subr.mxu0 %v8909
    %v8911 = vand.u32 %v8747, 4294901760
    %v8912 = vsub.f32 %v8747, %v8911
    %v8913 = vand.u32 %v8912, 4294901760
    %v8914 = vsub.f32 %v8912, %v8913
    %v8915 = vand.u32 %v8914, 4294901760
    %8916 = vmatpush1.msra.mxu0 %v8915
    %v8917 = vand.u32 %v8752, 4294901760
    %v8918 = vsub.f32 %v8752, %v8917
    %v8919 = vand.u32 %v8918, 4294901760
    %v8920 = vsub.f32 %v8918, %v8919
    %v8921 = vand.u32 %v8920, 4294901760
    %8922 = vmatprep.subr.mxu0 %v8921
    %v8923 = vand.u32 %v8751, 4294901760
    %v8924 = vsub.f32 %v8751, %v8923
    %v8925 = vand.u32 %v8924, 4294901760
    %v8926 = vsub.f32 %v8924, %v8925
    %v8927 = vand.u32 %v8926, 4294901760
    %8928 = vmatpush1.msra.mxu0 %v8927
    %v8929 = vand.u32 %v8756, 4294901760
    %v8930 = vsub.f32 %v8756, %v8929
    %v8931 = vand.u32 %v8930, 4294901760
    %v8932 = vsub.f32 %v8930, %v8931
    %v8933 = vand.u32 %v8932, 4294901760
    %8934 = vmatprep.subr.mxu0 %v8933
    %v8935 = vand.u32 %v8755, 4294901760
    %v8936 = vsub.f32 %v8755, %v8935
    %v8937 = vand.u32 %v8936, 4294901760
    %v8938 = vsub.f32 %v8936, %v8937
    %v8939 = vand.u32 %v8938, 4294901760
    %8940 = vmatpush1.msra.mxu0 %v8939
    %v8941 = vand.u32 %v8760, 4294901760
    %v8942 = vsub.f32 %v8760, %v8941
    %v8943 = vand.u32 %v8942, 4294901760
    %v8944 = vsub.f32 %v8942, %v8943
    %v8945 = vand.u32 %v8944, 4294901760
    %8946 = vmatprep.subr.mxu0 %v8945
    %v8947 = vand.u32 %v8759, 4294901760
    %v8948 = vsub.f32 %v8759, %v8947
    %v8949 = vand.u32 %v8948, 4294901760
    %v8950 = vsub.f32 %v8948, %v8949
    %v8951 = vand.u32 %v8950, 4294901760
    %8952 = vmatpush1.msra.mxu0 %v8951
    %8953 = vmatprep.subr.mxu0 0.0
    %8954 = vmatpush1.msra.mxu0 0.0
    %8955 = vmatprep.subr.mxu0 0.0
    %8956 = vmatpush1.msra.mxu0 0.0
    %8957 = vmatprep.subr.mxu0 0.0
    %8958 = vmatpush1.msra.mxu0 0.0
    %8959 = vmatprep.subr.mxu0 0.0
    %8960 = vmatpush1.msra.mxu0 0.0
    %8961 = vmatprep.subr.mxu0 0.0
    %8962 = vmatpush1.msra.mxu0 0.0
    %8963 = vmatprep.subr.mxu0 0.0
    %8964 = vmatpush1.msra.mxu0 0.0
    %8965 = vmatprep.subr.mxu0 0.0
    %8966 = vmatpush1.msra.mxu0 0.0
    %8967 = vmatprep.subr.mxu0 0.0
    %8968 = vmatpush1.msra.mxu0 0.0
    %8969 = vmatprep.subr.mxu0 0.0
    %8970 = vmatpush1.msra.mxu0 0.0
    %8971 = vmatprep.subr.mxu0 0.0
    %8972 = vmatpush1.msra.mxu0 0.0
    %8973 = vmatprep.subr.mxu0 0.0
    %8974 = vmatpush1.msra.mxu0 0.0
    %8975 = vmatprep.subr.mxu0 0.0
    %8976 = vmatpush1.msra.mxu0 0.0
    %8977 = vmatprep.subr.mxu0 0.0
    %8978 = vmatpush1.msra.mxu0 0.0
    %8979 = vmatprep.subr.mxu0 0.0
    %8980 = vmatpush1.msra.mxu0 0.0
    %8981 = vmatprep.subr.mxu0 0.0
    %8982 = vmatpush1.msra.mxu0 0.0
    %8983 = vmatprep.subr.mxu0 0.0
    %8984 = vmatpush1.msra.mxu0 0.0
    %8985 = vmatprep.subr.mxu0 0.0
    %8986 = vmatpush1.msra.mxu0 0.0
    %8987 = vmatprep.subr.mxu0 0.0
    %8988 = vmatpush1.msra.mxu0 0.0
    %8989 = vmatprep.subr.mxu0 0.0
    %8990 = vmatpush1.msra.mxu0 0.0
    %8991 = vmatprep.subr.mxu0 0.0
    %8992 = vmatpush1.msra.mxu0 0.0
    %8993 = vmatprep.subr.mxu0 0.0
    %8994 = vmatpush1.msra.mxu0 0.0
    %8995 = vmatprep.subr.mxu0 0.0
    %8996 = vmatpush1.msra.mxu0 0.0
    %8997 = vmatprep.subr.mxu0 0.0
    %8998 = vmatpush1.msra.mxu0 0.0
    %8999 = vmatprep.subr.mxu0 0.0
    %9000 = vmatpush1.msra.mxu0 0.0
    %9001 = vmatprep.subr.mxu0 0.0
    %9002 = vmatpush1.msra.mxu0 0.0
    %9003 = vmatprep.subr.mxu0 0.0
    %9004 = vmatpush1.msra.mxu0 0.0
    %9005 = vmatprep.subr.mxu0 0.0
    %9006 = vmatpush1.msra.mxu0 0.0
    %9007 = vmatprep.mubr.f32.mxu0 0.0
    %v9008 = vand.u32 %v3095, 4294901760
    %9009 = vmatmul.mubr.f32.gmra.mrb[0].mxu0 %v9008
    %v9010 = vpop.f32.mrb[0].mxu0
    %v9011 = vadd.f32 %v8845, %v9010
    %v9012 = vpop.f32.mrb[0].mxu0
    %v9013 = vadd.f32 %v8847, %v9012
    %9014 = vmatprep.mubr.f32.mxu0 0.0
    %v9015 = vand.u32 %v3098, 4294901760
    %9016 = vmatmul.mubr.f32.gmra.mrb[0].mxu0 %v9015
    %v9017 = vpop.f32.mrb[0].mxu0
    %v9018 = vadd.f32 %v8856, %v9017
    %v9019 = vpop.f32.mrb[0].mxu0
    %v9020 = vadd.f32 %v8858, %v9019
    %9021 = vmatprep.mubr.f32.mxu0 0.0
    %v9022 = vand.u32 %v3101, 4294901760
    %9023 = vmatmul.mubr.f32.gmra.mrb[0].mxu0 %v9022
    %v9024 = vpop.f32.mrb[0].mxu0
    %v9025 = vadd.f32 %v8867, %v9024
    %v9026 = vpop.f32.mrb[0].mxu0
    %v9027 = vadd.f32 %v8869, %v9026
    %9028 = vmatprep.mubr.f32.mxu0 0.0
    %v9029 = vand.u32 %v3104, 4294901760
    %9030 = vmatmul.mubr.f32.gmra.mrb[0].mxu0 %v9029
    %v9031 = vpop.f32.mrb[0].mxu0
    %v9032 = vadd.f32 %v8878, %v9031
    %v9033 = vpop.f32.mrb[0].mxu0
    %v9034 = vadd.f32 %v8880, %v9033
    %9035 = vmatprep.mubr.f32.mxu0 0.0
    %v9036 = vand.u32 %v3107, 4294901760
    %9037 = vmatmul.mubr.f32.gmra.mrb[0].mxu0 %v9036
    %v9038 = vpop.f32.mrb[0].mxu0
    %v9039 = vadd.f32 %v8889, %v9038
    %v9040 = vpop.f32.mrb[0].mxu0
    %v9041 = vadd.f32 %v8891, %v9040
    %9042 = vdwg.mxu0
    %v9043 = vand.u32 %v8744, 4294901760
    %v9044 = vsub.f32 %v8744, %v9043
    %9045 = vmatprep.subr.mxu0 %v9044
    %v9046 = vand.u32 %v8743, 4294901760
    %v9047 = vsub.f32 %v8743, %v9046
    %9048 = vmatpush1.msra.mxu0 %v9047
    %v9049 = vand.u32 %v8748, 4294901760
    %v9050 = vsub.f32 %v8748, %v9049
    %9051 = vmatprep.subr.mxu0 %v9050
    %v9052 = vand.u32 %v8747, 4294901760
    %v9053 = vsub.f32 %v8747, %v9052
    %9054 = vmatpush1.msra.mxu0 %v9053
    %v9055 = vand.u32 %v8752, 4294901760
    %v9056 = vsub.f32 %v8752, %v9055
    %9057 = vmatprep.subr.mxu0 %v9056
    %v9058 = vand.u32 %v8751, 4294901760
    %v9059 = vsub.f32 %v8751, %v9058
    %9060 = vmatpush1.msra.mxu0 %v9059
    %v9061 = vand.u32 %v8756, 4294901760
    %v9062 = vsub.f32 %v8756, %v9061
    %9063 = vmatprep.subr.mxu0 %v9062
    %v9064 = vand.u32 %v8755, 4294901760
    %v9065 = vsub.f32 %v8755, %v9064
    %9066 = vmatpush1.msra.mxu0 %v9065
    %v9067 = vand.u32 %v8760, 4294901760
    %v9068 = vsub.f32 %v8760, %v9067
    %9069 = vmatprep.subr.mxu0 %v9068
    %v9070 = vand.u32 %v8759, 4294901760
    %v9071 = vsub.f32 %v8759, %v9070
    %9072 = vmatpush1.msra.mxu0 %v9071
    %9073 = vmatprep.subr.mxu0 0.0
    %9074 = vmatpush1.msra.mxu0 0.0
    %9075 = vmatprep.subr.mxu0 0.0
    %9076 = vmatpush1.msra.mxu0 0.0
    %9077 = vmatprep.subr.mxu0 0.0
    %9078 = vmatpush1.msra.mxu0 0.0
    %9079 = vmatprep.subr.mxu0 0.0
    %9080 = vmatpush1.msra.mxu0 0.0
    %9081 = vmatprep.subr.mxu0 0.0
    %9082 = vmatpush1.msra.mxu0 0.0
    %9083 = vmatprep.subr.mxu0 0.0
    %9084 = vmatpush1.msra.mxu0 0.0
    %9085 = vmatprep.subr.mxu0 0.0
    %9086 = vmatpush1.msra.mxu0 0.0
    %9087 = vmatprep.subr.mxu0 0.0
    %9088 = vmatpush1.msra.mxu0 0.0
    %9089 = vmatprep.subr.mxu0 0.0
    %9090 = vmatpush1.msra.mxu0 0.0
    %9091 = vmatprep.subr.mxu0 0.0
    %9092 = vmatpush1.msra.mxu0 0.0
    %9093 = vmatprep.subr.mxu0 0.0
    %9094 = vmatpush1.msra.mxu0 0.0
    %9095 = vmatprep.subr.mxu0 0.0
    %9096 = vmatpush1.msra.mxu0 0.0
    %9097 = vmatprep.subr.mxu0 0.0
    %9098 = vmatpush1.msra.mxu0 0.0
    %9099 = vmatprep.subr.mxu0 0.0
    %9100 = vmatpush1.msra.mxu0 0.0
    %9101 = vmatprep.subr.mxu0 0.0
    %9102 = vmatpush1.msra.mxu0 0.0
    %9103 = vmatprep.subr.mxu0 0.0
    %9104 = vmatpush1.msra.mxu0 0.0
    %9105 = vmatprep.subr.mxu0 0.0
    %9106 = vmatpush1.msra.mxu0 0.0
    %9107 = vmatprep.subr.mxu0 0.0
    %9108 = vmatpush1.msra.mxu0 0.0
    %9109 = vmatprep.subr.mxu0 0.0
    %9110 = vmatpush1.msra.mxu0 0.0
    %9111 = vmatprep.subr.mxu0 0.0
    %9112 = vmatpush1.msra.mxu0 0.0
    %9113 = vmatprep.subr.mxu0 0.0
    %9114 = vmatpush1.msra.mxu0 0.0
    %9115 = vmatprep.subr.mxu0 0.0
    %9116 = vmatpush1.msra.mxu0 0.0
    %9117 = vmatprep.subr.mxu0 0.0
    %9118 = vmatpush1.msra.mxu0 0.0
    %9119 = vmatprep.subr.mxu0 0.0
    %9120 = vmatpush1.msra.mxu0 0.0
    %9121 = vmatprep.subr.mxu0 0.0
    %9122 = vmatpush1.msra.mxu0 0.0
    %9123 = vmatprep.subr.mxu0 0.0
    %9124 = vmatpush1.msra.mxu0 0.0
    %9125 = vmatprep.subr.mxu0 0.0
    %9126 = vmatpush1.msra.mxu0 0.0
    %9127 = vmatprep.mubr.f32.mxu0 0.0
    %v9128 = vand.u32 %v3095, 4294901760
    %v9129 = vsub.f32 %v3095, %v9128
    %9130 = vmatmul.mubr.f32.gmra.mrb[0].mxu0 %v9129
    %v9131 = vpop.f32.mrb[0].mxu0
    %v9132 = vadd.f32 %v9011, %v9131
    %v9133 = vpop.f32.mrb[0].mxu0
    %v9134 = vadd.f32 %v9013, %v9133
    %9135 = vmatprep.mubr.f32.mxu0 0.0
    %v9136 = vand.u32 %v3098, 4294901760
    %v9137 = vsub.f32 %v3098, %v9136
    %9138 = vmatmul.mubr.f32.gmra.mrb[0].mxu0 %v9137
    %v9139 = vpop.f32.mrb[0].mxu0
    %v9140 = vadd.f32 %v9018, %v9139
    %v9141 = vpop.f32.mrb[0].mxu0
    %v9142 = vadd.f32 %v9020, %v9141
    %9143 = vmatprep.mubr.f32.mxu0 0.0
    %v9144 = vand.u32 %v3101, 4294901760
    %v9145 = vsub.f32 %v3101, %v9144
    %9146 = vmatmul.mubr.f32.gmra.mrb[0].mxu0 %v9145
    %v9147 = vpop.f32.mrb[0].mxu0
    %v9148 = vadd.f32 %v9025, %v9147
    %v9149 = vpop.f32.mrb[0].mxu0
    %v9150 = vadd.f32 %v9027, %v9149
    %9151 = vmatprep.mubr.f32.mxu0 0.0
    %v9152 = vand.u32 %v3104, 4294901760
    %v9153 = vsub.f32 %v3104, %v9152
    %9154 = vmatmul.mubr.f32.gmra.mrb[0].mxu0 %v9153
    %v9155 = vpop.f32.mrb[0].mxu0
    %v9156 = vadd.f32 %v9032, %v9155
    %v9157 = vpop.f32.mrb[0].mxu0
    %v9158 = vadd.f32 %v9034, %v9157
    %9159 = vmatprep.mubr.f32.mxu0 0.0
    %v9160 = vand.u32 %v3107, 4294901760
    %v9161 = vsub.f32 %v3107, %v9160
    %9162 = vmatmul.mubr.f32.gmra.mrb[0].mxu0 %v9161
    %v9163 = vpop.f32.mrb[0].mxu0
    %v9164 = vadd.f32 %v9039, %v9163
    %v9165 = vpop.f32.mrb[0].mxu0
    %v9166 = vadd.f32 %v9041, %v9165
    %9167 = vdwg.mxu0
    %v9168 = vand.u32 %v8744, 4294901760
    %9169 = vmatprep.subr.mxu0 %v9168
    %v9170 = vand.u32 %v8743, 4294901760
    %9171 = vmatpush1.msra.mxu0 %v9170
    %v9172 = vand.u32 %v8748, 4294901760
    %9173 = vmatprep.subr.mxu0 %v9172
    %v9174 = vand.u32 %v8747, 4294901760
    %9175 = vmatpush1.msra.mxu0 %v9174
    %v9176 = vand.u32 %v8752, 4294901760
    %9177 = vmatprep.subr.mxu0 %v9176
    %v9178 = vand.u32 %v8751, 4294901760
    %9179 = vmatpush1.msra.mxu0 %v9178
    %v9180 = vand.u32 %v8756, 4294901760
    %9181 = vmatprep.subr.mxu0 %v9180
    %v9182 = vand.u32 %v8755, 4294901760
    %9183 = vmatpush1.msra.mxu0 %v9182
    %v9184 = vand.u32 %v8760, 4294901760
    %9185 = vmatprep.subr.mxu0 %v9184
    %v9186 = vand.u32 %v8759, 4294901760
    %9187 = vmatpush1.msra.mxu0 %v9186
    %9188 = vmatprep.subr.mxu0 0.0
    %9189 = vmatpush1.msra.mxu0 0.0
    %9190 = vmatprep.subr.mxu0 0.0
    %9191 = vmatpush1.msra.mxu0 0.0
    %9192 = vmatprep.subr.mxu0 0.0
    %9193 = vmatpush1.msra.mxu0 0.0
    %9194 = vmatprep.subr.mxu0 0.0
    %9195 = vmatpush1.msra.mxu0 0.0
    %9196 = vmatprep.subr.mxu0 0.0
    %9197 = vmatpush1.msra.mxu0 0.0
    %9198 = vmatprep.subr.mxu0 0.0
    %9199 = vmatpush1.msra.mxu0 0.0
    %9200 = vmatprep.subr.mxu0 0.0
    %9201 = vmatpush1.msra.mxu0 0.0
    %9202 = vmatprep.subr.mxu0 0.0
    %9203 = vmatpush1.msra.mxu0 0.0
    %9204 = vmatprep.subr.mxu0 0.0
    %9205 = vmatpush1.msra.mxu0 0.0
    %9206 = vmatprep.subr.mxu0 0.0
    %9207 = vmatpush1.msra.mxu0 0.0
    %9208 = vmatprep.subr.mxu0 0.0
    %9209 = vmatpush1.msra.mxu0 0.0
    %9210 = vmatprep.subr.mxu0 0.0
    %9211 = vmatpush1.msra.mxu0 0.0
    %9212 = vmatprep.subr.mxu0 0.0
    %9213 = vmatpush1.msra.mxu0 0.0
    %9214 = vmatprep.subr.mxu0 0.0
    %9215 = vmatpush1.msra.mxu0 0.0
    %9216 = vmatprep.subr.mxu0 0.0
    %9217 = vmatpush1.msra.mxu0 0.0
    %9218 = vmatprep.subr.mxu0 0.0
    %9219 = vmatpush1.msra.mxu0 0.0
    %9220 = vmatprep.subr.mxu0 0.0
    %9221 = vmatpush1.msra.mxu0 0.0
    %9222 = vmatprep.subr.mxu0 0.0
    %9223 = vmatpush1.msra.mxu0 0.0
    %9224 = vmatprep.subr.mxu0 0.0
    %9225 = vmatpush1.msra.mxu0 0.0
    %9226 = vmatprep.subr.mxu0 0.0
    %9227 = vmatpush1.msra.mxu0 0.0
    %9228 = vmatprep.subr.mxu0 0.0
    %9229 = vmatpush1.msra.mxu0 0.0
    %9230 = vmatprep.subr.mxu0 0.0
    %9231 = vmatpush1.msra.mxu0 0.0
    %9232 = vmatprep.subr.mxu0 0.0
    %9233 = vmatpush1.msra.mxu0 0.0
    %9234 = vmatprep.subr.mxu0 0.0
    %9235 = vmatpush1.msra.mxu0 0.0
    %9236 = vmatprep.subr.mxu0 0.0
    %9237 = vmatpush1.msra.mxu0 0.0
    %9238 = vmatprep.subr.mxu0 0.0
    %9239 = vmatpush1.msra.mxu0 0.0
    %9240 = vmatprep.subr.mxu0 0.0
    %9241 = vmatpush1.msra.mxu0 0.0
    %9242 = vmatprep.mubr.f32.mxu0 0.0
    %v9243 = vand.u32 %v3095, 4294901760
    %v9244 = vsub.f32 %v3095, %v9243
    %v9245 = vand.u32 %v9244, 4294901760
    %9246 = vmatmul.mubr.f32.gmra.mrb[0].mxu0 %v9245
    %v9247 = vpop.f32.mrb[0].mxu0
    %v9248 = vadd.f32 %v9132, %v9247
    %v9249 = vpop.f32.mrb[0].mxu0
    %v9250 = vadd.f32 %v9134, %v9249
    %9251 = vmatprep.mubr.f32.mxu0 0.0
    %v9252 = vand.u32 %v3098, 4294901760
    %v9253 = vsub.f32 %v3098, %v9252
    %v9254 = vand.u32 %v9253, 4294901760
    %9255 = vmatmul.mubr.f32.gmra.mrb[0].mxu0 %v9254
    %v9256 = vpop.f32.mrb[0].mxu0
    %v9257 = vadd.f32 %v9140, %v9256
    %v9258 = vpop.f32.mrb[0].mxu0
    %v9259 = vadd.f32 %v9142, %v9258
    %9260 = vmatprep.mubr.f32.mxu0 0.0
    %v9261 = vand.u32 %v3101, 4294901760
    %v9262 = vsub.f32 %v3101, %v9261
    %v9263 = vand.u32 %v9262, 4294901760
    %9264 = vmatmul.mubr.f32.gmra.mrb[0].mxu0 %v9263
    %v9265 = vpop.f32.mrb[0].mxu0
    %v9266 = vadd.f32 %v9148, %v9265
    %v9267 = vpop.f32.mrb[0].mxu0
    %v9268 = vadd.f32 %v9150, %v9267
    %9269 = vmatprep.mubr.f32.mxu0 0.0
    %v9270 = vand.u32 %v3104, 4294901760
    %v9271 = vsub.f32 %v3104, %v9270
    %v9272 = vand.u32 %v9271, 4294901760
    %9273 = vmatmul.mubr.f32.gmra.mrb[0].mxu0 %v9272
    %v9274 = vpop.f32.mrb[0].mxu0
    %v9275 = vadd.f32 %v9156, %v9274
    %v9276 = vpop.f32.mrb[0].mxu0
    %v9277 = vadd.f32 %v9158, %v9276
    %9278 = vmatprep.mubr.f32.mxu0 0.0
    %v9279 = vand.u32 %v3107, 4294901760
    %v9280 = vsub.f32 %v3107, %v9279
    %v9281 = vand.u32 %v9280, 4294901760
    %9282 = vmatmul.mubr.f32.gmra.mrb[0].mxu0 %v9281
    %v9283 = vpop.f32.mrb[0].mxu0
    %v9284 = vadd.f32 %v9164, %v9283
    %v9285 = vpop.f32.mrb[0].mxu0
    %v9286 = vadd.f32 %v9166, %v9285
    %9287 = vdwg.mxu0
    %v9288 = vand.u32 %v8744, 4294901760
    %v9289 = vsub.f32 %v8744, %v9288
    %v9290 = vand.u32 %v9289, 4294901760
    %9291 = vmatprep.subr.mxu0 %v9290
    %v9292 = vand.u32 %v8743, 4294901760
    %v9293 = vsub.f32 %v8743, %v9292
    %v9294 = vand.u32 %v9293, 4294901760
    %9295 = vmatpush1.msra.mxu0 %v9294
    %v9296 = vand.u32 %v8748, 4294901760
    %v9297 = vsub.f32 %v8748, %v9296
    %v9298 = vand.u32 %v9297, 4294901760
    %9299 = vmatprep.subr.mxu0 %v9298
    %v9300 = vand.u32 %v8747, 4294901760
    %v9301 = vsub.f32 %v8747, %v9300
    %v9302 = vand.u32 %v9301, 4294901760
    %9303 = vmatpush1.msra.mxu0 %v9302
    %v9304 = vand.u32 %v8752, 4294901760
    %v9305 = vsub.f32 %v8752, %v9304
    %v9306 = vand.u32 %v9305, 4294901760
    %9307 = vmatprep.subr.mxu0 %v9306
    %v9308 = vand.u32 %v8751, 4294901760
    %v9309 = vsub.f32 %v8751, %v9308
    %v9310 = vand.u32 %v9309, 4294901760
    %9311 = vmatpush1.msra.mxu0 %v9310
    %v9312 = vand.u32 %v8756, 4294901760
    %v9313 = vsub.f32 %v8756, %v9312
    %v9314 = vand.u32 %v9313, 4294901760
    %9315 = vmatprep.subr.mxu0 %v9314
    %v9316 = vand.u32 %v8755, 4294901760
    %v9317 = vsub.f32 %v8755, %v9316
    %v9318 = vand.u32 %v9317, 4294901760
    %9319 = vmatpush1.msra.mxu0 %v9318
    %v9320 = vand.u32 %v8760, 4294901760
    %v9321 = vsub.f32 %v8760, %v9320
    %v9322 = vand.u32 %v9321, 4294901760
    %9323 = vmatprep.subr.mxu0 %v9322
    %v9324 = vand.u32 %v8759, 4294901760
    %v9325 = vsub.f32 %v8759, %v9324
    %v9326 = vand.u32 %v9325, 4294901760
    %9327 = vmatpush1.msra.mxu0 %v9326
    %9328 = vmatprep.subr.mxu0 0.0
    %9329 = vmatpush1.msra.mxu0 0.0
    %9330 = vmatprep.subr.mxu0 0.0
    %9331 = vmatpush1.msra.mxu0 0.0
    %9332 = vmatprep.subr.mxu0 0.0
    %9333 = vmatpush1.msra.mxu0 0.0
    %9334 = vmatprep.subr.mxu0 0.0
    %9335 = vmatpush1.msra.mxu0 0.0
    %9336 = vmatprep.subr.mxu0 0.0
    %9337 = vmatpush1.msra.mxu0 0.0
    %9338 = vmatprep.subr.mxu0 0.0
    %9339 = vmatpush1.msra.mxu0 0.0
    %9340 = vmatprep.subr.mxu0 0.0
    %9341 = vmatpush1.msra.mxu0 0.0
    %9342 = vmatprep.subr.mxu0 0.0
    %9343 = vmatpush1.msra.mxu0 0.0
    %9344 = vmatprep.subr.mxu0 0.0
    %9345 = vmatpush1.msra.mxu0 0.0
    %9346 = vmatprep.subr.mxu0 0.0
    %9347 = vmatpush1.msra.mxu0 0.0
    %9348 = vmatprep.subr.mxu0 0.0
    %9349 = vmatpush1.msra.mxu0 0.0
    %9350 = vmatprep.subr.mxu0 0.0
    %9351 = vmatpush1.msra.mxu0 0.0
    %9352 = vmatprep.subr.mxu0 0.0
    %9353 = vmatpush1.msra.mxu0 0.0
    %9354 = vmatprep.subr.mxu0 0.0
    %9355 = vmatpush1.msra.mxu0 0.0
    %9356 = vmatprep.subr.mxu0 0.0
    %9357 = vmatpush1.msra.mxu0 0.0
    %9358 = vmatprep.subr.mxu0 0.0
    %9359 = vmatpush1.msra.mxu0 0.0
    %9360 = vmatprep.subr.mxu0 0.0
    %9361 = vmatpush1.msra.mxu0 0.0
    %9362 = vmatprep.subr.mxu0 0.0
    %9363 = vmatpush1.msra.mxu0 0.0
    %9364 = vmatprep.subr.mxu0 0.0
    %9365 = vmatpush1.msra.mxu0 0.0
    %9366 = vmatprep.subr.mxu0 0.0
    %9367 = vmatpush1.msra.mxu0 0.0
    %9368 = vmatprep.subr.mxu0 0.0
    %9369 = vmatpush1.msra.mxu0 0.0
    %9370 = vmatprep.subr.mxu0 0.0
    %9371 = vmatpush1.msra.mxu0 0.0
    %9372 = vmatprep.subr.mxu0 0.0
    %9373 = vmatpush1.msra.mxu0 0.0
    %9374 = vmatprep.subr.mxu0 0.0
    %9375 = vmatpush1.msra.mxu0 0.0
    %9376 = vmatprep.subr.mxu0 0.0
    %9377 = vmatpush1.msra.mxu0 0.0
    %9378 = vmatprep.subr.mxu0 0.0
    %9379 = vmatpush1.msra.mxu0 0.0
    %9380 = vmatprep.subr.mxu0 0.0
    %9381 = vmatpush1.msra.mxu0 0.0
    %9382 = vmatprep.mubr.f32.mxu0 0.0
    %v9383 = vand.u32 %v3095, 4294901760
    %9384 = vmatmul.mubr.f32.gmra.mrb[0].mxu0 %v9383
    %v9385 = vpop.f32.mrb[0].mxu0
    %v9386 = vadd.f32 %v9248, %v9385
    %v9387 = vpop.f32.mrb[0].mxu0
    %v9388 = vadd.f32 %v9250, %v9387
    %9389 = vmatprep.mubr.f32.mxu0 0.0
    %v9390 = vand.u32 %v3098, 4294901760
    %9391 = vmatmul.mubr.f32.gmra.mrb[0].mxu0 %v9390
    %v9392 = vpop.f32.mrb[0].mxu0
    %v9393 = vadd.f32 %v9257, %v9392
    %v9394 = vpop.f32.mrb[0].mxu0
    %v9395 = vadd.f32 %v9259, %v9394
    %9396 = vmatprep.mubr.f32.mxu0 0.0
    %v9397 = vand.u32 %v3101, 4294901760
    %9398 = vmatmul.mubr.f32.gmra.mrb[0].mxu0 %v9397
    %v9399 = vpop.f32.mrb[0].mxu0
    %v9400 = vadd.f32 %v9266, %v9399
    %v9401 = vpop.f32.mrb[0].mxu0
    %v9402 = vadd.f32 %v9268, %v9401
    %9403 = vmatprep.mubr.f32.mxu0 0.0
    %v9404 = vand.u32 %v3104, 4294901760
    %9405 = vmatmul.mubr.f32.gmra.mrb[0].mxu0 %v9404
    %v9406 = vpop.f32.mrb[0].mxu0
    %v9407 = vadd.f32 %v9275, %v9406
    %v9408 = vpop.f32.mrb[0].mxu0
    %v9409 = vadd.f32 %v9277, %v9408
    %9410 = vmatprep.mubr.f32.mxu0 0.0
    %v9411 = vand.u32 %v3107, 4294901760
    %9412 = vmatmul.mubr.f32.gmra.mrb[0].mxu0 %v9411
    %v9413 = vpop.f32.mrb[0].mxu0
    %v9414 = vadd.f32 %v9284, %v9413
    %v9415 = vpop.f32.mrb[0].mxu0
    %v9416 = vadd.f32 %v9286, %v9415
    %9417 = vdwg.mxu0
    %v9418 = vand.u32 %v8744, 4294901760
    %9419 = vmatprep.subr.mxu0 %v9418
    %v9420 = vand.u32 %v8743, 4294901760
    %9421 = vmatpush1.msra.mxu0 %v9420
    %v9422 = vand.u32 %v8748, 4294901760
    %9423 = vmatprep.subr.mxu0 %v9422
    %v9424 = vand.u32 %v8747, 4294901760
    %9425 = vmatpush1.msra.mxu0 %v9424
    %v9426 = vand.u32 %v8752, 4294901760
    %9427 = vmatprep.subr.mxu0 %v9426
    %v9428 = vand.u32 %v8751, 4294901760
    %9429 = vmatpush1.msra.mxu0 %v9428
    %v9430 = vand.u32 %v8756, 4294901760
    %9431 = vmatprep.subr.mxu0 %v9430
    %v9432 = vand.u32 %v8755, 4294901760
    %9433 = vmatpush1.msra.mxu0 %v9432
    %v9434 = vand.u32 %v8760, 4294901760
    %9435 = vmatprep.subr.mxu0 %v9434
    %v9436 = vand.u32 %v8759, 4294901760
    %9437 = vmatpush1.msra.mxu0 %v9436
    %9438 = vmatprep.subr.mxu0 0.0
    %9439 = vmatpush1.msra.mxu0 0.0
    %9440 = vmatprep.subr.mxu0 0.0
    %9441 = vmatpush1.msra.mxu0 0.0
    %9442 = vmatprep.subr.mxu0 0.0
    %9443 = vmatpush1.msra.mxu0 0.0
    %9444 = vmatprep.subr.mxu0 0.0
    %9445 = vmatpush1.msra.mxu0 0.0
    %9446 = vmatprep.subr.mxu0 0.0
    %9447 = vmatpush1.msra.mxu0 0.0
    %9448 = vmatprep.subr.mxu0 0.0
    %9449 = vmatpush1.msra.mxu0 0.0
    %9450 = vmatprep.subr.mxu0 0.0
    %9451 = vmatpush1.msra.mxu0 0.0
    %9452 = vmatprep.subr.mxu0 0.0
    %9453 = vmatpush1.msra.mxu0 0.0
    %9454 = vmatprep.subr.mxu0 0.0
    %9455 = vmatpush1.msra.mxu0 0.0
    %9456 = vmatprep.subr.mxu0 0.0
    %9457 = vmatpush1.msra.mxu0 0.0
    %9458 = vmatprep.subr.mxu0 0.0
    %9459 = vmatpush1.msra.mxu0 0.0
    %9460 = vmatprep.subr.mxu0 0.0
    %9461 = vmatpush1.msra.mxu0 0.0
    %9462 = vmatprep.subr.mxu0 0.0
    %9463 = vmatpush1.msra.mxu0 0.0
    %9464 = vmatprep.subr.mxu0 0.0
    %9465 = vmatpush1.msra.mxu0 0.0
    %9466 = vmatprep.subr.mxu0 0.0
    %9467 = vmatpush1.msra.mxu0 0.0
    %9468 = vmatprep.subr.mxu0 0.0
    %9469 = vmatpush1.msra.mxu0 0.0
    %9470 = vmatprep.subr.mxu0 0.0
    %9471 = vmatpush1.msra.mxu0 0.0
    %9472 = vmatprep.subr.mxu0 0.0
    %9473 = vmatpush1.msra.mxu0 0.0
    %9474 = vmatprep.subr.mxu0 0.0
    %9475 = vmatpush1.msra.mxu0 0.0
    %9476 = vmatprep.subr.mxu0 0.0
    %9477 = vmatpush1.msra.mxu0 0.0
    %9478 = vmatprep.subr.mxu0 0.0
    %9479 = vmatpush1.msra.mxu0 0.0
    %9480 = vmatprep.subr.mxu0 0.0
    %9481 = vmatpush1.msra.mxu0 0.0
    %9482 = vmatprep.subr.mxu0 0.0
    %9483 = vmatpush1.msra.mxu0 0.0
    %9484 = vmatprep.subr.mxu0 0.0
    %9485 = vmatpush1.msra.mxu0 0.0
    %9486 = vmatprep.subr.mxu0 0.0
    %9487 = vmatpush1.msra.mxu0 0.0
    %9488 = vmatprep.subr.mxu0 0.0
    %9489 = vmatpush1.msra.mxu0 0.0
    %9490 = vmatprep.subr.mxu0 0.0
    %9491 = vmatpush1.msra.mxu0 0.0
    %9492 = vmatprep.mubr.f32.mxu0 0.0
    %v9493 = vand.u32 %v3095, 4294901760
    %9494 = vmatmul.mubr.f32.gmra.mrb[0].mxu0 %v9493
    %v9495 = vpop.f32.mrb[0].mxu0
    %v9496 = vadd.f32 %v9386, %v9495
    %v9497 = vpop.f32.mrb[0].mxu0
    %v9498 = vadd.f32 %v9388, %v9497
    %9499 = vmatprep.mubr.f32.mxu0 0.0
    %v9500 = vand.u32 %v3098, 4294901760
    %9501 = vmatmul.mubr.f32.gmra.mrb[0].mxu0 %v9500
    %v9502 = vpop.f32.mrb[0].mxu0
    %v9503 = vadd.f32 %v9393, %v9502
    %v9504 = vpop.f32.mrb[0].mxu0
    %v9505 = vadd.f32 %v9395, %v9504
    %9506 = vmatprep.mubr.f32.mxu0 0.0
    %v9507 = vand.u32 %v3101, 4294901760
    %9508 = vmatmul.mubr.f32.gmra.mrb[0].mxu0 %v9507
    %v9509 = vpop.f32.mrb[0].mxu0
    %v9510 = vadd.f32 %v9400, %v9509
    %v9511 = vpop.f32.mrb[0].mxu0
    %v9512 = vadd.f32 %v9402, %v9511
    %9513 = vmatprep.mubr.f32.mxu0 0.0
    %v9514 = vand.u32 %v3104, 4294901760
    %9515 = vmatmul.mubr.f32.gmra.mrb[0].mxu0 %v9514
    %v9516 = vpop.f32.mrb[0].mxu0
    %v9517 = vadd.f32 %v9407, %v9516
    %v9518 = vpop.f32.mrb[0].mxu0
    %v9519 = vadd.f32 %v9409, %v9518
    %9520 = vmatprep.mubr.f32.mxu0 0.0
    %v9521 = vand.u32 %v3107, 4294901760
    %9522 = vmatmul.mubr.f32.gmra.mrb[0].mxu0 %v9521
    %v9523 = vpop.f32.mrb[0].mxu0
    %v9524 = vadd.f32 %v9414, %v9523
    %v9525 = vpop.f32.mrb[0].mxu0
    %v9526 = vadd.f32 %v9416, %v9525
    %9527 = vdwg.mxu0
    %v9528 = vand.u32 %v8746, 4294901760
    %9529 = vmatprep.subr.mxu0 %v9528
    %v9530 = vand.u32 %v8745, 4294901760
    %9531 = vmatpush1.msra.mxu0 %v9530
    %v9532 = vand.u32 %v8750, 4294901760
    %9533 = vmatprep.subr.mxu0 %v9532
    %v9534 = vand.u32 %v8749, 4294901760
    %9535 = vmatpush1.msra.mxu0 %v9534
    %v9536 = vand.u32 %v8754, 4294901760
    %9537 = vmatprep.subr.mxu0 %v9536
    %v9538 = vand.u32 %v8753, 4294901760
    %9539 = vmatpush1.msra.mxu0 %v9538
    %v9540 = vand.u32 %v8758, 4294901760
    %9541 = vmatprep.subr.mxu0 %v9540
    %v9542 = vand.u32 %v8757, 4294901760
    %9543 = vmatpush1.msra.mxu0 %v9542
    %v9544 = vand.u32 %v8762, 4294901760
    %9545 = vmatprep.subr.mxu0 %v9544
    %v9546 = vand.u32 %v8761, 4294901760
    %9547 = vmatpush1.msra.mxu0 %v9546
    %9548 = vmatprep.subr.mxu0 0.0
    %9549 = vmatpush1.msra.mxu0 0.0
    %9550 = vmatprep.subr.mxu0 0.0
    %9551 = vmatpush1.msra.mxu0 0.0
    %9552 = vmatprep.subr.mxu0 0.0
    %9553 = vmatpush1.msra.mxu0 0.0
    %9554 = vmatprep.subr.mxu0 0.0
    %9555 = vmatpush1.msra.mxu0 0.0
    %9556 = vmatprep.subr.mxu0 0.0
    %9557 = vmatpush1.msra.mxu0 0.0
    %9558 = vmatprep.subr.mxu0 0.0
    %9559 = vmatpush1.msra.mxu0 0.0
    %9560 = vmatprep.subr.mxu0 0.0
    %9561 = vmatpush1.msra.mxu0 0.0
    %9562 = vmatprep.subr.mxu0 0.0
    %9563 = vmatpush1.msra.mxu0 0.0
    %9564 = vmatprep.subr.mxu0 0.0
    %9565 = vmatpush1.msra.mxu0 0.0
    %9566 = vmatprep.subr.mxu0 0.0
    %9567 = vmatpush1.msra.mxu0 0.0
    %9568 = vmatprep.subr.mxu0 0.0
    %9569 = vmatpush1.msra.mxu0 0.0
    %9570 = vmatprep.subr.mxu0 0.0
    %9571 = vmatpush1.msra.mxu0 0.0
    %9572 = vmatprep.subr.mxu0 0.0
    %9573 = vmatpush1.msra.mxu0 0.0
    %9574 = vmatprep.subr.mxu0 0.0
    %9575 = vmatpush1.msra.mxu0 0.0
    %9576 = vmatprep.subr.mxu0 0.0
    %9577 = vmatpush1.msra.mxu0 0.0
    %9578 = vmatprep.subr.mxu0 0.0
    %9579 = vmatpush1.msra.mxu0 0.0
    %9580 = vmatprep.subr.mxu0 0.0
    %9581 = vmatpush1.msra.mxu0 0.0
    %9582 = vmatprep.subr.mxu0 0.0
    %9583 = vmatpush1.msra.mxu0 0.0
    %9584 = vmatprep.subr.mxu0 0.0
    %9585 = vmatpush1.msra.mxu0 0.0
    %9586 = vmatprep.subr.mxu0 0.0
    %9587 = vmatpush1.msra.mxu0 0.0
    %9588 = vmatprep.subr.mxu0 0.0
    %9589 = vmatpush1.msra.mxu0 0.0
    %9590 = vmatprep.subr.mxu0 0.0
    %9591 = vmatpush1.msra.mxu0 0.0
    %9592 = vmatprep.subr.mxu0 0.0
    %9593 = vmatpush1.msra.mxu0 0.0
    %9594 = vmatprep.subr.mxu0 0.0
    %9595 = vmatpush1.msra.mxu0 0.0
    %9596 = vmatprep.subr.mxu0 0.0
    %9597 = vmatpush1.msra.mxu0 0.0
    %9598 = vmatprep.subr.mxu0 0.0
    %9599 = vmatpush1.msra.mxu0 0.0
    %9600 = vmatprep.subr.mxu0 0.0
    %9601 = vmatpush1.msra.mxu0 0.0
    %9602 = vmatprep.mubr.f32.mxu0 0.0
    %v9603 = vand.u32 %v3095, 4294901760
    %v9604 = vsub.f32 %v3095, %v9603
    %v9605 = vand.u32 %v9604, 4294901760
    %v9606 = vsub.f32 %v9604, %v9605
    %v9607 = vand.u32 %v9606, 4294901760
    %9608 = vmatmul.mubr.f32.gmra.mrb[0].mxu0 %v9607
    %v9609 = vpop.f32.mrb[0].mxu0
    %v9610 = vadd.f32 %v3072, %v9609
    %v9611 = vpop.f32.mrb[0].mxu0
    %v9612 = vadd.f32 %v3072, %v9611
    %9613 = vmatprep.mubr.f32.mxu0 0.0
    %v9614 = vand.u32 %v3098, 4294901760
    %v9615 = vsub.f32 %v3098, %v9614
    %v9616 = vand.u32 %v9615, 4294901760
    %v9617 = vsub.f32 %v9615, %v9616
    %v9618 = vand.u32 %v9617, 4294901760
    %9619 = vmatmul.mubr.f32.gmra.mrb[0].mxu0 %v9618
    %v9620 = vpop.f32.mrb[0].mxu0
    %v9621 = vadd.f32 %v3077, %v9620
    %v9622 = vpop.f32.mrb[0].mxu0
    %v9623 = vadd.f32 %v3077, %v9622
    %9624 = vmatprep.mubr.f32.mxu0 0.0
    %v9625 = vand.u32 %v3101, 4294901760
    %v9626 = vsub.f32 %v3101, %v9625
    %v9627 = vand.u32 %v9626, 4294901760
    %v9628 = vsub.f32 %v9626, %v9627
    %v9629 = vand.u32 %v9628, 4294901760
    %9630 = vmatmul.mubr.f32.gmra.mrb[0].mxu0 %v9629
    %v9631 = vpop.f32.mrb[0].mxu0
    %v9632 = vadd.f32 %v3082, %v9631
    %v9633 = vpop.f32.mrb[0].mxu0
    %v9634 = vadd.f32 %v3082, %v9633
    %9635 = vmatprep.mubr.f32.mxu0 0.0
    %v9636 = vand.u32 %v3104, 4294901760
    %v9637 = vsub.f32 %v3104, %v9636
    %v9638 = vand.u32 %v9637, 4294901760
    %v9639 = vsub.f32 %v9637, %v9638
    %v9640 = vand.u32 %v9639, 4294901760
    %9641 = vmatmul.mubr.f32.gmra.mrb[0].mxu0 %v9640
    %v9642 = vpop.f32.mrb[0].mxu0
    %v9643 = vadd.f32 %v3087, %v9642
    %v9644 = vpop.f32.mrb[0].mxu0
    %v9645 = vadd.f32 %v3087, %v9644
    %9646 = vmatprep.mubr.f32.mxu0 0.0
    %v9647 = vand.u32 %v3107, 4294901760
    %v9648 = vsub.f32 %v3107, %v9647
    %v9649 = vand.u32 %v9648, 4294901760
    %v9650 = vsub.f32 %v9648, %v9649
    %v9651 = vand.u32 %v9650, 4294901760
    %9652 = vmatmul.mubr.f32.gmra.mrb[0].mxu0 %v9651
    %v9653 = vpop.f32.mrb[0].mxu0
    %v9654 = vadd.f32 %v3092, %v9653
    %v9655 = vpop.f32.mrb[0].mxu0
    %v9656 = vadd.f32 %v3092, %v9655
    %9657 = vdwg.mxu0
    %v9658 = vand.u32 %v8746, 4294901760
    %v9659 = vsub.f32 %v8746, %v9658
    %v9660 = vand.u32 %v9659, 4294901760
    %v9661 = vsub.f32 %v9659, %v9660
    %v9662 = vand.u32 %v9661, 4294901760
    %9663 = vmatprep.subr.mxu0 %v9662
    %v9664 = vand.u32 %v8745, 4294901760
    %v9665 = vsub.f32 %v8745, %v9664
    %v9666 = vand.u32 %v9665, 4294901760
    %v9667 = vsub.f32 %v9665, %v9666
    %v9668 = vand.u32 %v9667, 4294901760
    %9669 = vmatpush1.msra.mxu0 %v9668
    %v9670 = vand.u32 %v8750, 4294901760
    %v9671 = vsub.f32 %v8750, %v9670
    %v9672 = vand.u32 %v9671, 4294901760
    %v9673 = vsub.f32 %v9671, %v9672
    %v9674 = vand.u32 %v9673, 4294901760
    %9675 = vmatprep.subr.mxu0 %v9674
    %v9676 = vand.u32 %v8749, 4294901760
    %v9677 = vsub.f32 %v8749, %v9676
    %v9678 = vand.u32 %v9677, 4294901760
    %v9679 = vsub.f32 %v9677, %v9678
    %v9680 = vand.u32 %v9679, 4294901760
    %9681 = vmatpush1.msra.mxu0 %v9680
    %v9682 = vand.u32 %v8754, 4294901760
    %v9683 = vsub.f32 %v8754, %v9682
    %v9684 = vand.u32 %v9683, 4294901760
    %v9685 = vsub.f32 %v9683, %v9684
    %v9686 = vand.u32 %v9685, 4294901760
    %9687 = vmatprep.subr.mxu0 %v9686
    %v9688 = vand.u32 %v8753, 4294901760
    %v9689 = vsub.f32 %v8753, %v9688
    %v9690 = vand.u32 %v9689, 4294901760
    %v9691 = vsub.f32 %v9689, %v9690
    %v9692 = vand.u32 %v9691, 4294901760
    %9693 = vmatpush1.msra.mxu0 %v9692
    %v9694 = vand.u32 %v8758, 4294901760
    %v9695 = vsub.f32 %v8758, %v9694
    %v9696 = vand.u32 %v9695, 4294901760
    %v9697 = vsub.f32 %v9695, %v9696
    %v9698 = vand.u32 %v9697, 4294901760
    %9699 = vmatprep.subr.mxu0 %v9698
    %v9700 = vand.u32 %v8757, 4294901760
    %v9701 = vsub.f32 %v8757, %v9700
    %v9702 = vand.u32 %v9701, 4294901760
    %v9703 = vsub.f32 %v9701, %v9702
    %v9704 = vand.u32 %v9703, 4294901760
    %9705 = vmatpush1.msra.mxu0 %v9704
    %v9706 = vand.u32 %v8762, 4294901760
    %v9707 = vsub.f32 %v8762, %v9706
    %v9708 = vand.u32 %v9707, 4294901760
    %v9709 = vsub.f32 %v9707, %v9708
    %v9710 = vand.u32 %v9709, 4294901760
    %9711 = vmatprep.subr.mxu0 %v9710
    %v9712 = vand.u32 %v8761, 4294901760
    %v9713 = vsub.f32 %v8761, %v9712
    %v9714 = vand.u32 %v9713, 4294901760
    %v9715 = vsub.f32 %v9713, %v9714
    %v9716 = vand.u32 %v9715, 4294901760
    %9717 = vmatpush1.msra.mxu0 %v9716
    %9718 = vmatprep.subr.mxu0 0.0
    %9719 = vmatpush1.msra.mxu0 0.0
    %9720 = vmatprep.subr.mxu0 0.0
    %9721 = vmatpush1.msra.mxu0 0.0
    %9722 = vmatprep.subr.mxu0 0.0
    %9723 = vmatpush1.msra.mxu0 0.0
    %9724 = vmatprep.subr.mxu0 0.0
    %9725 = vmatpush1.msra.mxu0 0.0
    %9726 = vmatprep.subr.mxu0 0.0
    %9727 = vmatpush1.msra.mxu0 0.0
    %9728 = vmatprep.subr.mxu0 0.0
    %9729 = vmatpush1.msra.mxu0 0.0
    %9730 = vmatprep.subr.mxu0 0.0
    %9731 = vmatpush1.msra.mxu0 0.0
    %9732 = vmatprep.subr.mxu0 0.0
    %9733 = vmatpush1.msra.mxu0 0.0
    %9734 = vmatprep.subr.mxu0 0.0
    %9735 = vmatpush1.msra.mxu0 0.0
    %9736 = vmatprep.subr.mxu0 0.0
    %9737 = vmatpush1.msra.mxu0 0.0
    %9738 = vmatprep.subr.mxu0 0.0
    %9739 = vmatpush1.msra.mxu0 0.0
    %9740 = vmatprep.subr.mxu0 0.0
    %9741 = vmatpush1.msra.mxu0 0.0
    %9742 = vmatprep.subr.mxu0 0.0
    %9743 = vmatpush1.msra.mxu0 0.0
    %9744 = vmatprep.subr.mxu0 0.0
    %9745 = vmatpush1.msra.mxu0 0.0
    %9746 = vmatprep.subr.mxu0 0.0
    %9747 = vmatpush1.msra.mxu0 0.0
    %9748 = vmatprep.subr.mxu0 0.0
    %9749 = vmatpush1.msra.mxu0 0.0
    %9750 = vmatprep.subr.mxu0 0.0
    %9751 = vmatpush1.msra.mxu0 0.0
    %9752 = vmatprep.subr.mxu0 0.0
    %9753 = vmatpush1.msra.mxu0 0.0
    %9754 = vmatprep.subr.mxu0 0.0
    %9755 = vmatpush1.msra.mxu0 0.0
    %9756 = vmatprep.subr.mxu0 0.0
    %9757 = vmatpush1.msra.mxu0 0.0
    %9758 = vmatprep.subr.mxu0 0.0
    %9759 = vmatpush1.msra.mxu0 0.0
    %9760 = vmatprep.subr.mxu0 0.0
    %9761 = vmatpush1.msra.mxu0 0.0
    %9762 = vmatprep.subr.mxu0 0.0
    %9763 = vmatpush1.msra.mxu0 0.0
    %9764 = vmatprep.subr.mxu0 0.0
    %9765 = vmatpush1.msra.mxu0 0.0
    %9766 = vmatprep.subr.mxu0 0.0
    %9767 = vmatpush1.msra.mxu0 0.0
    %9768 = vmatprep.subr.mxu0 0.0
    %9769 = vmatpush1.msra.mxu0 0.0
    %9770 = vmatprep.subr.mxu0 0.0
    %9771 = vmatpush1.msra.mxu0 0.0
    %9772 = vmatprep.mubr.f32.mxu0 0.0
    %v9773 = vand.u32 %v3095, 4294901760
    %9774 = vmatmul.mubr.f32.gmra.mrb[0].mxu0 %v9773
    %v9775 = vpop.f32.mrb[0].mxu0
    %v9776 = vadd.f32 %v9610, %v9775
    %v9777 = vpop.f32.mrb[0].mxu0
    %v9778 = vadd.f32 %v9612, %v9777
    %9779 = vmatprep.mubr.f32.mxu0 0.0
    %v9780 = vand.u32 %v3098, 4294901760
    %9781 = vmatmul.mubr.f32.gmra.mrb[0].mxu0 %v9780
    %v9782 = vpop.f32.mrb[0].mxu0
    %v9783 = vadd.f32 %v9621, %v9782
    %v9784 = vpop.f32.mrb[0].mxu0
    %v9785 = vadd.f32 %v9623, %v9784
    %9786 = vmatprep.mubr.f32.mxu0 0.0
    %v9787 = vand.u32 %v3101, 4294901760
    %9788 = vmatmul.mubr.f32.gmra.mrb[0].mxu0 %v9787
    %v9789 = vpop.f32.mrb[0].mxu0
    %v9790 = vadd.f32 %v9632, %v9789
    %v9791 = vpop.f32.mrb[0].mxu0
    %v9792 = vadd.f32 %v9634, %v9791
    %9793 = vmatprep.mubr.f32.mxu0 0.0
    %v9794 = vand.u32 %v3104, 4294901760
    %9795 = vmatmul.mubr.f32.gmra.mrb[0].mxu0 %v9794
    %v9796 = vpop.f32.mrb[0].mxu0
    %v9797 = vadd.f32 %v9643, %v9796
    %v9798 = vpop.f32.mrb[0].mxu0
    %v9799 = vadd.f32 %v9645, %v9798
    %9800 = vmatprep.mubr.f32.mxu0 0.0
    %v9801 = vand.u32 %v3107, 4294901760
    %9802 = vmatmul.mubr.f32.gmra.mrb[0].mxu0 %v9801
    %v9803 = vpop.f32.mrb[0].mxu0
    %v9804 = vadd.f32 %v9654, %v9803
    %v9805 = vpop.f32.mrb[0].mxu0
    %v9806 = vadd.f32 %v9656, %v9805
    %9807 = vdwg.mxu0
    %v9808 = vand.u32 %v8746, 4294901760
    %v9809 = vsub.f32 %v8746, %v9808
    %9810 = vmatprep.subr.mxu0 %v9809
    %v9811 = vand.u32 %v8745, 4294901760
    %v9812 = vsub.f32 %v8745, %v9811
    %9813 = vmatpush1.msra.mxu0 %v9812
    %v9814 = vand.u32 %v8750, 4294901760
    %v9815 = vsub.f32 %v8750, %v9814
    %9816 = vmatprep.subr.mxu0 %v9815
    %v9817 = vand.u32 %v8749, 4294901760
    %v9818 = vsub.f32 %v8749, %v9817
    %9819 = vmatpush1.msra.mxu0 %v9818
    %v9820 = vand.u32 %v8754, 4294901760
    %v9821 = vsub.f32 %v8754, %v9820
    %9822 = vmatprep.subr.mxu0 %v9821
    %v9823 = vand.u32 %v8753, 4294901760
    %v9824 = vsub.f32 %v8753, %v9823
    %9825 = vmatpush1.msra.mxu0 %v9824
    %v9826 = vand.u32 %v8758, 4294901760
    %v9827 = vsub.f32 %v8758, %v9826
    %9828 = vmatprep.subr.mxu0 %v9827
    %v9829 = vand.u32 %v8757, 4294901760
    %v9830 = vsub.f32 %v8757, %v9829
    %9831 = vmatpush1.msra.mxu0 %v9830
    %v9832 = vand.u32 %v8762, 4294901760
    %v9833 = vsub.f32 %v8762, %v9832
    %9834 = vmatprep.subr.mxu0 %v9833
    %v9835 = vand.u32 %v8761, 4294901760
    %v9836 = vsub.f32 %v8761, %v9835
    %9837 = vmatpush1.msra.mxu0 %v9836
    %9838 = vmatprep.subr.mxu0 0.0
    %9839 = vmatpush1.msra.mxu0 0.0
    %9840 = vmatprep.subr.mxu0 0.0
    %9841 = vmatpush1.msra.mxu0 0.0
    %9842 = vmatprep.subr.mxu0 0.0
    %9843 = vmatpush1.msra.mxu0 0.0
    %9844 = vmatprep.subr.mxu0 0.0
    %9845 = vmatpush1.msra.mxu0 0.0
    %9846 = vmatprep.subr.mxu0 0.0
    %9847 = vmatpush1.msra.mxu0 0.0
    %9848 = vmatprep.subr.mxu0 0.0
    %9849 = vmatpush1.msra.mxu0 0.0
    %9850 = vmatprep.subr.mxu0 0.0
    %9851 = vmatpush1.msra.mxu0 0.0
    %9852 = vmatprep.subr.mxu0 0.0
    %9853 = vmatpush1.msra.mxu0 0.0
    %9854 = vmatprep.subr.mxu0 0.0
    %9855 = vmatpush1.msra.mxu0 0.0
    %9856 = vmatprep.subr.mxu0 0.0
    %9857 = vmatpush1.msra.mxu0 0.0
    %9858 = vmatprep.subr.mxu0 0.0
    %9859 = vmatpush1.msra.mxu0 0.0
    %9860 = vmatprep.subr.mxu0 0.0
    %9861 = vmatpush1.msra.mxu0 0.0
    %9862 = vmatprep.subr.mxu0 0.0
    %9863 = vmatpush1.msra.mxu0 0.0
    %9864 = vmatprep.subr.mxu0 0.0
    %9865 = vmatpush1.msra.mxu0 0.0
    %9866 = vmatprep.subr.mxu0 0.0
    %9867 = vmatpush1.msra.mxu0 0.0
    %9868 = vmatprep.subr.mxu0 0.0
    %9869 = vmatpush1.msra.mxu0 0.0
    %9870 = vmatprep.subr.mxu0 0.0
    %9871 = vmatpush1.msra.mxu0 0.0
    %9872 = vmatprep.subr.mxu0 0.0
    %9873 = vmatpush1.msra.mxu0 0.0
    %9874 = vmatprep.subr.mxu0 0.0
    %9875 = vmatpush1.msra.mxu0 0.0
    %9876 = vmatprep.subr.mxu0 0.0
    %9877 = vmatpush1.msra.mxu0 0.0
    %9878 = vmatprep.subr.mxu0 0.0
    %9879 = vmatpush1.msra.mxu0 0.0
    %9880 = vmatprep.subr.mxu0 0.0
    %9881 = vmatpush1.msra.mxu0 0.0
    %9882 = vmatprep.subr.mxu0 0.0
    %9883 = vmatpush1.msra.mxu0 0.0
    %9884 = vmatprep.subr.mxu0 0.0
    %9885 = vmatpush1.msra.mxu0 0.0
    %9886 = vmatprep.subr.mxu0 0.0
    %9887 = vmatpush1.msra.mxu0 0.0
    %9888 = vmatprep.subr.mxu0 0.0
    %9889 = vmatpush1.msra.mxu0 0.0
    %9890 = vmatprep.subr.mxu0 0.0
    %9891 = vmatpush1.msra.mxu0 0.0
    %9892 = vmatprep.mubr.f32.mxu0 0.0
    %v9893 = vand.u32 %v3095, 4294901760
    %v9894 = vsub.f32 %v3095, %v9893
    %9895 = vmatmul.mubr.f32.gmra.mrb[0].mxu0 %v9894
    %v9896 = vpop.f32.mrb[0].mxu0
    %v9897 = vadd.f32 %v9776, %v9896
    %v9898 = vpop.f32.mrb[0].mxu0
    %v9899 = vadd.f32 %v9778, %v9898
    %9900 = vmatprep.mubr.f32.mxu0 0.0
    %v9901 = vand.u32 %v3098, 4294901760
    %v9902 = vsub.f32 %v3098, %v9901
    %9903 = vmatmul.mubr.f32.gmra.mrb[0].mxu0 %v9902
    %v9904 = vpop.f32.mrb[0].mxu0
    %v9905 = vadd.f32 %v9783, %v9904
    %v9906 = vpop.f32.mrb[0].mxu0
    %v9907 = vadd.f32 %v9785, %v9906
    %9908 = vmatprep.mubr.f32.mxu0 0.0
    %v9909 = vand.u32 %v3101, 4294901760
    %v9910 = vsub.f32 %v3101, %v9909
    %9911 = vmatmul.mubr.f32.gmra.mrb[0].mxu0 %v9910
    %v9912 = vpop.f32.mrb[0].mxu0
    %v9913 = vadd.f32 %v9790, %v9912
    %v9914 = vpop.f32.mrb[0].mxu0
    %v9915 = vadd.f32 %v9792, %v9914
    %9916 = vmatprep.mubr.f32.mxu0 0.0
    %v9917 = vand.u32 %v3104, 4294901760
    %v9918 = vsub.f32 %v3104, %v9917
    %9919 = vmatmul.mubr.f32.gmra.mrb[0].mxu0 %v9918
    %v9920 = vpop.f32.mrb[0].mxu0
    %v9921 = vadd.f32 %v9797, %v9920
    %v9922 = vpop.f32.mrb[0].mxu0
    %v9923 = vadd.f32 %v9799, %v9922
    %9924 = vmatprep.mubr.f32.mxu0 0.0
    %v9925 = vand.u32 %v3107, 4294901760
    %v9926 = vsub.f32 %v3107, %v9925
    %9927 = vmatmul.mubr.f32.gmra.mrb[0].mxu0 %v9926
    %v9928 = vpop.f32.mrb[0].mxu0
    %v9929 = vadd.f32 %v9804, %v9928
    %v9930 = vpop.f32.mrb[0].mxu0
    %v9931 = vadd.f32 %v9806, %v9930
    %9932 = vdwg.mxu0
    %v9933 = vand.u32 %v8746, 4294901760
    %9934 = vmatprep.subr.mxu0 %v9933
    %v9935 = vand.u32 %v8745, 4294901760
    %9936 = vmatpush1.msra.mxu0 %v9935
    %v9937 = vand.u32 %v8750, 4294901760
    %9938 = vmatprep.subr.mxu0 %v9937
    %v9939 = vand.u32 %v8749, 4294901760
    %9940 = vmatpush1.msra.mxu0 %v9939
    %v9941 = vand.u32 %v8754, 4294901760
    %9942 = vmatprep.subr.mxu0 %v9941
    %v9943 = vand.u32 %v8753, 4294901760
    %9944 = vmatpush1.msra.mxu0 %v9943
    %v9945 = vand.u32 %v8758, 4294901760
    %9946 = vmatprep.subr.mxu0 %v9945
    %v9947 = vand.u32 %v8757, 4294901760
    %9948 = vmatpush1.msra.mxu0 %v9947
    %v9949 = vand.u32 %v8762, 4294901760
    %9950 = vmatprep.subr.mxu0 %v9949
    %v9951 = vand.u32 %v8761, 4294901760
    %9952 = vmatpush1.msra.mxu0 %v9951
    %9953 = vmatprep.subr.mxu0 0.0
    %9954 = vmatpush1.msra.mxu0 0.0
    %9955 = vmatprep.subr.mxu0 0.0
    %9956 = vmatpush1.msra.mxu0 0.0
    %9957 = vmatprep.subr.mxu0 0.0
    %9958 = vmatpush1.msra.mxu0 0.0
    %9959 = vmatprep.subr.mxu0 0.0
    %9960 = vmatpush1.msra.mxu0 0.0
    %9961 = vmatprep.subr.mxu0 0.0
    %9962 = vmatpush1.msra.mxu0 0.0
    %9963 = vmatprep.subr.mxu0 0.0
    %9964 = vmatpush1.msra.mxu0 0.0
    %9965 = vmatprep.subr.mxu0 0.0
    %9966 = vmatpush1.msra.mxu0 0.0
    %9967 = vmatprep.subr.mxu0 0.0
    %9968 = vmatpush1.msra.mxu0 0.0
    %9969 = vmatprep.subr.mxu0 0.0
    %9970 = vmatpush1.msra.mxu0 0.0
    %9971 = vmatprep.subr.mxu0 0.0
    %9972 = vmatpush1.msra.mxu0 0.0
    %9973 = vmatprep.subr.mxu0 0.0
    %9974 = vmatpush1.msra.mxu0 0.0
    %9975 = vmatprep.subr.mxu0 0.0
    %9976 = vmatpush1.msra.mxu0 0.0
    %9977 = vmatprep.subr.mxu0 0.0
    %9978 = vmatpush1.msra.mxu0 0.0
    %9979 = vmatprep.subr.mxu0 0.0
    %9980 = vmatpush1.msra.mxu0 0.0
    %9981 = vmatprep.subr.mxu0 0.0
    %9982 = vmatpush1.msra.mxu0 0.0
    %9983 = vmatprep.subr.mxu0 0.0
    %9984 = vmatpush1.msra.mxu0 0.0
    %9985 = vmatprep.subr.mxu0 0.0
    %9986 = vmatpush1.msra.mxu0 0.0
    %9987 = vmatprep.subr.mxu0 0.0
    %9988 = vmatpush1.msra.mxu0 0.0
    %9989 = vmatprep.subr.mxu0 0.0
    %9990 = vmatpush1.msra.mxu0 0.0
    %9991 = vmatprep.subr.mxu0 0.0
    %9992 = vmatpush1.msra.mxu0 0.0
    %9993 = vmatprep.subr.mxu0 0.0
    %9994 = vmatpush1.msra.mxu0 0.0
    %9995 = vmatprep.subr.mxu0 0.0
    %9996 = vmatpush1.msra.mxu0 0.0
    %9997 = vmatprep.subr.mxu0 0.0
    %9998 = vmatpush1.msra.mxu0 0.0
    %9999 = vmatprep.subr.mxu0 0.0
    %10000 = vmatpush1.msra.mxu0 0.0
    %10001 = vmatprep.subr.mxu0 0.0
    %10002 = vmatpush1.msra.mxu0 0.0
    %10003 = vmatprep.subr.mxu0 0.0
    %10004 = vmatpush1.msra.mxu0 0.0
    %10005 = vmatprep.subr.mxu0 0.0
    %10006 = vmatpush1.msra.mxu0 0.0
    %10007 = vmatprep.mubr.f32.mxu0 0.0
    %v10008 = vand.u32 %v3095, 4294901760
    %v10009 = vsub.f32 %v3095, %v10008
    %v10010 = vand.u32 %v10009, 4294901760
    %10011 = vmatmul.mubr.f32.gmra.mrb[0].mxu0 %v10010
    %v10012 = vpop.f32.mrb[0].mxu0
    %v10013 = vadd.f32 %v9897, %v10012
    %v10014 = vpop.f32.mrb[0].mxu0
    %v10015 = vadd.f32 %v9899, %v10014
    %10016 = vmatprep.mubr.f32.mxu0 0.0
    %v10017 = vand.u32 %v3098, 4294901760
    %v10018 = vsub.f32 %v3098, %v10017
    %v10019 = vand.u32 %v10018, 4294901760
    %10020 = vmatmul.mubr.f32.gmra.mrb[0].mxu0 %v10019
    %v10021 = vpop.f32.mrb[0].mxu0
    %v10022 = vadd.f32 %v9905, %v10021
    %v10023 = vpop.f32.mrb[0].mxu0
    %v10024 = vadd.f32 %v9907, %v10023
    %10025 = vmatprep.mubr.f32.mxu0 0.0
    %v10026 = vand.u32 %v3101, 4294901760
    %v10027 = vsub.f32 %v3101, %v10026
    %v10028 = vand.u32 %v10027, 4294901760
    %10029 = vmatmul.mubr.f32.gmra.mrb[0].mxu0 %v10028
    %v10030 = vpop.f32.mrb[0].mxu0
    %v10031 = vadd.f32 %v9913, %v10030
    %v10032 = vpop.f32.mrb[0].mxu0
    %v10033 = vadd.f32 %v9915, %v10032
    %10034 = vmatprep.mubr.f32.mxu0 0.0
    %v10035 = vand.u32 %v3104, 4294901760
    %v10036 = vsub.f32 %v3104, %v10035
    %v10037 = vand.u32 %v10036, 4294901760
    %10038 = vmatmul.mubr.f32.gmra.mrb[0].mxu0 %v10037
    %v10039 = vpop.f32.mrb[0].mxu0
    %v10040 = vadd.f32 %v9921, %v10039
    %v10041 = vpop.f32.mrb[0].mxu0
    %v10042 = vadd.f32 %v9923, %v10041
    %10043 = vmatprep.mubr.f32.mxu0 0.0
    %v10044 = vand.u32 %v3107, 4294901760
    %v10045 = vsub.f32 %v3107, %v10044
    %v10046 = vand.u32 %v10045, 4294901760
    %10047 = vmatmul.mubr.f32.gmra.mrb[0].mxu0 %v10046
    %v10048 = vpop.f32.mrb[0].mxu0
    %v10049 = vadd.f32 %v9929, %v10048
    %v10050 = vpop.f32.mrb[0].mxu0
    %v10051 = vadd.f32 %v9931, %v10050
    %10052 = vdwg.mxu0
    %v10053 = vand.u32 %v8746, 4294901760
    %v10054 = vsub.f32 %v8746, %v10053
    %v10055 = vand.u32 %v10054, 4294901760
    %10056 = vmatprep.subr.mxu0 %v10055
    %v10057 = vand.u32 %v8745, 4294901760
    %v10058 = vsub.f32 %v8745, %v10057
    %v10059 = vand.u32 %v10058, 4294901760
    %10060 = vmatpush1.msra.mxu0 %v10059
    %v10061 = vand.u32 %v8750, 4294901760
    %v10062 = vsub.f32 %v8750, %v10061
    %v10063 = vand.u32 %v10062, 4294901760
    %10064 = vmatprep.subr.mxu0 %v10063
    %v10065 = vand.u32 %v8749, 4294901760
    %v10066 = vsub.f32 %v8749, %v10065
    %v10067 = vand.u32 %v10066, 4294901760
    %10068 = vmatpush1.msra.mxu0 %v10067
    %v10069 = vand.u32 %v8754, 4294901760
    %v10070 = vsub.f32 %v8754, %v10069
    %v10071 = vand.u32 %v10070, 4294901760
    %10072 = vmatprep.subr.mxu0 %v10071
    %v10073 = vand.u32 %v8753, 4294901760
    %v10074 = vsub.f32 %v8753, %v10073
    %v10075 = vand.u32 %v10074, 4294901760
    %10076 = vmatpush1.msra.mxu0 %v10075
    %v10077 = vand.u32 %v8758, 4294901760
    %v10078 = vsub.f32 %v8758, %v10077
    %v10079 = vand.u32 %v10078, 4294901760
    %10080 = vmatprep.subr.mxu0 %v10079
    %v10081 = vand.u32 %v8757, 4294901760
    %v10082 = vsub.f32 %v8757, %v10081
    %v10083 = vand.u32 %v10082, 4294901760
    %10084 = vmatpush1.msra.mxu0 %v10083
    %v10085 = vand.u32 %v8762, 4294901760
    %v10086 = vsub.f32 %v8762, %v10085
    %v10087 = vand.u32 %v10086, 4294901760
    %10088 = vmatprep.subr.mxu0 %v10087
    %v10089 = vand.u32 %v8761, 4294901760
    %v10090 = vsub.f32 %v8761, %v10089
    %v10091 = vand.u32 %v10090, 4294901760
    %10092 = vmatpush1.msra.mxu0 %v10091
    %10093 = vmatprep.subr.mxu0 0.0
    %10094 = vmatpush1.msra.mxu0 0.0
    %10095 = vmatprep.subr.mxu0 0.0
    %10096 = vmatpush1.msra.mxu0 0.0
    %10097 = vmatprep.subr.mxu0 0.0
    %10098 = vmatpush1.msra.mxu0 0.0
    %10099 = vmatprep.subr.mxu0 0.0
    %10100 = vmatpush1.msra.mxu0 0.0
    %10101 = vmatprep.subr.mxu0 0.0
    %10102 = vmatpush1.msra.mxu0 0.0
    %10103 = vmatprep.subr.mxu0 0.0
    %10104 = vmatpush1.msra.mxu0 0.0
    %10105 = vmatprep.subr.mxu0 0.0
    %10106 = vmatpush1.msra.mxu0 0.0
    %10107 = vmatprep.subr.mxu0 0.0
    %10108 = vmatpush1.msra.mxu0 0.0
    %10109 = vmatprep.subr.mxu0 0.0
    %10110 = vmatpush1.msra.mxu0 0.0
    %10111 = vmatprep.subr.mxu0 0.0
    %10112 = vmatpush1.msra.mxu0 0.0
    %10113 = vmatprep.subr.mxu0 0.0
    %10114 = vmatpush1.msra.mxu0 0.0
    %10115 = vmatprep.subr.mxu0 0.0
    %10116 = vmatpush1.msra.mxu0 0.0
    %10117 = vmatprep.subr.mxu0 0.0
    %10118 = vmatpush1.msra.mxu0 0.0
    %10119 = vmatprep.subr.mxu0 0.0
    %10120 = vmatpush1.msra.mxu0 0.0
    %10121 = vmatprep.subr.mxu0 0.0
    %10122 = vmatpush1.msra.mxu0 0.0
    %10123 = vmatprep.subr.mxu0 0.0
    %10124 = vmatpush1.msra.mxu0 0.0
    %10125 = vmatprep.subr.mxu0 0.0
    %10126 = vmatpush1.msra.mxu0 0.0
    %10127 = vmatprep.subr.mxu0 0.0
    %10128 = vmatpush1.msra.mxu0 0.0
    %10129 = vmatprep.subr.mxu0 0.0
    %10130 = vmatpush1.msra.mxu0 0.0
    %10131 = vmatprep.subr.mxu0 0.0
    %10132 = vmatpush1.msra.mxu0 0.0
    %10133 = vmatprep.subr.mxu0 0.0
    %10134 = vmatpush1.msra.mxu0 0.0
    %10135 = vmatprep.subr.mxu0 0.0
    %10136 = vmatpush1.msra.mxu0 0.0
    %10137 = vmatprep.subr.mxu0 0.0
    %10138 = vmatpush1.msra.mxu0 0.0
    %10139 = vmatprep.subr.mxu0 0.0
    %10140 = vmatpush1.msra.mxu0 0.0
    %10141 = vmatprep.subr.mxu0 0.0
    %10142 = vmatpush1.msra.mxu0 0.0
    %10143 = vmatprep.subr.mxu0 0.0
    %10144 = vmatpush1.msra.mxu0 0.0
    %10145 = vmatprep.subr.mxu0 0.0
    %10146 = vmatpush1.msra.mxu0 0.0
    %10147 = vmatprep.mubr.f32.mxu0 0.0
    %v10148 = vand.u32 %v3095, 4294901760
    %10149 = vmatmul.mubr.f32.gmra.mrb[0].mxu0 %v10148
    %v10150 = vpop.f32.mrb[0].mxu0
    %v10151 = vadd.f32 %v10013, %v10150
    %v10152 = vpop.f32.mrb[0].mxu0
    %v10153 = vadd.f32 %v10015, %v10152
    %10154 = vmatprep.mubr.f32.mxu0 0.0
    %v10155 = vand.u32 %v3098, 4294901760
    %10156 = vmatmul.mubr.f32.gmra.mrb[0].mxu0 %v10155
    %v10157 = vpop.f32.mrb[0].mxu0
    %v10158 = vadd.f32 %v10022, %v10157
    %v10159 = vpop.f32.mrb[0].mxu0
    %v10160 = vadd.f32 %v10024, %v10159
    %10161 = vmatprep.mubr.f32.mxu0 0.0
    %v10162 = vand.u32 %v3101, 4294901760
    %10163 = vmatmul.mubr.f32.gmra.mrb[0].mxu0 %v10162
    %v10164 = vpop.f32.mrb[0].mxu0
    %v10165 = vadd.f32 %v10031, %v10164
    %v10166 = vpop.f32.mrb[0].mxu0
    %v10167 = vadd.f32 %v10033, %v10166
    %10168 = vmatprep.mubr.f32.mxu0 0.0
    %v10169 = vand.u32 %v3104, 4294901760
    %10170 = vmatmul.mubr.f32.gmra.mrb[0].mxu0 %v10169
    %v10171 = vpop.f32.mrb[0].mxu0
    %v10172 = vadd.f32 %v10040, %v10171
    %v10173 = vpop.f32.mrb[0].mxu0
    %v10174 = vadd.f32 %v10042, %v10173
    %10175 = vmatprep.mubr.f32.mxu0 0.0
    %v10176 = vand.u32 %v3107, 4294901760
    %10177 = vmatmul.mubr.f32.gmra.mrb[0].mxu0 %v10176
    %v10178 = vpop.f32.mrb[0].mxu0
    %v10179 = vadd.f32 %v10049, %v10178
    %v10180 = vpop.f32.mrb[0].mxu0
    %v10181 = vadd.f32 %v10051, %v10180
    %10182 = vdwg.mxu0
    %v10183 = vand.u32 %v8746, 4294901760
    %10184 = vmatprep.subr.mxu0 %v10183
    %v10185 = vand.u32 %v8745, 4294901760
    %10186 = vmatpush1.msra.mxu0 %v10185
    %v10187 = vand.u32 %v8750, 4294901760
    %10188 = vmatprep.subr.mxu0 %v10187
    %v10189 = vand.u32 %v8749, 4294901760
    %10190 = vmatpush1.msra.mxu0 %v10189
    %v10191 = vand.u32 %v8754, 4294901760
    %10192 = vmatprep.subr.mxu0 %v10191
    %v10193 = vand.u32 %v8753, 4294901760
    %10194 = vmatpush1.msra.mxu0 %v10193
    %v10195 = vand.u32 %v8758, 4294901760
    %10196 = vmatprep.subr.mxu0 %v10195
    %v10197 = vand.u32 %v8757, 4294901760
    %10198 = vmatpush1.msra.mxu0 %v10197
    %v10199 = vand.u32 %v8762, 4294901760
    %10200 = vmatprep.subr.mxu0 %v10199
    %v10201 = vand.u32 %v8761, 4294901760
    %10202 = vmatpush1.msra.mxu0 %v10201
    %10203 = vmatprep.subr.mxu0 0.0
    %10204 = vmatpush1.msra.mxu0 0.0
    %10205 = vmatprep.subr.mxu0 0.0
    %10206 = vmatpush1.msra.mxu0 0.0
    %10207 = vmatprep.subr.mxu0 0.0
    %10208 = vmatpush1.msra.mxu0 0.0
    %10209 = vmatprep.subr.mxu0 0.0
    %10210 = vmatpush1.msra.mxu0 0.0
    %10211 = vmatprep.subr.mxu0 0.0
    %10212 = vmatpush1.msra.mxu0 0.0
    %10213 = vmatprep.subr.mxu0 0.0
    %10214 = vmatpush1.msra.mxu0 0.0
    %10215 = vmatprep.subr.mxu0 0.0
    %10216 = vmatpush1.msra.mxu0 0.0
    %10217 = vmatprep.subr.mxu0 0.0
    %10218 = vmatpush1.msra.mxu0 0.0
    %10219 = vmatprep.subr.mxu0 0.0
    %10220 = vmatpush1.msra.mxu0 0.0
    %10221 = vmatprep.subr.mxu0 0.0
    %10222 = vmatpush1.msra.mxu0 0.0
    %10223 = vmatprep.subr.mxu0 0.0
    %10224 = vmatpush1.msra.mxu0 0.0
    %10225 = vmatprep.subr.mxu0 0.0
    %10226 = vmatpush1.msra.mxu0 0.0
    %10227 = vmatprep.subr.mxu0 0.0
    %10228 = vmatpush1.msra.mxu0 0.0
    %10229 = vmatprep.subr.mxu0 0.0
    %10230 = vmatpush1.msra.mxu0 0.0
    %10231 = vmatprep.subr.mxu0 0.0
    %10232 = vmatpush1.msra.mxu0 0.0
    %10233 = vmatprep.subr.mxu0 0.0
    %10234 = vmatpush1.msra.mxu0 0.0
    %10235 = vmatprep.subr.mxu0 0.0
    %10236 = vmatpush1.msra.mxu0 0.0
    %10237 = vmatprep.subr.mxu0 0.0
    %10238 = vmatpush1.msra.mxu0 0.0
    %10239 = vmatprep.subr.mxu0 0.0
    %10240 = vmatpush1.msra.mxu0 0.0
    %10241 = vmatprep.subr.mxu0 0.0
    %10242 = vmatpush1.msra.mxu0 0.0
    %10243 = vmatprep.subr.mxu0 0.0
    %10244 = vmatpush1.msra.mxu0 0.0
    %10245 = vmatprep.subr.mxu0 0.0
    %10246 = vmatpush1.msra.mxu0 0.0
    %10247 = vmatprep.subr.mxu0 0.0
    %10248 = vmatpush1.msra.mxu0 0.0
    %10249 = vmatprep.subr.mxu0 0.0
    %10250 = vmatpush1.msra.mxu0 0.0
    %10251 = vmatprep.subr.mxu0 0.0
    %10252 = vmatpush1.msra.mxu0 0.0
    %10253 = vmatprep.subr.mxu0 0.0
    %10254 = vmatpush1.msra.mxu0 0.0
    %10255 = vmatprep.subr.mxu0 0.0
    %10256 = vmatpush1.msra.mxu0 0.0
    %10257 = vmatprep.mubr.f32.mxu0 0.0
    %v10258 = vand.u32 %v3095, 4294901760
    %10259 = vmatmul.mubr.f32.gmra.mrb[0].mxu0 %v10258
    %v10260 = vpop.f32.mrb[0].mxu0
    %v10261 = vadd.f32 %v10151, %v10260
    %v10262 = vpop.f32.mrb[0].mxu0
    %v10263 = vadd.f32 %v10153, %v10262
    %10264 = vmatprep.mubr.f32.mxu0 0.0
    %v10265 = vand.u32 %v3098, 4294901760
    %10266 = vmatmul.mubr.f32.gmra.mrb[0].mxu0 %v10265
    %v10267 = vpop.f32.mrb[0].mxu0
    %v10268 = vadd.f32 %v10158, %v10267
    %v10269 = vpop.f32.mrb[0].mxu0
    %v10270 = vadd.f32 %v10160, %v10269
    %10271 = vmatprep.mubr.f32.mxu0 0.0
    %v10272 = vand.u32 %v3101, 4294901760
    %10273 = vmatmul.mubr.f32.gmra.mrb[0].mxu0 %v10272
    %v10274 = vpop.f32.mrb[0].mxu0
    %v10275 = vadd.f32 %v10165, %v10274
    %v10276 = vpop.f32.mrb[0].mxu0
    %v10277 = vadd.f32 %v10167, %v10276
    %10278 = vmatprep.mubr.f32.mxu0 0.0
    %v10279 = vand.u32 %v3104, 4294901760
    %10280 = vmatmul.mubr.f32.gmra.mrb[0].mxu0 %v10279
    %v10281 = vpop.f32.mrb[0].mxu0
    %v10282 = vadd.f32 %v10172, %v10281
    %v10283 = vpop.f32.mrb[0].mxu0
    %v10284 = vadd.f32 %v10174, %v10283
    %10285 = vmatprep.mubr.f32.mxu0 0.0
    %v10286 = vand.u32 %v3107, 4294901760
    %10287 = vmatmul.mubr.f32.gmra.mrb[0].mxu0 %v10286
    %v10288 = vpop.f32.mrb[0].mxu0
    %v10289 = vadd.f32 %v10179, %v10288
    %v10290 = vpop.f32.mrb[0].mxu0
    %v10291 = vadd.f32 %v10181, %v10290
    %10292 = vdwg.mxu0
    %v10293 = vtanh.pop %v9496
    %v10294 = vtanh.pop %v9498
    %v10295 = vtanh.pop %v10261
    %v10296 = vtanh.pop %v10263
    %v10297 = vtanh.pop %v9503
    %v10298 = vtanh.pop %v9505
    %v10299 = vtanh.pop %v10268
    %v10300 = vtanh.pop %v10270
    %v10301 = vtanh.pop %v9510
    %v10302 = vtanh.pop %v9512
    %v10303 = vtanh.pop %v10275
    %v10304 = vtanh.pop %v10277
    %v10305 = vtanh.pop %v9517
    %v10306 = vtanh.pop %v9519
    %v10307 = vtanh.pop %v10282
    %v10308 = vtanh.pop %v10284
    %v10309 = vtanh.pop %v9524
    %v10310 = vtanh.pop %v9526
    %v10311 = vtanh.pop %v10289
    %v10312 = vtanh.pop %v10291
    %v10313 = vand.u32 %v10294, 4294901760
    %10314 = vmatprep.subr.mxu0 %v10313
    %v10315 = vand.u32 %v10293, 4294901760
    %10316 = vmatpush1.msra.mxu0 %v10315
    %v10317 = vand.u32 %v10298, 4294901760
    %10318 = vmatprep.subr.mxu0 %v10317
    %v10319 = vand.u32 %v10297, 4294901760
    %10320 = vmatpush1.msra.mxu0 %v10319
    %v10321 = vand.u32 %v10302, 4294901760
    %10322 = vmatprep.subr.mxu0 %v10321
    %v10323 = vand.u32 %v10301, 4294901760
    %10324 = vmatpush1.msra.mxu0 %v10323
    %v10325 = vand.u32 %v10306, 4294901760
    %10326 = vmatprep.subr.mxu0 %v10325
    %v10327 = vand.u32 %v10305, 4294901760
    %10328 = vmatpush1.msra.mxu0 %v10327
    %v10329 = vand.u32 %v10310, 4294901760
    %10330 = vmatprep.subr.mxu0 %v10329
    %v10331 = vand.u32 %v10309, 4294901760
    %10332 = vmatpush1.msra.mxu0 %v10331
    %10333 = vmatprep.subr.mxu0 0.0
    %10334 = vmatpush1.msra.mxu0 0.0
    %10335 = vmatprep.subr.mxu0 0.0
    %10336 = vmatpush1.msra.mxu0 0.0
    %10337 = vmatprep.subr.mxu0 0.0
    %10338 = vmatpush1.msra.mxu0 0.0
    %10339 = vmatprep.subr.mxu0 0.0
    %10340 = vmatpush1.msra.mxu0 0.0
    %10341 = vmatprep.subr.mxu0 0.0
    %10342 = vmatpush1.msra.mxu0 0.0
    %10343 = vmatprep.subr.mxu0 0.0
    %10344 = vmatpush1.msra.mxu0 0.0
    %10345 = vmatprep.subr.mxu0 0.0
    %10346 = vmatpush1.msra.mxu0 0.0
    %10347 = vmatprep.subr.mxu0 0.0
    %10348 = vmatpush1.msra.mxu0 0.0
    %10349 = vmatprep.subr.mxu0 0.0
    %10350 = vmatpush1.msra.mxu0 0.0
    %10351 = vmatprep.subr.mxu0 0.0
    %10352 = vmatpush1.msra.mxu0 0.0
    %10353 = vmatprep.subr.mxu0 0.0
    %10354 = vmatpush1.msra.mxu0 0.0
    %10355 = vmatprep.subr.mxu0 0.0
    %10356 = vmatpush1.msra.mxu0 0.0
    %10357 = vmatprep.subr.mxu0 0.0
    %10358 = vmatpush1.msra.mxu0 0.0
    %10359 = vmatprep.subr.mxu0 0.0
    %10360 = vmatpush1.msra.mxu0 0.0
    %10361 = vmatprep.subr.mxu0 0.0
    %10362 = vmatpush1.msra.mxu0 0.0
    %10363 = vmatprep.subr.mxu0 0.0
    %10364 = vmatpush1.msra.mxu0 0.0
    %10365 = vmatprep.subr.mxu0 0.0
    %10366 = vmatpush1.msra.mxu0 0.0
    %10367 = vmatprep.subr.mxu0 0.0
    %10368 = vmatpush1.msra.mxu0 0.0
    %10369 = vmatprep.subr.mxu0 0.0
    %10370 = vmatpush1.msra.mxu0 0.0
    %10371 = vmatprep.subr.mxu0 0.0
    %10372 = vmatpush1.msra.mxu0 0.0
    %10373 = vmatprep.subr.mxu0 0.0
    %10374 = vmatpush1.msra.mxu0 0.0
    %10375 = vmatprep.subr.mxu0 0.0
    %10376 = vmatpush1.msra.mxu0 0.0
    %10377 = vmatprep.subr.mxu0 0.0
    %10378 = vmatpush1.msra.mxu0 0.0
    %10379 = vmatprep.subr.mxu0 0.0
    %10380 = vmatpush1.msra.mxu0 0.0
    %10381 = vmatprep.subr.mxu0 0.0
    %10382 = vmatpush1.msra.mxu0 0.0
    %10383 = vmatprep.subr.mxu0 0.0
    %10384 = vmatpush1.msra.mxu0 0.0
    %10385 = vmatprep.subr.mxu0 0.0
    %10386 = vmatpush1.msra.mxu0 0.0
    %10387 = vmatprep.mubr.f32.mxu0 0.0
    %v10388 = vand.u32 %v4669, 4294901760
    %v10389 = vsub.f32 %v4669, %v10388
    %v10390 = vand.u32 %v10389, 4294901760
    %v10391 = vsub.f32 %v10389, %v10390
    %v10392 = vand.u32 %v10391, 4294901760
    %10393 = vmatmul.mubr.f32.gmra.mrb[0].mxu0 %v10392
    %v10394 = vpop.f32.mrb[0].mxu0
    %v10395 = vadd.f32 %v4667, %v10394
    %v10396 = vpop.f32.mrb[0].mxu0
    %v10397 = vadd.f32 %v4667, %v10396
    %10398 = vdwg.mxu0
    %v10399 = vand.u32 %v10294, 4294901760
    %v10400 = vsub.f32 %v10294, %v10399
    %v10401 = vand.u32 %v10400, 4294901760
    %v10402 = vsub.f32 %v10400, %v10401
    %v10403 = vand.u32 %v10402, 4294901760
    %10404 = vmatprep.subr.mxu0 %v10403
    %v10405 = vand.u32 %v10293, 4294901760
    %v10406 = vsub.f32 %v10293, %v10405
    %v10407 = vand.u32 %v10406, 4294901760
    %v10408 = vsub.f32 %v10406, %v10407
    %v10409 = vand.u32 %v10408, 4294901760
    %10410 = vmatpush1.msra.mxu0 %v10409
    %v10411 = vand.u32 %v10298, 4294901760
    %v10412 = vsub.f32 %v10298, %v10411
    %v10413 = vand.u32 %v10412, 4294901760
    %v10414 = vsub.f32 %v10412, %v10413
    %v10415 = vand.u32 %v10414, 4294901760
    %10416 = vmatprep.subr.mxu0 %v10415
    %v10417 = vand.u32 %v10297, 4294901760
    %v10418 = vsub.f32 %v10297, %v10417
    %v10419 = vand.u32 %v10418, 4294901760
    %v10420 = vsub.f32 %v10418, %v10419
    %v10421 = vand.u32 %v10420, 4294901760
    %10422 = vmatpush1.msra.mxu0 %v10421
    %v10423 = vand.u32 %v10302, 4294901760
    %v10424 = vsub.f32 %v10302, %v10423
    %v10425 = vand.u32 %v10424, 4294901760
    %v10426 = vsub.f32 %v10424, %v10425
    %v10427 = vand.u32 %v10426, 4294901760
    %10428 = vmatprep.subr.mxu0 %v10427
    %v10429 = vand.u32 %v10301, 4294901760
    %v10430 = vsub.f32 %v10301, %v10429
    %v10431 = vand.u32 %v10430, 4294901760
    %v10432 = vsub.f32 %v10430, %v10431
    %v10433 = vand.u32 %v10432, 4294901760
    %10434 = vmatpush1.msra.mxu0 %v10433
    %v10435 = vand.u32 %v10306, 4294901760
    %v10436 = vsub.f32 %v10306, %v10435
    %v10437 = vand.u32 %v10436, 4294901760
    %v10438 = vsub.f32 %v10436, %v10437
    %v10439 = vand.u32 %v10438, 4294901760
    %10440 = vmatprep.subr.mxu0 %v10439
    %v10441 = vand.u32 %v10305, 4294901760
    %v10442 = vsub.f32 %v10305, %v10441
    %v10443 = vand.u32 %v10442, 4294901760
    %v10444 = vsub.f32 %v10442, %v10443
    %v10445 = vand.u32 %v10444, 4294901760
    %10446 = vmatpush1.msra.mxu0 %v10445
    %v10447 = vand.u32 %v10310, 4294901760
    %v10448 = vsub.f32 %v10310, %v10447
    %v10449 = vand.u32 %v10448, 4294901760
    %v10450 = vsub.f32 %v10448, %v10449
    %v10451 = vand.u32 %v10450, 4294901760
    %10452 = vmatprep.subr.mxu0 %v10451
    %v10453 = vand.u32 %v10309, 4294901760
    %v10454 = vsub.f32 %v10309, %v10453
    %v10455 = vand.u32 %v10454, 4294901760
    %v10456 = vsub.f32 %v10454, %v10455
    %v10457 = vand.u32 %v10456, 4294901760
    %10458 = vmatpush1.msra.mxu0 %v10457
    %10459 = vmatprep.subr.mxu0 0.0
    %10460 = vmatpush1.msra.mxu0 0.0
    %10461 = vmatprep.subr.mxu0 0.0
    %10462 = vmatpush1.msra.mxu0 0.0
    %10463 = vmatprep.subr.mxu0 0.0
    %10464 = vmatpush1.msra.mxu0 0.0
    %10465 = vmatprep.subr.mxu0 0.0
    %10466 = vmatpush1.msra.mxu0 0.0
    %10467 = vmatprep.subr.mxu0 0.0
    %10468 = vmatpush1.msra.mxu0 0.0
    %10469 = vmatprep.subr.mxu0 0.0
    %10470 = vmatpush1.msra.mxu0 0.0
    %10471 = vmatprep.subr.mxu0 0.0
    %10472 = vmatpush1.msra.mxu0 0.0
    %10473 = vmatprep.subr.mxu0 0.0
    %10474 = vmatpush1.msra.mxu0 0.0
    %10475 = vmatprep.subr.mxu0 0.0
    %10476 = vmatpush1.msra.mxu0 0.0
    %10477 = vmatprep.subr.mxu0 0.0
    %10478 = vmatpush1.msra.mxu0 0.0
    %10479 = vmatprep.subr.mxu0 0.0
    %10480 = vmatpush1.msra.mxu0 0.0
    %10481 = vmatprep.subr.mxu0 0.0
    %10482 = vmatpush1.msra.mxu0 0.0
    %10483 = vmatprep.subr.mxu0 0.0
    %10484 = vmatpush1.msra.mxu0 0.0
    %10485 = vmatprep.subr.mxu0 0.0
    %10486 = vmatpush1.msra.mxu0 0.0
    %10487 = vmatprep.subr.mxu0 0.0
    %10488 = vmatpush1.msra.mxu0 0.0
    %10489 = vmatprep.subr.mxu0 0.0
    %10490 = vmatpush1.msra.mxu0 0.0
    %10491 = vmatprep.subr.mxu0 0.0
    %10492 = vmatpush1.msra.mxu0 0.0
    %10493 = vmatprep.subr.mxu0 0.0
    %10494 = vmatpush1.msra.mxu0 0.0
    %10495 = vmatprep.subr.mxu0 0.0
    %10496 = vmatpush1.msra.mxu0 0.0
    %10497 = vmatprep.subr.mxu0 0.0
    %10498 = vmatpush1.msra.mxu0 0.0
    %10499 = vmatprep.subr.mxu0 0.0
    %10500 = vmatpush1.msra.mxu0 0.0
    %10501 = vmatprep.subr.mxu0 0.0
    %10502 = vmatpush1.msra.mxu0 0.0
    %10503 = vmatprep.subr.mxu0 0.0
    %10504 = vmatpush1.msra.mxu0 0.0
    %10505 = vmatprep.subr.mxu0 0.0
    %10506 = vmatpush1.msra.mxu0 0.0
    %10507 = vmatprep.subr.mxu0 0.0
    %10508 = vmatpush1.msra.mxu0 0.0
    %10509 = vmatprep.subr.mxu0 0.0
    %10510 = vmatpush1.msra.mxu0 0.0
    %10511 = vmatprep.subr.mxu0 0.0
    %10512 = vmatpush1.msra.mxu0 0.0
    %10513 = vmatprep.mubr.f32.mxu0 0.0
    %v10514 = vand.u32 %v4669, 4294901760
    %10515 = vmatmul.mubr.f32.gmra.mrb[0].mxu0 %v10514
    %v10516 = vpop.f32.mrb[0].mxu0
    %v10517 = vadd.f32 %v10395, %v10516
    %v10518 = vpop.f32.mrb[0].mxu0
    %v10519 = vadd.f32 %v10397, %v10518
    %10520 = vdwg.mxu0
    %v10521 = vand.u32 %v10294, 4294901760
    %v10522 = vsub.f32 %v10294, %v10521
    %10523 = vmatprep.subr.mxu0 %v10522
    %v10524 = vand.u32 %v10293, 4294901760
    %v10525 = vsub.f32 %v10293, %v10524
    %10526 = vmatpush1.msra.mxu0 %v10525
    %v10527 = vand.u32 %v10298, 4294901760
    %v10528 = vsub.f32 %v10298, %v10527
    %10529 = vmatprep.subr.mxu0 %v10528
    %v10530 = vand.u32 %v10297, 4294901760
    %v10531 = vsub.f32 %v10297, %v10530
    %10532 = vmatpush1.msra.mxu0 %v10531
    %v10533 = vand.u32 %v10302, 4294901760
    %v10534 = vsub.f32 %v10302, %v10533
    %10535 = vmatprep.subr.mxu0 %v10534
    %v10536 = vand.u32 %v10301, 4294901760
    %v10537 = vsub.f32 %v10301, %v10536
    %10538 = vmatpush1.msra.mxu0 %v10537
    %v10539 = vand.u32 %v10306, 4294901760
    %v10540 = vsub.f32 %v10306, %v10539
    %10541 = vmatprep.subr.mxu0 %v10540
    %v10542 = vand.u32 %v10305, 4294901760
    %v10543 = vsub.f32 %v10305, %v10542
    %10544 = vmatpush1.msra.mxu0 %v10543
    %v10545 = vand.u32 %v10310, 4294901760
    %v10546 = vsub.f32 %v10310, %v10545
    %10547 = vmatprep.subr.mxu0 %v10546
    %v10548 = vand.u32 %v10309, 4294901760
    %v10549 = vsub.f32 %v10309, %v10548
    %10550 = vmatpush1.msra.mxu0 %v10549
    %10551 = vmatprep.subr.mxu0 0.0
    %10552 = vmatpush1.msra.mxu0 0.0
    %10553 = vmatprep.subr.mxu0 0.0
    %10554 = vmatpush1.msra.mxu0 0.0
    %10555 = vmatprep.subr.mxu0 0.0
    %10556 = vmatpush1.msra.mxu0 0.0
    %10557 = vmatprep.subr.mxu0 0.0
    %10558 = vmatpush1.msra.mxu0 0.0
    %10559 = vmatprep.subr.mxu0 0.0
    %10560 = vmatpush1.msra.mxu0 0.0
    %10561 = vmatprep.subr.mxu0 0.0
    %10562 = vmatpush1.msra.mxu0 0.0
    %10563 = vmatprep.subr.mxu0 0.0
    %10564 = vmatpush1.msra.mxu0 0.0
    %10565 = vmatprep.subr.mxu0 0.0
    %10566 = vmatpush1.msra.mxu0 0.0
    %10567 = vmatprep.subr.mxu0 0.0
    %10568 = vmatpush1.msra.mxu0 0.0
    %10569 = vmatprep.subr.mxu0 0.0
    %10570 = vmatpush1.msra.mxu0 0.0
    %10571 = vmatprep.subr.mxu0 0.0
    %10572 = vmatpush1.msra.mxu0 0.0
    %10573 = vmatprep.subr.mxu0 0.0
    %10574 = vmatpush1.msra.mxu0 0.0
    %10575 = vmatprep.subr.mxu0 0.0
    %10576 = vmatpush1.msra.mxu0 0.0
    %10577 = vmatprep.subr.mxu0 0.0
    %10578 = vmatpush1.msra.mxu0 0.0
    %10579 = vmatprep.subr.mxu0 0.0
    %10580 = vmatpush1.msra.mxu0 0.0
    %10581 = vmatprep.subr.mxu0 0.0
    %10582 = vmatpush1.msra.mxu0 0.0
    %10583 = vmatprep.subr.mxu0 0.0
    %10584 = vmatpush1.msra.mxu0 0.0
    %10585 = vmatprep.subr.mxu0 0.0
    %10586 = vmatpush1.msra.mxu0 0.0
    %10587 = vmatprep.subr.mxu0 0.0
    %10588 = vmatpush1.msra.mxu0 0.0
    %10589 = vmatprep.subr.mxu0 0.0
    %10590 = vmatpush1.msra.mxu0 0.0
    %10591 = vmatprep.subr.mxu0 0.0
    %10592 = vmatpush1.msra.mxu0 0.0
    %10593 = vmatprep.subr.mxu0 0.0
    %10594 = vmatpush1.msra.mxu0 0.0
    %10595 = vmatprep.subr.mxu0 0.0
    %10596 = vmatpush1.msra.mxu0 0.0
    %10597 = vmatprep.subr.mxu0 0.0
    %10598 = vmatpush1.msra.mxu0 0.0
    %10599 = vmatprep.subr.mxu0 0.0
    %10600 = vmatpush1.msra.mxu0 0.0
    %10601 = vmatprep.subr.mxu0 0.0
    %10602 = vmatpush1.msra.mxu0 0.0
    %10603 = vmatprep.subr.mxu0 0.0
    %10604 = vmatpush1.msra.mxu0 0.0
    %10605 = vmatprep.mubr.f32.mxu0 0.0
    %v10606 = vand.u32 %v4669, 4294901760
    %v10607 = vsub.f32 %v4669, %v10606
    %10608 = vmatmul.mubr.f32.gmra.mrb[0].mxu0 %v10607
    %v10609 = vpop.f32.mrb[0].mxu0
    %v10610 = vadd.f32 %v10517, %v10609
    %v10611 = vpop.f32.mrb[0].mxu0
    %v10612 = vadd.f32 %v10519, %v10611
    %10613 = vdwg.mxu0
    %v10614 = vand.u32 %v10294, 4294901760
    %10615 = vmatprep.subr.mxu0 %v10614
    %v10616 = vand.u32 %v10293, 4294901760
    %10617 = vmatpush1.msra.mxu0 %v10616
    %v10618 = vand.u32 %v10298, 4294901760
    %10619 = vmatprep.subr.mxu0 %v10618
    %v10620 = vand.u32 %v10297, 4294901760
    %10621 = vmatpush1.msra.mxu0 %v10620
    %v10622 = vand.u32 %v10302, 4294901760
    %10623 = vmatprep.subr.mxu0 %v10622
    %v10624 = vand.u32 %v10301, 4294901760
    %10625 = vmatpush1.msra.mxu0 %v10624
    %v10626 = vand.u32 %v10306, 4294901760
    %10627 = vmatprep.subr.mxu0 %v10626
    %v10628 = vand.u32 %v10305, 4294901760
    %10629 = vmatpush1.msra.mxu0 %v10628
    %v10630 = vand.u32 %v10310, 4294901760
    %10631 = vmatprep.subr.mxu0 %v10630
    %v10632 = vand.u32 %v10309, 4294901760
    %10633 = vmatpush1.msra.mxu0 %v10632
    %10634 = vmatprep.subr.mxu0 0.0
    %10635 = vmatpush1.msra.mxu0 0.0
    %10636 = vmatprep.subr.mxu0 0.0
    %10637 = vmatpush1.msra.mxu0 0.0
    %10638 = vmatprep.subr.mxu0 0.0
    %10639 = vmatpush1.msra.mxu0 0.0
    %10640 = vmatprep.subr.mxu0 0.0
    %10641 = vmatpush1.msra.mxu0 0.0
    %10642 = vmatprep.subr.mxu0 0.0
    %10643 = vmatpush1.msra.mxu0 0.0
    %10644 = vmatprep.subr.mxu0 0.0
    %10645 = vmatpush1.msra.mxu0 0.0
    %10646 = vmatprep.subr.mxu0 0.0
    %10647 = vmatpush1.msra.mxu0 0.0
    %10648 = vmatprep.subr.mxu0 0.0
    %10649 = vmatpush1.msra.mxu0 0.0
    %10650 = vmatprep.subr.mxu0 0.0
    %10651 = vmatpush1.msra.mxu0 0.0
    %10652 = vmatprep.subr.mxu0 0.0
    %10653 = vmatpush1.msra.mxu0 0.0
    %10654 = vmatprep.subr.mxu0 0.0
    %10655 = vmatpush1.msra.mxu0 0.0
    %10656 = vmatprep.subr.mxu0 0.0
    %10657 = vmatpush1.msra.mxu0 0.0
    %10658 = vmatprep.subr.mxu0 0.0
    %10659 = vmatpush1.msra.mxu0 0.0
    %10660 = vmatprep.subr.mxu0 0.0
    %10661 = vmatpush1.msra.mxu0 0.0
    %10662 = vmatprep.subr.mxu0 0.0
    %10663 = vmatpush1.msra.mxu0 0.0
    %10664 = vmatprep.subr.mxu0 0.0
    %10665 = vmatpush1.msra.mxu0 0.0
    %10666 = vmatprep.subr.mxu0 0.0
    %10667 = vmatpush1.msra.mxu0 0.0
    %10668 = vmatprep.subr.mxu0 0.0
    %10669 = vmatpush1.msra.mxu0 0.0
    %10670 = vmatprep.subr.mxu0 0.0
    %10671 = vmatpush1.msra.mxu0 0.0
    %10672 = vmatprep.subr.mxu0 0.0
    %10673 = vmatpush1.msra.mxu0 0.0
    %10674 = vmatprep.subr.mxu0 0.0
    %10675 = vmatpush1.msra.mxu0 0.0
    %10676 = vmatprep.subr.mxu0 0.0
    %10677 = vmatpush1.msra.mxu0 0.0
    %10678 = vmatprep.subr.mxu0 0.0
    %10679 = vmatpush1.msra.mxu0 0.0
    %10680 = vmatprep.subr.mxu0 0.0
    %10681 = vmatpush1.msra.mxu0 0.0
    %10682 = vmatprep.subr.mxu0 0.0
    %10683 = vmatpush1.msra.mxu0 0.0
    %10684 = vmatprep.subr.mxu0 0.0
    %10685 = vmatpush1.msra.mxu0 0.0
    %10686 = vmatprep.subr.mxu0 0.0
    %10687 = vmatpush1.msra.mxu0 0.0
    %10688 = vmatprep.mubr.f32.mxu0 0.0
    %v10689 = vand.u32 %v4669, 4294901760
    %v10690 = vsub.f32 %v4669, %v10689
    %v10691 = vand.u32 %v10690, 4294901760
    %10692 = vmatmul.mubr.f32.gmra.mrb[0].mxu0 %v10691
    %v10693 = vpop.f32.mrb[0].mxu0
    %v10694 = vadd.f32 %v10610, %v10693
    %v10695 = vpop.f32.mrb[0].mxu0
    %v10696 = vadd.f32 %v10612, %v10695
    %10697 = vdwg.mxu0
    %v10698 = vand.u32 %v10294, 4294901760
    %v10699 = vsub.f32 %v10294, %v10698
    %v10700 = vand.u32 %v10699, 4294901760
    %10701 = vmatprep.subr.mxu0 %v10700
    %v10702 = vand.u32 %v10293, 4294901760
    %v10703 = vsub.f32 %v10293, %v10702
    %v10704 = vand.u32 %v10703, 4294901760
    %10705 = vmatpush1.msra.mxu0 %v10704
    %v10706 = vand.u32 %v10298, 4294901760
    %v10707 = vsub.f32 %v10298, %v10706
    %v10708 = vand.u32 %v10707, 4294901760
    %10709 = vmatprep.subr.mxu0 %v10708
    %v10710 = vand.u32 %v10297, 4294901760
    %v10711 = vsub.f32 %v10297, %v10710
    %v10712 = vand.u32 %v10711, 4294901760
    %10713 = vmatpush1.msra.mxu0 %v10712
    %v10714 = vand.u32 %v10302, 4294901760
    %v10715 = vsub.f32 %v10302, %v10714
    %v10716 = vand.u32 %v10715, 4294901760
    %10717 = vmatprep.subr.mxu0 %v10716
    %v10718 = vand.u32 %v10301, 4294901760
    %v10719 = vsub.f32 %v10301, %v10718
    %v10720 = vand.u32 %v10719, 4294901760
    %10721 = vmatpush1.msra.mxu0 %v10720
    %v10722 = vand.u32 %v10306, 4294901760
    %v10723 = vsub.f32 %v10306, %v10722
    %v10724 = vand.u32 %v10723, 4294901760
    %10725 = vmatprep.subr.mxu0 %v10724
    %v10726 = vand.u32 %v10305, 4294901760
    %v10727 = vsub.f32 %v10305, %v10726
    %v10728 = vand.u32 %v10727, 4294901760
    %10729 = vmatpush1.msra.mxu0 %v10728
    %v10730 = vand.u32 %v10310, 4294901760
    %v10731 = vsub.f32 %v10310, %v10730
    %v10732 = vand.u32 %v10731, 4294901760
    %10733 = vmatprep.subr.mxu0 %v10732
    %v10734 = vand.u32 %v10309, 4294901760
    %v10735 = vsub.f32 %v10309, %v10734
    %v10736 = vand.u32 %v10735, 4294901760
    %10737 = vmatpush1.msra.mxu0 %v10736
    %10738 = vmatprep.subr.mxu0 0.0
    %10739 = vmatpush1.msra.mxu0 0.0
    %10740 = vmatprep.subr.mxu0 0.0
    %10741 = vmatpush1.msra.mxu0 0.0
    %10742 = vmatprep.subr.mxu0 0.0
    %10743 = vmatpush1.msra.mxu0 0.0
    %10744 = vmatprep.subr.mxu0 0.0
    %10745 = vmatpush1.msra.mxu0 0.0
    %10746 = vmatprep.subr.mxu0 0.0
    %10747 = vmatpush1.msra.mxu0 0.0
    %10748 = vmatprep.subr.mxu0 0.0
    %10749 = vmatpush1.msra.mxu0 0.0
    %10750 = vmatprep.subr.mxu0 0.0
    %10751 = vmatpush1.msra.mxu0 0.0
    %10752 = vmatprep.subr.mxu0 0.0
    %10753 = vmatpush1.msra.mxu0 0.0
    %10754 = vmatprep.subr.mxu0 0.0
    %10755 = vmatpush1.msra.mxu0 0.0
    %10756 = vmatprep.subr.mxu0 0.0
    %10757 = vmatpush1.msra.mxu0 0.0
    %10758 = vmatprep.subr.mxu0 0.0
    %10759 = vmatpush1.msra.mxu0 0.0
    %10760 = vmatprep.subr.mxu0 0.0
    %10761 = vmatpush1.msra.mxu0 0.0
    %10762 = vmatprep.subr.mxu0 0.0
    %10763 = vmatpush1.msra.mxu0 0.0
    %10764 = vmatprep.subr.mxu0 0.0
    %10765 = vmatpush1.msra.mxu0 0.0
    %10766 = vmatprep.subr.mxu0 0.0
    %10767 = vmatpush1.msra.mxu0 0.0
    %10768 = vmatprep.subr.mxu0 0.0
    %10769 = vmatpush1.msra.mxu0 0.0
    %10770 = vmatprep.subr.mxu0 0.0
    %10771 = vmatpush1.msra.mxu0 0.0
    %10772 = vmatprep.subr.mxu0 0.0
    %10773 = vmatpush1.msra.mxu0 0.0
    %10774 = vmatprep.subr.mxu0 0.0
    %10775 = vmatpush1.msra.mxu0 0.0
    %10776 = vmatprep.subr.mxu0 0.0
    %10777 = vmatpush1.msra.mxu0 0.0
    %10778 = vmatprep.subr.mxu0 0.0
    %10779 = vmatpush1.msra.mxu0 0.0
    %10780 = vmatprep.subr.mxu0 0.0
    %10781 = vmatpush1.msra.mxu0 0.0
    %10782 = vmatprep.subr.mxu0 0.0
    %10783 = vmatpush1.msra.mxu0 0.0
    %10784 = vmatprep.subr.mxu0 0.0
    %10785 = vmatpush1.msra.mxu0 0.0
    %10786 = vmatprep.subr.mxu0 0.0
    %10787 = vmatpush1.msra.mxu0 0.0
    %10788 = vmatprep.subr.mxu0 0.0
    %10789 = vmatpush1.msra.mxu0 0.0
    %10790 = vmatprep.subr.mxu0 0.0
    %10791 = vmatpush1.msra.mxu0 0.0
    %10792 = vmatprep.mubr.f32.mxu0 0.0
    %v10793 = vand.u32 %v4669, 4294901760
    %10794 = vmatmul.mubr.f32.gmra.mrb[0].mxu0 %v10793
    %v10795 = vpop.f32.mrb[0].mxu0
    %v10796 = vadd.f32 %v10694, %v10795
    %v10797 = vpop.f32.mrb[0].mxu0
    %v10798 = vadd.f32 %v10696, %v10797
    %10799 = vdwg.mxu0
    %v10800 = vand.u32 %v10294, 4294901760
    %10801 = vmatprep.subr.mxu0 %v10800
    %v10802 = vand.u32 %v10293, 4294901760
    %10803 = vmatpush1.msra.mxu0 %v10802
    %v10804 = vand.u32 %v10298, 4294901760
    %10805 = vmatprep.subr.mxu0 %v10804
    %v10806 = vand.u32 %v10297, 4294901760
    %10807 = vmatpush1.msra.mxu0 %v10806
    %v10808 = vand.u32 %v10302, 4294901760
    %10809 = vmatprep.subr.mxu0 %v10808
    %v10810 = vand.u32 %v10301, 4294901760
    %10811 = vmatpush1.msra.mxu0 %v10810
    %v10812 = vand.u32 %v10306, 4294901760
    %10813 = vmatprep.subr.mxu0 %v10812
    %v10814 = vand.u32 %v10305, 4294901760
    %10815 = vmatpush1.msra.mxu0 %v10814
    %v10816 = vand.u32 %v10310, 4294901760
    %10817 = vmatprep.subr.mxu0 %v10816
    %v10818 = vand.u32 %v10309, 4294901760
    %10819 = vmatpush1.msra.mxu0 %v10818
    %10820 = vmatprep.subr.mxu0 0.0
    %10821 = vmatpush1.msra.mxu0 0.0
    %10822 = vmatprep.subr.mxu0 0.0
    %10823 = vmatpush1.msra.mxu0 0.0
    %10824 = vmatprep.subr.mxu0 0.0
    %10825 = vmatpush1.msra.mxu0 0.0
    %10826 = vmatprep.subr.mxu0 0.0
    %10827 = vmatpush1.msra.mxu0 0.0
    %10828 = vmatprep.subr.mxu0 0.0
    %10829 = vmatpush1.msra.mxu0 0.0
    %10830 = vmatprep.subr.mxu0 0.0
    %10831 = vmatpush1.msra.mxu0 0.0
    %10832 = vmatprep.subr.mxu0 0.0
    %10833 = vmatpush1.msra.mxu0 0.0
    %10834 = vmatprep.subr.mxu0 0.0
    %10835 = vmatpush1.msra.mxu0 0.0
    %10836 = vmatprep.subr.mxu0 0.0
    %10837 = vmatpush1.msra.mxu0 0.0
    %10838 = vmatprep.subr.mxu0 0.0
    %10839 = vmatpush1.msra.mxu0 0.0
    %10840 = vmatprep.subr.mxu0 0.0
    %10841 = vmatpush1.msra.mxu0 0.0
    %10842 = vmatprep.subr.mxu0 0.0
    %10843 = vmatpush1.msra.mxu0 0.0
    %10844 = vmatprep.subr.mxu0 0.0
    %10845 = vmatpush1.msra.mxu0 0.0
    %10846 = vmatprep.subr.mxu0 0.0
    %10847 = vmatpush1.msra.mxu0 0.0
    %10848 = vmatprep.subr.mxu0 0.0
    %10849 = vmatpush1.msra.mxu0 0.0
    %10850 = vmatprep.subr.mxu0 0.0
    %10851 = vmatpush1.msra.mxu0 0.0
    %10852 = vmatprep.subr.mxu0 0.0
    %10853 = vmatpush1.msra.mxu0 0.0
    %10854 = vmatprep.subr.mxu0 0.0
    %10855 = vmatpush1.msra.mxu0 0.0
    %10856 = vmatprep.subr.mxu0 0.0
    %10857 = vmatpush1.msra.mxu0 0.0
    %10858 = vmatprep.subr.mxu0 0.0
    %10859 = vmatpush1.msra.mxu0 0.0
    %10860 = vmatprep.subr.mxu0 0.0
    %10861 = vmatpush1.msra.mxu0 0.0
    %10862 = vmatprep.subr.mxu0 0.0
    %10863 = vmatpush1.msra.mxu0 0.0
    %10864 = vmatprep.subr.mxu0 0.0
    %10865 = vmatpush1.msra.mxu0 0.0
    %10866 = vmatprep.subr.mxu0 0.0
    %10867 = vmatpush1.msra.mxu0 0.0
    %10868 = vmatprep.subr.mxu0 0.0
    %10869 = vmatpush1.msra.mxu0 0.0
    %10870 = vmatprep.subr.mxu0 0.0
    %10871 = vmatpush1.msra.mxu0 0.0
    %10872 = vmatprep.subr.mxu0 0.0
    %10873 = vmatpush1.msra.mxu0 0.0
    %10874 = vmatprep.mubr.f32.mxu0 0.0
    %v10875 = vand.u32 %v4669, 4294901760
    %10876 = vmatmul.mubr.f32.gmra.mrb[0].mxu0 %v10875
    %v10877 = vpop.f32.mrb[0].mxu0
    %v10878 = vadd.f32 %v10796, %v10877
    %v10879 = vpop.f32.mrb[0].mxu0
    %v10880 = vadd.f32 %v10798, %v10879
    %10881 = vdwg.mxu0
    %v10882 = vand.u32 %v10296, 4294901760
    %10883 = vmatprep.subr.mxu0 %v10882
    %v10884 = vand.u32 %v10295, 4294901760
    %10885 = vmatpush1.msra.mxu0 %v10884
    %v10886 = vand.u32 %v10300, 4294901760
    %10887 = vmatprep.subr.mxu0 %v10886
    %v10888 = vand.u32 %v10299, 4294901760
    %10889 = vmatpush1.msra.mxu0 %v10888
    %v10890 = vand.u32 %v10304, 4294901760
    %10891 = vmatprep.subr.mxu0 %v10890
    %v10892 = vand.u32 %v10303, 4294901760
    %10893 = vmatpush1.msra.mxu0 %v10892
    %v10894 = vand.u32 %v10308, 4294901760
    %10895 = vmatprep.subr.mxu0 %v10894
    %v10896 = vand.u32 %v10307, 4294901760
    %10897 = vmatpush1.msra.mxu0 %v10896
    %v10898 = vand.u32 %v10312, 4294901760
    %10899 = vmatprep.subr.mxu0 %v10898
    %v10900 = vand.u32 %v10311, 4294901760
    %10901 = vmatpush1.msra.mxu0 %v10900
    %10902 = vmatprep.subr.mxu0 0.0
    %10903 = vmatpush1.msra.mxu0 0.0
    %10904 = vmatprep.subr.mxu0 0.0
    %10905 = vmatpush1.msra.mxu0 0.0
    %10906 = vmatprep.subr.mxu0 0.0
    %10907 = vmatpush1.msra.mxu0 0.0
    %10908 = vmatprep.subr.mxu0 0.0
    %10909 = vmatpush1.msra.mxu0 0.0
    %10910 = vmatprep.subr.mxu0 0.0
    %10911 = vmatpush1.msra.mxu0 0.0
    %10912 = vmatprep.subr.mxu0 0.0
    %10913 = vmatpush1.msra.mxu0 0.0
    %10914 = vmatprep.subr.mxu0 0.0
    %10915 = vmatpush1.msra.mxu0 0.0
    %10916 = vmatprep.subr.mxu0 0.0
    %10917 = vmatpush1.msra.mxu0 0.0
    %10918 = vmatprep.subr.mxu0 0.0
    %10919 = vmatpush1.msra.mxu0 0.0
    %10920 = vmatprep.subr.mxu0 0.0
    %10921 = vmatpush1.msra.mxu0 0.0
    %10922 = vmatprep.subr.mxu0 0.0
    %10923 = vmatpush1.msra.mxu0 0.0
    %10924 = vmatprep.subr.mxu0 0.0
    %10925 = vmatpush1.msra.mxu0 0.0
    %10926 = vmatprep.subr.mxu0 0.0
    %10927 = vmatpush1.msra.mxu0 0.0
    %10928 = vmatprep.subr.mxu0 0.0
    %10929 = vmatpush1.msra.mxu0 0.0
    %10930 = vmatprep.subr.mxu0 0.0
    %10931 = vmatpush1.msra.mxu0 0.0
    %10932 = vmatprep.subr.mxu0 0.0
    %10933 = vmatpush1.msra.mxu0 0.0
    %10934 = vmatprep.subr.mxu0 0.0
    %10935 = vmatpush1.msra.mxu0 0.0
    %10936 = vmatprep.subr.mxu0 0.0
    %10937 = vmatpush1.msra.mxu0 0.0
    %10938 = vmatprep.subr.mxu0 0.0
    %10939 = vmatpush1.msra.mxu0 0.0
    %10940 = vmatprep.subr.mxu0 0.0
    %10941 = vmatpush1.msra.mxu0 0.0
    %10942 = vmatprep.subr.mxu0 0.0
    %10943 = vmatpush1.msra.mxu0 0.0
    %10944 = vmatprep.subr.mxu0 0.0
    %10945 = vmatpush1.msra.mxu0 0.0
    %10946 = vmatprep.subr.mxu0 0.0
    %10947 = vmatpush1.msra.mxu0 0.0
    %10948 = vmatprep.subr.mxu0 0.0
    %10949 = vmatpush1.msra.mxu0 0.0
    %10950 = vmatprep.subr.mxu0 0.0
    %10951 = vmatpush1.msra.mxu0 0.0
    %10952 = vmatprep.subr.mxu0 0.0
    %10953 = vmatpush1.msra.mxu0 0.0
    %10954 = vmatprep.subr.mxu0 0.0
    %10955 = vmatpush1.msra.mxu0 0.0
    %10956 = vmatprep.mubr.f32.mxu0 0.0
    %v10957 = vand.u32 %v4669, 4294901760
    %v10958 = vsub.f32 %v4669, %v10957
    %v10959 = vand.u32 %v10958, 4294901760
    %v10960 = vsub.f32 %v10958, %v10959
    %v10961 = vand.u32 %v10960, 4294901760
    %10962 = vmatmul.mubr.f32.gmra.mrb[0].mxu0 %v10961
    %v10963 = vpop.f32.mrb[0].mxu0
    %v10964 = vadd.f32 %v4667, %v10963
    %v10965 = vpop.f32.mrb[0].mxu0
    %v10966 = vadd.f32 %v4667, %v10965
    %10967 = vdwg.mxu0
    %v10968 = vand.u32 %v10296, 4294901760
    %v10969 = vsub.f32 %v10296, %v10968
    %v10970 = vand.u32 %v10969, 4294901760
    %v10971 = vsub.f32 %v10969, %v10970
    %v10972 = vand.u32 %v10971, 4294901760
    %10973 = vmatprep.subr.mxu0 %v10972
    %v10974 = vand.u32 %v10295, 4294901760
    %v10975 = vsub.f32 %v10295, %v10974
    %v10976 = vand.u32 %v10975, 4294901760
    %v10977 = vsub.f32 %v10975, %v10976
    %v10978 = vand.u32 %v10977, 4294901760
    %10979 = vmatpush1.msra.mxu0 %v10978
    %v10980 = vand.u32 %v10300, 4294901760
    %v10981 = vsub.f32 %v10300, %v10980
    %v10982 = vand.u32 %v10981, 4294901760
    %v10983 = vsub.f32 %v10981, %v10982
    %v10984 = vand.u32 %v10983, 4294901760
    %10985 = vmatprep.subr.mxu0 %v10984
    %v10986 = vand.u32 %v10299, 4294901760
    %v10987 = vsub.f32 %v10299, %v10986
    %v10988 = vand.u32 %v10987, 4294901760
    %v10989 = vsub.f32 %v10987, %v10988
    %v10990 = vand.u32 %v10989, 4294901760
    %10991 = vmatpush1.msra.mxu0 %v10990
    %v10992 = vand.u32 %v10304, 4294901760
    %v10993 = vsub.f32 %v10304, %v10992
    %v10994 = vand.u32 %v10993, 4294901760
    %v10995 = vsub.f32 %v10993, %v10994
    %v10996 = vand.u32 %v10995, 4294901760
    %10997 = vmatprep.subr.mxu0 %v10996
    %v10998 = vand.u32 %v10303, 4294901760
    %v10999 = vsub.f32 %v10303, %v10998
    %v11000 = vand.u32 %v10999, 4294901760
    %v11001 = vsub.f32 %v10999, %v11000
    %v11002 = vand.u32 %v11001, 4294901760
    %11003 = vmatpush1.msra.mxu0 %v11002
    %v11004 = vand.u32 %v10308, 4294901760
    %v11005 = vsub.f32 %v10308, %v11004
    %v11006 = vand.u32 %v11005, 4294901760
    %v11007 = vsub.f32 %v11005, %v11006
    %v11008 = vand.u32 %v11007, 4294901760
    %11009 = vmatprep.subr.mxu0 %v11008
    %v11010 = vand.u32 %v10307, 4294901760
    %v11011 = vsub.f32 %v10307, %v11010
    %v11012 = vand.u32 %v11011, 4294901760
    %v11013 = vsub.f32 %v11011, %v11012
    %v11014 = vand.u32 %v11013, 4294901760
    %11015 = vmatpush1.msra.mxu0 %v11014
    %v11016 = vand.u32 %v10312, 4294901760
    %v11017 = vsub.f32 %v10312, %v11016
    %v11018 = vand.u32 %v11017, 4294901760
    %v11019 = vsub.f32 %v11017, %v11018
    %v11020 = vand.u32 %v11019, 4294901760
    %11021 = vmatprep.subr.mxu0 %v11020
    %v11022 = vand.u32 %v10311, 4294901760
    %v11023 = vsub.f32 %v10311, %v11022
    %v11024 = vand.u32 %v11023, 4294901760
    %v11025 = vsub.f32 %v11023, %v11024
    %v11026 = vand.u32 %v11025, 4294901760
    %11027 = vmatpush1.msra.mxu0 %v11026
    %11028 = vmatprep.subr.mxu0 0.0
    %11029 = vmatpush1.msra.mxu0 0.0
    %11030 = vmatprep.subr.mxu0 0.0
    %11031 = vmatpush1.msra.mxu0 0.0
    %11032 = vmatprep.subr.mxu0 0.0
    %11033 = vmatpush1.msra.mxu0 0.0
    %11034 = vmatprep.subr.mxu0 0.0
    %11035 = vmatpush1.msra.mxu0 0.0
    %11036 = vmatprep.subr.mxu0 0.0
    %11037 = vmatpush1.msra.mxu0 0.0
    %11038 = vmatprep.subr.mxu0 0.0
    %11039 = vmatpush1.msra.mxu0 0.0
    %11040 = vmatprep.subr.mxu0 0.0
    %11041 = vmatpush1.msra.mxu0 0.0
    %11042 = vmatprep.subr.mxu0 0.0
    %11043 = vmatpush1.msra.mxu0 0.0
    %11044 = vmatprep.subr.mxu0 0.0
    %11045 = vmatpush1.msra.mxu0 0.0
    %11046 = vmatprep.subr.mxu0 0.0
    %11047 = vmatpush1.msra.mxu0 0.0
    %11048 = vmatprep.subr.mxu0 0.0
    %11049 = vmatpush1.msra.mxu0 0.0
    %11050 = vmatprep.subr.mxu0 0.0
    %11051 = vmatpush1.msra.mxu0 0.0
    %11052 = vmatprep.subr.mxu0 0.0
    %11053 = vmatpush1.msra.mxu0 0.0
    %11054 = vmatprep.subr.mxu0 0.0
    %11055 = vmatpush1.msra.mxu0 0.0
    %11056 = vmatprep.subr.mxu0 0.0
    %11057 = vmatpush1.msra.mxu0 0.0
    %11058 = vmatprep.subr.mxu0 0.0
    %11059 = vmatpush1.msra.mxu0 0.0
    %11060 = vmatprep.subr.mxu0 0.0
    %11061 = vmatpush1.msra.mxu0 0.0
    %11062 = vmatprep.subr.mxu0 0.0
    %11063 = vmatpush1.msra.mxu0 0.0
    %11064 = vmatprep.subr.mxu0 0.0
    %11065 = vmatpush1.msra.mxu0 0.0
    %11066 = vmatprep.subr.mxu0 0.0
    %11067 = vmatpush1.msra.mxu0 0.0
    %11068 = vmatprep.subr.mxu0 0.0
    %11069 = vmatpush1.msra.mxu0 0.0
    %11070 = vmatprep.subr.mxu0 0.0
    %11071 = vmatpush1.msra.mxu0 0.0
    %11072 = vmatprep.subr.mxu0 0.0
    %11073 = vmatpush1.msra.mxu0 0.0
    %11074 = vmatprep.subr.mxu0 0.0
    %11075 = vmatpush1.msra.mxu0 0.0
    %11076 = vmatprep.subr.mxu0 0.0
    %11077 = vmatpush1.msra.mxu0 0.0
    %11078 = vmatprep.subr.mxu0 0.0
    %11079 = vmatpush1.msra.mxu0 0.0
    %11080 = vmatprep.subr.mxu0 0.0
    %11081 = vmatpush1.msra.mxu0 0.0
    %11082 = vmatprep.mubr.f32.mxu0 0.0
    %v11083 = vand.u32 %v4669, 4294901760
    %11084 = vmatmul.mubr.f32.gmra.mrb[0].mxu0 %v11083
    %v11085 = vpop.f32.mrb[0].mxu0
    %v11086 = vadd.f32 %v10964, %v11085
    %v11087 = vpop.f32.mrb[0].mxu0
    %v11088 = vadd.f32 %v10966, %v11087
    %11089 = vdwg.mxu0
    %v11090 = vand.u32 %v10296, 4294901760
    %v11091 = vsub.f32 %v10296, %v11090
    %11092 = vmatprep.subr.mxu0 %v11091
    %v11093 = vand.u32 %v10295, 4294901760
    %v11094 = vsub.f32 %v10295, %v11093
    %11095 = vmatpush1.msra.mxu0 %v11094
    %v11096 = vand.u32 %v10300, 4294901760
    %v11097 = vsub.f32 %v10300, %v11096
    %11098 = vmatprep.subr.mxu0 %v11097
    %v11099 = vand.u32 %v10299, 4294901760
    %v11100 = vsub.f32 %v10299, %v11099
    %11101 = vmatpush1.msra.mxu0 %v11100
    %v11102 = vand.u32 %v10304, 4294901760
    %v11103 = vsub.f32 %v10304, %v11102
    %11104 = vmatprep.subr.mxu0 %v11103
    %v11105 = vand.u32 %v10303, 4294901760
    %v11106 = vsub.f32 %v10303, %v11105
    %11107 = vmatpush1.msra.mxu0 %v11106
    %v11108 = vand.u32 %v10308, 4294901760
    %v11109 = vsub.f32 %v10308, %v11108
    %11110 = vmatprep.subr.mxu0 %v11109
    %v11111 = vand.u32 %v10307, 4294901760
    %v11112 = vsub.f32 %v10307, %v11111
    %11113 = vmatpush1.msra.mxu0 %v11112
    %v11114 = vand.u32 %v10312, 4294901760
    %v11115 = vsub.f32 %v10312, %v11114
    %11116 = vmatprep.subr.mxu0 %v11115
    %v11117 = vand.u32 %v10311, 4294901760
    %v11118 = vsub.f32 %v10311, %v11117
    %11119 = vmatpush1.msra.mxu0 %v11118
    %11120 = vmatprep.subr.mxu0 0.0
    %11121 = vmatpush1.msra.mxu0 0.0
    %11122 = vmatprep.subr.mxu0 0.0
    %11123 = vmatpush1.msra.mxu0 0.0
    %11124 = vmatprep.subr.mxu0 0.0
    %11125 = vmatpush1.msra.mxu0 0.0
    %11126 = vmatprep.subr.mxu0 0.0
    %11127 = vmatpush1.msra.mxu0 0.0
    %11128 = vmatprep.subr.mxu0 0.0
    %11129 = vmatpush1.msra.mxu0 0.0
    %11130 = vmatprep.subr.mxu0 0.0
    %11131 = vmatpush1.msra.mxu0 0.0
    %11132 = vmatprep.subr.mxu0 0.0
    %11133 = vmatpush1.msra.mxu0 0.0
    %11134 = vmatprep.subr.mxu0 0.0
    %11135 = vmatpush1.msra.mxu0 0.0
    %11136 = vmatprep.subr.mxu0 0.0
    %11137 = vmatpush1.msra.mxu0 0.0
    %11138 = vmatprep.subr.mxu0 0.0
    %11139 = vmatpush1.msra.mxu0 0.0
    %11140 = vmatprep.subr.mxu0 0.0
    %11141 = vmatpush1.msra.mxu0 0.0
    %11142 = vmatprep.subr.mxu0 0.0
    %11143 = vmatpush1.msra.mxu0 0.0
    %11144 = vmatprep.subr.mxu0 0.0
    %11145 = vmatpush1.msra.mxu0 0.0
    %11146 = vmatprep.subr.mxu0 0.0
    %11147 = vmatpush1.msra.mxu0 0.0
    %11148 = vmatprep.subr.mxu0 0.0
    %11149 = vmatpush1.msra.mxu0 0.0
    %11150 = vmatprep.subr.mxu0 0.0
    %11151 = vmatpush1.msra.mxu0 0.0
    %11152 = vmatprep.subr.mxu0 0.0
    %11153 = vmatpush1.msra.mxu0 0.0
    %11154 = vmatprep.subr.mxu0 0.0
    %11155 = vmatpush1.msra.mxu0 0.0
    %11156 = vmatprep.subr.mxu0 0.0
    %11157 = vmatpush1.msra.mxu0 0.0
    %11158 = vmatprep.subr.mxu0 0.0
    %11159 = vmatpush1.msra.mxu0 0.0
    %11160 = vmatprep.subr.mxu0 0.0
    %11161 = vmatpush1.msra.mxu0 0.0
    %11162 = vmatprep.subr.mxu0 0.0
    %11163 = vmatpush1.msra.mxu0 0.0
    %11164 = vmatprep.subr.mxu0 0.0
    %11165 = vmatpush1.msra.mxu0 0.0
    %11166 = vmatprep.subr.mxu0 0.0
    %11167 = vmatpush1.msra.mxu0 0.0
    %11168 = vmatprep.subr.mxu0 0.0
    %11169 = vmatpush1.msra.mxu0 0.0
    %11170 = vmatprep.subr.mxu0 0.0
    %11171 = vmatpush1.msra.mxu0 0.0
    %11172 = vmatprep.subr.mxu0 0.0
    %11173 = vmatpush1.msra.mxu0 0.0
    %11174 = vmatprep.mubr.f32.mxu0 0.0
    %v11175 = vand.u32 %v4669, 4294901760
    %v11176 = vsub.f32 %v4669, %v11175
    %11177 = vmatmul.mubr.f32.gmra.mrb[0].mxu0 %v11176
    %v11178 = vpop.f32.mrb[0].mxu0
    %v11179 = vadd.f32 %v11086, %v11178
    %v11180 = vpop.f32.mrb[0].mxu0
    %v11181 = vadd.f32 %v11088, %v11180
    %11182 = vdwg.mxu0
    %v11183 = vand.u32 %v10296, 4294901760
    %11184 = vmatprep.subr.mxu0 %v11183
    %v11185 = vand.u32 %v10295, 4294901760
    %11186 = vmatpush1.msra.mxu0 %v11185
    %v11187 = vand.u32 %v10300, 4294901760
    %11188 = vmatprep.subr.mxu0 %v11187
    %v11189 = vand.u32 %v10299, 4294901760
    %11190 = vmatpush1.msra.mxu0 %v11189
    %v11191 = vand.u32 %v10304, 4294901760
    %11192 = vmatprep.subr.mxu0 %v11191
    %v11193 = vand.u32 %v10303, 4294901760
    %11194 = vmatpush1.msra.mxu0 %v11193
    %v11195 = vand.u32 %v10308, 4294901760
    %11196 = vmatprep.subr.mxu0 %v11195
    %v11197 = vand.u32 %v10307, 4294901760
    %11198 = vmatpush1.msra.mxu0 %v11197
    %v11199 = vand.u32 %v10312, 4294901760
    %11200 = vmatprep.subr.mxu0 %v11199
    %v11201 = vand.u32 %v10311, 4294901760
    %11202 = vmatpush1.msra.mxu0 %v11201
    %11203 = vmatprep.subr.mxu0 0.0
    %11204 = vmatpush1.msra.mxu0 0.0
    %11205 = vmatprep.subr.mxu0 0.0
    %11206 = vmatpush1.msra.mxu0 0.0
    %11207 = vmatprep.subr.mxu0 0.0
    %11208 = vmatpush1.msra.mxu0 0.0
    %11209 = vmatprep.subr.mxu0 0.0
    %11210 = vmatpush1.msra.mxu0 0.0
    %11211 = vmatprep.subr.mxu0 0.0
    %11212 = vmatpush1.msra.mxu0 0.0
    %11213 = vmatprep.subr.mxu0 0.0
    %11214 = vmatpush1.msra.mxu0 0.0
    %11215 = vmatprep.subr.mxu0 0.0
    %11216 = vmatpush1.msra.mxu0 0.0
    %11217 = vmatprep.subr.mxu0 0.0
    %11218 = vmatpush1.msra.mxu0 0.0
    %11219 = vmatprep.subr.mxu0 0.0
    %11220 = vmatpush1.msra.mxu0 0.0
    %11221 = vmatprep.subr.mxu0 0.0
    %11222 = vmatpush1.msra.mxu0 0.0
    %11223 = vmatprep.subr.mxu0 0.0
    %11224 = vmatpush1.msra.mxu0 0.0
    %11225 = vmatprep.subr.mxu0 0.0
    %11226 = vmatpush1.msra.mxu0 0.0
    %11227 = vmatprep.subr.mxu0 0.0
    %11228 = vmatpush1.msra.mxu0 0.0
    %11229 = vmatprep.subr.mxu0 0.0
    %11230 = vmatpush1.msra.mxu0 0.0
    %11231 = vmatprep.subr.mxu0 0.0
    %11232 = vmatpush1.msra.mxu0 0.0
    %11233 = vmatprep.subr.mxu0 0.0
    %11234 = vmatpush1.msra.mxu0 0.0
    %11235 = vmatprep.subr.mxu0 0.0
    %11236 = vmatpush1.msra.mxu0 0.0
    %11237 = vmatprep.subr.mxu0 0.0
    %11238 = vmatpush1.msra.mxu0 0.0
    %11239 = vmatprep.subr.mxu0 0.0
    %11240 = vmatpush1.msra.mxu0 0.0
    %11241 = vmatprep.subr.mxu0 0.0
    %11242 = vmatpush1.msra.mxu0 0.0
    %11243 = vmatprep.subr.mxu0 0.0
    %11244 = vmatpush1.msra.mxu0 0.0
    %11245 = vmatprep.subr.mxu0 0.0
    %11246 = vmatpush1.msra.mxu0 0.0
    %11247 = vmatprep.subr.mxu0 0.0
    %11248 = vmatpush1.msra.mxu0 0.0
    %11249 = vmatprep.subr.mxu0 0.0
    %11250 = vmatpush1.msra.mxu0 0.0
    %11251 = vmatprep.subr.mxu0 0.0
    %11252 = vmatpush1.msra.mxu0 0.0
    %11253 = vmatprep.subr.mxu0 0.0
    %11254 = vmatpush1.msra.mxu0 0.0
    %11255 = vmatprep.subr.mxu0 0.0
    %11256 = vmatpush1.msra.mxu0 0.0
    %11257 = vmatprep.mubr.f32.mxu0 0.0
    %v11258 = vand.u32 %v4669, 4294901760
    %v11259 = vsub.f32 %v4669, %v11258
    %v11260 = vand.u32 %v11259, 4294901760
    %11261 = vmatmul.mubr.f32.gmra.mrb[0].mxu0 %v11260
    %v11262 = vpop.f32.mrb[0].mxu0
    %v11263 = vadd.f32 %v11179, %v11262
    %v11264 = vpop.f32.mrb[0].mxu0
    %v11265 = vadd.f32 %v11181, %v11264
    %11266 = vdwg.mxu0
    %v11267 = vand.u32 %v10296, 4294901760
    %v11268 = vsub.f32 %v10296, %v11267
    %v11269 = vand.u32 %v11268, 4294901760
    %11270 = vmatprep.subr.mxu0 %v11269
    %v11271 = vand.u32 %v10295, 4294901760
    %v11272 = vsub.f32 %v10295, %v11271
    %v11273 = vand.u32 %v11272, 4294901760
    %11274 = vmatpush1.msra.mxu0 %v11273
    %v11275 = vand.u32 %v10300, 4294901760
    %v11276 = vsub.f32 %v10300, %v11275
    %v11277 = vand.u32 %v11276, 4294901760
    %11278 = vmatprep.subr.mxu0 %v11277
    %v11279 = vand.u32 %v10299, 4294901760
    %v11280 = vsub.f32 %v10299, %v11279
    %v11281 = vand.u32 %v11280, 4294901760
    %11282 = vmatpush1.msra.mxu0 %v11281
    %v11283 = vand.u32 %v10304, 4294901760
    %v11284 = vsub.f32 %v10304, %v11283
    %v11285 = vand.u32 %v11284, 4294901760
    %11286 = vmatprep.subr.mxu0 %v11285
    %v11287 = vand.u32 %v10303, 4294901760
    %v11288 = vsub.f32 %v10303, %v11287
    %v11289 = vand.u32 %v11288, 4294901760
    %11290 = vmatpush1.msra.mxu0 %v11289
    %v11291 = vand.u32 %v10308, 4294901760
    %v11292 = vsub.f32 %v10308, %v11291
    %v11293 = vand.u32 %v11292, 4294901760
    %11294 = vmatprep.subr.mxu0 %v11293
    %v11295 = vand.u32 %v10307, 4294901760
    %v11296 = vsub.f32 %v10307, %v11295
    %v11297 = vand.u32 %v11296, 4294901760
    %11298 = vmatpush1.msra.mxu0 %v11297
    %v11299 = vand.u32 %v10312, 4294901760
    %v11300 = vsub.f32 %v10312, %v11299
    %v11301 = vand.u32 %v11300, 4294901760
    %11302 = vmatprep.subr.mxu0 %v11301
    %v11303 = vand.u32 %v10311, 4294901760
    %v11304 = vsub.f32 %v10311, %v11303
    %v11305 = vand.u32 %v11304, 4294901760
    %11306 = vmatpush1.msra.mxu0 %v11305
    %11307 = vmatprep.subr.mxu0 0.0
    %11308 = vmatpush1.msra.mxu0 0.0
    %11309 = vmatprep.subr.mxu0 0.0
    %11310 = vmatpush1.msra.mxu0 0.0
    %11311 = vmatprep.subr.mxu0 0.0
    %11312 = vmatpush1.msra.mxu0 0.0
    %11313 = vmatprep.subr.mxu0 0.0
    %11314 = vmatpush1.msra.mxu0 0.0
    %11315 = vmatprep.subr.mxu0 0.0
    %11316 = vmatpush1.msra.mxu0 0.0
    %11317 = vmatprep.subr.mxu0 0.0
    %11318 = vmatpush1.msra.mxu0 0.0
    %11319 = vmatprep.subr.mxu0 0.0
    %11320 = vmatpush1.msra.mxu0 0.0
    %11321 = vmatprep.subr.mxu0 0.0
    %11322 = vmatpush1.msra.mxu0 0.0
    %11323 = vmatprep.subr.mxu0 0.0
    %11324 = vmatpush1.msra.mxu0 0.0
    %11325 = vmatprep.subr.mxu0 0.0
    %11326 = vmatpush1.msra.mxu0 0.0
    %11327 = vmatprep.subr.mxu0 0.0
    %11328 = vmatpush1.msra.mxu0 0.0
    %11329 = vmatprep.subr.mxu0 0.0
    %11330 = vmatpush1.msra.mxu0 0.0
    %11331 = vmatprep.subr.mxu0 0.0
    %11332 = vmatpush1.msra.mxu0 0.0
    %11333 = vmatprep.subr.mxu0 0.0
    %11334 = vmatpush1.msra.mxu0 0.0
    %11335 = vmatprep.subr.mxu0 0.0
    %11336 = vmatpush1.msra.mxu0 0.0
    %11337 = vmatprep.subr.mxu0 0.0
    %11338 = vmatpush1.msra.mxu0 0.0
    %11339 = vmatprep.subr.mxu0 0.0
    %11340 = vmatpush1.msra.mxu0 0.0
    %11341 = vmatprep.subr.mxu0 0.0
    %11342 = vmatpush1.msra.mxu0 0.0
    %11343 = vmatprep.subr.mxu0 0.0
    %11344 = vmatpush1.msra.mxu0 0.0
    %11345 = vmatprep.subr.mxu0 0.0
    %11346 = vmatpush1.msra.mxu0 0.0
    %11347 = vmatprep.subr.mxu0 0.0
    %11348 = vmatpush1.msra.mxu0 0.0
    %11349 = vmatprep.subr.mxu0 0.0
    %11350 = vmatpush1.msra.mxu0 0.0
    %11351 = vmatprep.subr.mxu0 0.0
    %11352 = vmatpush1.msra.mxu0 0.0
    %11353 = vmatprep.subr.mxu0 0.0
    %11354 = vmatpush1.msra.mxu0 0.0
    %11355 = vmatprep.subr.mxu0 0.0
    %11356 = vmatpush1.msra.mxu0 0.0
    %11357 = vmatprep.subr.mxu0 0.0
    %11358 = vmatpush1.msra.mxu0 0.0
    %11359 = vmatprep.subr.mxu0 0.0
    %11360 = vmatpush1.msra.mxu0 0.0
    %11361 = vmatprep.mubr.f32.mxu0 0.0
    %v11362 = vand.u32 %v4669, 4294901760
    %11363 = vmatmul.mubr.f32.gmra.mrb[0].mxu0 %v11362
    %v11364 = vpop.f32.mrb[0].mxu0
    %v11365 = vadd.f32 %v11263, %v11364
    %v11366 = vpop.f32.mrb[0].mxu0
    %v11367 = vadd.f32 %v11265, %v11366
    %11368 = vdwg.mxu0
    %v11369 = vand.u32 %v10296, 4294901760
    %11370 = vmatprep.subr.mxu0 %v11369
    %v11371 = vand.u32 %v10295, 4294901760
    %11372 = vmatpush1.msra.mxu0 %v11371
    %v11373 = vand.u32 %v10300, 4294901760
    %11374 = vmatprep.subr.mxu0 %v11373
    %v11375 = vand.u32 %v10299, 4294901760
    %11376 = vmatpush1.msra.mxu0 %v11375
    %v11377 = vand.u32 %v10304, 4294901760
    %11378 = vmatprep.subr.mxu0 %v11377
    %v11379 = vand.u32 %v10303, 4294901760
    %11380 = vmatpush1.msra.mxu0 %v11379
    %v11381 = vand.u32 %v10308, 4294901760
    %11382 = vmatprep.subr.mxu0 %v11381
    %v11383 = vand.u32 %v10307, 4294901760
    %11384 = vmatpush1.msra.mxu0 %v11383
    %v11385 = vand.u32 %v10312, 4294901760
    %11386 = vmatprep.subr.mxu0 %v11385
    %v11387 = vand.u32 %v10311, 4294901760
    %11388 = vmatpush1.msra.mxu0 %v11387
    %11389 = vmatprep.subr.mxu0 0.0
    %11390 = vmatpush1.msra.mxu0 0.0
    %11391 = vmatprep.subr.mxu0 0.0
    %11392 = vmatpush1.msra.mxu0 0.0
    %11393 = vmatprep.subr.mxu0 0.0
    %11394 = vmatpush1.msra.mxu0 0.0
    %11395 = vmatprep.subr.mxu0 0.0
    %11396 = vmatpush1.msra.mxu0 0.0
    %11397 = vmatprep.subr.mxu0 0.0
    %11398 = vmatpush1.msra.mxu0 0.0
    %11399 = vmatprep.subr.mxu0 0.0
    %11400 = vmatpush1.msra.mxu0 0.0
    %11401 = vmatprep.subr.mxu0 0.0
    %11402 = vmatpush1.msra.mxu0 0.0
    %11403 = vmatprep.subr.mxu0 0.0
    %11404 = vmatpush1.msra.mxu0 0.0
    %11405 = vmatprep.subr.mxu0 0.0
    %11406 = vmatpush1.msra.mxu0 0.0
    %11407 = vmatprep.subr.mxu0 0.0
    %11408 = vmatpush1.msra.mxu0 0.0
    %11409 = vmatprep.subr.mxu0 0.0
    %11410 = vmatpush1.msra.mxu0 0.0
    %11411 = vmatprep.subr.mxu0 0.0
    %11412 = vmatpush1.msra.mxu0 0.0
    %11413 = vmatprep.subr.mxu0 0.0
    %11414 = vmatpush1.msra.mxu0 0.0
    %11415 = vmatprep.subr.mxu0 0.0
    %11416 = vmatpush1.msra.mxu0 0.0
    %11417 = vmatprep.subr.mxu0 0.0
    %11418 = vmatpush1.msra.mxu0 0.0
    %11419 = vmatprep.subr.mxu0 0.0
    %11420 = vmatpush1.msra.mxu0 0.0
    %11421 = vmatprep.subr.mxu0 0.0
    %11422 = vmatpush1.msra.mxu0 0.0
    %11423 = vmatprep.subr.mxu0 0.0
    %11424 = vmatpush1.msra.mxu0 0.0
    %11425 = vmatprep.subr.mxu0 0.0
    %11426 = vmatpush1.msra.mxu0 0.0
    %11427 = vmatprep.subr.mxu0 0.0
    %11428 = vmatpush1.msra.mxu0 0.0
    %11429 = vmatprep.subr.mxu0 0.0
    %11430 = vmatpush1.msra.mxu0 0.0
    %11431 = vmatprep.subr.mxu0 0.0
    %11432 = vmatpush1.msra.mxu0 0.0
    %11433 = vmatprep.subr.mxu0 0.0
    %11434 = vmatpush1.msra.mxu0 0.0
    %11435 = vmatprep.subr.mxu0 0.0
    %11436 = vmatpush1.msra.mxu0 0.0
    %11437 = vmatprep.subr.mxu0 0.0
    %11438 = vmatpush1.msra.mxu0 0.0
    %11439 = vmatprep.subr.mxu0 0.0
    %11440 = vmatpush1.msra.mxu0 0.0
    %11441 = vmatprep.subr.mxu0 0.0
    %11442 = vmatpush1.msra.mxu0 0.0
    %11443 = vmatprep.mubr.f32.mxu0 0.0
    %v11444 = vand.u32 %v4669, 4294901760
    %11445 = vmatmul.mubr.f32.gmra.mrb[0].mxu0 %v11444
    %v11446 = vpop.f32.mrb[0].mxu0
    %v11447 = vadd.f32 %v11365, %v11446
    %v11448 = vpop.f32.mrb[0].mxu0
    %v11449 = vadd.f32 %v11367, %v11448
    %11450 = vdwg.mxu0
    %v11455 = vcombine.low %v10878, %v10880
    %v11456 = vcombine.low %v11447, %v11449
    %v11458 = vunpack.c.l.s4 1966171168
    %v11459 = vunpack.c.0.s8 %v11458
    %v11460 = vlaneseq
    %v11461 = vshrl.u32 %v11460, 7
    %v11462 = vsub.s32 %v11459, %v11461
    %v11463 = vrot.slane %v11455, %v11462
    %v11465 = vunpack.c.l.s4 1966171168
    %v11466 = vunpack.c.0.s8 %v11465
    %v11467 = vlaneseq
    %v11468 = vshrl.u32 %v11467, 7
    %v11469 = vsub.s32 %v11466, %v11468
    %v11470 = vrot.slane %v11456, %v11469
    %v11471 = vcombine.low %v11463, %v11470
    %v11473 = vunpack.c.l.s4 1966171168
    %v11474 = vunpack.c.0.s8 %v11473
    %v11475 = vlaneseq
    %v11476 = vshrl.u32 %v11475, 7
    %v11477 = vsub.s32 %v11474, %v11476
    %v11478 = vrot.slane %v11471, %v11477
    %s11480 = scalar_lea.vmem [#allocation3], 4
    %11481 = vst.msk [vmem:[%s11480] sm:$0xf] %vm5841, %v11478
    // Predicated region
    $region38: #{tpu_custom_call.1} parent=1 // pred_check
      _
    $region39: #{tpu_custom_call.1} parent=1 // pred_check_branch
      %11483 = sbr.rel (0) target = $region41
    $region40: #{tpu_custom_call.1} parent=1 // pred_region
      %s11485 = ssub.s32 128, 128
      %11486 = vsyncadd [#allocation4], %s11485
      %s11488 = sshll.u32 [#allocation3], 4
      %s11489 = int_to_ptr.vmem [resolvable:$true] %s11488
      %11491 = dma.vmem_to_hbm [thread:$0]  %s11489, 128, %s9, [#allocation4]
    $region41: #{tpu_custom_call.1} parent=1 // pred_fallthru
      _
    // Predicated region
    $region42: #{tpu_custom_call.1} parent=1 // pred_check
      _
    $region43: #{tpu_custom_call.1} parent=1 // pred_check_branch
      %11493 = sbr.rel (0) target = $region45
    $region44: #{tpu_custom_call.1} parent=1 // pred_region
      %11494 = dma.done [#allocation4], 128
    $region45: #{tpu_custom_call.1} parent=1 // pred_fallthru
      _
    %11495 = vsyncpa [#allocation4], 1

</llo_original>
